<compile_context>
chip_gen: v7x
topology: tpu7x:2x2x1
jax: 0.10.0
libtpu: 0.0.40
codegen_flags: <defaults>
</compile_context>

<pallas_src>
import functools

import jax
import jax.numpy as jnp
from jax import lax
from jax.experimental import pallas as pl
from jax.experimental.pallas import tpu as pltpu

LANE = 128  # TPU vreg lane width


# --------------------------------------------------------------------------
# small helpers (shared by kernel and reference)
# --------------------------------------------------------------------------
def _round_up(x, m):
    return (x + m - 1) // m * m


def _apply_act(y, act):
    if act == "hswish":
        return y * jnp.clip(y + 3.0, 0.0, 6.0) * (1.0 / 6.0)
    return jnp.clip(y, 0.0, 6.0)  # nn.ReLU6


def _sigmoid(x):
    return 1.0 / (1.0 + jnp.exp(-x))


def _pad_dim(a, axis, target):
    extra = target - a.shape[axis]
    if extra <= 0:
        return a
    widths = [(0, 0)] * a.ndim
    widths[axis] = (0, extra)
    return jnp.pad(a, widths)


def _pad_last2(w, ci_t, co_t):
    return _pad_dim(_pad_dim(w, -2, ci_t), -1, co_t)


def _vmem_limit_bytes():
    # ~100 MiB on v5e/v6e (128 MiB physical), ~51 MiB on v7x (64 MiB physical).
    try:
        cap = int(pltpu.get_tpu_info().vmem_capacity_bytes)
    except Exception:
        cap = 64 * 1024 * 1024
    return max(32 * 1024 * 1024, min(int(cap * 0.8), 100 * 1024 * 1024))


# --------------------------------------------------------------------------
# fused UIB kernel: one grid step per batch element
# --------------------------------------------------------------------------
def _uib_fused_kernel(*refs, H, W, Ho, Wo, Cin, Hc, Cop, K1, K2, stride,
                      has_expand, has_middle, use_se, use_residual,
                      use_layer_scale, act):
    refs = list(refs)
    x_ref = refs.pop(0)
    w_exp = refs.pop(0)
    if has_expand:
        s_exp, b_exp = refs.pop(0), refs.pop(0)
    w_sdw, s_sdw, b_sdw = refs.pop(0), refs.pop(0), refs.pop(0)
    if has_middle:
        w_mdw, s_mdw, b_mdw = refs.pop(0), refs.pop(0), refs.pop(0)
    if use_se:
        w_se1, w_se2 = refs.pop(0), refs.pop(0)
    w_proj, s_proj, b_proj = refs.pop(0), refs.pop(0), refs.pop(0)
    gamma = refs.pop(0) if use_layer_scale else None
    o_ref = refs.pop(0)
    hpad1 = refs.pop(0)
    hpad2 = refs.pop(0) if has_middle else None

    bf16 = jnp.bfloat16
    p1 = K1 // 2

    # ---- expand 1x1 (or identity channel-pad) + BN + act --------------------
    # x arrives with its true channel count; the matmul pads it to the lane
    # width.  Padded output lanes are exactly zero (zero-padded weight columns).
    xv = x_ref[0].reshape(H * W, Cin)                        # f32, (H*W, Cin)
    h = jnp.dot(xv.astype(bf16), w_exp[...],
                preferred_element_type=jnp.float32)          # (H*W, Hc)
    if has_expand:
        h = _apply_act(h * s_exp[...] + b_exp[...], act)

    def stage_padded(buf, val, rows, cols, p):
        """'same'-pad on-chip: zero only the halo, then write the interior."""
        Hp, Wp = rows + 2 * p, cols + 2 * p
        if p > 0:
            buf[0:p, :, :] = jnp.zeros((p, Wp, Hc), jnp.float32)
            buf[p + rows:Hp, :, :] = jnp.zeros((p, Wp, Hc), jnp.float32)
            buf[p:p + rows, 0:p, :] = jnp.zeros((rows, p, Hc), jnp.float32)
            buf[p:p + rows, p + cols:Wp, :] = jnp.zeros((rows, p, Hc), jnp.float32)
        buf[p:p + rows, p:p + cols, :] = val.reshape(rows, cols, Hc)

    def dw_conv(buf, w_ref, K, rows, cols, s):
        """KxK conv; taps read directly at the strided output positions and the
        contributions are accumulated as a traced value (no scratch round-trips)."""
        acc = None
        for dy in range(K):
            for dx in range(K):
                if s == 1:
                    patch = buf[dy:dy + rows, dx:dx + cols, :]
                else:
                    patch = buf[pl.ds(dy, rows, stride=s),
                                pl.ds(dx, cols, stride=s), :]
                contrib = jnp.dot(patch.reshape(rows * cols, Hc).astype(bf16),
                                  w_ref[dy, dx],
                                  preferred_element_type=jnp.float32)
                acc = contrib if acc is None else acc + contrib
        return acc

    # ---- start_dw KxK conv (possibly strided) + BN + act --------------------
    stage_padded(hpad1, h, H, W, p1)
    h = dw_conv(hpad1, w_sdw, K1, Ho, Wo, stride)            # (Ho*Wo, Hc)
    h = _apply_act(h * s_sdw[...] + b_sdw[...], act)

    # ---- middle_dw KxK conv + BN + act --------------------------------------
    if has_middle:
        p2 = K2 // 2
        stage_padded(hpad2, h, Ho, Wo, p2)
        h = dw_conv(hpad2, w_mdw, K2, Ho, Wo, 1)
        h = _apply_act(h * s_mdw[...] + b_mdw[...], act)

    # ---- squeeze-and-excite on the VMEM-resident hidden tensor --------------
    if use_se:
        pooled = jnp.mean(h, axis=0, keepdims=True)          # (1, Hc)
        z = jnp.maximum(
            jnp.dot(pooled, w_se1[...], preferred_element_type=jnp.float32), 0.0)
        g = _sigmoid(jnp.dot(z, w_se2[...], preferred_element_type=jnp.float32))
        h = h * g

    # ---- 1x1 projection + BN (+ residual) (* layer_scale) -------------------
    y = jnp.dot(h.astype(bf16), w_proj[...], preferred_element_type=jnp.float32)
    y = y * s_proj[...] + b_proj[...]
    if use_residual:
        if Cin == Cop:
            y = y + xv
        else:  # pad the (true-channel) residual to the lane-dense output width
            y = y + jnp.concatenate(
                [xv, jnp.zeros((H * W, Cop - Cin), jnp.float32)], axis=-1)
    if use_layer_scale:
        y = y * gamma[...]
    o_ref[0] = y.reshape(Ho, Wo, Cop)


# --------------------------------------------------------------------------
# UniversalInvertedBottleneck forward (Pallas), NHWC-native
# --------------------------------------------------------------------------
def uib_forward_nhwc(x_nhwc, params, cfg):
    cin, cout = cfg["in_channels"], cfg["out_channels"]
    K1, K2 = cfg["start_dw_kernel_size"], cfg["middle_dw_kernel_size"]
    stride, act = cfg["stride"], cfg["activation"]
    hidden = int(round(cin * cfg["expand_ratio"]))
    has_expand = cfg["expand_ratio"] != 1
    has_middle = K2 > 0
    use_se, use_ls = cfg["use_se"], cfg["use_layer_scale"]
    use_residual = (stride == 1) and (cin == cout)
    assert K1 % 2 == 1 and (K2 == 0 or K2 % 2 == 1), "odd dw kernel sizes assumed"

    N, H, W, _ = x_nhwc.shape
    Hc = _round_up(hidden, LANE)
    Cop = _round_up(cout, LANE)
    p1 = K1 // 2
    Ho = (H - 1) // stride + 1
    Wo = (W - 1) // stride + 1

    x = x_nhwc.astype(jnp.float32)                  # true channel count (no HBM pad)
    bf16 = jnp.bfloat16

    inputs = [x]
    in_specs = [pl.BlockSpec((1, H, W, cin), lambda n: (n, 0, 0, 0))]

    # Grid-invariant operands: whole-array resident in VMEM, single-buffered.
    vmem_spec = pl.BlockSpec(memory_space=pltpu.MemorySpace.VMEM)

    def add(arr):
        inputs.append(arr)
        in_specs.append(vmem_spec)

    if has_expand:
        p = params["expand"]
        add(_pad_dim(p["w"].reshape(cin, hidden), -1, Hc).astype(bf16))
        add(_pad_dim(p["scale"], -1, Hc))
        add(_pad_dim(p["shift"], -1, Hc))
    else:
        # identity "expand": lane-pads x with one tiny (K=cin) matmul; no BN/act.
        add(jnp.eye(cin, Hc, dtype=jnp.float32).astype(bf16))
    p = params["start_dw"]
    add(_pad_last2(p["w"], Hc, Hc).astype(bf16))
    add(_pad_dim(p["scale"], -1, Hc))
    add(_pad_dim(p["shift"], -1, Hc))
    if has_middle:
        p = params["middle_dw"]
        add(_pad_last2(p["w"], Hc, Hc).astype(bf16))
        add(_pad_dim(p["scale"], -1, Hc))
        add(_pad_dim(p["shift"], -1, Hc))
    if use_se:
        add(_pad_dim(params["se"]["w1"], -2, Hc))   # (Hc, cr)  f32, cr unpadded
        add(_pad_dim(params["se"]["w2"], -1, Hc))   # (cr, Hc)  f32
    p = params["proj"]
    add(_pad_last2(p["w"], Hc, Cop).astype(bf16))
    add(_pad_dim(p["scale"], -1, Cop))
    add(_pad_dim(p["shift"], -1, Cop))
    if use_ls:
        add(_pad_dim(params["gamma"], -1, Cop))

    scratch = [pltpu.VMEM((H + 2 * p1, W + 2 * p1, Hc), jnp.float32)]  # padded hidden
    if has_middle:
        p2 = K2 // 2
        scratch.append(pltpu.VMEM((Ho + 2 * p2, Wo + 2 * p2, Hc), jnp.float32))

    kernel = functools.partial(
        _uib_fused_kernel, H=H, W=W, Ho=Ho, Wo=Wo, Cin=cin, Hc=Hc, Cop=Cop,
        K1=K1, K2=K2, stride=stride, has_expand=has_expand,
        has_middle=has_middle, use_se=use_se, use_residual=use_residual,
        use_layer_scale=use_ls, act=act)

    out = pl.pallas_call(
        kernel,
        out_shape=jax.ShapeDtypeStruct((N, Ho, Wo, Cop), jnp.float32),
        grid=(N,),
        in_specs=in_specs,
        out_specs=pl.BlockSpec((1, Ho, Wo, Cop), lambda n: (n, 0, 0, 0)),
        scratch_shapes=scratch,
        compiler_params=pltpu.CompilerParams(
            dimension_semantics=("parallel",),
            vmem_limit_bytes=_vmem_limit_bytes()),
    )(*inputs)

    # Lane-dense stores inside the kernel; slice the valid channels for consumers.
    return out[..., :cout]


def uib_forward(x_nchw, params, cfg):
    # NCHW adapter for the PyTorch-layout interface.  Inside a network, keep
    # activations NHWC and call uib_forward_nhwc directly to avoid these two
    # extra HBM layout passes per block.
    x = jnp.transpose(x_nchw, (0, 2, 3, 1))
    y = uib_forward_nhwc(x, params, cfg)
    return jnp.transpose(y, (0, 3, 1, 2))


# --------------------------------------------------------------------------
# deterministic parameter init (synthetic; BN folded to inference-mode affine)
# --------------------------------------------------------------------------
def init_params(key, cfg):
    cin, cout = cfg["in_channels"], cfg["out_channels"]
    hidden = int(round(cin * cfg["expand_ratio"]))
    eps = 1e-5
    keys = iter(jax.random.split(key, 64))

    def bn(c):
        g = 1.0 + 0.1 * jax.random.normal(next(keys), (c,), jnp.float32)
        b = 0.05 * jax.random.normal(next(keys), (c,), jnp.float32)
        m = 0.02 * jax.random.normal(next(keys), (c,), jnp.float32)
        v = 1.0 + 0.1 * jnp.abs(jax.random.normal(next(keys), (c,), jnp.float32))
        scale = g / jnp.sqrt(v + eps)
        shift = b - m * scale
        return scale.reshape(1, c), shift.reshape(1, c)

    def conv_w(k, ci, co):
        return 0.2 * jax.random.normal(next(keys), (k, k, ci, co), jnp.float32)

    params = {}
    if cfg["expand_ratio"] != 1:
        s, sh = bn(hidden)
        params["expand"] = {"w": conv_w(1, cin, hidden), "scale": s, "shift": sh}
    s, sh = bn(hidden)
    params["start_dw"] = {"w": conv_w(cfg["start_dw_kernel_size"], hidden, hidden),
                          "scale": s, "shift": sh}
    if cfg["middle_dw_kernel_size"] > 0:
        s, sh = bn(hidden)
        params["middle_dw"] = {"w": conv_w(cfg["middle_dw_kernel_size"], hidden, hidden),
                               "scale": s, "shift": sh}
    if cfg["use_se"]:
        cr = hidden // 4
        params["se"] = {
            "w1": 0.3 * jax.random.normal(next(keys), (hidden, cr), jnp.float32),
            "w2": 0.3 * jax.random.normal(next(keys), (cr, hidden), jnp.float32),
        }
    s, sh = bn(cout)
    params["proj"] = {"w": 0.2 * jax.random.normal(next(keys), (hidden, cout), jnp.float32),
                      "scale": s, "shift": sh}
    if cfg["use_layer_scale"]:
        params["gamma"] = 1e-5 * jnp.ones((1, cout), jnp.float32)
    return params


# --------------------------------------------------------------------------
# pure-JAX reference (correctness check, f32)
# --------------------------------------------------------------------------
def ref_forward(x_nchw, params, cfg):
    x = jnp.transpose(x_nchw, (0, 2, 3, 1)).astype(jnp.float32)

    def conv(h, w, stride):
        pad = w.shape[0] // 2
        return lax.conv_general_dilated(
            h, w, (stride, stride), [(pad, pad), (pad, pad)],
            dimension_numbers=("NHWC", "HWIO", "NHWC"))

    def block(h, p, stride):
        h = conv(h, p["w"], stride)
        h = h * p["scale"].reshape(1, 1, 1, -1) + p["shift"].reshape(1, 1, 1, -1)
        return _apply_act(h, cfg["activation"])

    h = x
    if cfg["expand_ratio"] != 1:
        h = block(h, params["expand"], 1)
    h = block(h, params["start_dw"], cfg["stride"])
    if cfg["middle_dw_kernel_size"] > 0:
        h = block(h, params["middle_dw"], 1)
    if cfg["use_se"]:
        pooled = jnp.mean(h, axis=(1, 2))
        g = _sigmoid(jnp.maximum(pooled @ params["se"]["w1"], 0.0) @ params["se"]["w2"])
        h = h * g[:, None, None, :]
    y = jnp.einsum("nhwc,co->nhwo", h, params["proj"]["w"])
    y = y * params["proj"]["scale"].reshape(1, 1, 1, -1) \
          + params["proj"]["shift"].reshape(1, 1, 1, -1)
    if cfg["stride"] == 1 and cfg["in_channels"] == cfg["out_channels"]:
        y = y + x
    if cfg["use_layer_scale"]:
        y = y * params["gamma"].reshape(1, 1, 1, -1)
    return jnp.transpose(y, (0, 3, 1, 2))


# --------------------------------------------------------------------------
if __name__ == "__main__":
    cfgs = [
        # residual + SE + layer_scale + hswish, stride 1, middle conv
        dict(in_channels=4, out_channels=4, start_dw_kernel_size=3,
             middle_dw_kernel_size=3, stride=1, expand_ratio=4,
             use_se=True, use_layer_scale=True, activation="hswish"),
        # strided (exercises the strided-tap path), no middle/SE/LS/residual
        dict(in_channels=4, out_channels=8, start_dw_kernel_size=3,
             middle_dw_kernel_size=0, stride=2, expand_ratio=2,
             use_se=False, use_layer_scale=False, activation="relu"),
        # expand_ratio=1 (identity channel-pad path), 5x5 start_dw, residual
        dict(in_channels=8, out_channels=8, start_dw_kernel_size=5,
             middle_dw_kernel_size=0, stride=1, expand_ratio=1,
             use_se=False, use_layer_scale=False, activation="relu"),
    ]

    key = jax.random.PRNGKey(0)
    for idx, cfg in enumerate(cfgs):
        kx, kp, key = jax.random.split(key, 3)
        x = jax.random.normal(kx, (2, cfg["in_channels"], 16, 16), jnp.float32)
        params = init_params(kp, cfg)

        out = jax.block_until_ready(uib_forward(x, params, cfg))
        ref = jax.block_until_ready(ref_forward(x, params, cfg))

        assert out.shape == ref.shape, (out.shape, ref.shape)
        err = float(jnp.max(jnp.abs(out - ref)))
        scale = float(jnp.max(jnp.abs(ref))) + 1e-12
        # bf16 MXU operands with f32 accumulation: allow ~2% of output scale
        if err > 2e-2 * scale:
            raise AssertionError(
                f"cfg{idx}: mismatch vs reference, max abs err={err:.3e}, "
                f"output scale={scale:.3e}")
    print("KERNEL_OK")
</pallas_src>

<mosaic_0001>
module attributes {stable_mosaic.version = 11 : i64} {
  func.func @_uib_fused_kernel(%arg0: i32, %arg1: memref<1x16x16x4xf32, #tpu.memory_space<vmem>>, %arg2: memref<4x128xbf16, #tpu.memory_space<vmem>>, %arg3: memref<1x128xf32, #tpu.memory_space<vmem>>, %arg4: memref<1x128xf32, #tpu.memory_space<vmem>>, %arg5: memref<3x3x128x128xbf16, #tpu.memory_space<vmem>>, %arg6: memref<1x128xf32, #tpu.memory_space<vmem>>, %arg7: memref<1x128xf32, #tpu.memory_space<vmem>>, %arg8: memref<3x3x128x128xbf16, #tpu.memory_space<vmem>>, %arg9: memref<1x128xf32, #tpu.memory_space<vmem>>, %arg10: memref<1x128xf32, #tpu.memory_space<vmem>>, %arg11: memref<128x4xf32, #tpu.memory_space<vmem>>, %arg12: memref<4x128xf32, #tpu.memory_space<vmem>>, %arg13: memref<128x128xbf16, #tpu.memory_space<vmem>>, %arg14: memref<1x128xf32, #tpu.memory_space<vmem>>, %arg15: memref<1x128xf32, #tpu.memory_space<vmem>>, %arg16: memref<1x128xf32, #tpu.memory_space<vmem>>, %arg17: memref<1x16x16x128xf32, #tpu.memory_space<vmem>>, %arg18: memref<18x18x128xf32, #tpu.memory_space<vmem>>, %arg19: memref<18x18x128xf32, #tpu.memory_space<vmem>>) attributes {dimension_semantics = [#tpu.dimension_semantics<parallel>], iteration_bounds = array<i64: 2>, scalar_prefetch = 0 : i64, scratch_operands = 2 : i64, tpu.core_type = #tpu.core_type<tc>, window_params = [{transform_indices = @transform_0, window_bounds = array<i64: 1, 16, 16, 4>}, {pipeline_mode = #tpu.pipeline_mode<synchronous>, transform_indices = @transform_1, window_bounds = array<i64: 4, 128>}, {pipeline_mode = #tpu.pipeline_mode<synchronous>, transform_indices = @transform_2, window_bounds = array<i64: 1, 128>}, {pipeline_mode = #tpu.pipeline_mode<synchronous>, transform_indices = @transform_3, window_bounds = array<i64: 1, 128>}, {pipeline_mode = #tpu.pipeline_mode<synchronous>, transform_indices = @transform_4, window_bounds = array<i64: 3, 3, 128, 128>}, {pipeline_mode = #tpu.pipeline_mode<synchronous>, transform_indices = @transform_5, window_bounds = array<i64: 1, 128>}, {pipeline_mode = #tpu.pipeline_mode<synchronous>, transform_indices = @transform_6, window_bounds = array<i64: 1, 128>}, {pipeline_mode = #tpu.pipeline_mode<synchronous>, transform_indices = @transform_7, window_bounds = array<i64: 3, 3, 128, 128>}, {pipeline_mode = #tpu.pipeline_mode<synchronous>, transform_indices = @transform_8, window_bounds = array<i64: 1, 128>}, {pipeline_mode = #tpu.pipeline_mode<synchronous>, transform_indices = @transform_9, window_bounds = array<i64: 1, 128>}, {pipeline_mode = #tpu.pipeline_mode<synchronous>, transform_indices = @transform_10, window_bounds = array<i64: 128, 4>}, {pipeline_mode = #tpu.pipeline_mode<synchronous>, transform_indices = @transform_11, window_bounds = array<i64: 4, 128>}, {pipeline_mode = #tpu.pipeline_mode<synchronous>, transform_indices = @transform_12, window_bounds = array<i64: 128, 128>}, {pipeline_mode = #tpu.pipeline_mode<synchronous>, transform_indices = @transform_13, window_bounds = array<i64: 1, 128>}, {pipeline_mode = #tpu.pipeline_mode<synchronous>, transform_indices = @transform_14, window_bounds = array<i64: 1, 128>}, {pipeline_mode = #tpu.pipeline_mode<synchronous>, transform_indices = @transform_15, window_bounds = array<i64: 1, 128>}, {transform_indices = @transform_16, window_bounds = array<i64: 1, 16, 16, 128>}]} {
    %c0 = arith.constant 0 : index
    %c0_0 = arith.constant 0 : index
    %c0_1 = arith.constant 0 : index
    %c0_2 = arith.constant 0 : index
    %0 = vector.load %arg1[%c0, %c0_0, %c0_1, %c0_2] : memref<1x16x16x4xf32, #tpu.memory_space<vmem>>, vector<1x16x16x4xf32>
    %1 = vector.shape_cast %0 : vector<1x16x16x4xf32> to vector<16x16x4xf32>
    %2 = vector.shape_cast %1 : vector<16x16x4xf32> to vector<256x4xf32>
    %3 = arith.truncf %2 : vector<256x4xf32> to vector<256x4xbf16>
    %c0_3 = arith.constant 0 : index
    %c0_4 = arith.constant 0 : index
    %4 = vector.load %arg2[%c0_3, %c0_4] : memref<4x128xbf16, #tpu.memory_space<vmem>>, vector<4x128xbf16>
    %cst = arith.constant dense<0.000000e+00> : vector<256x128xf32>
    %5 = tpu.matmul %3, %4, %cst {dimension_numbers = #tpu.dot_dimension_numbers<[1], [0], [0], [1], [0, 0, 1, 1], [], []>} : vector<256x4xbf16>, vector<4x128xbf16>, vector<256x128xf32> -> vector<256x128xf32>
    %c0_5 = arith.constant 0 : index
    %c0_6 = arith.constant 0 : index
    %6 = vector.load %arg3[%c0_5, %c0_6] : memref<1x128xf32, #tpu.memory_space<vmem>>, vector<1x128xf32>
    %7 = vector.broadcast %6 : vector<1x128xf32> to vector<256x128xf32>
    %8 = arith.mulf %5, %7 : vector<256x128xf32>
    %c0_7 = arith.constant 0 : index
    %c0_8 = arith.constant 0 : index
    %9 = vector.load %arg4[%c0_7, %c0_8] : memref<1x128xf32, #tpu.memory_space<vmem>>, vector<1x128xf32>
    %10 = vector.broadcast %9 : vector<1x128xf32> to vector<256x128xf32>
    %11 = arith.addf %8, %10 : vector<256x128xf32>
    %cst_9 = arith.constant 3.000000e+00 : f32
    %12 = vector.broadcast %cst_9 : f32 to vector<256x128xf32>
    %13 = arith.addf %11, %12 : vector<256x128xf32>
    %cst_10 = arith.constant 0.000000e+00 : f32
    %cst_11 = arith.constant 6.000000e+00 : f32
    %14 = vector.broadcast %cst_10 : f32 to vector<256x128xf32>
    %15 = arith.maximumf %14, %13 : vector<256x128xf32>
    %16 = vector.broadcast %cst_11 : f32 to vector<256x128xf32>
    %17 = arith.minimumf %16, %15 : vector<256x128xf32>
    %18 = arith.mulf %11, %17 : vector<256x128xf32>
    %cst_12 = arith.constant 0.166666672 : f32
    %19 = vector.broadcast %cst_12 : f32 to vector<256x128xf32>
    %20 = arith.mulf %18, %19 : vector<256x128xf32>
    %cst_13 = arith.constant 0.000000e+00 : f32
    %21 = vector.broadcast %cst_13 : f32 to vector<1x18x128xf32>
    %c0_14 = arith.constant 0 : index
    %c0_15 = arith.constant 0 : index
    %c0_16 = arith.constant 0 : index
    %22 = vector.load %arg18[%c0_14, %c0_15, %c0_16] : memref<18x18x128xf32, #tpu.memory_space<vmem>>, vector<1x18x128xf32>
    tpu.vector_store %arg18[%c0_14, %c0_15, %c0_16], %21 {strides = array<i32>} : memref<18x18x128xf32, #tpu.memory_space<vmem>>, vector<1x18x128xf32>,
    %cst_17 = arith.constant 0.000000e+00 : f32
    %23 = vector.broadcast %cst_17 : f32 to vector<1x18x128xf32>
    %c17 = arith.constant 17 : index
    %c0_18 = arith.constant 0 : index
    %c0_19 = arith.constant 0 : index
    %24 = vector.load %arg18[%c17, %c0_18, %c0_19] : memref<18x18x128xf32, #tpu.memory_space<vmem>>, vector<1x18x128xf32>
    tpu.vector_store %arg18[%c17, %c0_18, %c0_19], %23 {strides = array<i32>} : memref<18x18x128xf32, #tpu.memory_space<vmem>>, vector<1x18x128xf32>,
    %cst_20 = arith.constant 0.000000e+00 : f32
    %25 = vector.broadcast %cst_20 : f32 to vector<16x1x128xf32>
    %c1 = arith.constant 1 : index
    %c0_21 = arith.constant 0 : index
    %c0_22 = arith.constant 0 : index
    %26 = vector.load %arg18[%c1, %c0_21, %c0_22] : memref<18x18x128xf32, #tpu.memory_space<vmem>>, vector<16x1x128xf32>
    tpu.vector_store %arg18[%c1, %c0_21, %c0_22], %25 {strides = array<i32>} : memref<18x18x128xf32, #tpu.memory_space<vmem>>, vector<16x1x128xf32>,
    %cst_23 = arith.constant 0.000000e+00 : f32
    %27 = vector.broadcast %cst_23 : f32 to vector<16x1x128xf32>
    %c1_24 = arith.constant 1 : index
    %c17_25 = arith.constant 17 : index
    %c0_26 = arith.constant 0 : index
    %28 = vector.load %arg18[%c1_24, %c17_25, %c0_26] : memref<18x18x128xf32, #tpu.memory_space<vmem>>, vector<16x1x128xf32>
    tpu.vector_store %arg18[%c1_24, %c17_25, %c0_26], %27 {strides = array<i32>} : memref<18x18x128xf32, #tpu.memory_space<vmem>>, vector<16x1x128xf32>,
    %29 = vector.shape_cast %20 : vector<256x128xf32> to vector<16x16x128xf32>
    %c1_27 = arith.constant 1 : index
    %c1_28 = arith.constant 1 : index
    %c0_29 = arith.constant 0 : index
    %30 = vector.load %arg18[%c1_27, %c1_28, %c0_29] : memref<18x18x128xf32, #tpu.memory_space<vmem>>, vector<16x16x128xf32>
    tpu.vector_store %arg18[%c1_27, %c1_28, %c0_29], %29 {strides = array<i32>} : memref<18x18x128xf32, #tpu.memory_space<vmem>>, vector<16x16x128xf32>,
    %c0_30 = arith.constant 0 : index
    %c0_31 = arith.constant 0 : index
    %c0_32 = arith.constant 0 : index
    %31 = vector.load %arg18[%c0_30, %c0_31, %c0_32] : memref<18x18x128xf32, #tpu.memory_space<vmem>>, vector<16x16x128xf32>
    %32 = vector.shape_cast %31 : vector<16x16x128xf32> to vector<256x128xf32>
    %33 = arith.truncf %32 : vector<256x128xf32> to vector<256x128xbf16>
    %c0_33 = arith.constant 0 : index
    %c0_34 = arith.constant 0 : index
    %c0_35 = arith.constant 0 : index
    %c0_36 = arith.constant 0 : index
    %34 = vector.load %arg5[%c0_33, %c0_34, %c0_35, %c0_36] : memref<3x3x128x128xbf16, #tpu.memory_space<vmem>>, vector<1x1x128x128xbf16>
    %35 = vector.shape_cast %34 : vector<1x1x128x128xbf16> to vector<128x128xbf16>
    %cst_37 = arith.constant dense<0.000000e+00> : vector<256x128xf32>
    %36 = tpu.matmul %33, %35, %cst_37 {dimension_numbers = #tpu.dot_dimension_numbers<[1], [0], [0], [1], [0, 0, 1, 1], [], []>} : vector<256x128xbf16>, vector<128x128xbf16>, vector<256x128xf32> -> vector<256x128xf32>
    %c0_38 = arith.constant 0 : index
    %c1_39 = arith.constant 1 : index
    %c0_40 = arith.constant 0 : index
    %37 = vector.load %arg18[%c0_38, %c1_39, %c0_40] : memref<18x18x128xf32, #tpu.memory_space<vmem>>, vector<16x16x128xf32>
    %38 = vector.shape_cast %37 : vector<16x16x128xf32> to vector<256x128xf32>
    %39 = arith.truncf %38 : vector<256x128xf32> to vector<256x128xbf16>
    %c0_41 = arith.constant 0 : index
    %c1_42 = arith.constant 1 : index
    %c0_43 = arith.constant 0 : index
    %c0_44 = arith.constant 0 : index
    %40 = vector.load %arg5[%c0_41, %c1_42, %c0_43, %c0_44] : memref<3x3x128x128xbf16, #tpu.memory_space<vmem>>, vector<1x1x128x128xbf16>
    %41 = vector.shape_cast %40 : vector<1x1x128x128xbf16> to vector<128x128xbf16>
    %cst_45 = arith.constant dense<0.000000e+00> : vector<256x128xf32>
    %42 = tpu.matmul %39, %41, %cst_45 {dimension_numbers = #tpu.dot_dimension_numbers<[1], [0], [0], [1], [0, 0, 1, 1], [], []>} : vector<256x128xbf16>, vector<128x128xbf16>, vector<256x128xf32> -> vector<256x128xf32>
    %43 = arith.addf %36, %42 : vector<256x128xf32>
    %c0_46 = arith.constant 0 : index
    %c2 = arith.constant 2 : index
    %c0_47 = arith.constant 0 : index
    %44 = vector.load %arg18[%c0_46, %c2, %c0_47] : memref<18x18x128xf32, #tpu.memory_space<vmem>>, vector<16x16x128xf32>
    %45 = vector.shape_cast %44 : vector<16x16x128xf32> to vector<256x128xf32>
    %46 = arith.truncf %45 : vector<256x128xf32> to vector<256x128xbf16>
    %c0_48 = arith.constant 0 : index
    %c2_49 = arith.constant 2 : index
    %c0_50 = arith.constant 0 : index
    %c0_51 = arith.constant 0 : index
    %47 = vector.load %arg5[%c0_48, %c2_49, %c0_50, %c0_51] : memref<3x3x128x128xbf16, #tpu.memory_space<vmem>>, vector<1x1x128x128xbf16>
    %48 = vector.shape_cast %47 : vector<1x1x128x128xbf16> to vector<128x128xbf16>
    %cst_52 = arith.constant dense<0.000000e+00> : vector<256x128xf32>
    %49 = tpu.matmul %46, %48, %cst_52 {dimension_numbers = #tpu.dot_dimension_numbers<[1], [0], [0], [1], [0, 0, 1, 1], [], []>} : vector<256x128xbf16>, vector<128x128xbf16>, vector<256x128xf32> -> vector<256x128xf32>
    %50 = arith.addf %43, %49 : vector<256x128xf32>
    %c1_53 = arith.constant 1 : index
    %c0_54 = arith.constant 0 : index
    %c0_55 = arith.constant 0 : index
    %51 = vector.load %arg18[%c1_53, %c0_54, %c0_55] : memref<18x18x128xf32, #tpu.memory_space<vmem>>, vector<16x16x128xf32>
    %52 = vector.shape_cast %51 : vector<16x16x128xf32> to vector<256x128xf32>
    %53 = arith.truncf %52 : vector<256x128xf32> to vector<256x128xbf16>
    %c1_56 = arith.constant 1 : index
    %c0_57 = arith.constant 0 : index
    %c0_58 = arith.constant 0 : index
    %c0_59 = arith.constant 0 : index
    %54 = vector.load %arg5[%c1_56, %c0_57, %c0_58, %c0_59] : memref<3x3x128x128xbf16, #tpu.memory_space<vmem>>, vector<1x1x128x128xbf16>
    %55 = vector.shape_cast %54 : vector<1x1x128x128xbf16> to vector<128x128xbf16>
    %cst_60 = arith.constant dense<0.000000e+00> : vector<256x128xf32>
    %56 = tpu.matmul %53, %55, %cst_60 {dimension_numbers = #tpu.dot_dimension_numbers<[1], [0], [0], [1], [0, 0, 1, 1], [], []>} : vector<256x128xbf16>, vector<128x128xbf16>, vector<256x128xf32> -> vector<256x128xf32>
    %57 = arith.addf %50, %56 : vector<256x128xf32>
    %c1_61 = arith.constant 1 : index
    %c1_62 = arith.constant 1 : index
    %c0_63 = arith.constant 0 : index
    %58 = vector.load %arg18[%c1_61, %c1_62, %c0_63] : memref<18x18x128xf32, #tpu.memory_space<vmem>>, vector<16x16x128xf32>
    %59 = vector.shape_cast %58 : vector<16x16x128xf32> to vector<256x128xf32>
    %60 = arith.truncf %59 : vector<256x128xf32> to vector<256x128xbf16>
    %c1_64 = arith.constant 1 : index
    %c1_65 = arith.constant 1 : index
    %c0_66 = arith.constant 0 : index
    %c0_67 = arith.constant 0 : index
    %61 = vector.load %arg5[%c1_64, %c1_65, %c0_66, %c0_67] : memref<3x3x128x128xbf16, #tpu.memory_space<vmem>>, vector<1x1x128x128xbf16>
    %62 = vector.shape_cast %61 : vector<1x1x128x128xbf16> to vector<128x128xbf16>
    %cst_68 = arith.constant dense<0.000000e+00> : vector<256x128xf32>
    %63 = tpu.matmul %60, %62, %cst_68 {dimension_numbers = #tpu.dot_dimension_numbers<[1], [0], [0], [1], [0, 0, 1, 1], [], []>} : vector<256x128xbf16>, vector<128x128xbf16>, vector<256x128xf32> -> vector<256x128xf32>
    %64 = arith.addf %57, %63 : vector<256x128xf32>
    %c1_69 = arith.constant 1 : index
    %c2_70 = arith.constant 2 : index
    %c0_71 = arith.constant 0 : index
    %65 = vector.load %arg18[%c1_69, %c2_70, %c0_71] : memref<18x18x128xf32, #tpu.memory_space<vmem>>, vector<16x16x128xf32>
    %66 = vector.shape_cast %65 : vector<16x16x128xf32> to vector<256x128xf32>
    %67 = arith.truncf %66 : vector<256x128xf32> to vector<256x128xbf16>
    %c1_72 = arith.constant 1 : index
    %c2_73 = arith.constant 2 : index
    %c0_74 = arith.constant 0 : index
    %c0_75 = arith.constant 0 : index
    %68 = vector.load %arg5[%c1_72, %c2_73, %c0_74, %c0_75] : memref<3x3x128x128xbf16, #tpu.memory_space<vmem>>, vector<1x1x128x128xbf16>
    %69 = vector.shape_cast %68 : vector<1x1x128x128xbf16> to vector<128x128xbf16>
    %cst_76 = arith.constant dense<0.000000e+00> : vector<256x128xf32>
    %70 = tpu.matmul %67, %69, %cst_76 {dimension_numbers = #tpu.dot_dimension_numbers<[1], [0], [0], [1], [0, 0, 1, 1], [], []>} : vector<256x128xbf16>, vector<128x128xbf16>, vector<256x128xf32> -> vector<256x128xf32>
    %71 = arith.addf %64, %70 : vector<256x128xf32>
    %c2_77 = arith.constant 2 : index
    %c0_78 = arith.constant 0 : index
    %c0_79 = arith.constant 0 : index
    %72 = vector.load %arg18[%c2_77, %c0_78, %c0_79] : memref<18x18x128xf32, #tpu.memory_space<vmem>>, vector<16x16x128xf32>
    %73 = vector.shape_cast %72 : vector<16x16x128xf32> to vector<256x128xf32>
    %74 = arith.truncf %73 : vector<256x128xf32> to vector<256x128xbf16>
    %c2_80 = arith.constant 2 : index
    %c0_81 = arith.constant 0 : index
    %c0_82 = arith.constant 0 : index
    %c0_83 = arith.constant 0 : index
    %75 = vector.load %arg5[%c2_80, %c0_81, %c0_82, %c0_83] : memref<3x3x128x128xbf16, #tpu.memory_space<vmem>>, vector<1x1x128x128xbf16>
    %76 = vector.shape_cast %75 : vector<1x1x128x128xbf16> to vector<128x128xbf16>
    %cst_84 = arith.constant dense<0.000000e+00> : vector<256x128xf32>
    %77 = tpu.matmul %74, %76, %cst_84 {dimension_numbers = #tpu.dot_dimension_numbers<[1], [0], [0], [1], [0, 0, 1, 1], [], []>} : vector<256x128xbf16>, vector<128x128xbf16>, vector<256x128xf32> -> vector<256x128xf32>
    %78 = arith.addf %71, %77 : vector<256x128xf32>
    %c2_85 = arith.constant 2 : index
    %c1_86 = arith.constant 1 : index
    %c0_87 = arith.constant 0 : index
    %79 = vector.load %arg18[%c2_85, %c1_86, %c0_87] : memref<18x18x128xf32, #tpu.memory_space<vmem>>, vector<16x16x128xf32>
    %80 = vector.shape_cast %79 : vector<16x16x128xf32> to vector<256x128xf32>
    %81 = arith.truncf %80 : vector<256x128xf32> to vector<256x128xbf16>
    %c2_88 = arith.constant 2 : index
    %c1_89 = arith.constant 1 : index
    %c0_90 = arith.constant 0 : index
    %c0_91 = arith.constant 0 : index
    %82 = vector.load %arg5[%c2_88, %c1_89, %c0_90, %c0_91] : memref<3x3x128x128xbf16, #tpu.memory_space<vmem>>, vector<1x1x128x128xbf16>
    %83 = vector.shape_cast %82 : vector<1x1x128x128xbf16> to vector<128x128xbf16>
    %cst_92 = arith.constant dense<0.000000e+00> : vector<256x128xf32>
    %84 = tpu.matmul %81, %83, %cst_92 {dimension_numbers = #tpu.dot_dimension_numbers<[1], [0], [0], [1], [0, 0, 1, 1], [], []>} : vector<256x128xbf16>, vector<128x128xbf16>, vector<256x128xf32> -> vector<256x128xf32>
    %85 = arith.addf %78, %84 : vector<256x128xf32>
    %c2_93 = arith.constant 2 : index
    %c2_94 = arith.constant 2 : index
    %c0_95 = arith.constant 0 : index
    %86 = vector.load %arg18[%c2_93, %c2_94, %c0_95] : memref<18x18x128xf32, #tpu.memory_space<vmem>>, vector<16x16x128xf32>
    %87 = vector.shape_cast %86 : vector<16x16x128xf32> to vector<256x128xf32>
    %88 = arith.truncf %87 : vector<256x128xf32> to vector<256x128xbf16>
    %c2_96 = arith.constant 2 : index
    %c2_97 = arith.constant 2 : index
    %c0_98 = arith.constant 0 : index
    %c0_99 = arith.constant 0 : index
    %89 = vector.load %arg5[%c2_96, %c2_97, %c0_98, %c0_99] : memref<3x3x128x128xbf16, #tpu.memory_space<vmem>>, vector<1x1x128x128xbf16>
    %90 = vector.shape_cast %89 : vector<1x1x128x128xbf16> to vector<128x128xbf16>
    %cst_100 = arith.constant dense<0.000000e+00> : vector<256x128xf32>
    %91 = tpu.matmul %88, %90, %cst_100 {dimension_numbers = #tpu.dot_dimension_numbers<[1], [0], [0], [1], [0, 0, 1, 1], [], []>} : vector<256x128xbf16>, vector<128x128xbf16>, vector<256x128xf32> -> vector<256x128xf32>
    %92 = arith.addf %85, %91 : vector<256x128xf32>
    %c0_101 = arith.constant 0 : index
    %c0_102 = arith.constant 0 : index
    %93 = vector.load %arg6[%c0_101, %c0_102] : memref<1x128xf32, #tpu.memory_space<vmem>>, vector<1x128xf32>
    %94 = vector.broadcast %93 : vector<1x128xf32> to vector<256x128xf32>
    %95 = arith.mulf %92, %94 : vector<256x128xf32>
    %c0_103 = arith.constant 0 : index
    %c0_104 = arith.constant 0 : index
    %96 = vector.load %arg7[%c0_103, %c0_104] : memref<1x128xf32, #tpu.memory_space<vmem>>, vector<1x128xf32>
    %97 = vector.broadcast %96 : vector<1x128xf32> to vector<256x128xf32>
    %98 = arith.addf %95, %97 : vector<256x128xf32>
    %cst_105 = arith.constant 3.000000e+00 : f32
    %99 = vector.broadcast %cst_105 : f32 to vector<256x128xf32>
    %100 = arith.addf %98, %99 : vector<256x128xf32>
    %cst_106 = arith.constant 0.000000e+00 : f32
    %cst_107 = arith.constant 6.000000e+00 : f32
    %101 = vector.broadcast %cst_106 : f32 to vector<256x128xf32>
    %102 = arith.maximumf %101, %100 : vector<256x128xf32>
    %103 = vector.broadcast %cst_107 : f32 to vector<256x128xf32>
    %104 = arith.minimumf %103, %102 : vector<256x128xf32>
    %105 = arith.mulf %98, %104 : vector<256x128xf32>
    %cst_108 = arith.constant 0.166666672 : f32
    %106 = vector.broadcast %cst_108 : f32 to vector<256x128xf32>
    %107 = arith.mulf %105, %106 : vector<256x128xf32>
    %cst_109 = arith.constant 0.000000e+00 : f32
    %108 = vector.broadcast %cst_109 : f32 to vector<1x18x128xf32>
    %c0_110 = arith.constant 0 : index
    %c0_111 = arith.constant 0 : index
    %c0_112 = arith.constant 0 : index
    %109 = vector.load %arg19[%c0_110, %c0_111, %c0_112] : memref<18x18x128xf32, #tpu.memory_space<vmem>>, vector<1x18x128xf32>
    tpu.vector_store %arg19[%c0_110, %c0_111, %c0_112], %108 {strides = array<i32>} : memref<18x18x128xf32, #tpu.memory_space<vmem>>, vector<1x18x128xf32>,
    %cst_113 = arith.constant 0.000000e+00 : f32
    %110 = vector.broadcast %cst_113 : f32 to vector<1x18x128xf32>
    %c17_114 = arith.constant 17 : index
    %c0_115 = arith.constant 0 : index
    %c0_116 = arith.constant 0 : index
    %111 = vector.load %arg19[%c17_114, %c0_115, %c0_116] : memref<18x18x128xf32, #tpu.memory_space<vmem>>, vector<1x18x128xf32>
    tpu.vector_store %arg19[%c17_114, %c0_115, %c0_116], %110 {strides = array<i32>} : memref<18x18x128xf32, #tpu.memory_space<vmem>>, vector<1x18x128xf32>,
    %cst_117 = arith.constant 0.000000e+00 : f32
    %112 = vector.broadcast %cst_117 : f32 to vector<16x1x128xf32>
    %c1_118 = arith.constant 1 : index
    %c0_119 = arith.constant 0 : index
    %c0_120 = arith.constant 0 : index
    %113 = vector.load %arg19[%c1_118, %c0_119, %c0_120] : memref<18x18x128xf32, #tpu.memory_space<vmem>>, vector<16x1x128xf32>
    tpu.vector_store %arg19[%c1_118, %c0_119, %c0_120], %112 {strides = array<i32>} : memref<18x18x128xf32, #tpu.memory_space<vmem>>, vector<16x1x128xf32>,
    %cst_121 = arith.constant 0.000000e+00 : f32
    %114 = vector.broadcast %cst_121 : f32 to vector<16x1x128xf32>
    %c1_122 = arith.constant 1 : index
    %c17_123 = arith.constant 17 : index
    %c0_124 = arith.constant 0 : index
    %115 = vector.load %arg19[%c1_122, %c17_123, %c0_124] : memref<18x18x128xf32, #tpu.memory_space<vmem>>, vector<16x1x128xf32>
    tpu.vector_store %arg19[%c1_122, %c17_123, %c0_124], %114 {strides = array<i32>} : memref<18x18x128xf32, #tpu.memory_space<vmem>>, vector<16x1x128xf32>,
    %116 = vector.shape_cast %107 : vector<256x128xf32> to vector<16x16x128xf32>
    %c1_125 = arith.constant 1 : index
    %c1_126 = arith.constant 1 : index
    %c0_127 = arith.constant 0 : index
    %117 = vector.load %arg19[%c1_125, %c1_126, %c0_127] : memref<18x18x128xf32, #tpu.memory_space<vmem>>, vector<16x16x128xf32>
    tpu.vector_store %arg19[%c1_125, %c1_126, %c0_127], %116 {strides = array<i32>} : memref<18x18x128xf32, #tpu.memory_space<vmem>>, vector<16x16x128xf32>,
    %c0_128 = arith.constant 0 : index
    %c0_129 = arith.constant 0 : index
    %c0_130 = arith.constant 0 : index
    %118 = vector.load %arg19[%c0_128, %c0_129, %c0_130] : memref<18x18x128xf32, #tpu.memory_space<vmem>>, vector<16x16x128xf32>
    %119 = vector.shape_cast %118 : vector<16x16x128xf32> to vector<256x128xf32>
    %120 = arith.truncf %119 : vector<256x128xf32> to vector<256x128xbf16>
    %c0_131 = arith.constant 0 : index
    %c0_132 = arith.constant 0 : index
    %c0_133 = arith.constant 0 : index
    %c0_134 = arith.constant 0 : index
    %121 = vector.load %arg8[%c0_131, %c0_132, %c0_133, %c0_134] : memref<3x3x128x128xbf16, #tpu.memory_space<vmem>>, vector<1x1x128x128xbf16>
    %122 = vector.shape_cast %121 : vector<1x1x128x128xbf16> to vector<128x128xbf16>
    %cst_135 = arith.constant dense<0.000000e+00> : vector<256x128xf32>
    %123 = tpu.matmul %120, %122, %cst_135 {dimension_numbers = #tpu.dot_dimension_numbers<[1], [0], [0], [1], [0, 0, 1, 1], [], []>} : vector<256x128xbf16>, vector<128x128xbf16>, vector<256x128xf32> -> vector<256x128xf32>
    %c0_136 = arith.constant 0 : index
    %c1_137 = arith.constant 1 : index
    %c0_138 = arith.constant 0 : index
    %124 = vector.load %arg19[%c0_136, %c1_137, %c0_138] : memref<18x18x128xf32, #tpu.memory_space<vmem>>, vector<16x16x128xf32>
    %125 = vector.shape_cast %124 : vector<16x16x128xf32> to vector<256x128xf32>
    %126 = arith.truncf %125 : vector<256x128xf32> to vector<256x128xbf16>
    %c0_139 = arith.constant 0 : index
    %c1_140 = arith.constant 1 : index
    %c0_141 = arith.constant 0 : index
    %c0_142 = arith.constant 0 : index
    %127 = vector.load %arg8[%c0_139, %c1_140, %c0_141, %c0_142] : memref<3x3x128x128xbf16, #tpu.memory_space<vmem>>, vector<1x1x128x128xbf16>
    %128 = vector.shape_cast %127 : vector<1x1x128x128xbf16> to vector<128x128xbf16>
    %cst_143 = arith.constant dense<0.000000e+00> : vector<256x128xf32>
    %129 = tpu.matmul %126, %128, %cst_143 {dimension_numbers = #tpu.dot_dimension_numbers<[1], [0], [0], [1], [0, 0, 1, 1], [], []>} : vector<256x128xbf16>, vector<128x128xbf16>, vector<256x128xf32> -> vector<256x128xf32>
    %130 = arith.addf %123, %129 : vector<256x128xf32>
    %c0_144 = arith.constant 0 : index
    %c2_145 = arith.constant 2 : index
    %c0_146 = arith.constant 0 : index
    %131 = vector.load %arg19[%c0_144, %c2_145, %c0_146] : memref<18x18x128xf32, #tpu.memory_space<vmem>>, vector<16x16x128xf32>
    %132 = vector.shape_cast %131 : vector<16x16x128xf32> to vector<256x128xf32>
    %133 = arith.truncf %132 : vector<256x128xf32> to vector<256x128xbf16>
    %c0_147 = arith.constant 0 : index
    %c2_148 = arith.constant 2 : index
    %c0_149 = arith.constant 0 : index
    %c0_150 = arith.constant 0 : index
    %134 = vector.load %arg8[%c0_147, %c2_148, %c0_149, %c0_150] : memref<3x3x128x128xbf16, #tpu.memory_space<vmem>>, vector<1x1x128x128xbf16>
    %135 = vector.shape_cast %134 : vector<1x1x128x128xbf16> to vector<128x128xbf16>
    %cst_151 = arith.constant dense<0.000000e+00> : vector<256x128xf32>
    %136 = tpu.matmul %133, %135, %cst_151 {dimension_numbers = #tpu.dot_dimension_numbers<[1], [0], [0], [1], [0, 0, 1, 1], [], []>} : vector<256x128xbf16>, vector<128x128xbf16>, vector<256x128xf32> -> vector<256x128xf32>
    %137 = arith.addf %130, %136 : vector<256x128xf32>
    %c1_152 = arith.constant 1 : index
    %c0_153 = arith.constant 0 : index
    %c0_154 = arith.constant 0 : index
    %138 = vector.load %arg19[%c1_152, %c0_153, %c0_154] : memref<18x18x128xf32, #tpu.memory_space<vmem>>, vector<16x16x128xf32>
    %139 = vector.shape_cast %138 : vector<16x16x128xf32> to vector<256x128xf32>
    %140 = arith.truncf %139 : vector<256x128xf32> to vector<256x128xbf16>
    %c1_155 = arith.constant 1 : index
    %c0_156 = arith.constant 0 : index
    %c0_157 = arith.constant 0 : index
    %c0_158 = arith.constant 0 : index
    %141 = vector.load %arg8[%c1_155, %c0_156, %c0_157, %c0_158] : memref<3x3x128x128xbf16, #tpu.memory_space<vmem>>, vector<1x1x128x128xbf16>
    %142 = vector.shape_cast %141 : vector<1x1x128x128xbf16> to vector<128x128xbf16>
    %cst_159 = arith.constant dense<0.000000e+00> : vector<256x128xf32>
    %143 = tpu.matmul %140, %142, %cst_159 {dimension_numbers = #tpu.dot_dimension_numbers<[1], [0], [0], [1], [0, 0, 1, 1], [], []>} : vector<256x128xbf16>, vector<128x128xbf16>, vector<256x128xf32> -> vector<256x128xf32>
    %144 = arith.addf %137, %143 : vector<256x128xf32>
    %c1_160 = arith.constant 1 : index
    %c1_161 = arith.constant 1 : index
    %c0_162 = arith.constant 0 : index
    %145 = vector.load %arg19[%c1_160, %c1_161, %c0_162] : memref<18x18x128xf32, #tpu.memory_space<vmem>>, vector<16x16x128xf32>
    %146 = vector.shape_cast %145 : vector<16x16x128xf32> to vector<256x128xf32>
    %147 = arith.truncf %146 : vector<256x128xf32> to vector<256x128xbf16>
    %c1_163 = arith.constant 1 : index
    %c1_164 = arith.constant 1 : index
    %c0_165 = arith.constant 0 : index
    %c0_166 = arith.constant 0 : index
    %148 = vector.load %arg8[%c1_163, %c1_164, %c0_165, %c0_166] : memref<3x3x128x128xbf16, #tpu.memory_space<vmem>>, vector<1x1x128x128xbf16>
    %149 = vector.shape_cast %148 : vector<1x1x128x128xbf16> to vector<128x128xbf16>
    %cst_167 = arith.constant dense<0.000000e+00> : vector<256x128xf32>
    %150 = tpu.matmul %147, %149, %cst_167 {dimension_numbers = #tpu.dot_dimension_numbers<[1], [0], [0], [1], [0, 0, 1, 1], [], []>} : vector<256x128xbf16>, vector<128x128xbf16>, vector<256x128xf32> -> vector<256x128xf32>
    %151 = arith.addf %144, %150 : vector<256x128xf32>
    %c1_168 = arith.constant 1 : index
    %c2_169 = arith.constant 2 : index
    %c0_170 = arith.constant 0 : index
    %152 = vector.load %arg19[%c1_168, %c2_169, %c0_170] : memref<18x18x128xf32, #tpu.memory_space<vmem>>, vector<16x16x128xf32>
    %153 = vector.shape_cast %152 : vector<16x16x128xf32> to vector<256x128xf32>
    %154 = arith.truncf %153 : vector<256x128xf32> to vector<256x128xbf16>
    %c1_171 = arith.constant 1 : index
    %c2_172 = arith.constant 2 : index
    %c0_173 = arith.constant 0 : index
    %c0_174 = arith.constant 0 : index
    %155 = vector.load %arg8[%c1_171, %c2_172, %c0_173, %c0_174] : memref<3x3x128x128xbf16, #tpu.memory_space<vmem>>, vector<1x1x128x128xbf16>
    %156 = vector.shape_cast %155 : vector<1x1x128x128xbf16> to vector<128x128xbf16>
    %cst_175 = arith.constant dense<0.000000e+00> : vector<256x128xf32>
    %157 = tpu.matmul %154, %156, %cst_175 {dimension_numbers = #tpu.dot_dimension_numbers<[1], [0], [0], [1], [0, 0, 1, 1], [], []>} : vector<256x128xbf16>, vector<128x128xbf16>, vector<256x128xf32> -> vector<256x128xf32>
    %158 = arith.addf %151, %157 : vector<256x128xf32>
    %c2_176 = arith.constant 2 : index
    %c0_177 = arith.constant 0 : index
    %c0_178 = arith.constant 0 : index
    %159 = vector.load %arg19[%c2_176, %c0_177, %c0_178] : memref<18x18x128xf32, #tpu.memory_space<vmem>>, vector<16x16x128xf32>
    %160 = vector.shape_cast %159 : vector<16x16x128xf32> to vector<256x128xf32>
    %161 = arith.truncf %160 : vector<256x128xf32> to vector<256x128xbf16>
    %c2_179 = arith.constant 2 : index
    %c0_180 = arith.constant 0 : index
    %c0_181 = arith.constant 0 : index
    %c0_182 = arith.constant 0 : index
    %162 = vector.load %arg8[%c2_179, %c0_180, %c0_181, %c0_182] : memref<3x3x128x128xbf16, #tpu.memory_space<vmem>>, vector<1x1x128x128xbf16>
    %163 = vector.shape_cast %162 : vector<1x1x128x128xbf16> to vector<128x128xbf16>
    %cst_183 = arith.constant dense<0.000000e+00> : vector<256x128xf32>
    %164 = tpu.matmul %161, %163, %cst_183 {dimension_numbers = #tpu.dot_dimension_numbers<[1], [0], [0], [1], [0, 0, 1, 1], [], []>} : vector<256x128xbf16>, vector<128x128xbf16>, vector<256x128xf32> -> vector<256x128xf32>
    %165 = arith.addf %158, %164 : vector<256x128xf32>
    %c2_184 = arith.constant 2 : index
    %c1_185 = arith.constant 1 : index
    %c0_186 = arith.constant 0 : index
    %166 = vector.load %arg19[%c2_184, %c1_185, %c0_186] : memref<18x18x128xf32, #tpu.memory_space<vmem>>, vector<16x16x128xf32>
    %167 = vector.shape_cast %166 : vector<16x16x128xf32> to vector<256x128xf32>
    %168 = arith.truncf %167 : vector<256x128xf32> to vector<256x128xbf16>
    %c2_187 = arith.constant 2 : index
    %c1_188 = arith.constant 1 : index
    %c0_189 = arith.constant 0 : index
    %c0_190 = arith.constant 0 : index
    %169 = vector.load %arg8[%c2_187, %c1_188, %c0_189, %c0_190] : memref<3x3x128x128xbf16, #tpu.memory_space<vmem>>, vector<1x1x128x128xbf16>
    %170 = vector.shape_cast %169 : vector<1x1x128x128xbf16> to vector<128x128xbf16>
    %cst_191 = arith.constant dense<0.000000e+00> : vector<256x128xf32>
    %171 = tpu.matmul %168, %170, %cst_191 {dimension_numbers = #tpu.dot_dimension_numbers<[1], [0], [0], [1], [0, 0, 1, 1], [], []>} : vector<256x128xbf16>, vector<128x128xbf16>, vector<256x128xf32> -> vector<256x128xf32>
    %172 = arith.addf %165, %171 : vector<256x128xf32>
    %c2_192 = arith.constant 2 : index
    %c2_193 = arith.constant 2 : index
    %c0_194 = arith.constant 0 : index
    %173 = vector.load %arg19[%c2_192, %c2_193, %c0_194] : memref<18x18x128xf32, #tpu.memory_space<vmem>>, vector<16x16x128xf32>
    %174 = vector.shape_cast %173 : vector<16x16x128xf32> to vector<256x128xf32>
    %175 = arith.truncf %174 : vector<256x128xf32> to vector<256x128xbf16>
    %c2_195 = arith.constant 2 : index
    %c2_196 = arith.constant 2 : index
    %c0_197 = arith.constant 0 : index
    %c0_198 = arith.constant 0 : index
    %176 = vector.load %arg8[%c2_195, %c2_196, %c0_197, %c0_198] : memref<3x3x128x128xbf16, #tpu.memory_space<vmem>>, vector<1x1x128x128xbf16>
    %177 = vector.shape_cast %176 : vector<1x1x128x128xbf16> to vector<128x128xbf16>
    %cst_199 = arith.constant dense<0.000000e+00> : vector<256x128xf32>
    %178 = tpu.matmul %175, %177, %cst_199 {dimension_numbers = #tpu.dot_dimension_numbers<[1], [0], [0], [1], [0, 0, 1, 1], [], []>} : vector<256x128xbf16>, vector<128x128xbf16>, vector<256x128xf32> -> vector<256x128xf32>
    %179 = arith.addf %172, %178 : vector<256x128xf32>
    %c0_200 = arith.constant 0 : index
    %c0_201 = arith.constant 0 : index
    %180 = vector.load %arg9[%c0_200, %c0_201] : memref<1x128xf32, #tpu.memory_space<vmem>>, vector<1x128xf32>
    %181 = vector.broadcast %180 : vector<1x128xf32> to vector<256x128xf32>
    %182 = arith.mulf %179, %181 : vector<256x128xf32>
    %c0_202 = arith.constant 0 : index
    %c0_203 = arith.constant 0 : index
    %183 = vector.load %arg10[%c0_202, %c0_203] : memref<1x128xf32, #tpu.memory_space<vmem>>, vector<1x128xf32>
    %184 = vector.broadcast %183 : vector<1x128xf32> to vector<256x128xf32>
    %185 = arith.addf %182, %184 : vector<256x128xf32>
    %cst_204 = arith.constant 3.000000e+00 : f32
    %186 = vector.broadcast %cst_204 : f32 to vector<256x128xf32>
    %187 = arith.addf %185, %186 : vector<256x128xf32>
    %cst_205 = arith.constant 0.000000e+00 : f32
    %cst_206 = arith.constant 6.000000e+00 : f32
    %188 = vector.broadcast %cst_205 : f32 to vector<256x128xf32>
    %189 = arith.maximumf %188, %187 : vector<256x128xf32>
    %190 = vector.broadcast %cst_206 : f32 to vector<256x128xf32>
    %191 = arith.minimumf %190, %189 : vector<256x128xf32>
    %192 = arith.mulf %185, %191 : vector<256x128xf32>
    %cst_207 = arith.constant 0.166666672 : f32
    %193 = vector.broadcast %cst_207 : f32 to vector<256x128xf32>
    %194 = arith.mulf %192, %193 : vector<256x128xf32>
    %cst_208 = arith.constant dense<0.000000e+00> : vector<128xf32>
    %195 = vector.multi_reduction <add>, %194, %cst_208 [0] : vector<256x128xf32> to vector<128xf32>
    %196 = vector.shape_cast %195 : vector<128xf32> to vector<1x128xf32>
    %cst_209 = arith.constant 2.560000e+02 : f32
    %197 = vector.broadcast %cst_209 : f32 to vector<1x128xf32>
    %198 = arith.divf %196, %197 : vector<1x128xf32>
    %c0_210 = arith.constant 0 : index
    %c0_211 = arith.constant 0 : index
    %199 = vector.load %arg11[%c0_210, %c0_211] : memref<128x4xf32, #tpu.memory_space<vmem>>, vector<128x4xf32>
    %cst_212 = arith.constant dense<0.000000e+00> : vector<1x4xf32>
    %200 = tpu.matmul %198, %199, %cst_212 {dimension_numbers = #tpu.dot_dimension_numbers<[1], [0], [0], [1], [0, 0, 1, 1], [], []>} : vector<1x128xf32>, vector<128x4xf32>, vector<1x4xf32> -> vector<1x4xf32>
    %cst_213 = arith.constant 0.000000e+00 : f32
    %201 = vector.broadcast %cst_213 : f32 to vector<1x4xf32>
    %202 = arith.maximumf %200, %201 : vector<1x4xf32>
    %c0_214 = arith.constant 0 : index
    %c0_215 = arith.constant 0 : index
    %203 = vector.load %arg12[%c0_214, %c0_215] : memref<4x128xf32, #tpu.memory_space<vmem>>, vector<4x128xf32>
    %cst_216 = arith.constant dense<0.000000e+00> : vector<1x128xf32>
    %204 = tpu.matmul %202, %203, %cst_216 {dimension_numbers = #tpu.dot_dimension_numbers<[1], [0], [0], [1], [0, 0, 1, 1], [], []>} : vector<1x4xf32>, vector<4x128xf32>, vector<1x128xf32> -> vector<1x128xf32>
    %cst_217 = arith.constant 0.000000e+00 : f32
    %205 = vector.broadcast %cst_217 : f32 to vector<1x128xf32>
    %206 = arith.subf %205, %204 : vector<1x128xf32>
    %207 = math.exp %206 : vector<1x128xf32>
    %cst_218 = arith.constant 1.000000e+00 : f32
    %208 = vector.broadcast %cst_218 : f32 to vector<1x128xf32>
    %209 = arith.addf %208, %207 : vector<1x128xf32>
    %cst_219 = arith.constant 1.000000e+00 : f32
    %210 = vector.broadcast %cst_219 : f32 to vector<1x128xf32>
    %211 = arith.divf %210, %209 : vector<1x128xf32>
    %212 = vector.broadcast %211 : vector<1x128xf32> to vector<256x128xf32>
    %213 = arith.mulf %194, %212 : vector<256x128xf32>
    %214 = arith.truncf %213 : vector<256x128xf32> to vector<256x128xbf16>
    %c0_220 = arith.constant 0 : index
    %c0_221 = arith.constant 0 : index
    %215 = vector.load %arg13[%c0_220, %c0_221] : memref<128x128xbf16, #tpu.memory_space<vmem>>, vector<128x128xbf16>
    %cst_222 = arith.constant dense<0.000000e+00> : vector<256x128xf32>
    %216 = tpu.matmul %214, %215, %cst_222 {dimension_numbers = #tpu.dot_dimension_numbers<[1], [0], [0], [1], [0, 0, 1, 1], [], []>} : vector<256x128xbf16>, vector<128x128xbf16>, vector<256x128xf32> -> vector<256x128xf32>
    %c0_223 = arith.constant 0 : index
    %c0_224 = arith.constant 0 : index
    %217 = vector.load %arg14[%c0_223, %c0_224] : memref<1x128xf32, #tpu.memory_space<vmem>>, vector<1x128xf32>
    %218 = vector.broadcast %217 : vector<1x128xf32> to vector<256x128xf32>
    %219 = arith.mulf %216, %218 : vector<256x128xf32>
    %c0_225 = arith.constant 0 : index
    %c0_226 = arith.constant 0 : index
    %220 = vector.load %arg15[%c0_225, %c0_226] : memref<1x128xf32, #tpu.memory_space<vmem>>, vector<1x128xf32>
    %221 = vector.broadcast %220 : vector<1x128xf32> to vector<256x128xf32>
    %222 = arith.addf %219, %221 : vector<256x128xf32>
    %cst_227 = arith.constant 0.000000e+00 : f32
    %223 = vector.broadcast %cst_227 : f32 to vector<256x124xf32>
    %224 = tpu.concatenate %2, %223 in 1 : vector<256x4xf32>, vector<256x124xf32> -> vector<256x128xf32>
    %225 = arith.addf %222, %224 : vector<256x128xf32>
    %c0_228 = arith.constant 0 : index
    %c0_229 = arith.constant 0 : index
    %226 = vector.load %arg16[%c0_228, %c0_229] : memref<1x128xf32, #tpu.memory_space<vmem>>, vector<1x128xf32>
    %227 = vector.broadcast %226 : vector<1x128xf32> to vector<256x128xf32>
    %228 = arith.mulf %225, %227 : vector<256x128xf32>
    %229 = vector.shape_cast %228 : vector<256x128xf32> to vector<16x16x128xf32>
    %c0_230 = arith.constant 0 : index
    %c0_231 = arith.constant 0 : index
    %c0_232 = arith.constant 0 : index
    %c0_233 = arith.constant 0 : index
    %230 = vector.load %arg17[%c0_230, %c0_231, %c0_232, %c0_233] : memref<1x16x16x128xf32, #tpu.memory_space<vmem>>, vector<1x16x16x128xf32>
    %231 = vector.shape_cast %230 : vector<1x16x16x128xf32> to vector<16x16x128xf32>
    %232 = vector.shape_cast %229 : vector<16x16x128xf32> to vector<1x16x16x128xf32>
    tpu.vector_store %arg17[%c0_230, %c0_231, %c0_232, %c0_233], %232 {strides = array<i32>} : memref<1x16x16x128xf32, #tpu.memory_space<vmem>>, vector<1x16x16x128xf32>,
    return
  }
  func.func @transform_0(%arg0: i32) -> (i32, i32, i32, i32) {
    %c0_i32 = arith.constant 0 : i32
    %c0_i32_0 = arith.constant 0 : i32
    %c0_i32_1 = arith.constant 0 : i32
    %c0_i32_2 = arith.constant 0 : i32
    return %arg0, %c0_i32, %c0_i32_0, %c0_i32_1 : i32, i32, i32, i32
  }
  func.func @transform_1(%arg0: i32) -> (i32, i32) {
    %c0_i32 = arith.constant 0 : i32
    %c0_i32_0 = arith.constant 0 : i32
    %c0_i32_1 = arith.constant 0 : i32
    return %c0_i32, %c0_i32_0 : i32, i32
  }
  func.func @transform_2(%arg0: i32) -> (i32, i32) {
    %c0_i32 = arith.constant 0 : i32
    %c0_i32_0 = arith.constant 0 : i32
    %c0_i32_1 = arith.constant 0 : i32
    return %c0_i32, %c0_i32_0 : i32, i32
  }
  func.func @transform_3(%arg0: i32) -> (i32, i32) {
    %c0_i32 = arith.constant 0 : i32
    %c0_i32_0 = arith.constant 0 : i32
    %c0_i32_1 = arith.constant 0 : i32
    return %c0_i32, %c0_i32_0 : i32, i32
  }
  func.func @transform_4(%arg0: i32) -> (i32, i32, i32, i32) {
    %c0_i32 = arith.constant 0 : i32
    %c0_i32_0 = arith.constant 0 : i32
    %c0_i32_1 = arith.constant 0 : i32
    %c0_i32_2 = arith.constant 0 : i32
    %c0_i32_3 = arith.constant 0 : i32
    return %c0_i32, %c0_i32_0, %c0_i32_1, %c0_i32_2 : i32, i32, i32, i32
  }
  func.func @transform_5(%arg0: i32) -> (i32, i32) {
    %c0_i32 = arith.constant 0 : i32
    %c0_i32_0 = arith.constant 0 : i32
    %c0_i32_1 = arith.constant 0 : i32
    return %c0_i32, %c0_i32_0 : i32, i32
  }
  func.func @transform_6(%arg0: i32) -> (i32, i32) {
    %c0_i32 = arith.constant 0 : i32
    %c0_i32_0 = arith.constant 0 : i32
    %c0_i32_1 = arith.constant 0 : i32
    return %c0_i32, %c0_i32_0 : i32, i32
  }
  func.func @transform_7(%arg0: i32) -> (i32, i32, i32, i32) {
    %c0_i32 = arith.constant 0 : i32
    %c0_i32_0 = arith.constant 0 : i32
    %c0_i32_1 = arith.constant 0 : i32
    %c0_i32_2 = arith.constant 0 : i32
    %c0_i32_3 = arith.constant 0 : i32
    return %c0_i32, %c0_i32_0, %c0_i32_1, %c0_i32_2 : i32, i32, i32, i32
  }
  func.func @transform_8(%arg0: i32) -> (i32, i32) {
    %c0_i32 = arith.constant 0 : i32
    %c0_i32_0 = arith.constant 0 : i32
    %c0_i32_1 = arith.constant 0 : i32
    return %c0_i32, %c0_i32_0 : i32, i32
  }
  func.func @transform_9(%arg0: i32) -> (i32, i32) {
    %c0_i32 = arith.constant 0 : i32
    %c0_i32_0 = arith.constant 0 : i32
    %c0_i32_1 = arith.constant 0 : i32
    return %c0_i32, %c0_i32_0 : i32, i32
  }
  func.func @transform_10(%arg0: i32) -> (i32, i32) {
    %c0_i32 = arith.constant 0 : i32
    %c0_i32_0 = arith.constant 0 : i32
    %c0_i32_1 = arith.constant 0 : i32
    return %c0_i32, %c0_i32_0 : i32, i32
  }
  func.func @transform_11(%arg0: i32) -> (i32, i32) {
    %c0_i32 = arith.constant 0 : i32
    %c0_i32_0 = arith.constant 0 : i32
    %c0_i32_1 = arith.constant 0 : i32
    return %c0_i32, %c0_i32_0 : i32, i32
  }
  func.func @transform_12(%arg0: i32) -> (i32, i32) {
    %c0_i32 = arith.constant 0 : i32
    %c0_i32_0 = arith.constant 0 : i32
    %c0_i32_1 = arith.constant 0 : i32
    return %c0_i32, %c0_i32_0 : i32, i32
  }
  func.func @transform_13(%arg0: i32) -> (i32, i32) {
    %c0_i32 = arith.constant 0 : i32
    %c0_i32_0 = arith.constant 0 : i32
    %c0_i32_1 = arith.constant 0 : i32
    return %c0_i32, %c0_i32_0 : i32, i32
  }
  func.func @transform_14(%arg0: i32) -> (i32, i32) {
    %c0_i32 = arith.constant 0 : i32
    %c0_i32_0 = arith.constant 0 : i32
    %c0_i32_1 = arith.constant 0 : i32
    return %c0_i32, %c0_i32_0 : i32, i32
  }
  func.func @transform_15(%arg0: i32) -> (i32, i32) {
    %c0_i32 = arith.constant 0 : i32
    %c0_i32_0 = arith.constant 0 : i32
    %c0_i32_1 = arith.constant 0 : i32
    return %c0_i32, %c0_i32_0 : i32, i32
  }
  func.func @transform_16(%arg0: i32) -> (i32, i32, i32, i32) {
    %c0_i32 = arith.constant 0 : i32
    %c0_i32_0 = arith.constant 0 : i32
    %c0_i32_1 = arith.constant 0 : i32
    %c0_i32_2 = arith.constant 0 : i32
    return %arg0, %c0_i32, %c0_i32_0, %c0_i32_1 : i32, i32, i32, i32
  }
}

</mosaic_0001>

<llo_original>
// kernel: tpu_custom_call.1
$region0: #{tpu_custom_call.1}
  #allocation0 [shape = 'u32[]', space=smem, size = 0x4, offset = 0x4, fixed_abs, tag = 'smem constant byte address 0x4 - core index']
  #allocation1 [shape = 'u32[144,128]{1,0:T(1,128)}', space=vmem, size = 0x12000, scoped, tag = 'internal scratch']
  #allocation2 [shape = 'f32[18,18,128]{2,1,0:T(8,128)}', space=vmem, size = 0x36000, scoped, tag = 'scratch operand']
  #allocation3 [shape = 'f32[18,18,128]{2,1,0:T(8,128)}', space=vmem, size = 0x36000, scoped, tag = 'scratch operand']
  %s0 = inlined_call_operand.vmem [shape: f32[2,16,16,4], index: 0, kind: input, shape index: {}]
  %s1 = inlined_call_operand.vmem [shape: bf16[4,128], index: 1, kind: input, shape index: {}]
  %s2 = inlined_call_operand.vmem [shape: f32[1,128], index: 2, kind: input, shape index: {}]
  %s3 = inlined_call_operand.vmem [shape: f32[1,128], index: 3, kind: input, shape index: {}]
  %s4 = inlined_call_operand.vmem [shape: bf16[3,3,128,128], index: 4, kind: input, shape index: {}]
  %s5 = inlined_call_operand.vmem [shape: f32[1,128], index: 5, kind: input, shape index: {}]
  %s6 = inlined_call_operand.vmem [shape: f32[1,128], index: 6, kind: input, shape index: {}]
  %s7 = inlined_call_operand.hbm [shape: bf16[3,3,128,128], index: 7, kind: input, shape index: {}]
  %s8 = inlined_call_operand.vmem [shape: f32[1,128], index: 8, kind: input, shape index: {}]
  %s9 = inlined_call_operand.vmem [shape: f32[1,128], index: 9, kind: input, shape index: {}]
  %s10 = inlined_call_operand.vmem [shape: f32[128,4], index: 10, kind: input, shape index: {}]
  %s11 = inlined_call_operand.vmem [shape: f32[4,128], index: 11, kind: input, shape index: {}]
  %s12 = inlined_call_operand.vmem [shape: bf16[128,128], index: 12, kind: input, shape index: {}]
  %s13 = inlined_call_operand.vmem [shape: f32[1,128], index: 13, kind: input, shape index: {}]
  %s14 = inlined_call_operand.vmem [shape: f32[1,128], index: 14, kind: input, shape index: {}]
  %s15 = inlined_call_operand.vmem [shape: f32[1,128], index: 15, kind: input, shape index: {}]
  %s16 = inlined_call_operand.hbm [shape: f32[2,16,16,128], index: 16, kind: output, shape index: {}]
  %s17 = sld [smem:[#allocation0]]
  $region101: #{tpu_custom_call.1} parent=0
    _
  %s19 = ssub.s32 1, %s17
  %s20 = scalar_select 0, %s19, %s17
  $region1: #{tpu_custom_call.1} parent=0
    #allocation4 [shape = 'u8[294912]{0}', space=vmem, size = 0x48000, scoped, tag = 'input window, operand 7, single buffered']
    #allocation5 [shape = 's32[2]{0}', space=sflag, size = 0x8, scoped, tag = 'scoped memory for tpu_custom_call.1']
    #allocation6 [shape = 's32[2]{0}', space=sflag, size = 0x8, scoped, tag = 'scoped memory for tpu_custom_call.1']
    #allocation7 [shape = 'u8[262144]{0}', space=vmem, size = 0x40000, scoped, tag = 'output window, operand 0']
    %21 = vsyncpa [#allocation5], 0
    %22 = vsyncpa [#allocation6], 0
    %s23 = scalar_lea.sflag [#allocation6], 1
    %24 = vsyncpa %s23, 0
    loop: start=0, step=1, limit=4
    $region2: #{tpu_custom_call.1} parent=1 // loop_pre_header
      _
    $region3: #{tpu_custom_call.1} parent=1 // loop_header
      %s26 = sphi 0, %s30
      %p27 = scmp.ge.s32.totalorder %s26, 4
      %s36 = sphi 0, %s38
      %s39 = sphi 0, %s36
      %s40 = sphi 0, %s39
      %s56 = sphi 0, %s40
      %s60 = sphi 0, %s60
      %s62 = sphi 0, %s60
      %s63 = sphi 0, %s62
      %s77 = sphi 0, %s63
      %s81 = sphi 0, %s81
      %s83 = sphi 0, %s81
      %s84 = sphi 0, %s83
      %s98 = sphi 0, %s84
      %s102 = sphi 0, %s102
      %s104 = sphi 0, %s102
      %s105 = sphi 0, %s104
      %s119 = sphi 0, %s105
      %s123 = sphi 0, %s123
      %s125 = sphi 0, %s123
      %s126 = sphi 0, %s125
      %s140 = sphi 0, %s126
      %s144 = sphi 0, %s144
      %s146 = sphi 0, %s144
      %s147 = sphi 0, %s146
      %s161 = sphi 0, %s147
      %s165 = sphi 0, %s165
      %s167 = sphi 0, %s165
      %s168 = sphi 0, %s167
      %s182 = sphi 0, %s168
      %s186 = sphi 0, %s186
      %s188 = sphi 0, %s186
      %s189 = sphi 0, %s188
      %s203 = sphi 0, %s189
      %s207 = sphi 0, %s207
      %s209 = sphi 0, %s207
      %s210 = sphi 0, %s209
      %s224 = sphi 0, %s210
      %s228 = sphi 0, %s228
      %s230 = sphi 0, %s228
      %s231 = sphi 0, %s230
      %s245 = sphi 0, %s231
      %s249 = sphi 0, %s249
      %s251 = sphi 0, %s249
      %s252 = sphi 0, %s251
      %s266 = sphi 0, %s252
      %s270 = sphi 0, %s270
      %s272 = sphi 0, %s270
      %s273 = sphi 0, %s272
      %s287 = sphi 0, %s273
      %s291 = sphi 0, %s291
      %s293 = sphi 0, %s291
      %s294 = sphi 0, %s293
      %s308 = sphi 0, %s294
      %s312 = sphi 0, %s312
      %s314 = sphi 0, %s312
      %s315 = sphi 0, %s314
      %s329 = sphi 0, %s315
      %s333 = sphi 0, %s333
      %s335 = sphi 0, %s333
      %s336 = sphi 0, %s335
      %s350 = sphi 0, %s336
      %s354 = sphi 0, %s354
      %s356 = sphi 0, %s354
      %s357 = sphi 0, %s356
      %s371 = sphi 0, %s357
      %s377 = sphi 0, %s379
      %s380 = sphi 0, %s377
      %s381 = sphi 0, %s380
      %s397 = sphi 0, %s381
    $region4: #{tpu_custom_call.1} parent=1 // loop_header_branch
      %29 = sbr.rel (%p27) target = $region8
    $region5: #{tpu_custom_call.1} parent=1 // loop_body
      %s31 = ssub.s32 %s26, 1
      %s32 = ssub.s32 %s26, 2
      %s33 = sadd.s32 %s26, 1
      %s34 = ssub.s32 %s26, %s33
      %p35 = scmp.eq.s32.totalorder %s34, 0
      %s37 = sadd.s32 %s36, 1
      %s38 = scalar_select %p35, %s36, %s37
      %p41 = pneg %p35
      %p42 = scmp.eq.s32.totalorder %s26, 1
      %p43 = por %p41, %p42
      %p44 = scmp.ne.s32.totalorder %s36, %s39
      %p45 = scmp.eq.s32.totalorder %s26, 0
      %p46 = por %p44, %p45
      %p47 = scmp.ne.s32.totalorder %s36, %s39
      %p48 = scmp.eq.s32.totalorder %s31, 1
      %p49 = por %p47, %p48
      %p50 = scmp.ne.s32.totalorder %s39, %s40
      %p51 = scmp.eq.s32.totalorder %s31, 0
      %p52 = por %p50, %p51
      %p53 = scmp.ne.s32.totalorder %s39, %s40
      %p54 = scmp.eq.s32.totalorder %s32, 1
      %p55 = por %p53, %p54
      %p57 = scmp.ne.s32.totalorder %s40, %s56
      %p58 = scmp.eq.s32.totalorder %s32, 0
      %p59 = por %p57, %p58
      %s61 = sadd.s32 %s60, 1
      %p64 = scmp.eq.s32.totalorder %s26, 1
      %p65 = scmp.ne.s32.totalorder %s60, %s62
      %p66 = scmp.eq.s32.totalorder %s26, 0
      %p67 = por %p65, %p66
      %p68 = scmp.ne.s32.totalorder %s60, %s62
      %p69 = scmp.eq.s32.totalorder %s31, 1
      %p70 = por %p68, %p69
      %p71 = scmp.ne.s32.totalorder %s62, %s63
      %p72 = scmp.eq.s32.totalorder %s31, 0
      %p73 = por %p71, %p72
      %p74 = scmp.ne.s32.totalorder %s62, %s63
      %p75 = scmp.eq.s32.totalorder %s32, 1
      %p76 = por %p74, %p75
      %p78 = scmp.ne.s32.totalorder %s63, %s77
      %p79 = scmp.eq.s32.totalorder %s32, 0
      %p80 = por %p78, %p79
      %s82 = sadd.s32 %s81, 1
      %p85 = scmp.eq.s32.totalorder %s26, 1
      %p86 = scmp.ne.s32.totalorder %s81, %s83
      %p87 = scmp.eq.s32.totalorder %s26, 0
      %p88 = por %p86, %p87
      %p89 = scmp.ne.s32.totalorder %s81, %s83
      %p90 = scmp.eq.s32.totalorder %s31, 1
      %p91 = por %p89, %p90
      %p92 = scmp.ne.s32.totalorder %s83, %s84
      %p93 = scmp.eq.s32.totalorder %s31, 0
      %p94 = por %p92, %p93
      %p95 = scmp.ne.s32.totalorder %s83, %s84
      %p96 = scmp.eq.s32.totalorder %s32, 1
      %p97 = por %p95, %p96
      %p99 = scmp.ne.s32.totalorder %s84, %s98
      %p100 = scmp.eq.s32.totalorder %s32, 0
      %p101 = por %p99, %p100
      %s103 = sadd.s32 %s102, 1
      %p106 = scmp.eq.s32.totalorder %s26, 1
      %p107 = scmp.ne.s32.totalorder %s102, %s104
      %p108 = scmp.eq.s32.totalorder %s26, 0
      %p109 = por %p107, %p108
      %p110 = scmp.ne.s32.totalorder %s102, %s104
      %p111 = scmp.eq.s32.totalorder %s31, 1
      %p112 = por %p110, %p111
      %p113 = scmp.ne.s32.totalorder %s104, %s105
      %p114 = scmp.eq.s32.totalorder %s31, 0
      %p115 = por %p113, %p114
      %p116 = scmp.ne.s32.totalorder %s104, %s105
      %p117 = scmp.eq.s32.totalorder %s32, 1
      %p118 = por %p116, %p117
      %p120 = scmp.ne.s32.totalorder %s105, %s119
      %p121 = scmp.eq.s32.totalorder %s32, 0
      %p122 = por %p120, %p121
      %s124 = sadd.s32 %s123, 1
      %p127 = scmp.eq.s32.totalorder %s26, 1
      %p128 = scmp.ne.s32.totalorder %s123, %s125
      %p129 = scmp.eq.s32.totalorder %s26, 0
      %p130 = por %p128, %p129
      %p131 = scmp.ne.s32.totalorder %s123, %s125
      %p132 = scmp.eq.s32.totalorder %s31, 1
      %p133 = por %p131, %p132
      %p134 = scmp.ne.s32.totalorder %s125, %s126
      %p135 = scmp.eq.s32.totalorder %s31, 0
      %p136 = por %p134, %p135
      %p137 = scmp.ne.s32.totalorder %s125, %s126
      %p138 = scmp.eq.s32.totalorder %s32, 1
      %p139 = por %p137, %p138
      %p141 = scmp.ne.s32.totalorder %s126, %s140
      %p142 = scmp.eq.s32.totalorder %s32, 0
      %p143 = por %p141, %p142
      %s145 = sadd.s32 %s144, 1
      %p148 = scmp.eq.s32.totalorder %s26, 1
      %p149 = scmp.ne.s32.totalorder %s144, %s146
      %p150 = scmp.eq.s32.totalorder %s26, 0
      %p151 = por %p149, %p150
      %p152 = scmp.ne.s32.totalorder %s144, %s146
      %p153 = scmp.eq.s32.totalorder %s31, 1
      %p154 = por %p152, %p153
      %p155 = scmp.ne.s32.totalorder %s146, %s147
      %p156 = scmp.eq.s32.totalorder %s31, 0
      %p157 = por %p155, %p156
      %p158 = scmp.ne.s32.totalorder %s146, %s147
      %p159 = scmp.eq.s32.totalorder %s32, 1
      %p160 = por %p158, %p159
      %p162 = scmp.ne.s32.totalorder %s147, %s161
      %p163 = scmp.eq.s32.totalorder %s32, 0
      %p164 = por %p162, %p163
      %s166 = sadd.s32 %s165, 1
      %p169 = scmp.eq.s32.totalorder %s26, 1
      %p170 = scmp.ne.s32.totalorder %s165, %s167
      %p171 = scmp.eq.s32.totalorder %s26, 0
      %p172 = por %p170, %p171
      %p173 = scmp.ne.s32.totalorder %s165, %s167
      %p174 = scmp.eq.s32.totalorder %s31, 1
      %p175 = por %p173, %p174
      %p176 = scmp.ne.s32.totalorder %s167, %s168
      %p177 = scmp.eq.s32.totalorder %s31, 0
      %p178 = por %p176, %p177
      %p179 = scmp.ne.s32.totalorder %s167, %s168
      %p180 = scmp.eq.s32.totalorder %s32, 1
      %p181 = por %p179, %p180
      %p183 = scmp.ne.s32.totalorder %s168, %s182
      %p184 = scmp.eq.s32.totalorder %s32, 0
      %p185 = por %p183, %p184
      %s187 = sadd.s32 %s186, 1
      %p190 = scmp.eq.s32.totalorder %s26, 1
      %p191 = scmp.ne.s32.totalorder %s186, %s188
      %p192 = scmp.eq.s32.totalorder %s26, 0
      %p193 = por %p191, %p192
      %p194 = scmp.ne.s32.totalorder %s186, %s188
      %p195 = scmp.eq.s32.totalorder %s31, 1
      %p196 = por %p194, %p195
      %p197 = scmp.ne.s32.totalorder %s188, %s189
      %p198 = scmp.eq.s32.totalorder %s31, 0
      %p199 = por %p197, %p198
      %p200 = scmp.ne.s32.totalorder %s188, %s189
      %p201 = scmp.eq.s32.totalorder %s32, 1
      %p202 = por %p200, %p201
      %p204 = scmp.ne.s32.totalorder %s189, %s203
      %p205 = scmp.eq.s32.totalorder %s32, 0
      %p206 = por %p204, %p205
      %s208 = sadd.s32 %s207, 1
      %p211 = scmp.eq.s32.totalorder %s26, 1
      %p212 = scmp.ne.s32.totalorder %s207, %s209
      %p213 = scmp.eq.s32.totalorder %s26, 0
      %p214 = por %p212, %p213
      %p215 = scmp.ne.s32.totalorder %s207, %s209
      %p216 = scmp.eq.s32.totalorder %s31, 1
      %p217 = por %p215, %p216
      %p218 = scmp.ne.s32.totalorder %s209, %s210
      %p219 = scmp.eq.s32.totalorder %s31, 0
      %p220 = por %p218, %p219
      %p221 = scmp.ne.s32.totalorder %s209, %s210
      %p222 = scmp.eq.s32.totalorder %s32, 1
      %p223 = por %p221, %p222
      %p225 = scmp.ne.s32.totalorder %s210, %s224
      %p226 = scmp.eq.s32.totalorder %s32, 0
      %p227 = por %p225, %p226
      %s229 = sadd.s32 %s228, 1
      %p232 = scmp.eq.s32.totalorder %s26, 1
      %p233 = scmp.ne.s32.totalorder %s228, %s230
      %p234 = scmp.eq.s32.totalorder %s26, 0
      %p235 = por %p233, %p234
      %p236 = scmp.ne.s32.totalorder %s228, %s230
      %p237 = scmp.eq.s32.totalorder %s31, 1
      %p238 = por %p236, %p237
      %p239 = scmp.ne.s32.totalorder %s230, %s231
      %p240 = scmp.eq.s32.totalorder %s31, 0
      %p241 = por %p239, %p240
      %p242 = scmp.ne.s32.totalorder %s230, %s231
      %p243 = scmp.eq.s32.totalorder %s32, 1
      %p244 = por %p242, %p243
      %p246 = scmp.ne.s32.totalorder %s231, %s245
      %p247 = scmp.eq.s32.totalorder %s32, 0
      %p248 = por %p246, %p247
      %s250 = sadd.s32 %s249, 1
      %p253 = scmp.eq.s32.totalorder %s26, 1
      %p254 = scmp.ne.s32.totalorder %s249, %s251
      %p255 = scmp.eq.s32.totalorder %s26, 0
      %p256 = por %p254, %p255
      %p257 = scmp.ne.s32.totalorder %s249, %s251
      %p258 = scmp.eq.s32.totalorder %s31, 1
      %p259 = por %p257, %p258
      %p260 = scmp.ne.s32.totalorder %s251, %s252
      %p261 = scmp.eq.s32.totalorder %s31, 0
      %p262 = por %p260, %p261
      %p263 = scmp.ne.s32.totalorder %s251, %s252
      %p264 = scmp.eq.s32.totalorder %s32, 1
      %p265 = por %p263, %p264
      %p267 = scmp.ne.s32.totalorder %s252, %s266
      %p268 = scmp.eq.s32.totalorder %s32, 0
      %p269 = por %p267, %p268
      %s271 = sadd.s32 %s270, 1
      %p274 = scmp.eq.s32.totalorder %s26, 1
      %p275 = scmp.ne.s32.totalorder %s270, %s272
      %p276 = scmp.eq.s32.totalorder %s26, 0
      %p277 = por %p275, %p276
      %p278 = scmp.ne.s32.totalorder %s270, %s272
      %p279 = scmp.eq.s32.totalorder %s31, 1
      %p280 = por %p278, %p279
      %p281 = scmp.ne.s32.totalorder %s272, %s273
      %p282 = scmp.eq.s32.totalorder %s31, 0
      %p283 = por %p281, %p282
      %p284 = scmp.ne.s32.totalorder %s272, %s273
      %p285 = scmp.eq.s32.totalorder %s32, 1
      %p286 = por %p284, %p285
      %p288 = scmp.ne.s32.totalorder %s273, %s287
      %p289 = scmp.eq.s32.totalorder %s32, 0
      %p290 = por %p288, %p289
      %s292 = sadd.s32 %s291, 1
      %p295 = scmp.eq.s32.totalorder %s26, 1
      %p296 = scmp.ne.s32.totalorder %s291, %s293
      %p297 = scmp.eq.s32.totalorder %s26, 0
      %p298 = por %p296, %p297
      %p299 = scmp.ne.s32.totalorder %s291, %s293
      %p300 = scmp.eq.s32.totalorder %s31, 1
      %p301 = por %p299, %p300
      %p302 = scmp.ne.s32.totalorder %s293, %s294
      %p303 = scmp.eq.s32.totalorder %s31, 0
      %p304 = por %p302, %p303
      %p305 = scmp.ne.s32.totalorder %s293, %s294
      %p306 = scmp.eq.s32.totalorder %s32, 1
      %p307 = por %p305, %p306
      %p309 = scmp.ne.s32.totalorder %s294, %s308
      %p310 = scmp.eq.s32.totalorder %s32, 0
      %p311 = por %p309, %p310
      %s313 = sadd.s32 %s312, 1
      %p316 = scmp.eq.s32.totalorder %s26, 1
      %p317 = scmp.ne.s32.totalorder %s312, %s314
      %p318 = scmp.eq.s32.totalorder %s26, 0
      %p319 = por %p317, %p318
      %p320 = scmp.ne.s32.totalorder %s312, %s314
      %p321 = scmp.eq.s32.totalorder %s31, 1
      %p322 = por %p320, %p321
      %p323 = scmp.ne.s32.totalorder %s314, %s315
      %p324 = scmp.eq.s32.totalorder %s31, 0
      %p325 = por %p323, %p324
      %p326 = scmp.ne.s32.totalorder %s314, %s315
      %p327 = scmp.eq.s32.totalorder %s32, 1
      %p328 = por %p326, %p327
      %p330 = scmp.ne.s32.totalorder %s315, %s329
      %p331 = scmp.eq.s32.totalorder %s32, 0
      %p332 = por %p330, %p331
      %s334 = sadd.s32 %s333, 1
      %p337 = scmp.eq.s32.totalorder %s26, 1
      %p338 = scmp.ne.s32.totalorder %s333, %s335
      %p339 = scmp.eq.s32.totalorder %s26, 0
      %p340 = por %p338, %p339
      %p341 = scmp.ne.s32.totalorder %s333, %s335
      %p342 = scmp.eq.s32.totalorder %s31, 1
      %p343 = por %p341, %p342
      %p344 = scmp.ne.s32.totalorder %s335, %s336
      %p345 = scmp.eq.s32.totalorder %s31, 0
      %p346 = por %p344, %p345
      %p347 = scmp.ne.s32.totalorder %s335, %s336
      %p348 = scmp.eq.s32.totalorder %s32, 1
      %p349 = por %p347, %p348
      %p351 = scmp.ne.s32.totalorder %s336, %s350
      %p352 = scmp.eq.s32.totalorder %s32, 0
      %p353 = por %p351, %p352
      %s355 = sadd.s32 %s354, 1
      %p358 = scmp.eq.s32.totalorder %s26, 1
      %p359 = scmp.ne.s32.totalorder %s354, %s356
      %p360 = scmp.eq.s32.totalorder %s26, 0
      %p361 = por %p359, %p360
      %p362 = scmp.ne.s32.totalorder %s354, %s356
      %p363 = scmp.eq.s32.totalorder %s31, 1
      %p364 = por %p362, %p363
      %p365 = scmp.ne.s32.totalorder %s356, %s357
      %p366 = scmp.eq.s32.totalorder %s31, 0
      %p367 = por %p365, %p366
      %p368 = scmp.ne.s32.totalorder %s356, %s357
      %p369 = scmp.eq.s32.totalorder %s32, 1
      %p370 = por %p368, %p369
      %p372 = scmp.ne.s32.totalorder %s357, %s371
      %p373 = scmp.eq.s32.totalorder %s32, 0
      %p374 = por %p372, %p373
      %s375 = ssub.s32 %s26, %s33
      %p376 = scmp.eq.s32.totalorder %s375, 0
      %s378 = sadd.s32 %s377, 1
      %s379 = scalar_select %p376, %s377, %s378
      %p382 = pneg %p376
      %p383 = scmp.eq.s32.totalorder %s26, 1
      %p384 = por %p382, %p383
      %p385 = scmp.ne.s32.totalorder %s377, %s380
      %p386 = scmp.eq.s32.totalorder %s26, 0
      %p387 = por %p385, %p386
      %p388 = scmp.ne.s32.totalorder %s377, %s380
      %p389 = scmp.eq.s32.totalorder %s31, 1
      %p390 = por %p388, %p389
      %p391 = scmp.ne.s32.totalorder %s380, %s381
      %p392 = scmp.eq.s32.totalorder %s31, 0
      %p393 = por %p391, %p392
      %p394 = scmp.ne.s32.totalorder %s380, %s381
      %p395 = scmp.eq.s32.totalorder %s32, 1
      %p396 = por %p394, %p395
      %p398 = scmp.ne.s32.totalorder %s381, %s397
      %p399 = scmp.eq.s32.totalorder %s32, 0
      %p400 = por %p398, %p399
      %p401 = scmp.le.s32.totalorder 1, %s26
      %p402 = scmp.lt.s32.totalorder %s26, 3
      %p403 = pnand %p401, %p402
      %p404 = pneg %p403
      // Predicated region
      $region9: #{tpu_custom_call.1} parent=5 // pred_check
        _
      $region10: #{tpu_custom_call.1} parent=5 // pred_check_branch
        %406 = sbr.rel (%p403) target = $region12
      $region11: #{tpu_custom_call.1} parent=5 // pred_region
        %s407 = ssub.s32 %s26, 1
        // Predicated region
        $region13: #{tpu_custom_call.1} parent=11 // pred_check
          %p408 = pneg %p73
        $region14: #{tpu_custom_call.1} parent=11 // pred_check_branch
          %410 = sbr.rel (%p408) target = $region16
        $region15: #{tpu_custom_call.1} parent=11 // pred_region
          _
        $region16: #{tpu_custom_call.1} parent=11 // pred_fallthru
          _
        // Predicated region
        $region17: #{tpu_custom_call.1} parent=11 // pred_check
          %p411 = pneg %p94
        $region18: #{tpu_custom_call.1} parent=11 // pred_check_branch
          %413 = sbr.rel (%p411) target = $region20
        $region19: #{tpu_custom_call.1} parent=11 // pred_region
          _
        $region20: #{tpu_custom_call.1} parent=11 // pred_fallthru
          _
        // Predicated region
        $region21: #{tpu_custom_call.1} parent=11 // pred_check
          %p414 = pneg %p115
        $region22: #{tpu_custom_call.1} parent=11 // pred_check_branch
          %416 = sbr.rel (%p414) target = $region24
        $region23: #{tpu_custom_call.1} parent=11 // pred_region
          _
        $region24: #{tpu_custom_call.1} parent=11 // pred_fallthru
          _
        // Predicated region
        $region25: #{tpu_custom_call.1} parent=11 // pred_check
          %p417 = pneg %p136
        $region26: #{tpu_custom_call.1} parent=11 // pred_check_branch
          %419 = sbr.rel (%p417) target = $region28
        $region27: #{tpu_custom_call.1} parent=11 // pred_region
          _
        $region28: #{tpu_custom_call.1} parent=11 // pred_fallthru
          _
        // Predicated region
        $region29: #{tpu_custom_call.1} parent=11 // pred_check
          %p420 = pneg %p157
        $region30: #{tpu_custom_call.1} parent=11 // pred_check_branch
          %422 = sbr.rel (%p420) target = $region32
        $region31: #{tpu_custom_call.1} parent=11 // pred_region
          _
        $region32: #{tpu_custom_call.1} parent=11 // pred_fallthru
          _
        // Predicated region
        $region33: #{tpu_custom_call.1} parent=11 // pred_check
          %p423 = pneg %p178
        $region34: #{tpu_custom_call.1} parent=11 // pred_check_branch
          %425 = sbr.rel (%p423) target = $region36
        $region35: #{tpu_custom_call.1} parent=11 // pred_region
          _
        $region36: #{tpu_custom_call.1} parent=11 // pred_fallthru
          _
        // Predicated region
        $region37: #{tpu_custom_call.1} parent=11 // pred_check
          %p426 = pneg %p199
        $region38: #{tpu_custom_call.1} parent=11 // pred_check_branch
          %428 = sbr.rel (%p426) target = $region40
        $region39: #{tpu_custom_call.1} parent=11 // pred_region
          %s430 = ssub.s32 9216, 9216
          %431 = vsyncadd [#allocation5], %s430
          %s432 = sshll.u32 [#allocation4], 4
          %s433 = int_to_ptr.vmem [resolvable:$true] %s432
          %438 = dma.hbm_to_vmem [thread:$0]  %s7, 9216, %s433, [#allocation5], 64, 64, 4
        $region40: #{tpu_custom_call.1} parent=11 // pred_fallthru
          _
        // Predicated region
        $region41: #{tpu_custom_call.1} parent=11 // pred_check
          %p439 = pneg %p220
        $region42: #{tpu_custom_call.1} parent=11 // pred_check_branch
          %441 = sbr.rel (%p439) target = $region44
        $region43: #{tpu_custom_call.1} parent=11 // pred_region
          _
        $region44: #{tpu_custom_call.1} parent=11 // pred_fallthru
          _
        // Predicated region
        $region45: #{tpu_custom_call.1} parent=11 // pred_check
          %p442 = pneg %p241
        $region46: #{tpu_custom_call.1} parent=11 // pred_check_branch
          %444 = sbr.rel (%p442) target = $region48
        $region47: #{tpu_custom_call.1} parent=11 // pred_region
          _
        $region48: #{tpu_custom_call.1} parent=11 // pred_fallthru
          _
        // Predicated region
        $region49: #{tpu_custom_call.1} parent=11 // pred_check
          %p445 = pneg %p262
        $region50: #{tpu_custom_call.1} parent=11 // pred_check_branch
          %447 = sbr.rel (%p445) target = $region52
        $region51: #{tpu_custom_call.1} parent=11 // pred_region
          _
        $region52: #{tpu_custom_call.1} parent=11 // pred_fallthru
          _
        // Predicated region
        $region53: #{tpu_custom_call.1} parent=11 // pred_check
          %p448 = pneg %p283
        $region54: #{tpu_custom_call.1} parent=11 // pred_check_branch
          %450 = sbr.rel (%p448) target = $region56
        $region55: #{tpu_custom_call.1} parent=11 // pred_region
          _
        $region56: #{tpu_custom_call.1} parent=11 // pred_fallthru
          _
        // Predicated region
        $region57: #{tpu_custom_call.1} parent=11 // pred_check
          %p451 = pneg %p304
        $region58: #{tpu_custom_call.1} parent=11 // pred_check_branch
          %453 = sbr.rel (%p451) target = $region60
        $region59: #{tpu_custom_call.1} parent=11 // pred_region
          _
        $region60: #{tpu_custom_call.1} parent=11 // pred_fallthru
          _
        // Predicated region
        $region61: #{tpu_custom_call.1} parent=11 // pred_check
          %p454 = pneg %p325
        $region62: #{tpu_custom_call.1} parent=11 // pred_check_branch
          %456 = sbr.rel (%p454) target = $region64
        $region63: #{tpu_custom_call.1} parent=11 // pred_region
          _
        $region64: #{tpu_custom_call.1} parent=11 // pred_fallthru
          _
        // Predicated region
        $region65: #{tpu_custom_call.1} parent=11 // pred_check
          %p457 = pneg %p346
        $region66: #{tpu_custom_call.1} parent=11 // pred_check_branch
          %459 = sbr.rel (%p457) target = $region68
        $region67: #{tpu_custom_call.1} parent=11 // pred_region
          _
        $region68: #{tpu_custom_call.1} parent=11 // pred_fallthru
          _
        // Predicated region
        $region69: #{tpu_custom_call.1} parent=11 // pred_check
          %p460 = pneg %p367
        $region70: #{tpu_custom_call.1} parent=11 // pred_check_branch
          %462 = sbr.rel (%p460) target = $region72
        $region71: #{tpu_custom_call.1} parent=11 // pred_region
          _
        $region72: #{tpu_custom_call.1} parent=11 // pred_fallthru
          _
      $region12: #{tpu_custom_call.1} parent=5 // pred_fallthru
        _
      %p463 = scmp.lt.s32.totalorder %s26, 2
      // Predicated region
      $region73: #{tpu_custom_call.1} parent=5 // pred_check
        %p464 = pneg %p463
      $region74: #{tpu_custom_call.1} parent=5 // pred_check_branch
        %466 = sbr.rel (%p464) target = $region76
      $region75: #{tpu_custom_call.1} parent=5 // pred_region
        // Predicated region
        $region77: #{tpu_custom_call.1} parent=75 // pred_check
          %p467 = pneg %p46
        $region78: #{tpu_custom_call.1} parent=75 // pred_check_branch
          %469 = sbr.rel (%p467) target = $region80
        $region79: #{tpu_custom_call.1} parent=75 // pred_region
          %p470 = scmp.lt.s32.totalorder %s26, 1
          %s471 = scalar_select %p470, %s26, 1
          %s472 = smul.addr %s471, 32
          %s473 = smul.addr %s472, 8
          %s474 = scalar_lea.vmem %s0, %s473
        $region80: #{tpu_custom_call.1} parent=75 // pred_fallthru
          _
      $region76: #{tpu_custom_call.1} parent=5 // pred_fallthru
        _
      %p475 = scmp.le.s32.totalorder 1, %s26
      %p476 = scmp.lt.s32.totalorder %s26, 3
      %p477 = pnand %p475, %p476
      %p478 = pneg %p477
      // Predicated region
      $region81: #{tpu_custom_call.1} parent=5 // pred_check
        _
      $region82: #{tpu_custom_call.1} parent=5 // pred_check_branch
        %480 = sbr.rel (%p477) target = $region84
      $region83: #{tpu_custom_call.1} parent=5 // pred_region
        %s481 = ssub.s32 %s26, 1
        // Predicated region
        $region85: #{tpu_custom_call.1} parent=83 // pred_check
          %p482 = pneg %p199
        $region86: #{tpu_custom_call.1} parent=83 // pred_check_branch
          %484 = sbr.rel (%p482) target = $region88
        $region87: #{tpu_custom_call.1} parent=83 // pred_region
          %485 = dma.done [#allocation5], 9216
        $region88: #{tpu_custom_call.1} parent=83 // pred_fallthru
          _
        %p486 = scmp.lt.s32.totalorder %s31, 1
        %s487 = scalar_select %p486, %s31, 1
        %s488 = smul.addr %s487, 32
        %s489 = smul.addr %s488, 8
        %s490 = scalar_lea.vmem %s0, %s489
        %p491 = pneg %p52
        %p492 = pneg %p49
        %p493 = pneg %p73
        %p494 = pneg %p70
        %p495 = pneg %p94
        %p496 = pneg %p91
        %p497 = pneg %p115
        %p498 = pneg %p112
        %p499 = pneg %p136
        %p500 = pneg %p133
        %p501 = pneg %p157
        %p502 = pneg %p154
        %p503 = pneg %p178
        %p504 = pneg %p175
        %p505 = pneg %p199
        %p506 = pneg %p196
        %p507 = pneg %p220
        %p508 = pneg %p217
        %p509 = pneg %p241
        %p510 = pneg %p238
        %p511 = pneg %p262
        %p512 = pneg %p259
        %p513 = pneg %p283
        %p514 = pneg %p280
        %p515 = pneg %p304
        %p516 = pneg %p301
        %p517 = pneg %p325
        %p518 = pneg %p322
        %p519 = pneg %p346
        %p520 = pneg %p343
        %p521 = pneg %p367
        %p522 = pneg %p364
        %p523 = pneg %p393
        %p524 = pneg %p390
        %s525 = sand.u32 %s380, 1
        %s526 = scalar_lea.sflag [#allocation6], %s525
        %s527 = sand.u32 %s380, 1
        %s528 = smul.addr %s527, 256
        %s529 = scalar_lea.vmem [#allocation7], %s528
        %p530 = scmp.lt.s32.totalorder %s31, 1
        %s531 = scalar_select %p530, %s31, 1
        %s532 = smul.addr %s531, 32
        %s533 = smul.addr %s532, 8
        %s534 = scalar_lea.vmem %s0, %s533
        %v536 = vld [vmem:[%s534] sm:$0xff]
        %v537 = vld [vmem:[%s534 + $0x8] sm:$0xff]
        %v538 = vld [vmem:[%s534 + $0x10] sm:$0xff]
        %v539 = vld [vmem:[%s534 + $0x18] sm:$0xff]
        %v540 = vld [vmem:[%s534 + $0x20] sm:$0xff]
        %v541 = vld [vmem:[%s534 + $0x28] sm:$0xff]
        %v542 = vld [vmem:[%s534 + $0x30] sm:$0xff]
        %v543 = vld [vmem:[%s534 + $0x38] sm:$0xff]
        %v544 = vld [vmem:[%s534 + $0x40] sm:$0xff]
        %v545 = vld [vmem:[%s534 + $0x48] sm:$0xff]
        %v546 = vld [vmem:[%s534 + $0x50] sm:$0xff]
        %v547 = vld [vmem:[%s534 + $0x58] sm:$0xff]
        %v548 = vld [vmem:[%s534 + $0x60] sm:$0xff]
        %v549 = vld [vmem:[%s534 + $0x68] sm:$0xff]
        %v550 = vld [vmem:[%s534 + $0x70] sm:$0xff]
        %v551 = vld [vmem:[%s534 + $0x78] sm:$0xff]
        %v552 = vld [vmem:[%s534 + $0x80] sm:$0xff]
        %v553 = vld [vmem:[%s534 + $0x88] sm:$0xff]
        %v554 = vld [vmem:[%s534 + $0x90] sm:$0xff]
        %v555 = vld [vmem:[%s534 + $0x98] sm:$0xff]
        %v556 = vld [vmem:[%s534 + $0xa0] sm:$0xff]
        %v557 = vld [vmem:[%s534 + $0xa8] sm:$0xff]
        %v558 = vld [vmem:[%s534 + $0xb0] sm:$0xff]
        %v559 = vld [vmem:[%s534 + $0xb8] sm:$0xff]
        %v560 = vld [vmem:[%s534 + $0xc0] sm:$0xff]
        %v561 = vld [vmem:[%s534 + $0xc8] sm:$0xff]
        %v562 = vld [vmem:[%s534 + $0xd0] sm:$0xff]
        %v563 = vld [vmem:[%s534 + $0xd8] sm:$0xff]
        %v564 = vld [vmem:[%s534 + $0xe0] sm:$0xff]
        %v565 = vld [vmem:[%s534 + $0xe8] sm:$0xff]
        %v566 = vld [vmem:[%s534 + $0xf0] sm:$0xff]
        %v567 = vld [vmem:[%s534 + $0xf8] sm:$0xff]
        %v568 = vpack.c.bf16 %v537, %v536
        %v569 = vpack.c.bf16 %v539, %v538
        %v570 = vpack.c.bf16 %v541, %v540
        %v571 = vpack.c.bf16 %v543, %v542
        %v572 = vpack.c.bf16 %v545, %v544
        %v573 = vpack.c.bf16 %v547, %v546
        %v574 = vpack.c.bf16 %v549, %v548
        %v575 = vpack.c.bf16 %v551, %v550
        %v576 = vpack.c.bf16 %v553, %v552
        %v577 = vpack.c.bf16 %v555, %v554
        %v578 = vpack.c.bf16 %v557, %v556
        %v579 = vpack.c.bf16 %v559, %v558
        %v580 = vpack.c.bf16 %v561, %v560
        %v581 = vpack.c.bf16 %v563, %v562
        %v582 = vpack.c.bf16 %v565, %v564
        %v583 = vpack.c.bf16 %v567, %v566
        %v584 = vld [vmem:[%s1] sm:$0x3]
        %vm585 = vcmask 31744
        %v587 = vsel %vm585, %v568, 0
        %v590 = vsel %vm585, %v569, 0
        %v593 = vsel %vm585, %v570, 0
        %v596 = vsel %vm585, %v571, 0
        %v599 = vsel %vm585, %v572, 0
        %v602 = vsel %vm585, %v573, 0
        %v605 = vsel %vm585, %v574, 0
        %v608 = vsel %vm585, %v575, 0
        %v611 = vsel %vm585, %v576, 0
        %v614 = vsel %vm585, %v577, 0
        %v617 = vsel %vm585, %v578, 0
        %v620 = vsel %vm585, %v579, 0
        %v623 = vsel %vm585, %v580, 0
        %v626 = vsel %vm585, %v581, 0
        %v629 = vsel %vm585, %v582, 0
        %v632 = vsel %vm585, %v583, 0
        %vm634 = vcmask 1041408
        %v636 = vsel %vm634, %v584, 0
        %638 = vmatprep.subr.bf16.mxu0 0
        %639 = vmatpush1.bf16.msra.mxu0 %v636
        %640 = vmatprep.subr.bf16.mxu0 0
        %641 = vmatpush1.bf16.msra.mxu0 0
        %642 = vmatprep.subr.bf16.mxu0 0
        %643 = vmatpush1.bf16.msra.mxu0 0
        %644 = vmatprep.subr.bf16.mxu0 0
        %645 = vmatpush1.bf16.msra.mxu0 0
        %646 = vmatprep.subr.bf16.mxu0 0
        %647 = vmatpush1.bf16.msra.mxu0 0
        %648 = vmatprep.subr.bf16.mxu0 0
        %649 = vmatpush1.bf16.msra.mxu0 0
        %650 = vmatprep.subr.bf16.mxu0 0
        %651 = vmatpush1.bf16.msra.mxu0 0
        %652 = vmatprep.subr.bf16.mxu0 0
        %653 = vmatpush1.bf16.msra.mxu0 0
        %654 = vmatprep.subr.bf16.mxu0 0
        %655 = vmatpush1.bf16.msra.mxu0 0
        %656 = vmatprep.subr.bf16.mxu0 0
        %657 = vmatpush1.bf16.msra.mxu0 0
        %658 = vmatprep.subr.bf16.mxu0 0
        %659 = vmatpush1.bf16.msra.mxu0 0
        %660 = vmatprep.subr.bf16.mxu0 0
        %661 = vmatpush1.bf16.msra.mxu0 0
        %662 = vmatprep.subr.bf16.mxu0 0
        %663 = vmatpush1.bf16.msra.mxu0 0
        %664 = vmatprep.subr.bf16.mxu0 0
        %665 = vmatpush1.bf16.msra.mxu0 0
        %666 = vmatprep.subr.bf16.mxu0 0
        %667 = vmatpush1.bf16.msra.mxu0 0
        %668 = vmatprep.subr.bf16.mxu0 0
        %669 = vmatpush1.bf16.msra.mxu0 0
        %670 = vmatprep.mubr.bf16.mxu0 0
        %671 = vmatmul.mubr.bf16.gmra.mrb[0].mxu0 %v587
        %v672 = vpop.f32.mrb[0].mxu0
        %v673 = vadd.f32 0.0, %v672
        %v674 = vpop.f32.mrb[0].mxu0
        %v675 = vpop.f32.mrb[0].mxu0
        %v676 = vadd.f32 0.0, %v675
        %v677 = vpop.f32.mrb[0].mxu0
        %678 = vmatprep.mubr.bf16.mxu0 0
        %679 = vmatmul.mubr.bf16.gmra.mrb[0].mxu0 %v590
        %v680 = vpop.f32.mrb[0].mxu0
        %v681 = vadd.f32 0.0, %v680
        %v682 = vpop.f32.mrb[0].mxu0
        %v683 = vpop.f32.mrb[0].mxu0
        %v684 = vadd.f32 0.0, %v683
        %v685 = vpop.f32.mrb[0].mxu0
        %686 = vmatprep.mubr.bf16.mxu0 0
        %687 = vmatmul.mubr.bf16.gmra.mrb[0].mxu0 %v593
        %v688 = vpop.f32.mrb[0].mxu0
        %v689 = vadd.f32 0.0, %v688
        %v690 = vpop.f32.mrb[0].mxu0
        %v691 = vpop.f32.mrb[0].mxu0
        %v692 = vadd.f32 0.0, %v691
        %v693 = vpop.f32.mrb[0].mxu0
        %694 = vmatprep.mubr.bf16.mxu0 0
        %695 = vmatmul.mubr.bf16.gmra.mrb[0].mxu0 %v596
        %v696 = vpop.f32.mrb[0].mxu0
        %v697 = vadd.f32 0.0, %v696
        %v698 = vpop.f32.mrb[0].mxu0
        %v699 = vpop.f32.mrb[0].mxu0
        %v700 = vadd.f32 0.0, %v699
        %v701 = vpop.f32.mrb[0].mxu0
        %702 = vmatprep.mubr.bf16.mxu0 0
        %703 = vmatmul.mubr.bf16.gmra.mrb[0].mxu0 %v599
        %v704 = vpop.f32.mrb[0].mxu0
        %v705 = vadd.f32 0.0, %v704
        %v706 = vpop.f32.mrb[0].mxu0
        %v707 = vpop.f32.mrb[0].mxu0
        %v708 = vadd.f32 0.0, %v707
        %v709 = vpop.f32.mrb[0].mxu0
        %710 = vmatprep.mubr.bf16.mxu0 0
        %711 = vmatmul.mubr.bf16.gmra.mrb[0].mxu0 %v602
        %v712 = vpop.f32.mrb[0].mxu0
        %v713 = vadd.f32 0.0, %v712
        %v714 = vpop.f32.mrb[0].mxu0
        %v715 = vpop.f32.mrb[0].mxu0
        %v716 = vadd.f32 0.0, %v715
        %v717 = vpop.f32.mrb[0].mxu0
        %718 = vmatprep.mubr.bf16.mxu0 0
        %719 = vmatmul.mubr.bf16.gmra.mrb[0].mxu0 %v605
        %v720 = vpop.f32.mrb[0].mxu0
        %v721 = vadd.f32 0.0, %v720
        %v722 = vpop.f32.mrb[0].mxu0
        %v723 = vpop.f32.mrb[0].mxu0
        %v724 = vadd.f32 0.0, %v723
        %v725 = vpop.f32.mrb[0].mxu0
        %726 = vmatprep.mubr.bf16.mxu0 0
        %727 = vmatmul.mubr.bf16.gmra.mrb[0].mxu0 %v608
        %v728 = vpop.f32.mrb[0].mxu0
        %v729 = vadd.f32 0.0, %v728
        %v730 = vpop.f32.mrb[0].mxu0
        %v731 = vpop.f32.mrb[0].mxu0
        %v732 = vadd.f32 0.0, %v731
        %v733 = vpop.f32.mrb[0].mxu0
        %734 = vmatprep.mubr.bf16.mxu0 0
        %735 = vmatmul.mubr.bf16.gmra.mrb[0].mxu0 %v611
        %v736 = vpop.f32.mrb[0].mxu0
        %v737 = vadd.f32 0.0, %v736
        %v738 = vpop.f32.mrb[0].mxu0
        %v739 = vpop.f32.mrb[0].mxu0
        %v740 = vadd.f32 0.0, %v739
        %v741 = vpop.f32.mrb[0].mxu0
        %742 = vmatprep.mubr.bf16.mxu0 0
        %743 = vmatmul.mubr.bf16.gmra.mrb[0].mxu0 %v614
        %v744 = vpop.f32.mrb[0].mxu0
        %v745 = vadd.f32 0.0, %v744
        %v746 = vpop.f32.mrb[0].mxu0
        %v747 = vpop.f32.mrb[0].mxu0
        %v748 = vadd.f32 0.0, %v747
        %v749 = vpop.f32.mrb[0].mxu0
        %750 = vmatprep.mubr.bf16.mxu0 0
        %751 = vmatmul.mubr.bf16.gmra.mrb[0].mxu0 %v617
        %v752 = vpop.f32.mrb[0].mxu0
        %v753 = vadd.f32 0.0, %v752
        %v754 = vpop.f32.mrb[0].mxu0
        %v755 = vpop.f32.mrb[0].mxu0
        %v756 = vadd.f32 0.0, %v755
        %v757 = vpop.f32.mrb[0].mxu0
        %758 = vmatprep.mubr.bf16.mxu0 0
        %759 = vmatmul.mubr.bf16.gmra.mrb[0].mxu0 %v620
        %v760 = vpop.f32.mrb[0].mxu0
        %v761 = vadd.f32 0.0, %v760
        %v762 = vpop.f32.mrb[0].mxu0
        %v763 = vpop.f32.mrb[0].mxu0
        %v764 = vadd.f32 0.0, %v763
        %v765 = vpop.f32.mrb[0].mxu0
        %766 = vmatprep.mubr.bf16.mxu0 0
        %767 = vmatmul.mubr.bf16.gmra.mrb[0].mxu0 %v623
        %v768 = vpop.f32.mrb[0].mxu0
        %v769 = vadd.f32 0.0, %v768
        %v770 = vpop.f32.mrb[0].mxu0
        %v771 = vpop.f32.mrb[0].mxu0
        %v772 = vadd.f32 0.0, %v771
        %v773 = vpop.f32.mrb[0].mxu0
        %774 = vmatprep.mubr.bf16.mxu0 0
        %775 = vmatmul.mubr.bf16.gmra.mrb[0].mxu0 %v626
        %v776 = vpop.f32.mrb[0].mxu0
        %v777 = vadd.f32 0.0, %v776
        %v778 = vpop.f32.mrb[0].mxu0
        %v779 = vpop.f32.mrb[0].mxu0
        %v780 = vadd.f32 0.0, %v779
        %v781 = vpop.f32.mrb[0].mxu0
        %782 = vmatprep.mubr.bf16.mxu0 0
        %783 = vmatmul.mubr.bf16.gmra.mrb[0].mxu0 %v629
        %v784 = vpop.f32.mrb[0].mxu0
        %v785 = vadd.f32 0.0, %v784
        %v786 = vpop.f32.mrb[0].mxu0
        %v787 = vpop.f32.mrb[0].mxu0
        %v788 = vadd.f32 0.0, %v787
        %v789 = vpop.f32.mrb[0].mxu0
        %790 = vmatprep.mubr.bf16.mxu0 0
        %791 = vmatmul.mubr.bf16.gmra.mrb[0].mxu0 %v632
        %v792 = vpop.f32.mrb[0].mxu0
        %v793 = vadd.f32 0.0, %v792
        %v794 = vpop.f32.mrb[0].mxu0
        %v795 = vpop.f32.mrb[0].mxu0
        %v796 = vadd.f32 0.0, %v795
        %v797 = vpop.f32.mrb[0].mxu0
        %798 = vdwg.mxu0
        %v799 = vld [vmem:[%s2] sm:$0x1]
        %v801 = vlaneseq
        %v802 = vshrl.u32 %v801, 7
        %v803 = vsub.s32 0, %v802
        %v804 = vrot.slane %v799, %v803
        %v806 = vmul.f32 %v673, %v804
        %v807 = vmul.f32 %v676, %v804
        %v808 = vmul.f32 %v681, %v804
        %v809 = vmul.f32 %v684, %v804
        %v810 = vmul.f32 %v689, %v804
        %v811 = vmul.f32 %v692, %v804
        %v812 = vmul.f32 %v697, %v804
        %v813 = vmul.f32 %v700, %v804
        %v814 = vmul.f32 %v705, %v804
        %v815 = vmul.f32 %v708, %v804
        %v816 = vmul.f32 %v713, %v804
        %v817 = vmul.f32 %v716, %v804
        %v818 = vmul.f32 %v721, %v804
        %v819 = vmul.f32 %v724, %v804
        %v820 = vmul.f32 %v729, %v804
        %v821 = vmul.f32 %v732, %v804
        %v822 = vmul.f32 %v737, %v804
        %v823 = vmul.f32 %v740, %v804
        %v824 = vmul.f32 %v745, %v804
        %v825 = vmul.f32 %v748, %v804
        %v826 = vmul.f32 %v753, %v804
        %v827 = vmul.f32 %v756, %v804
        %v828 = vmul.f32 %v761, %v804
        %v829 = vmul.f32 %v764, %v804
        %v830 = vmul.f32 %v769, %v804
        %v831 = vmul.f32 %v772, %v804
        %v832 = vmul.f32 %v777, %v804
        %v833 = vmul.f32 %v780, %v804
        %v834 = vmul.f32 %v785, %v804
        %v835 = vmul.f32 %v788, %v804
        %v836 = vmul.f32 %v793, %v804
        %v837 = vmul.f32 %v796, %v804
        %v838 = vld [vmem:[%s3] sm:$0x1]
        %v840 = vlaneseq
        %v841 = vshrl.u32 %v840, 7
        %v842 = vsub.s32 0, %v841
        %v843 = vrot.slane %v838, %v842
        %v845 = vadd.f32 %v806, %v843
        %v846 = vadd.f32 %v807, %v843
        %v847 = vadd.f32 %v808, %v843
        %v848 = vadd.f32 %v809, %v843
        %v849 = vadd.f32 %v810, %v843
        %v850 = vadd.f32 %v811, %v843
        %v851 = vadd.f32 %v812, %v843
        %v852 = vadd.f32 %v813, %v843
        %v853 = vadd.f32 %v814, %v843
        %v854 = vadd.f32 %v815, %v843
        %v855 = vadd.f32 %v816, %v843
        %v856 = vadd.f32 %v817, %v843
        %v857 = vadd.f32 %v818, %v843
        %v858 = vadd.f32 %v819, %v843
        %v859 = vadd.f32 %v820, %v843
        %v860 = vadd.f32 %v821, %v843
        %v861 = vadd.f32 %v822, %v843
        %v862 = vadd.f32 %v823, %v843
        %v863 = vadd.f32 %v824, %v843
        %v864 = vadd.f32 %v825, %v843
        %v865 = vadd.f32 %v826, %v843
        %v866 = vadd.f32 %v827, %v843
        %v867 = vadd.f32 %v828, %v843
        %v868 = vadd.f32 %v829, %v843
        %v869 = vadd.f32 %v830, %v843
        %v870 = vadd.f32 %v831, %v843
        %v871 = vadd.f32 %v832, %v843
        %v872 = vadd.f32 %v833, %v843
        %v873 = vadd.f32 %v834, %v843
        %v874 = vadd.f32 %v835, %v843
        %v875 = vadd.f32 %v836, %v843
        %v876 = vadd.f32 %v837, %v843
        %v877 = vadd.f32 %v845, 3.0
        %v878 = vadd.f32 %v846, 3.0
        %v879 = vadd.f32 %v847, 3.0
        %v880 = vadd.f32 %v848, 3.0
        %v881 = vadd.f32 %v849, 3.0
        %v882 = vadd.f32 %v850, 3.0
        %v883 = vadd.f32 %v851, 3.0
        %v884 = vadd.f32 %v852, 3.0
        %v885 = vadd.f32 %v853, 3.0
        %v886 = vadd.f32 %v854, 3.0
        %v887 = vadd.f32 %v855, 3.0
        %v888 = vadd.f32 %v856, 3.0
        %v889 = vadd.f32 %v857, 3.0
        %v890 = vadd.f32 %v858, 3.0
        %v891 = vadd.f32 %v859, 3.0
        %v892 = vadd.f32 %v860, 3.0
        %v893 = vadd.f32 %v861, 3.0
        %v894 = vadd.f32 %v862, 3.0
        %v895 = vadd.f32 %v863, 3.0
        %v896 = vadd.f32 %v864, 3.0
        %v897 = vadd.f32 %v865, 3.0
        %v898 = vadd.f32 %v866, 3.0
        %v899 = vadd.f32 %v867, 3.0
        %v900 = vadd.f32 %v868, 3.0
        %v901 = vadd.f32 %v869, 3.0
        %v902 = vadd.f32 %v870, 3.0
        %v903 = vadd.f32 %v871, 3.0
        %v904 = vadd.f32 %v872, 3.0
        %v905 = vadd.f32 %v873, 3.0
        %v906 = vadd.f32 %v874, 3.0
        %v907 = vadd.f32 %v875, 3.0
        %v908 = vadd.f32 %v876, 3.0
        %v909 = vmax.f32 %v877, 0.0
        %v910 = vmax.f32 %v878, 0.0
        %v911 = vmax.f32 %v879, 0.0
        %v912 = vmax.f32 %v880, 0.0
        %v913 = vmax.f32 %v881, 0.0
        %v914 = vmax.f32 %v882, 0.0
        %v915 = vmax.f32 %v883, 0.0
        %v916 = vmax.f32 %v884, 0.0
        %v917 = vmax.f32 %v885, 0.0
        %v918 = vmax.f32 %v886, 0.0
        %v919 = vmax.f32 %v887, 0.0
        %v920 = vmax.f32 %v888, 0.0
        %v921 = vmax.f32 %v889, 0.0
        %v922 = vmax.f32 %v890, 0.0
        %v923 = vmax.f32 %v891, 0.0
        %v924 = vmax.f32 %v892, 0.0
        %v925 = vmax.f32 %v893, 0.0
        %v926 = vmax.f32 %v894, 0.0
        %v927 = vmax.f32 %v895, 0.0
        %v928 = vmax.f32 %v896, 0.0
        %v929 = vmax.f32 %v897, 0.0
        %v930 = vmax.f32 %v898, 0.0
        %v931 = vmax.f32 %v899, 0.0
        %v932 = vmax.f32 %v900, 0.0
        %v933 = vmax.f32 %v901, 0.0
        %v934 = vmax.f32 %v902, 0.0
        %v935 = vmax.f32 %v903, 0.0
        %v936 = vmax.f32 %v904, 0.0
        %v937 = vmax.f32 %v905, 0.0
        %v938 = vmax.f32 %v906, 0.0
        %v939 = vmax.f32 %v907, 0.0
        %v940 = vmax.f32 %v908, 0.0
        %v941 = vmin.f32 %v909, 6.0
        %v942 = vmin.f32 %v910, 6.0
        %v943 = vmin.f32 %v911, 6.0
        %v944 = vmin.f32 %v912, 6.0
        %v945 = vmin.f32 %v913, 6.0
        %v946 = vmin.f32 %v914, 6.0
        %v947 = vmin.f32 %v915, 6.0
        %v948 = vmin.f32 %v916, 6.0
        %v949 = vmin.f32 %v917, 6.0
        %v950 = vmin.f32 %v918, 6.0
        %v951 = vmin.f32 %v919, 6.0
        %v952 = vmin.f32 %v920, 6.0
        %v953 = vmin.f32 %v921, 6.0
        %v954 = vmin.f32 %v922, 6.0
        %v955 = vmin.f32 %v923, 6.0
        %v956 = vmin.f32 %v924, 6.0
        %v957 = vmin.f32 %v925, 6.0
        %v958 = vmin.f32 %v926, 6.0
        %v959 = vmin.f32 %v927, 6.0
        %v960 = vmin.f32 %v928, 6.0
        %v961 = vmin.f32 %v929, 6.0
        %v962 = vmin.f32 %v930, 6.0
        %v963 = vmin.f32 %v931, 6.0
        %v964 = vmin.f32 %v932, 6.0
        %v965 = vmin.f32 %v933, 6.0
        %v966 = vmin.f32 %v934, 6.0
        %v967 = vmin.f32 %v935, 6.0
        %v968 = vmin.f32 %v936, 6.0
        %v969 = vmin.f32 %v937, 6.0
        %v970 = vmin.f32 %v938, 6.0
        %v971 = vmin.f32 %v939, 6.0
        %v972 = vmin.f32 %v940, 6.0
        %v973 = vmul.f32 %v845, %v941
        %v974 = vmul.f32 %v846, %v942
        %v975 = vmul.f32 %v847, %v943
        %v976 = vmul.f32 %v848, %v944
        %v977 = vmul.f32 %v849, %v945
        %v978 = vmul.f32 %v850, %v946
        %v979 = vmul.f32 %v851, %v947
        %v980 = vmul.f32 %v852, %v948
        %v981 = vmul.f32 %v853, %v949
        %v982 = vmul.f32 %v854, %v950
        %v983 = vmul.f32 %v855, %v951
        %v984 = vmul.f32 %v856, %v952
        %v985 = vmul.f32 %v857, %v953
        %v986 = vmul.f32 %v858, %v954
        %v987 = vmul.f32 %v859, %v955
        %v988 = vmul.f32 %v860, %v956
        %v989 = vmul.f32 %v861, %v957
        %v990 = vmul.f32 %v862, %v958
        %v991 = vmul.f32 %v863, %v959
        %v992 = vmul.f32 %v864, %v960
        %v993 = vmul.f32 %v865, %v961
        %v994 = vmul.f32 %v866, %v962
        %v995 = vmul.f32 %v867, %v963
        %v996 = vmul.f32 %v868, %v964
        %v997 = vmul.f32 %v869, %v965
        %v998 = vmul.f32 %v870, %v966
        %v999 = vmul.f32 %v871, %v967
        %v1000 = vmul.f32 %v872, %v968
        %v1001 = vmul.f32 %v873, %v969
        %v1002 = vmul.f32 %v874, %v970
        %v1003 = vmul.f32 %v875, %v971
        %v1004 = vmul.f32 %v876, %v972
        %v1005 = vmul.f32 %v973, 0.16666667
        %v1006 = vmul.f32 %v974, 0.16666667
        %v1007 = vmul.f32 %v975, 0.16666667
        %v1008 = vmul.f32 %v976, 0.16666667
        %v1009 = vmul.f32 %v977, 0.16666667
        %v1010 = vmul.f32 %v978, 0.16666667
        %v1011 = vmul.f32 %v979, 0.16666667
        %v1012 = vmul.f32 %v980, 0.16666667
        %v1013 = vmul.f32 %v981, 0.16666667
        %v1014 = vmul.f32 %v982, 0.16666667
        %v1015 = vmul.f32 %v983, 0.16666667
        %v1016 = vmul.f32 %v984, 0.16666667
        %v1017 = vmul.f32 %v985, 0.16666667
        %v1018 = vmul.f32 %v986, 0.16666667
        %v1019 = vmul.f32 %v987, 0.16666667
        %v1020 = vmul.f32 %v988, 0.16666667
        %v1021 = vmul.f32 %v989, 0.16666667
        %v1022 = vmul.f32 %v990, 0.16666667
        %v1023 = vmul.f32 %v991, 0.16666667
        %v1024 = vmul.f32 %v992, 0.16666667
        %v1025 = vmul.f32 %v993, 0.16666667
        %v1026 = vmul.f32 %v994, 0.16666667
        %v1027 = vmul.f32 %v995, 0.16666667
        %v1028 = vmul.f32 %v996, 0.16666667
        %v1029 = vmul.f32 %v997, 0.16666667
        %v1030 = vmul.f32 %v998, 0.16666667
        %v1031 = vmul.f32 %v999, 0.16666667
        %v1032 = vmul.f32 %v1000, 0.16666667
        %v1033 = vmul.f32 %v1001, 0.16666667
        %v1034 = vmul.f32 %v1002, 0.16666667
        %v1035 = vmul.f32 %v1003, 0.16666667
        %v1036 = vmul.f32 %v1004, 0.16666667
        %1037 = vst [vmem:[#allocation2] sm:$0xff] 0.0
        %1038 = vst [vmem:[#allocation2 + $0x8] sm:$0xff] 0.0
        %1039 = vst [vmem:[#allocation2 + $0x10] sm:$0x3] 0.0
        %s1040 = scalar_lea.vmem [#allocation2], 408
        %1041 = vst [vmem:[%s1040] sm:$0xff] 0.0
        %1042 = vst [vmem:[%s1040 + $0x8] sm:$0xff] 0.0
        %1043 = vst [vmem:[%s1040 + $0x10] sm:$0x3] 0.0
        %s1044 = scalar_lea.vmem [#allocation2], 24
        %1045 = vst [vmem:[%s1044] sm:$0x1] 0.0
        %1046 = vst [vmem:[%s1044 + $0x18] sm:$0x1] 0.0
        %1047 = vst [vmem:[%s1044 + $0x30] sm:$0x1] 0.0
        %1048 = vst [vmem:[%s1044 + $0x48] sm:$0x1] 0.0
        %1049 = vst [vmem:[%s1044 + $0x60] sm:$0x1] 0.0
        %1050 = vst [vmem:[%s1044 + $0x78] sm:$0x1] 0.0
        %1051 = vst [vmem:[%s1044 + $0x90] sm:$0x1] 0.0
        %1052 = vst [vmem:[%s1044 + $0xa8] sm:$0x1] 0.0
        %1053 = vst [vmem:[%s1044 + $0xc0] sm:$0x1] 0.0
        %1054 = vst [vmem:[%s1044 + $0xd8] sm:$0x1] 0.0
        %1055 = vst [vmem:[%s1044 + $0xf0] sm:$0x1] 0.0
        %1056 = vst [vmem:[%s1044 + $0x108] sm:$0x1] 0.0
        %1057 = vst [vmem:[%s1044 + $0x120] sm:$0x1] 0.0
        %1058 = vst [vmem:[%s1044 + $0x138] sm:$0x1] 0.0
        %1059 = vst [vmem:[%s1044 + $0x150] sm:$0x1] 0.0
        %1060 = vst [vmem:[%s1044 + $0x168] sm:$0x1] 0.0
        %1061 = vst [vmem:[%s1044 + $0x11] sm:$0x1] 0.0
        %1062 = vst [vmem:[%s1044 + $0x29] sm:$0x1] 0.0
        %1063 = vst [vmem:[%s1044 + $0x41] sm:$0x1] 0.0
        %1064 = vst [vmem:[%s1044 + $0x59] sm:$0x1] 0.0
        %1065 = vst [vmem:[%s1044 + $0x71] sm:$0x1] 0.0
        %1066 = vst [vmem:[%s1044 + $0x89] sm:$0x1] 0.0
        %1067 = vst [vmem:[%s1044 + $0xa1] sm:$0x1] 0.0
        %1068 = vst [vmem:[%s1044 + $0xb9] sm:$0x1] 0.0
        %1069 = vst [vmem:[%s1044 + $0xd1] sm:$0x1] 0.0
        %1070 = vst [vmem:[%s1044 + $0xe9] sm:$0x1] 0.0
        %1071 = vst [vmem:[%s1044 + $0x101] sm:$0x1] 0.0
        %1072 = vst [vmem:[%s1044 + $0x119] sm:$0x1] 0.0
        %1073 = vst [vmem:[%s1044 + $0x131] sm:$0x1] 0.0
        %1074 = vst [vmem:[%s1044 + $0x149] sm:$0x1] 0.0
        %1075 = vst [vmem:[%s1044 + $0x161] sm:$0x1] 0.0
        %1076 = vst [vmem:[%s1044 + $0x179] sm:$0x1] 0.0
        %1077 = vst [vmem:[%s1044 + $0x1] sm:$0xff] %v1005
        %1078 = vst [vmem:[%s1044 + $0x9] sm:$0xff] %v1006
        %1079 = vst [vmem:[%s1044 + $0x19] sm:$0xff] %v1007
        %1080 = vst [vmem:[%s1044 + $0x21] sm:$0xff] %v1008
        %1081 = vst [vmem:[%s1044 + $0x31] sm:$0xff] %v1009
        %1082 = vst [vmem:[%s1044 + $0x39] sm:$0xff] %v1010
        %1083 = vst [vmem:[%s1044 + $0x49] sm:$0xff] %v1011
        %1084 = vst [vmem:[%s1044 + $0x51] sm:$0xff] %v1012
        %1085 = vst [vmem:[%s1044 + $0x61] sm:$0xff] %v1013
        %1086 = vst [vmem:[%s1044 + $0x69] sm:$0xff] %v1014
        %1087 = vst [vmem:[%s1044 + $0x79] sm:$0xff] %v1015
        %1088 = vst [vmem:[%s1044 + $0x81] sm:$0xff] %v1016
        %1089 = vst [vmem:[%s1044 + $0x91] sm:$0xff] %v1017
        %1090 = vst [vmem:[%s1044 + $0x99] sm:$0xff] %v1018
        %1091 = vst [vmem:[%s1044 + $0xa9] sm:$0xff] %v1019
        %1092 = vst [vmem:[%s1044 + $0xb1] sm:$0xff] %v1020
        %1093 = vst [vmem:[%s1044 + $0xc1] sm:$0xff] %v1021
        %1094 = vst [vmem:[%s1044 + $0xc9] sm:$0xff] %v1022
        %1095 = vst [vmem:[%s1044 + $0xd9] sm:$0xff] %v1023
        %1096 = vst [vmem:[%s1044 + $0xe1] sm:$0xff] %v1024
        %1097 = vst [vmem:[%s1044 + $0xf1] sm:$0xff] %v1025
        %1098 = vst [vmem:[%s1044 + $0xf9] sm:$0xff] %v1026
        %1099 = vst [vmem:[%s1044 + $0x109] sm:$0xff] %v1027
        %1100 = vst [vmem:[%s1044 + $0x111] sm:$0xff] %v1028
        %1101 = vst [vmem:[%s1044 + $0x121] sm:$0xff] %v1029
        %1102 = vst [vmem:[%s1044 + $0x129] sm:$0xff] %v1030
        %1103 = vst [vmem:[%s1044 + $0x139] sm:$0xff] %v1031
        %1104 = vst [vmem:[%s1044 + $0x141] sm:$0xff] %v1032
        %1105 = vst [vmem:[%s1044 + $0x151] sm:$0xff] %v1033
        %1106 = vst [vmem:[%s1044 + $0x159] sm:$0xff] %v1034
        %1107 = vst [vmem:[%s1044 + $0x169] sm:$0xff] %v1035
        %1108 = vst [vmem:[%s1044 + $0x171] sm:$0xff] %v1036
        %v1109 = vld [vmem:[#allocation2] sm:$0xff]
        %v1110 = vld [vmem:[#allocation2 + $0x8] sm:$0xff]
        %v1111 = vld [vmem:[#allocation2 + $0x18] sm:$0xff]
        %v1112 = vld [vmem:[#allocation2 + $0x20] sm:$0xff]
        %v1113 = vld [vmem:[#allocation2 + $0x30] sm:$0xff]
        %v1114 = vld [vmem:[#allocation2 + $0x38] sm:$0xff]
        %v1115 = vld [vmem:[#allocation2 + $0x48] sm:$0xff]
        %v1116 = vld [vmem:[#allocation2 + $0x50] sm:$0xff]
        %v1117 = vld [vmem:[#allocation2 + $0x60] sm:$0xff]
        %v1118 = vld [vmem:[#allocation2 + $0x68] sm:$0xff]
        %v1119 = vld [vmem:[#allocation2 + $0x78] sm:$0xff]
        %v1120 = vld [vmem:[#allocation2 + $0x80] sm:$0xff]
        %v1121 = vld [vmem:[#allocation2 + $0x90] sm:$0xff]
        %v1122 = vld [vmem:[#allocation2 + $0x98] sm:$0xff]
        %v1123 = vld [vmem:[#allocation2 + $0xa8] sm:$0xff]
        %v1124 = vld [vmem:[#allocation2 + $0xb0] sm:$0xff]
        %v1125 = vld [vmem:[#allocation2 + $0xc0] sm:$0xff]
        %v1126 = vld [vmem:[#allocation2 + $0xc8] sm:$0xff]
        %v1127 = vld [vmem:[#allocation2 + $0xd8] sm:$0xff]
        %v1128 = vld [vmem:[#allocation2 + $0xe0] sm:$0xff]
        %v1129 = vld [vmem:[#allocation2 + $0xf0] sm:$0xff]
        %v1130 = vld [vmem:[#allocation2 + $0xf8] sm:$0xff]
        %v1131 = vld [vmem:[#allocation2 + $0x108] sm:$0xff]
        %v1132 = vld [vmem:[#allocation2 + $0x110] sm:$0xff]
        %v1133 = vld [vmem:[#allocation2 + $0x120] sm:$0xff]
        %v1134 = vld [vmem:[#allocation2 + $0x128] sm:$0xff]
        %v1135 = vld [vmem:[#allocation2 + $0x138] sm:$0xff]
        %v1136 = vld [vmem:[#allocation2 + $0x140] sm:$0xff]
        %v1137 = vld [vmem:[#allocation2 + $0x150] sm:$0xff]
        %v1138 = vld [vmem:[#allocation2 + $0x158] sm:$0xff]
        %v1139 = vld [vmem:[#allocation2 + $0x168] sm:$0xff]
        %v1140 = vld [vmem:[#allocation2 + $0x170] sm:$0xff]
        %v1141 = vpack.c.bf16 %v1110, %v1109
        %v1142 = vpack.c.bf16 %v1112, %v1111
        %v1143 = vpack.c.bf16 %v1114, %v1113
        %v1144 = vpack.c.bf16 %v1116, %v1115
        %v1145 = vpack.c.bf16 %v1118, %v1117
        %v1146 = vpack.c.bf16 %v1120, %v1119
        %v1147 = vpack.c.bf16 %v1122, %v1121
        %v1148 = vpack.c.bf16 %v1124, %v1123
        %v1149 = vpack.c.bf16 %v1126, %v1125
        %v1150 = vpack.c.bf16 %v1128, %v1127
        %v1151 = vpack.c.bf16 %v1130, %v1129
        %v1152 = vpack.c.bf16 %v1132, %v1131
        %v1153 = vpack.c.bf16 %v1134, %v1133
        %v1154 = vpack.c.bf16 %v1136, %v1135
        %v1155 = vpack.c.bf16 %v1138, %v1137
        %v1156 = vpack.c.bf16 %v1140, %v1139
        %v1157 = vld [vmem:[%s4] sm:$0xf]
        %v1158 = vld [vmem:[%s4 + $0x4] sm:$0xf]
        %v1159 = vld [vmem:[%s4 + $0x8] sm:$0xf]
        %v1160 = vld [vmem:[%s4 + $0xc] sm:$0xf]
        %v1161 = vld [vmem:[%s4 + $0x10] sm:$0xf]
        %v1162 = vld [vmem:[%s4 + $0x14] sm:$0xf]
        %v1163 = vld [vmem:[%s4 + $0x18] sm:$0xf]
        %v1164 = vld [vmem:[%s4 + $0x1c] sm:$0xf]
        %v1165 = vld [vmem:[%s4 + $0x20] sm:$0xf]
        %v1166 = vld [vmem:[%s4 + $0x24] sm:$0xf]
        %v1167 = vld [vmem:[%s4 + $0x28] sm:$0xf]
        %v1168 = vld [vmem:[%s4 + $0x2c] sm:$0xf]
        %v1169 = vld [vmem:[%s4 + $0x30] sm:$0xf]
        %v1170 = vld [vmem:[%s4 + $0x34] sm:$0xf]
        %v1171 = vld [vmem:[%s4 + $0x38] sm:$0xf]
        %v1172 = vld [vmem:[%s4 + $0x3c] sm:$0xf]
        %v1173 = vld [vmem:[#allocation2 + $0x1] sm:$0xff]
        %v1174 = vld [vmem:[#allocation2 + $0x9] sm:$0xff]
        %v1175 = vld [vmem:[#allocation2 + $0x19] sm:$0xff]
        %v1176 = vld [vmem:[#allocation2 + $0x21] sm:$0xff]
        %v1177 = vld [vmem:[#allocation2 + $0x31] sm:$0xff]
        %v1178 = vld [vmem:[#allocation2 + $0x39] sm:$0xff]
        %v1179 = vld [vmem:[#allocation2 + $0x49] sm:$0xff]
        %v1180 = vld [vmem:[#allocation2 + $0x51] sm:$0xff]
        %v1181 = vld [vmem:[#allocation2 + $0x61] sm:$0xff]
        %v1182 = vld [vmem:[#allocation2 + $0x69] sm:$0xff]
        %v1183 = vld [vmem:[#allocation2 + $0x79] sm:$0xff]
        %v1184 = vld [vmem:[#allocation2 + $0x81] sm:$0xff]
        %v1185 = vld [vmem:[#allocation2 + $0x91] sm:$0xff]
        %v1186 = vld [vmem:[#allocation2 + $0x99] sm:$0xff]
        %v1187 = vld [vmem:[#allocation2 + $0xa9] sm:$0xff]
        %v1188 = vld [vmem:[#allocation2 + $0xb1] sm:$0xff]
        %v1189 = vld [vmem:[#allocation2 + $0xc1] sm:$0xff]
        %v1190 = vld [vmem:[#allocation2 + $0xc9] sm:$0xff]
        %v1191 = vld [vmem:[#allocation2 + $0xd9] sm:$0xff]
        %v1192 = vld [vmem:[#allocation2 + $0xe1] sm:$0xff]
        %v1193 = vld [vmem:[#allocation2 + $0xf1] sm:$0xff]
        %v1194 = vld [vmem:[#allocation2 + $0xf9] sm:$0xff]
        %v1195 = vld [vmem:[#allocation2 + $0x109] sm:$0xff]
        %v1196 = vld [vmem:[#allocation2 + $0x111] sm:$0xff]
        %v1197 = vld [vmem:[#allocation2 + $0x121] sm:$0xff]
        %v1198 = vld [vmem:[#allocation2 + $0x129] sm:$0xff]
        %v1199 = vld [vmem:[#allocation2 + $0x139] sm:$0xff]
        %v1200 = vld [vmem:[#allocation2 + $0x141] sm:$0xff]
        %v1201 = vld [vmem:[#allocation2 + $0x151] sm:$0xff]
        %v1202 = vld [vmem:[#allocation2 + $0x159] sm:$0xff]
        %v1203 = vld [vmem:[#allocation2 + $0x169] sm:$0xff]
        %v1204 = vld [vmem:[#allocation2 + $0x171] sm:$0xff]
        %v1205 = vpack.c.bf16 %v1174, %v1173
        %v1206 = vpack.c.bf16 %v1176, %v1175
        %v1207 = vpack.c.bf16 %v1178, %v1177
        %v1208 = vpack.c.bf16 %v1180, %v1179
        %v1209 = vpack.c.bf16 %v1182, %v1181
        %v1210 = vpack.c.bf16 %v1184, %v1183
        %v1211 = vpack.c.bf16 %v1186, %v1185
        %v1212 = vpack.c.bf16 %v1188, %v1187
        %v1213 = vpack.c.bf16 %v1190, %v1189
        %v1214 = vpack.c.bf16 %v1192, %v1191
        %v1215 = vpack.c.bf16 %v1194, %v1193
        %v1216 = vpack.c.bf16 %v1196, %v1195
        %v1217 = vpack.c.bf16 %v1198, %v1197
        %v1218 = vpack.c.bf16 %v1200, %v1199
        %v1219 = vpack.c.bf16 %v1202, %v1201
        %v1220 = vpack.c.bf16 %v1204, %v1203
        %s1221 = scalar_lea.vmem %s4, 64
        %v1222 = vld [vmem:[%s1221] sm:$0xf]
        %v1223 = vld [vmem:[%s1221 + $0x4] sm:$0xf]
        %v1224 = vld [vmem:[%s1221 + $0x8] sm:$0xf]
        %v1225 = vld [vmem:[%s1221 + $0xc] sm:$0xf]
        %v1226 = vld [vmem:[%s1221 + $0x10] sm:$0xf]
        %v1227 = vld [vmem:[%s1221 + $0x14] sm:$0xf]
        %v1228 = vld [vmem:[%s1221 + $0x18] sm:$0xf]
        %v1229 = vld [vmem:[%s1221 + $0x1c] sm:$0xf]
        %v1230 = vld [vmem:[%s1221 + $0x20] sm:$0xf]
        %v1231 = vld [vmem:[%s1221 + $0x24] sm:$0xf]
        %v1232 = vld [vmem:[%s1221 + $0x28] sm:$0xf]
        %v1233 = vld [vmem:[%s1221 + $0x2c] sm:$0xf]
        %v1234 = vld [vmem:[%s1221 + $0x30] sm:$0xf]
        %v1235 = vld [vmem:[%s1221 + $0x34] sm:$0xf]
        %v1236 = vld [vmem:[%s1221 + $0x38] sm:$0xf]
        %v1237 = vld [vmem:[%s1221 + $0x3c] sm:$0xf]
        %v1254 = vunpack.c.l.b16 %v1222
        %v1255 = vunpack.c.l.b16 %v1223
        %v1256 = vunpack.c.l.b16 %v1224
        %v1257 = vunpack.c.l.b16 %v1225
        %v1258 = vunpack.c.l.b16 %v1226
        %v1259 = vunpack.c.l.b16 %v1227
        %v1260 = vunpack.c.l.b16 %v1228
        %v1261 = vunpack.c.l.b16 %v1229
        %v1262 = vunpack.c.l.b16 %v1230
        %v1263 = vunpack.c.l.b16 %v1231
        %v1264 = vunpack.c.l.b16 %v1232
        %v1265 = vunpack.c.l.b16 %v1233
        %v1266 = vunpack.c.l.b16 %v1234
        %v1267 = vunpack.c.l.b16 %v1235
        %v1268 = vunpack.c.l.b16 %v1236
        %v1269 = vunpack.c.l.b16 %v1237
        %v1270 = vpack.c.b16 %v1255, %v1254
        %v1271 = vpack.c.b16 %v1257, %v1256
        %v1272 = vpack.c.b16 %v1259, %v1258
        %v1273 = vpack.c.b16 %v1261, %v1260
        %v1274 = vpack.c.b16 %v1263, %v1262
        %v1275 = vpack.c.b16 %v1265, %v1264
        %v1276 = vpack.c.b16 %v1267, %v1266
        %v1277 = vpack.c.b16 %v1269, %v1268
        %1286 = vmatprep.subr.bf16.mxu0 0
        %1287 = vmatpush1.bf16.msra.mxu0 %v1270
        %1288 = vmatprep.subr.bf16.mxu0 0
        %1289 = vmatpush1.bf16.msra.mxu0 %v1271
        %1290 = vmatprep.subr.bf16.mxu0 0
        %1291 = vmatpush1.bf16.msra.mxu0 %v1272
        %1292 = vmatprep.subr.bf16.mxu0 0
        %1293 = vmatpush1.bf16.msra.mxu0 %v1273
        %1294 = vmatprep.subr.bf16.mxu0 0
        %1295 = vmatpush1.bf16.msra.mxu0 %v1274
        %1296 = vmatprep.subr.bf16.mxu0 0
        %1297 = vmatpush1.bf16.msra.mxu0 %v1275
        %1298 = vmatprep.subr.bf16.mxu0 0
        %1299 = vmatpush1.bf16.msra.mxu0 %v1276
        %1300 = vmatprep.subr.bf16.mxu0 0
        %1301 = vmatpush1.bf16.msra.mxu0 %v1277
        %1302 = vmatprep.subr.bf16.mxu0 0
        %1303 = vmatpush1.bf16.msra.mxu0 0
        %1304 = vmatprep.subr.bf16.mxu0 0
        %1305 = vmatpush1.bf16.msra.mxu0 0
        %1306 = vmatprep.subr.bf16.mxu0 0
        %1307 = vmatpush1.bf16.msra.mxu0 0
        %1308 = vmatprep.subr.bf16.mxu0 0
        %1309 = vmatpush1.bf16.msra.mxu0 0
        %1310 = vmatprep.subr.bf16.mxu0 0
        %1311 = vmatpush1.bf16.msra.mxu0 0
        %1312 = vmatprep.subr.bf16.mxu0 0
        %1313 = vmatpush1.bf16.msra.mxu0 0
        %1314 = vmatprep.subr.bf16.mxu0 0
        %1315 = vmatpush1.bf16.msra.mxu0 0
        %1316 = vmatprep.subr.bf16.mxu0 0
        %1317 = vmatpush1.bf16.msra.mxu0 0
        %1318 = vmatprep.mubr.bf16.mxu0 0
        %1319 = vmatmul.mubr.bf16.gmra.mrb[0].mxu0 %v1205
        %v1320 = vpop.f32.mrb[0].mxu0
        %v1321 = vadd.f32 0.0, %v1320
        %v1322 = vpop.f32.mrb[0].mxu0
        %v1323 = vpop.f32.mrb[0].mxu0
        %v1324 = vadd.f32 0.0, %v1323
        %v1325 = vpop.f32.mrb[0].mxu0
        %1326 = vmatprep.mubr.bf16.mxu0 0
        %1327 = vmatmul.mubr.bf16.gmra.mrb[0].mxu0 %v1206
        %v1328 = vpop.f32.mrb[0].mxu0
        %v1329 = vadd.f32 0.0, %v1328
        %v1330 = vpop.f32.mrb[0].mxu0
        %v1331 = vpop.f32.mrb[0].mxu0
        %v1332 = vadd.f32 0.0, %v1331
        %v1333 = vpop.f32.mrb[0].mxu0
        %1334 = vmatprep.mubr.bf16.mxu0 0
        %1335 = vmatmul.mubr.bf16.gmra.mrb[0].mxu0 %v1207
        %v1336 = vpop.f32.mrb[0].mxu0
        %v1337 = vadd.f32 0.0, %v1336
        %v1338 = vpop.f32.mrb[0].mxu0
        %v1339 = vpop.f32.mrb[0].mxu0
        %v1340 = vadd.f32 0.0, %v1339
        %v1341 = vpop.f32.mrb[0].mxu0
        %1342 = vmatprep.mubr.bf16.mxu0 0
        %1343 = vmatmul.mubr.bf16.gmra.mrb[0].mxu0 %v1208
        %v1344 = vpop.f32.mrb[0].mxu0
        %v1345 = vadd.f32 0.0, %v1344
        %v1346 = vpop.f32.mrb[0].mxu0
        %v1347 = vpop.f32.mrb[0].mxu0
        %v1348 = vadd.f32 0.0, %v1347
        %v1349 = vpop.f32.mrb[0].mxu0
        %1350 = vmatprep.mubr.bf16.mxu0 0
        %1351 = vmatmul.mubr.bf16.gmra.mrb[0].mxu0 %v1209
        %v1352 = vpop.f32.mrb[0].mxu0
        %v1353 = vadd.f32 0.0, %v1352
        %v1354 = vpop.f32.mrb[0].mxu0
        %v1355 = vpop.f32.mrb[0].mxu0
        %v1356 = vadd.f32 0.0, %v1355
        %v1357 = vpop.f32.mrb[0].mxu0
        %1358 = vmatprep.mubr.bf16.mxu0 0
        %1359 = vmatmul.mubr.bf16.gmra.mrb[0].mxu0 %v1210
        %v1360 = vpop.f32.mrb[0].mxu0
        %v1361 = vadd.f32 0.0, %v1360
        %v1362 = vpop.f32.mrb[0].mxu0
        %v1363 = vpop.f32.mrb[0].mxu0
        %v1364 = vadd.f32 0.0, %v1363
        %v1365 = vpop.f32.mrb[0].mxu0
        %1366 = vmatprep.mubr.bf16.mxu0 0
        %1367 = vmatmul.mubr.bf16.gmra.mrb[0].mxu0 %v1211
        %v1368 = vpop.f32.mrb[0].mxu0
        %v1369 = vadd.f32 0.0, %v1368
        %v1370 = vpop.f32.mrb[0].mxu0
        %v1371 = vpop.f32.mrb[0].mxu0
        %v1372 = vadd.f32 0.0, %v1371
        %v1373 = vpop.f32.mrb[0].mxu0
        %1374 = vmatprep.mubr.bf16.mxu0 0
        %1375 = vmatmul.mubr.bf16.gmra.mrb[0].mxu0 %v1212
        %v1376 = vpop.f32.mrb[0].mxu0
        %v1377 = vadd.f32 0.0, %v1376
        %v1378 = vpop.f32.mrb[0].mxu0
        %v1379 = vpop.f32.mrb[0].mxu0
        %v1380 = vadd.f32 0.0, %v1379
        %v1381 = vpop.f32.mrb[0].mxu0
        %1382 = vmatprep.mubr.bf16.mxu0 0
        %1383 = vmatmul.mubr.bf16.gmra.mrb[0].mxu0 %v1213
        %v1384 = vpop.f32.mrb[0].mxu0
        %v1385 = vadd.f32 0.0, %v1384
        %v1386 = vpop.f32.mrb[0].mxu0
        %v1387 = vpop.f32.mrb[0].mxu0
        %v1388 = vadd.f32 0.0, %v1387
        %v1389 = vpop.f32.mrb[0].mxu0
        %1390 = vmatprep.mubr.bf16.mxu0 0
        %1391 = vmatmul.mubr.bf16.gmra.mrb[0].mxu0 %v1214
        %v1392 = vpop.f32.mrb[0].mxu0
        %v1393 = vadd.f32 0.0, %v1392
        %v1394 = vpop.f32.mrb[0].mxu0
        %v1395 = vpop.f32.mrb[0].mxu0
        %v1396 = vadd.f32 0.0, %v1395
        %v1397 = vpop.f32.mrb[0].mxu0
        %1398 = vmatprep.mubr.bf16.mxu0 0
        %1399 = vmatmul.mubr.bf16.gmra.mrb[0].mxu0 %v1215
        %v1400 = vpop.f32.mrb[0].mxu0
        %v1401 = vadd.f32 0.0, %v1400
        %v1402 = vpop.f32.mrb[0].mxu0
        %v1403 = vpop.f32.mrb[0].mxu0
        %v1404 = vadd.f32 0.0, %v1403
        %v1405 = vpop.f32.mrb[0].mxu0
        %1406 = vmatprep.mubr.bf16.mxu0 0
        %1407 = vmatmul.mubr.bf16.gmra.mrb[0].mxu0 %v1216
        %v1408 = vpop.f32.mrb[0].mxu0
        %v1409 = vadd.f32 0.0, %v1408
        %v1410 = vpop.f32.mrb[0].mxu0
        %v1411 = vpop.f32.mrb[0].mxu0
        %v1412 = vadd.f32 0.0, %v1411
        %v1413 = vpop.f32.mrb[0].mxu0
        %1414 = vmatprep.mubr.bf16.mxu0 0
        %1415 = vmatmul.mubr.bf16.gmra.mrb[0].mxu0 %v1217
        %v1416 = vpop.f32.mrb[0].mxu0
        %v1417 = vadd.f32 0.0, %v1416
        %v1418 = vpop.f32.mrb[0].mxu0
        %v1419 = vpop.f32.mrb[0].mxu0
        %v1420 = vadd.f32 0.0, %v1419
        %v1421 = vpop.f32.mrb[0].mxu0
        %1422 = vmatprep.mubr.bf16.mxu0 0
        %1423 = vmatmul.mubr.bf16.gmra.mrb[0].mxu0 %v1218
        %v1424 = vpop.f32.mrb[0].mxu0
        %v1425 = vadd.f32 0.0, %v1424
        %v1426 = vpop.f32.mrb[0].mxu0
        %v1427 = vpop.f32.mrb[0].mxu0
        %v1428 = vadd.f32 0.0, %v1427
        %v1429 = vpop.f32.mrb[0].mxu0
        %1430 = vmatprep.mubr.bf16.mxu0 0
        %1431 = vmatmul.mubr.bf16.gmra.mrb[0].mxu0 %v1219
        %v1432 = vpop.f32.mrb[0].mxu0
        %v1433 = vadd.f32 0.0, %v1432
        %v1434 = vpop.f32.mrb[0].mxu0
        %v1435 = vpop.f32.mrb[0].mxu0
        %v1436 = vadd.f32 0.0, %v1435
        %v1437 = vpop.f32.mrb[0].mxu0
        %1438 = vmatprep.mubr.bf16.mxu0 0
        %1439 = vmatmul.mubr.bf16.gmra.mrb[0].mxu0 %v1220
        %v1440 = vpop.f32.mrb[0].mxu0
        %v1441 = vadd.f32 0.0, %v1440
        %v1442 = vpop.f32.mrb[0].mxu0
        %v1443 = vpop.f32.mrb[0].mxu0
        %v1444 = vadd.f32 0.0, %v1443
        %v1445 = vpop.f32.mrb[0].mxu0
        %1446 = vdwg.mxu0
        %v1463 = vunpack.c.l.b16 %v1157
        %v1464 = vunpack.c.l.b16 %v1158
        %v1465 = vunpack.c.l.b16 %v1159
        %v1466 = vunpack.c.l.b16 %v1160
        %v1467 = vunpack.c.l.b16 %v1161
        %v1468 = vunpack.c.l.b16 %v1162
        %v1469 = vunpack.c.l.b16 %v1163
        %v1470 = vunpack.c.l.b16 %v1164
        %v1471 = vunpack.c.l.b16 %v1165
        %v1472 = vunpack.c.l.b16 %v1166
        %v1473 = vunpack.c.l.b16 %v1167
        %v1474 = vunpack.c.l.b16 %v1168
        %v1475 = vunpack.c.l.b16 %v1169
        %v1476 = vunpack.c.l.b16 %v1170
        %v1477 = vunpack.c.l.b16 %v1171
        %v1478 = vunpack.c.l.b16 %v1172
        %v1479 = vpack.c.b16 %v1464, %v1463
        %v1480 = vpack.c.b16 %v1466, %v1465
        %v1481 = vpack.c.b16 %v1468, %v1467
        %v1482 = vpack.c.b16 %v1470, %v1469
        %v1483 = vpack.c.b16 %v1472, %v1471
        %v1484 = vpack.c.b16 %v1474, %v1473
        %v1485 = vpack.c.b16 %v1476, %v1475
        %v1486 = vpack.c.b16 %v1478, %v1477
        %1495 = vmatprep.subr.bf16.mxu0 0
        %1496 = vmatpush1.bf16.msra.mxu0 %v1479
        %1497 = vmatprep.subr.bf16.mxu0 0
        %1498 = vmatpush1.bf16.msra.mxu0 %v1480
        %1499 = vmatprep.subr.bf16.mxu0 0
        %1500 = vmatpush1.bf16.msra.mxu0 %v1481
        %1501 = vmatprep.subr.bf16.mxu0 0
        %1502 = vmatpush1.bf16.msra.mxu0 %v1482
        %1503 = vmatprep.subr.bf16.mxu0 0
        %1504 = vmatpush1.bf16.msra.mxu0 %v1483
        %1505 = vmatprep.subr.bf16.mxu0 0
        %1506 = vmatpush1.bf16.msra.mxu0 %v1484
        %1507 = vmatprep.subr.bf16.mxu0 0
        %1508 = vmatpush1.bf16.msra.mxu0 %v1485
        %1509 = vmatprep.subr.bf16.mxu0 0
        %1510 = vmatpush1.bf16.msra.mxu0 %v1486
        %1511 = vmatprep.subr.bf16.mxu0 0
        %1512 = vmatpush1.bf16.msra.mxu0 0
        %1513 = vmatprep.subr.bf16.mxu0 0
        %1514 = vmatpush1.bf16.msra.mxu0 0
        %1515 = vmatprep.subr.bf16.mxu0 0
        %1516 = vmatpush1.bf16.msra.mxu0 0
        %1517 = vmatprep.subr.bf16.mxu0 0
        %1518 = vmatpush1.bf16.msra.mxu0 0
        %1519 = vmatprep.subr.bf16.mxu0 0
        %1520 = vmatpush1.bf16.msra.mxu0 0
        %1521 = vmatprep.subr.bf16.mxu0 0
        %1522 = vmatpush1.bf16.msra.mxu0 0
        %1523 = vmatprep.subr.bf16.mxu0 0
        %1524 = vmatpush1.bf16.msra.mxu0 0
        %1525 = vmatprep.subr.bf16.mxu0 0
        %1526 = vmatpush1.bf16.msra.mxu0 0
        %1527 = vmatprep.mubr.bf16.mxu0 0
        %1528 = vmatmul.mubr.bf16.gmra.mrb[0].mxu0 %v1141
        %v1529 = vpop.f32.mrb[0].mxu0
        %v1530 = vadd.f32 %v1321, %v1529
        %v1531 = vpop.f32.mrb[0].mxu0
        %v1532 = vpop.f32.mrb[0].mxu0
        %v1533 = vadd.f32 %v1324, %v1532
        %v1534 = vpop.f32.mrb[0].mxu0
        %1535 = vmatprep.mubr.bf16.mxu0 0
        %1536 = vmatmul.mubr.bf16.gmra.mrb[0].mxu0 %v1142
        %v1537 = vpop.f32.mrb[0].mxu0
        %v1538 = vadd.f32 %v1329, %v1537
        %v1539 = vpop.f32.mrb[0].mxu0
        %v1540 = vpop.f32.mrb[0].mxu0
        %v1541 = vadd.f32 %v1332, %v1540
        %v1542 = vpop.f32.mrb[0].mxu0
        %1543 = vmatprep.mubr.bf16.mxu0 0
        %1544 = vmatmul.mubr.bf16.gmra.mrb[0].mxu0 %v1143
        %v1545 = vpop.f32.mrb[0].mxu0
        %v1546 = vadd.f32 %v1337, %v1545
        %v1547 = vpop.f32.mrb[0].mxu0
        %v1548 = vpop.f32.mrb[0].mxu0
        %v1549 = vadd.f32 %v1340, %v1548
        %v1550 = vpop.f32.mrb[0].mxu0
        %1551 = vmatprep.mubr.bf16.mxu0 0
        %1552 = vmatmul.mubr.bf16.gmra.mrb[0].mxu0 %v1144
        %v1553 = vpop.f32.mrb[0].mxu0
        %v1554 = vadd.f32 %v1345, %v1553
        %v1555 = vpop.f32.mrb[0].mxu0
        %v1556 = vpop.f32.mrb[0].mxu0
        %v1557 = vadd.f32 %v1348, %v1556
        %v1558 = vpop.f32.mrb[0].mxu0
        %1559 = vmatprep.mubr.bf16.mxu0 0
        %1560 = vmatmul.mubr.bf16.gmra.mrb[0].mxu0 %v1145
        %v1561 = vpop.f32.mrb[0].mxu0
        %v1562 = vadd.f32 %v1353, %v1561
        %v1563 = vpop.f32.mrb[0].mxu0
        %v1564 = vpop.f32.mrb[0].mxu0
        %v1565 = vadd.f32 %v1356, %v1564
        %v1566 = vpop.f32.mrb[0].mxu0
        %1567 = vmatprep.mubr.bf16.mxu0 0
        %1568 = vmatmul.mubr.bf16.gmra.mrb[0].mxu0 %v1146
        %v1569 = vpop.f32.mrb[0].mxu0
        %v1570 = vadd.f32 %v1361, %v1569
        %v1571 = vpop.f32.mrb[0].mxu0
        %v1572 = vpop.f32.mrb[0].mxu0
        %v1573 = vadd.f32 %v1364, %v1572
        %v1574 = vpop.f32.mrb[0].mxu0
        %1575 = vmatprep.mubr.bf16.mxu0 0
        %1576 = vmatmul.mubr.bf16.gmra.mrb[0].mxu0 %v1147
        %v1577 = vpop.f32.mrb[0].mxu0
        %v1578 = vadd.f32 %v1369, %v1577
        %v1579 = vpop.f32.mrb[0].mxu0
        %v1580 = vpop.f32.mrb[0].mxu0
        %v1581 = vadd.f32 %v1372, %v1580
        %v1582 = vpop.f32.mrb[0].mxu0
        %1583 = vmatprep.mubr.bf16.mxu0 0
        %1584 = vmatmul.mubr.bf16.gmra.mrb[0].mxu0 %v1148
        %v1585 = vpop.f32.mrb[0].mxu0
        %v1586 = vadd.f32 %v1377, %v1585
        %v1587 = vpop.f32.mrb[0].mxu0
        %v1588 = vpop.f32.mrb[0].mxu0
        %v1589 = vadd.f32 %v1380, %v1588
        %v1590 = vpop.f32.mrb[0].mxu0
        %1591 = vmatprep.mubr.bf16.mxu0 0
        %1592 = vmatmul.mubr.bf16.gmra.mrb[0].mxu0 %v1149
        %v1593 = vpop.f32.mrb[0].mxu0
        %v1594 = vadd.f32 %v1385, %v1593
        %v1595 = vpop.f32.mrb[0].mxu0
        %v1596 = vpop.f32.mrb[0].mxu0
        %v1597 = vadd.f32 %v1388, %v1596
        %v1598 = vpop.f32.mrb[0].mxu0
        %1599 = vmatprep.mubr.bf16.mxu0 0
        %1600 = vmatmul.mubr.bf16.gmra.mrb[0].mxu0 %v1150
        %v1601 = vpop.f32.mrb[0].mxu0
        %v1602 = vadd.f32 %v1393, %v1601
        %v1603 = vpop.f32.mrb[0].mxu0
        %v1604 = vpop.f32.mrb[0].mxu0
        %v1605 = vadd.f32 %v1396, %v1604
        %v1606 = vpop.f32.mrb[0].mxu0
        %1607 = vmatprep.mubr.bf16.mxu0 0
        %1608 = vmatmul.mubr.bf16.gmra.mrb[0].mxu0 %v1151
        %v1609 = vpop.f32.mrb[0].mxu0
        %v1610 = vadd.f32 %v1401, %v1609
        %v1611 = vpop.f32.mrb[0].mxu0
        %v1612 = vpop.f32.mrb[0].mxu0
        %v1613 = vadd.f32 %v1404, %v1612
        %v1614 = vpop.f32.mrb[0].mxu0
        %1615 = vmatprep.mubr.bf16.mxu0 0
        %1616 = vmatmul.mubr.bf16.gmra.mrb[0].mxu0 %v1152
        %v1617 = vpop.f32.mrb[0].mxu0
        %v1618 = vadd.f32 %v1409, %v1617
        %v1619 = vpop.f32.mrb[0].mxu0
        %v1620 = vpop.f32.mrb[0].mxu0
        %v1621 = vadd.f32 %v1412, %v1620
        %v1622 = vpop.f32.mrb[0].mxu0
        %1623 = vmatprep.mubr.bf16.mxu0 0
        %1624 = vmatmul.mubr.bf16.gmra.mrb[0].mxu0 %v1153
        %v1625 = vpop.f32.mrb[0].mxu0
        %v1626 = vadd.f32 %v1417, %v1625
        %v1627 = vpop.f32.mrb[0].mxu0
        %v1628 = vpop.f32.mrb[0].mxu0
        %v1629 = vadd.f32 %v1420, %v1628
        %v1630 = vpop.f32.mrb[0].mxu0
        %1631 = vmatprep.mubr.bf16.mxu0 0
        %1632 = vmatmul.mubr.bf16.gmra.mrb[0].mxu0 %v1154
        %v1633 = vpop.f32.mrb[0].mxu0
        %v1634 = vadd.f32 %v1425, %v1633
        %v1635 = vpop.f32.mrb[0].mxu0
        %v1636 = vpop.f32.mrb[0].mxu0
        %v1637 = vadd.f32 %v1428, %v1636
        %v1638 = vpop.f32.mrb[0].mxu0
        %1639 = vmatprep.mubr.bf16.mxu0 0
        %1640 = vmatmul.mubr.bf16.gmra.mrb[0].mxu0 %v1155
        %v1641 = vpop.f32.mrb[0].mxu0
        %v1642 = vadd.f32 %v1433, %v1641
        %v1643 = vpop.f32.mrb[0].mxu0
        %v1644 = vpop.f32.mrb[0].mxu0
        %v1645 = vadd.f32 %v1436, %v1644
        %v1646 = vpop.f32.mrb[0].mxu0
        %1647 = vmatprep.mubr.bf16.mxu0 0
        %1648 = vmatmul.mubr.bf16.gmra.mrb[0].mxu0 %v1156
        %v1649 = vpop.f32.mrb[0].mxu0
        %v1650 = vadd.f32 %v1441, %v1649
        %v1651 = vpop.f32.mrb[0].mxu0
        %v1652 = vpop.f32.mrb[0].mxu0
        %v1653 = vadd.f32 %v1444, %v1652
        %v1654 = vpop.f32.mrb[0].mxu0
        %1655 = vdwg.mxu0
        %v1656 = vld [vmem:[#allocation2 + $0x2] sm:$0xff]
        %v1657 = vld [vmem:[#allocation2 + $0xa] sm:$0xff]
        %v1658 = vld [vmem:[#allocation2 + $0x1a] sm:$0xff]
        %v1659 = vld [vmem:[#allocation2 + $0x22] sm:$0xff]
        %v1660 = vld [vmem:[#allocation2 + $0x32] sm:$0xff]
        %v1661 = vld [vmem:[#allocation2 + $0x3a] sm:$0xff]
        %v1662 = vld [vmem:[#allocation2 + $0x4a] sm:$0xff]
        %v1663 = vld [vmem:[#allocation2 + $0x52] sm:$0xff]
        %v1664 = vld [vmem:[#allocation2 + $0x62] sm:$0xff]
        %v1665 = vld [vmem:[#allocation2 + $0x6a] sm:$0xff]
        %v1666 = vld [vmem:[#allocation2 + $0x7a] sm:$0xff]
        %v1667 = vld [vmem:[#allocation2 + $0x82] sm:$0xff]
        %v1668 = vld [vmem:[#allocation2 + $0x92] sm:$0xff]
        %v1669 = vld [vmem:[#allocation2 + $0x9a] sm:$0xff]
        %v1670 = vld [vmem:[#allocation2 + $0xaa] sm:$0xff]
        %v1671 = vld [vmem:[#allocation2 + $0xb2] sm:$0xff]
        %v1672 = vld [vmem:[#allocation2 + $0xc2] sm:$0xff]
        %v1673 = vld [vmem:[#allocation2 + $0xca] sm:$0xff]
        %v1674 = vld [vmem:[#allocation2 + $0xda] sm:$0xff]
        %v1675 = vld [vmem:[#allocation2 + $0xe2] sm:$0xff]
        %v1676 = vld [vmem:[#allocation2 + $0xf2] sm:$0xff]
        %v1677 = vld [vmem:[#allocation2 + $0xfa] sm:$0xff]
        %v1678 = vld [vmem:[#allocation2 + $0x10a] sm:$0xff]
        %v1679 = vld [vmem:[#allocation2 + $0x112] sm:$0xff]
        %v1680 = vld [vmem:[#allocation2 + $0x122] sm:$0xff]
        %v1681 = vld [vmem:[#allocation2 + $0x12a] sm:$0xff]
        %v1682 = vld [vmem:[#allocation2 + $0x13a] sm:$0xff]
        %v1683 = vld [vmem:[#allocation2 + $0x142] sm:$0xff]
        %v1684 = vld [vmem:[#allocation2 + $0x152] sm:$0xff]
        %v1685 = vld [vmem:[#allocation2 + $0x15a] sm:$0xff]
        %v1686 = vld [vmem:[#allocation2 + $0x16a] sm:$0xff]
        %v1687 = vld [vmem:[#allocation2 + $0x172] sm:$0xff]
        %v1688 = vpack.c.bf16 %v1657, %v1656
        %v1689 = vpack.c.bf16 %v1659, %v1658
        %v1690 = vpack.c.bf16 %v1661, %v1660
        %v1691 = vpack.c.bf16 %v1663, %v1662
        %v1692 = vpack.c.bf16 %v1665, %v1664
        %v1693 = vpack.c.bf16 %v1667, %v1666
        %v1694 = vpack.c.bf16 %v1669, %v1668
        %v1695 = vpack.c.bf16 %v1671, %v1670
        %v1696 = vpack.c.bf16 %v1673, %v1672
        %v1697 = vpack.c.bf16 %v1675, %v1674
        %v1698 = vpack.c.bf16 %v1677, %v1676
        %v1699 = vpack.c.bf16 %v1679, %v1678
        %v1700 = vpack.c.bf16 %v1681, %v1680
        %v1701 = vpack.c.bf16 %v1683, %v1682
        %v1702 = vpack.c.bf16 %v1685, %v1684
        %v1703 = vpack.c.bf16 %v1687, %v1686
        %s1704 = scalar_lea.vmem %s4, 128
        %v1705 = vld [vmem:[%s1704] sm:$0xf]
        %v1706 = vld [vmem:[%s1704 + $0x4] sm:$0xf]
        %v1707 = vld [vmem:[%s1704 + $0x8] sm:$0xf]
        %v1708 = vld [vmem:[%s1704 + $0xc] sm:$0xf]
        %v1709 = vld [vmem:[%s1704 + $0x10] sm:$0xf]
        %v1710 = vld [vmem:[%s1704 + $0x14] sm:$0xf]
        %v1711 = vld [vmem:[%s1704 + $0x18] sm:$0xf]
        %v1712 = vld [vmem:[%s1704 + $0x1c] sm:$0xf]
        %v1713 = vld [vmem:[%s1704 + $0x20] sm:$0xf]
        %v1714 = vld [vmem:[%s1704 + $0x24] sm:$0xf]
        %v1715 = vld [vmem:[%s1704 + $0x28] sm:$0xf]
        %v1716 = vld [vmem:[%s1704 + $0x2c] sm:$0xf]
        %v1717 = vld [vmem:[%s1704 + $0x30] sm:$0xf]
        %v1718 = vld [vmem:[%s1704 + $0x34] sm:$0xf]
        %v1719 = vld [vmem:[%s1704 + $0x38] sm:$0xf]
        %v1720 = vld [vmem:[%s1704 + $0x3c] sm:$0xf]
        %v1737 = vunpack.c.l.b16 %v1705
        %v1738 = vunpack.c.l.b16 %v1706
        %v1739 = vunpack.c.l.b16 %v1707
        %v1740 = vunpack.c.l.b16 %v1708
        %v1741 = vunpack.c.l.b16 %v1709
        %v1742 = vunpack.c.l.b16 %v1710
        %v1743 = vunpack.c.l.b16 %v1711
        %v1744 = vunpack.c.l.b16 %v1712
        %v1745 = vunpack.c.l.b16 %v1713
        %v1746 = vunpack.c.l.b16 %v1714
        %v1747 = vunpack.c.l.b16 %v1715
        %v1748 = vunpack.c.l.b16 %v1716
        %v1749 = vunpack.c.l.b16 %v1717
        %v1750 = vunpack.c.l.b16 %v1718
        %v1751 = vunpack.c.l.b16 %v1719
        %v1752 = vunpack.c.l.b16 %v1720
        %v1753 = vpack.c.b16 %v1738, %v1737
        %v1754 = vpack.c.b16 %v1740, %v1739
        %v1755 = vpack.c.b16 %v1742, %v1741
        %v1756 = vpack.c.b16 %v1744, %v1743
        %v1757 = vpack.c.b16 %v1746, %v1745
        %v1758 = vpack.c.b16 %v1748, %v1747
        %v1759 = vpack.c.b16 %v1750, %v1749
        %v1760 = vpack.c.b16 %v1752, %v1751
        %1769 = vmatprep.subr.bf16.mxu0 0
        %1770 = vmatpush1.bf16.msra.mxu0 %v1753
        %1771 = vmatprep.subr.bf16.mxu0 0
        %1772 = vmatpush1.bf16.msra.mxu0 %v1754
        %1773 = vmatprep.subr.bf16.mxu0 0
        %1774 = vmatpush1.bf16.msra.mxu0 %v1755
        %1775 = vmatprep.subr.bf16.mxu0 0
        %1776 = vmatpush1.bf16.msra.mxu0 %v1756
        %1777 = vmatprep.subr.bf16.mxu0 0
        %1778 = vmatpush1.bf16.msra.mxu0 %v1757
        %1779 = vmatprep.subr.bf16.mxu0 0
        %1780 = vmatpush1.bf16.msra.mxu0 %v1758
        %1781 = vmatprep.subr.bf16.mxu0 0
        %1782 = vmatpush1.bf16.msra.mxu0 %v1759
        %1783 = vmatprep.subr.bf16.mxu0 0
        %1784 = vmatpush1.bf16.msra.mxu0 %v1760
        %1785 = vmatprep.subr.bf16.mxu0 0
        %1786 = vmatpush1.bf16.msra.mxu0 0
        %1787 = vmatprep.subr.bf16.mxu0 0
        %1788 = vmatpush1.bf16.msra.mxu0 0
        %1789 = vmatprep.subr.bf16.mxu0 0
        %1790 = vmatpush1.bf16.msra.mxu0 0
        %1791 = vmatprep.subr.bf16.mxu0 0
        %1792 = vmatpush1.bf16.msra.mxu0 0
        %1793 = vmatprep.subr.bf16.mxu0 0
        %1794 = vmatpush1.bf16.msra.mxu0 0
        %1795 = vmatprep.subr.bf16.mxu0 0
        %1796 = vmatpush1.bf16.msra.mxu0 0
        %1797 = vmatprep.subr.bf16.mxu0 0
        %1798 = vmatpush1.bf16.msra.mxu0 0
        %1799 = vmatprep.subr.bf16.mxu0 0
        %1800 = vmatpush1.bf16.msra.mxu0 0
        %1801 = vmatprep.mubr.bf16.mxu0 0
        %1802 = vmatmul.mubr.bf16.gmra.mrb[0].mxu0 %v1688
        %v1803 = vpop.f32.mrb[0].mxu0
        %v1804 = vadd.f32 0.0, %v1803
        %v1805 = vpop.f32.mrb[0].mxu0
        %v1806 = vpop.f32.mrb[0].mxu0
        %v1807 = vadd.f32 0.0, %v1806
        %v1808 = vpop.f32.mrb[0].mxu0
        %1809 = vmatprep.mubr.bf16.mxu0 0
        %1810 = vmatmul.mubr.bf16.gmra.mrb[0].mxu0 %v1689
        %v1811 = vpop.f32.mrb[0].mxu0
        %v1812 = vadd.f32 0.0, %v1811
        %v1813 = vpop.f32.mrb[0].mxu0
        %v1814 = vpop.f32.mrb[0].mxu0
        %v1815 = vadd.f32 0.0, %v1814
        %v1816 = vpop.f32.mrb[0].mxu0
        %1817 = vmatprep.mubr.bf16.mxu0 0
        %1818 = vmatmul.mubr.bf16.gmra.mrb[0].mxu0 %v1690
        %v1819 = vpop.f32.mrb[0].mxu0
        %v1820 = vadd.f32 0.0, %v1819
        %v1821 = vpop.f32.mrb[0].mxu0
        %v1822 = vpop.f32.mrb[0].mxu0
        %v1823 = vadd.f32 0.0, %v1822
        %v1824 = vpop.f32.mrb[0].mxu0
        %1825 = vmatprep.mubr.bf16.mxu0 0
        %1826 = vmatmul.mubr.bf16.gmra.mrb[0].mxu0 %v1691
        %v1827 = vpop.f32.mrb[0].mxu0
        %v1828 = vadd.f32 0.0, %v1827
        %v1829 = vpop.f32.mrb[0].mxu0
        %v1830 = vpop.f32.mrb[0].mxu0
        %v1831 = vadd.f32 0.0, %v1830
        %v1832 = vpop.f32.mrb[0].mxu0
        %1833 = vmatprep.mubr.bf16.mxu0 0
        %1834 = vmatmul.mubr.bf16.gmra.mrb[0].mxu0 %v1692
        %v1835 = vpop.f32.mrb[0].mxu0
        %v1836 = vadd.f32 0.0, %v1835
        %v1837 = vpop.f32.mrb[0].mxu0
        %v1838 = vpop.f32.mrb[0].mxu0
        %v1839 = vadd.f32 0.0, %v1838
        %v1840 = vpop.f32.mrb[0].mxu0
        %1841 = vmatprep.mubr.bf16.mxu0 0
        %1842 = vmatmul.mubr.bf16.gmra.mrb[0].mxu0 %v1693
        %v1843 = vpop.f32.mrb[0].mxu0
        %v1844 = vadd.f32 0.0, %v1843
        %v1845 = vpop.f32.mrb[0].mxu0
        %v1846 = vpop.f32.mrb[0].mxu0
        %v1847 = vadd.f32 0.0, %v1846
        %v1848 = vpop.f32.mrb[0].mxu0
        %1849 = vmatprep.mubr.bf16.mxu0 0
        %1850 = vmatmul.mubr.bf16.gmra.mrb[0].mxu0 %v1694
        %v1851 = vpop.f32.mrb[0].mxu0
        %v1852 = vadd.f32 0.0, %v1851
        %v1853 = vpop.f32.mrb[0].mxu0
        %v1854 = vpop.f32.mrb[0].mxu0
        %v1855 = vadd.f32 0.0, %v1854
        %v1856 = vpop.f32.mrb[0].mxu0
        %1857 = vmatprep.mubr.bf16.mxu0 0
        %1858 = vmatmul.mubr.bf16.gmra.mrb[0].mxu0 %v1695
        %v1859 = vpop.f32.mrb[0].mxu0
        %v1860 = vadd.f32 0.0, %v1859
        %v1861 = vpop.f32.mrb[0].mxu0
        %v1862 = vpop.f32.mrb[0].mxu0
        %v1863 = vadd.f32 0.0, %v1862
        %v1864 = vpop.f32.mrb[0].mxu0
        %1865 = vmatprep.mubr.bf16.mxu0 0
        %1866 = vmatmul.mubr.bf16.gmra.mrb[0].mxu0 %v1696
        %v1867 = vpop.f32.mrb[0].mxu0
        %v1868 = vadd.f32 0.0, %v1867
        %v1869 = vpop.f32.mrb[0].mxu0
        %v1870 = vpop.f32.mrb[0].mxu0
        %v1871 = vadd.f32 0.0, %v1870
        %v1872 = vpop.f32.mrb[0].mxu0
        %1873 = vmatprep.mubr.bf16.mxu0 0
        %1874 = vmatmul.mubr.bf16.gmra.mrb[0].mxu0 %v1697
        %v1875 = vpop.f32.mrb[0].mxu0
        %v1876 = vadd.f32 0.0, %v1875
        %v1877 = vpop.f32.mrb[0].mxu0
        %v1878 = vpop.f32.mrb[0].mxu0
        %v1879 = vadd.f32 0.0, %v1878
        %v1880 = vpop.f32.mrb[0].mxu0
        %1881 = vmatprep.mubr.bf16.mxu0 0
        %1882 = vmatmul.mubr.bf16.gmra.mrb[0].mxu0 %v1698
        %v1883 = vpop.f32.mrb[0].mxu0
        %v1884 = vadd.f32 0.0, %v1883
        %v1885 = vpop.f32.mrb[0].mxu0
        %v1886 = vpop.f32.mrb[0].mxu0
        %v1887 = vadd.f32 0.0, %v1886
        %v1888 = vpop.f32.mrb[0].mxu0
        %1889 = vmatprep.mubr.bf16.mxu0 0
        %1890 = vmatmul.mubr.bf16.gmra.mrb[0].mxu0 %v1699
        %v1891 = vpop.f32.mrb[0].mxu0
        %v1892 = vadd.f32 0.0, %v1891
        %v1893 = vpop.f32.mrb[0].mxu0
        %v1894 = vpop.f32.mrb[0].mxu0
        %v1895 = vadd.f32 0.0, %v1894
        %v1896 = vpop.f32.mrb[0].mxu0
        %1897 = vmatprep.mubr.bf16.mxu0 0
        %1898 = vmatmul.mubr.bf16.gmra.mrb[0].mxu0 %v1700
        %v1899 = vpop.f32.mrb[0].mxu0
        %v1900 = vadd.f32 0.0, %v1899
        %v1901 = vpop.f32.mrb[0].mxu0
        %v1902 = vpop.f32.mrb[0].mxu0
        %v1903 = vadd.f32 0.0, %v1902
        %v1904 = vpop.f32.mrb[0].mxu0
        %1905 = vmatprep.mubr.bf16.mxu0 0
        %1906 = vmatmul.mubr.bf16.gmra.mrb[0].mxu0 %v1701
        %v1907 = vpop.f32.mrb[0].mxu0
        %v1908 = vadd.f32 0.0, %v1907
        %v1909 = vpop.f32.mrb[0].mxu0
        %v1910 = vpop.f32.mrb[0].mxu0
        %v1911 = vadd.f32 0.0, %v1910
        %v1912 = vpop.f32.mrb[0].mxu0
        %1913 = vmatprep.mubr.bf16.mxu0 0
        %1914 = vmatmul.mubr.bf16.gmra.mrb[0].mxu0 %v1702
        %v1915 = vpop.f32.mrb[0].mxu0
        %v1916 = vadd.f32 0.0, %v1915
        %v1917 = vpop.f32.mrb[0].mxu0
        %v1918 = vpop.f32.mrb[0].mxu0
        %v1919 = vadd.f32 0.0, %v1918
        %v1920 = vpop.f32.mrb[0].mxu0
        %1921 = vmatprep.mubr.bf16.mxu0 0
        %1922 = vmatmul.mubr.bf16.gmra.mrb[0].mxu0 %v1703
        %v1923 = vpop.f32.mrb[0].mxu0
        %v1924 = vadd.f32 0.0, %v1923
        %v1925 = vpop.f32.mrb[0].mxu0
        %v1926 = vpop.f32.mrb[0].mxu0
        %v1927 = vadd.f32 0.0, %v1926
        %v1928 = vpop.f32.mrb[0].mxu0
        %1929 = vdwg.mxu0
        %v1930 = vadd.f32 %v1530, %v1804
        %v1931 = vadd.f32 %v1533, %v1807
        %v1932 = vadd.f32 %v1538, %v1812
        %v1933 = vadd.f32 %v1541, %v1815
        %v1934 = vadd.f32 %v1546, %v1820
        %v1935 = vadd.f32 %v1549, %v1823
        %v1936 = vadd.f32 %v1554, %v1828
        %v1937 = vadd.f32 %v1557, %v1831
        %v1938 = vadd.f32 %v1562, %v1836
        %v1939 = vadd.f32 %v1565, %v1839
        %v1940 = vadd.f32 %v1570, %v1844
        %v1941 = vadd.f32 %v1573, %v1847
        %v1942 = vadd.f32 %v1578, %v1852
        %v1943 = vadd.f32 %v1581, %v1855
        %v1944 = vadd.f32 %v1586, %v1860
        %v1945 = vadd.f32 %v1589, %v1863
        %v1946 = vadd.f32 %v1594, %v1868
        %v1947 = vadd.f32 %v1597, %v1871
        %v1948 = vadd.f32 %v1602, %v1876
        %v1949 = vadd.f32 %v1605, %v1879
        %v1950 = vadd.f32 %v1610, %v1884
        %v1951 = vadd.f32 %v1613, %v1887
        %v1952 = vadd.f32 %v1618, %v1892
        %v1953 = vadd.f32 %v1621, %v1895
        %v1954 = vadd.f32 %v1626, %v1900
        %v1955 = vadd.f32 %v1629, %v1903
        %v1956 = vadd.f32 %v1634, %v1908
        %v1957 = vadd.f32 %v1637, %v1911
        %v1958 = vadd.f32 %v1642, %v1916
        %v1959 = vadd.f32 %v1645, %v1919
        %v1960 = vadd.f32 %v1650, %v1924
        %v1961 = vadd.f32 %v1653, %v1927
        %v1962 = vld [vmem:[%s1044] sm:$0xff]
        %v1963 = vld [vmem:[%s1044 + $0x8] sm:$0xff]
        %v1964 = vld [vmem:[%s1044 + $0x18] sm:$0xff]
        %v1965 = vld [vmem:[%s1044 + $0x20] sm:$0xff]
        %v1966 = vld [vmem:[%s1044 + $0x30] sm:$0xff]
        %v1967 = vld [vmem:[%s1044 + $0x38] sm:$0xff]
        %v1968 = vld [vmem:[%s1044 + $0x48] sm:$0xff]
        %v1969 = vld [vmem:[%s1044 + $0x50] sm:$0xff]
        %v1970 = vld [vmem:[%s1044 + $0x60] sm:$0xff]
        %v1971 = vld [vmem:[%s1044 + $0x68] sm:$0xff]
        %v1972 = vld [vmem:[%s1044 + $0x78] sm:$0xff]
        %v1973 = vld [vmem:[%s1044 + $0x80] sm:$0xff]
        %v1974 = vld [vmem:[%s1044 + $0x90] sm:$0xff]
        %v1975 = vld [vmem:[%s1044 + $0x98] sm:$0xff]
        %v1976 = vld [vmem:[%s1044 + $0xa8] sm:$0xff]
        %v1977 = vld [vmem:[%s1044 + $0xb0] sm:$0xff]
        %v1978 = vld [vmem:[%s1044 + $0xc0] sm:$0xff]
        %v1979 = vld [vmem:[%s1044 + $0xc8] sm:$0xff]
        %v1980 = vld [vmem:[%s1044 + $0xd8] sm:$0xff]
        %v1981 = vld [vmem:[%s1044 + $0xe0] sm:$0xff]
        %v1982 = vld [vmem:[%s1044 + $0xf0] sm:$0xff]
        %v1983 = vld [vmem:[%s1044 + $0xf8] sm:$0xff]
        %v1984 = vld [vmem:[%s1044 + $0x108] sm:$0xff]
        %v1985 = vld [vmem:[%s1044 + $0x110] sm:$0xff]
        %v1986 = vld [vmem:[%s1044 + $0x120] sm:$0xff]
        %v1987 = vld [vmem:[%s1044 + $0x128] sm:$0xff]
        %v1988 = vld [vmem:[%s1044 + $0x138] sm:$0xff]
        %v1989 = vld [vmem:[%s1044 + $0x140] sm:$0xff]
        %v1990 = vld [vmem:[%s1044 + $0x150] sm:$0xff]
        %v1991 = vld [vmem:[%s1044 + $0x158] sm:$0xff]
        %v1992 = vld [vmem:[%s1044 + $0x168] sm:$0xff]
        %v1993 = vld [vmem:[%s1044 + $0x170] sm:$0xff]
        %v1994 = vpack.c.bf16 %v1963, %v1962
        %v1995 = vpack.c.bf16 %v1965, %v1964
        %v1996 = vpack.c.bf16 %v1967, %v1966
        %v1997 = vpack.c.bf16 %v1969, %v1968
        %v1998 = vpack.c.bf16 %v1971, %v1970
        %v1999 = vpack.c.bf16 %v1973, %v1972
        %v2000 = vpack.c.bf16 %v1975, %v1974
        %v2001 = vpack.c.bf16 %v1977, %v1976
        %v2002 = vpack.c.bf16 %v1979, %v1978
        %v2003 = vpack.c.bf16 %v1981, %v1980
        %v2004 = vpack.c.bf16 %v1983, %v1982
        %v2005 = vpack.c.bf16 %v1985, %v1984
        %v2006 = vpack.c.bf16 %v1987, %v1986
        %v2007 = vpack.c.bf16 %v1989, %v1988
        %v2008 = vpack.c.bf16 %v1991, %v1990
        %v2009 = vpack.c.bf16 %v1993, %v1992
        %s2010 = scalar_lea.vmem %s4, 192
        %v2011 = vld [vmem:[%s2010] sm:$0xf]
        %v2012 = vld [vmem:[%s2010 + $0x4] sm:$0xf]
        %v2013 = vld [vmem:[%s2010 + $0x8] sm:$0xf]
        %v2014 = vld [vmem:[%s2010 + $0xc] sm:$0xf]
        %v2015 = vld [vmem:[%s2010 + $0x10] sm:$0xf]
        %v2016 = vld [vmem:[%s2010 + $0x14] sm:$0xf]
        %v2017 = vld [vmem:[%s2010 + $0x18] sm:$0xf]
        %v2018 = vld [vmem:[%s2010 + $0x1c] sm:$0xf]
        %v2019 = vld [vmem:[%s2010 + $0x20] sm:$0xf]
        %v2020 = vld [vmem:[%s2010 + $0x24] sm:$0xf]
        %v2021 = vld [vmem:[%s2010 + $0x28] sm:$0xf]
        %v2022 = vld [vmem:[%s2010 + $0x2c] sm:$0xf]
        %v2023 = vld [vmem:[%s2010 + $0x30] sm:$0xf]
        %v2024 = vld [vmem:[%s2010 + $0x34] sm:$0xf]
        %v2025 = vld [vmem:[%s2010 + $0x38] sm:$0xf]
        %v2026 = vld [vmem:[%s2010 + $0x3c] sm:$0xf]
        %v2043 = vunpack.c.l.b16 %v2011
        %v2044 = vunpack.c.l.b16 %v2012
        %v2045 = vunpack.c.l.b16 %v2013
        %v2046 = vunpack.c.l.b16 %v2014
        %v2047 = vunpack.c.l.b16 %v2015
        %v2048 = vunpack.c.l.b16 %v2016
        %v2049 = vunpack.c.l.b16 %v2017
        %v2050 = vunpack.c.l.b16 %v2018
        %v2051 = vunpack.c.l.b16 %v2019
        %v2052 = vunpack.c.l.b16 %v2020
        %v2053 = vunpack.c.l.b16 %v2021
        %v2054 = vunpack.c.l.b16 %v2022
        %v2055 = vunpack.c.l.b16 %v2023
        %v2056 = vunpack.c.l.b16 %v2024
        %v2057 = vunpack.c.l.b16 %v2025
        %v2058 = vunpack.c.l.b16 %v2026
        %v2059 = vpack.c.b16 %v2044, %v2043
        %v2060 = vpack.c.b16 %v2046, %v2045
        %v2061 = vpack.c.b16 %v2048, %v2047
        %v2062 = vpack.c.b16 %v2050, %v2049
        %v2063 = vpack.c.b16 %v2052, %v2051
        %v2064 = vpack.c.b16 %v2054, %v2053
        %v2065 = vpack.c.b16 %v2056, %v2055
        %v2066 = vpack.c.b16 %v2058, %v2057
        %2075 = vmatprep.subr.bf16.mxu0 0
        %2076 = vmatpush1.bf16.msra.mxu0 %v2059
        %2077 = vmatprep.subr.bf16.mxu0 0
        %2078 = vmatpush1.bf16.msra.mxu0 %v2060
        %2079 = vmatprep.subr.bf16.mxu0 0
        %2080 = vmatpush1.bf16.msra.mxu0 %v2061
        %2081 = vmatprep.subr.bf16.mxu0 0
        %2082 = vmatpush1.bf16.msra.mxu0 %v2062
        %2083 = vmatprep.subr.bf16.mxu0 0
        %2084 = vmatpush1.bf16.msra.mxu0 %v2063
        %2085 = vmatprep.subr.bf16.mxu0 0
        %2086 = vmatpush1.bf16.msra.mxu0 %v2064
        %2087 = vmatprep.subr.bf16.mxu0 0
        %2088 = vmatpush1.bf16.msra.mxu0 %v2065
        %2089 = vmatprep.subr.bf16.mxu0 0
        %2090 = vmatpush1.bf16.msra.mxu0 %v2066
        %2091 = vmatprep.subr.bf16.mxu0 0
        %2092 = vmatpush1.bf16.msra.mxu0 0
        %2093 = vmatprep.subr.bf16.mxu0 0
        %2094 = vmatpush1.bf16.msra.mxu0 0
        %2095 = vmatprep.subr.bf16.mxu0 0
        %2096 = vmatpush1.bf16.msra.mxu0 0
        %2097 = vmatprep.subr.bf16.mxu0 0
        %2098 = vmatpush1.bf16.msra.mxu0 0
        %2099 = vmatprep.subr.bf16.mxu0 0
        %2100 = vmatpush1.bf16.msra.mxu0 0
        %2101 = vmatprep.subr.bf16.mxu0 0
        %2102 = vmatpush1.bf16.msra.mxu0 0
        %2103 = vmatprep.subr.bf16.mxu0 0
        %2104 = vmatpush1.bf16.msra.mxu0 0
        %2105 = vmatprep.subr.bf16.mxu0 0
        %2106 = vmatpush1.bf16.msra.mxu0 0
        %2107 = vmatprep.mubr.bf16.mxu0 0
        %2108 = vmatmul.mubr.bf16.gmra.mrb[0].mxu0 %v1994
        %v2109 = vpop.f32.mrb[0].mxu0
        %v2110 = vadd.f32 0.0, %v2109
        %v2111 = vpop.f32.mrb[0].mxu0
        %v2112 = vpop.f32.mrb[0].mxu0
        %v2113 = vadd.f32 0.0, %v2112
        %v2114 = vpop.f32.mrb[0].mxu0
        %2115 = vmatprep.mubr.bf16.mxu0 0
        %2116 = vmatmul.mubr.bf16.gmra.mrb[0].mxu0 %v1995
        %v2117 = vpop.f32.mrb[0].mxu0
        %v2118 = vadd.f32 0.0, %v2117
        %v2119 = vpop.f32.mrb[0].mxu0
        %v2120 = vpop.f32.mrb[0].mxu0
        %v2121 = vadd.f32 0.0, %v2120
        %v2122 = vpop.f32.mrb[0].mxu0
        %2123 = vmatprep.mubr.bf16.mxu0 0
        %2124 = vmatmul.mubr.bf16.gmra.mrb[0].mxu0 %v1996
        %v2125 = vpop.f32.mrb[0].mxu0
        %v2126 = vadd.f32 0.0, %v2125
        %v2127 = vpop.f32.mrb[0].mxu0
        %v2128 = vpop.f32.mrb[0].mxu0
        %v2129 = vadd.f32 0.0, %v2128
        %v2130 = vpop.f32.mrb[0].mxu0
        %2131 = vmatprep.mubr.bf16.mxu0 0
        %2132 = vmatmul.mubr.bf16.gmra.mrb[0].mxu0 %v1997
        %v2133 = vpop.f32.mrb[0].mxu0
        %v2134 = vadd.f32 0.0, %v2133
        %v2135 = vpop.f32.mrb[0].mxu0
        %v2136 = vpop.f32.mrb[0].mxu0
        %v2137 = vadd.f32 0.0, %v2136
        %v2138 = vpop.f32.mrb[0].mxu0
        %2139 = vmatprep.mubr.bf16.mxu0 0
        %2140 = vmatmul.mubr.bf16.gmra.mrb[0].mxu0 %v1998
        %v2141 = vpop.f32.mrb[0].mxu0
        %v2142 = vadd.f32 0.0, %v2141
        %v2143 = vpop.f32.mrb[0].mxu0
        %v2144 = vpop.f32.mrb[0].mxu0
        %v2145 = vadd.f32 0.0, %v2144
        %v2146 = vpop.f32.mrb[0].mxu0
        %2147 = vmatprep.mubr.bf16.mxu0 0
        %2148 = vmatmul.mubr.bf16.gmra.mrb[0].mxu0 %v1999
        %v2149 = vpop.f32.mrb[0].mxu0
        %v2150 = vadd.f32 0.0, %v2149
        %v2151 = vpop.f32.mrb[0].mxu0
        %v2152 = vpop.f32.mrb[0].mxu0
        %v2153 = vadd.f32 0.0, %v2152
        %v2154 = vpop.f32.mrb[0].mxu0
        %2155 = vmatprep.mubr.bf16.mxu0 0
        %2156 = vmatmul.mubr.bf16.gmra.mrb[0].mxu0 %v2000
        %v2157 = vpop.f32.mrb[0].mxu0
        %v2158 = vadd.f32 0.0, %v2157
        %v2159 = vpop.f32.mrb[0].mxu0
        %v2160 = vpop.f32.mrb[0].mxu0
        %v2161 = vadd.f32 0.0, %v2160
        %v2162 = vpop.f32.mrb[0].mxu0
        %2163 = vmatprep.mubr.bf16.mxu0 0
        %2164 = vmatmul.mubr.bf16.gmra.mrb[0].mxu0 %v2001
        %v2165 = vpop.f32.mrb[0].mxu0
        %v2166 = vadd.f32 0.0, %v2165
        %v2167 = vpop.f32.mrb[0].mxu0
        %v2168 = vpop.f32.mrb[0].mxu0
        %v2169 = vadd.f32 0.0, %v2168
        %v2170 = vpop.f32.mrb[0].mxu0
        %2171 = vmatprep.mubr.bf16.mxu0 0
        %2172 = vmatmul.mubr.bf16.gmra.mrb[0].mxu0 %v2002
        %v2173 = vpop.f32.mrb[0].mxu0
        %v2174 = vadd.f32 0.0, %v2173
        %v2175 = vpop.f32.mrb[0].mxu0
        %v2176 = vpop.f32.mrb[0].mxu0
        %v2177 = vadd.f32 0.0, %v2176
        %v2178 = vpop.f32.mrb[0].mxu0
        %2179 = vmatprep.mubr.bf16.mxu0 0
        %2180 = vmatmul.mubr.bf16.gmra.mrb[0].mxu0 %v2003
        %v2181 = vpop.f32.mrb[0].mxu0
        %v2182 = vadd.f32 0.0, %v2181
        %v2183 = vpop.f32.mrb[0].mxu0
        %v2184 = vpop.f32.mrb[0].mxu0
        %v2185 = vadd.f32 0.0, %v2184
        %v2186 = vpop.f32.mrb[0].mxu0
        %2187 = vmatprep.mubr.bf16.mxu0 0
        %2188 = vmatmul.mubr.bf16.gmra.mrb[0].mxu0 %v2004
        %v2189 = vpop.f32.mrb[0].mxu0
        %v2190 = vadd.f32 0.0, %v2189
        %v2191 = vpop.f32.mrb[0].mxu0
        %v2192 = vpop.f32.mrb[0].mxu0
        %v2193 = vadd.f32 0.0, %v2192
        %v2194 = vpop.f32.mrb[0].mxu0
        %2195 = vmatprep.mubr.bf16.mxu0 0
        %2196 = vmatmul.mubr.bf16.gmra.mrb[0].mxu0 %v2005
        %v2197 = vpop.f32.mrb[0].mxu0
        %v2198 = vadd.f32 0.0, %v2197
        %v2199 = vpop.f32.mrb[0].mxu0
        %v2200 = vpop.f32.mrb[0].mxu0
        %v2201 = vadd.f32 0.0, %v2200
        %v2202 = vpop.f32.mrb[0].mxu0
        %2203 = vmatprep.mubr.bf16.mxu0 0
        %2204 = vmatmul.mubr.bf16.gmra.mrb[0].mxu0 %v2006
        %v2205 = vpop.f32.mrb[0].mxu0
        %v2206 = vadd.f32 0.0, %v2205
        %v2207 = vpop.f32.mrb[0].mxu0
        %v2208 = vpop.f32.mrb[0].mxu0
        %v2209 = vadd.f32 0.0, %v2208
        %v2210 = vpop.f32.mrb[0].mxu0
        %2211 = vmatprep.mubr.bf16.mxu0 0
        %2212 = vmatmul.mubr.bf16.gmra.mrb[0].mxu0 %v2007
        %v2213 = vpop.f32.mrb[0].mxu0
        %v2214 = vadd.f32 0.0, %v2213
        %v2215 = vpop.f32.mrb[0].mxu0
        %v2216 = vpop.f32.mrb[0].mxu0
        %v2217 = vadd.f32 0.0, %v2216
        %v2218 = vpop.f32.mrb[0].mxu0
        %2219 = vmatprep.mubr.bf16.mxu0 0
        %2220 = vmatmul.mubr.bf16.gmra.mrb[0].mxu0 %v2008
        %v2221 = vpop.f32.mrb[0].mxu0
        %v2222 = vadd.f32 0.0, %v2221
        %v2223 = vpop.f32.mrb[0].mxu0
        %v2224 = vpop.f32.mrb[0].mxu0
        %v2225 = vadd.f32 0.0, %v2224
        %v2226 = vpop.f32.mrb[0].mxu0
        %2227 = vmatprep.mubr.bf16.mxu0 0
        %2228 = vmatmul.mubr.bf16.gmra.mrb[0].mxu0 %v2009
        %v2229 = vpop.f32.mrb[0].mxu0
        %v2230 = vadd.f32 0.0, %v2229
        %v2231 = vpop.f32.mrb[0].mxu0
        %v2232 = vpop.f32.mrb[0].mxu0
        %v2233 = vadd.f32 0.0, %v2232
        %v2234 = vpop.f32.mrb[0].mxu0
        %2235 = vdwg.mxu0
        %v2236 = vadd.f32 %v1930, %v2110
        %v2237 = vadd.f32 %v1931, %v2113
        %v2238 = vadd.f32 %v1932, %v2118
        %v2239 = vadd.f32 %v1933, %v2121
        %v2240 = vadd.f32 %v1934, %v2126
        %v2241 = vadd.f32 %v1935, %v2129
        %v2242 = vadd.f32 %v1936, %v2134
        %v2243 = vadd.f32 %v1937, %v2137
        %v2244 = vadd.f32 %v1938, %v2142
        %v2245 = vadd.f32 %v1939, %v2145
        %v2246 = vadd.f32 %v1940, %v2150
        %v2247 = vadd.f32 %v1941, %v2153
        %v2248 = vadd.f32 %v1942, %v2158
        %v2249 = vadd.f32 %v1943, %v2161
        %v2250 = vadd.f32 %v1944, %v2166
        %v2251 = vadd.f32 %v1945, %v2169
        %v2252 = vadd.f32 %v1946, %v2174
        %v2253 = vadd.f32 %v1947, %v2177
        %v2254 = vadd.f32 %v1948, %v2182
        %v2255 = vadd.f32 %v1949, %v2185
        %v2256 = vadd.f32 %v1950, %v2190
        %v2257 = vadd.f32 %v1951, %v2193
        %v2258 = vadd.f32 %v1952, %v2198
        %v2259 = vadd.f32 %v1953, %v2201
        %v2260 = vadd.f32 %v1954, %v2206
        %v2261 = vadd.f32 %v1955, %v2209
        %v2262 = vadd.f32 %v1956, %v2214
        %v2263 = vadd.f32 %v1957, %v2217
        %v2264 = vadd.f32 %v1958, %v2222
        %v2265 = vadd.f32 %v1959, %v2225
        %v2266 = vadd.f32 %v1960, %v2230
        %v2267 = vadd.f32 %v1961, %v2233
        %v2268 = vld [vmem:[%s1044 + $0x1] sm:$0xff]
        %v2269 = vld [vmem:[%s1044 + $0x9] sm:$0xff]
        %v2270 = vld [vmem:[%s1044 + $0x19] sm:$0xff]
        %v2271 = vld [vmem:[%s1044 + $0x21] sm:$0xff]
        %v2272 = vld [vmem:[%s1044 + $0x31] sm:$0xff]
        %v2273 = vld [vmem:[%s1044 + $0x39] sm:$0xff]
        %v2274 = vld [vmem:[%s1044 + $0x49] sm:$0xff]
        %v2275 = vld [vmem:[%s1044 + $0x51] sm:$0xff]
        %v2276 = vld [vmem:[%s1044 + $0x61] sm:$0xff]
        %v2277 = vld [vmem:[%s1044 + $0x69] sm:$0xff]
        %v2278 = vld [vmem:[%s1044 + $0x79] sm:$0xff]
        %v2279 = vld [vmem:[%s1044 + $0x81] sm:$0xff]
        %v2280 = vld [vmem:[%s1044 + $0x91] sm:$0xff]
        %v2281 = vld [vmem:[%s1044 + $0x99] sm:$0xff]
        %v2282 = vld [vmem:[%s1044 + $0xa9] sm:$0xff]
        %v2283 = vld [vmem:[%s1044 + $0xb1] sm:$0xff]
        %v2284 = vld [vmem:[%s1044 + $0xc1] sm:$0xff]
        %v2285 = vld [vmem:[%s1044 + $0xc9] sm:$0xff]
        %v2286 = vld [vmem:[%s1044 + $0xd9] sm:$0xff]
        %v2287 = vld [vmem:[%s1044 + $0xe1] sm:$0xff]
        %v2288 = vld [vmem:[%s1044 + $0xf1] sm:$0xff]
        %v2289 = vld [vmem:[%s1044 + $0xf9] sm:$0xff]
        %v2290 = vld [vmem:[%s1044 + $0x109] sm:$0xff]
        %v2291 = vld [vmem:[%s1044 + $0x111] sm:$0xff]
        %v2292 = vld [vmem:[%s1044 + $0x121] sm:$0xff]
        %v2293 = vld [vmem:[%s1044 + $0x129] sm:$0xff]
        %v2294 = vld [vmem:[%s1044 + $0x139] sm:$0xff]
        %v2295 = vld [vmem:[%s1044 + $0x141] sm:$0xff]
        %v2296 = vld [vmem:[%s1044 + $0x151] sm:$0xff]
        %v2297 = vld [vmem:[%s1044 + $0x159] sm:$0xff]
        %v2298 = vld [vmem:[%s1044 + $0x169] sm:$0xff]
        %v2299 = vld [vmem:[%s1044 + $0x171] sm:$0xff]
        %v2300 = vpack.c.bf16 %v2269, %v2268
        %v2301 = vpack.c.bf16 %v2271, %v2270
        %v2302 = vpack.c.bf16 %v2273, %v2272
        %v2303 = vpack.c.bf16 %v2275, %v2274
        %v2304 = vpack.c.bf16 %v2277, %v2276
        %v2305 = vpack.c.bf16 %v2279, %v2278
        %v2306 = vpack.c.bf16 %v2281, %v2280
        %v2307 = vpack.c.bf16 %v2283, %v2282
        %v2308 = vpack.c.bf16 %v2285, %v2284
        %v2309 = vpack.c.bf16 %v2287, %v2286
        %v2310 = vpack.c.bf16 %v2289, %v2288
        %v2311 = vpack.c.bf16 %v2291, %v2290
        %v2312 = vpack.c.bf16 %v2293, %v2292
        %v2313 = vpack.c.bf16 %v2295, %v2294
        %v2314 = vpack.c.bf16 %v2297, %v2296
        %v2315 = vpack.c.bf16 %v2299, %v2298
        %s2316 = scalar_lea.vmem %s4, 256
        %v2317 = vld [vmem:[%s2316] sm:$0xf]
        %v2318 = vld [vmem:[%s2316 + $0x4] sm:$0xf]
        %v2319 = vld [vmem:[%s2316 + $0x8] sm:$0xf]
        %v2320 = vld [vmem:[%s2316 + $0xc] sm:$0xf]
        %v2321 = vld [vmem:[%s2316 + $0x10] sm:$0xf]
        %v2322 = vld [vmem:[%s2316 + $0x14] sm:$0xf]
        %v2323 = vld [vmem:[%s2316 + $0x18] sm:$0xf]
        %v2324 = vld [vmem:[%s2316 + $0x1c] sm:$0xf]
        %v2325 = vld [vmem:[%s2316 + $0x20] sm:$0xf]
        %v2326 = vld [vmem:[%s2316 + $0x24] sm:$0xf]
        %v2327 = vld [vmem:[%s2316 + $0x28] sm:$0xf]
        %v2328 = vld [vmem:[%s2316 + $0x2c] sm:$0xf]
        %v2329 = vld [vmem:[%s2316 + $0x30] sm:$0xf]
        %v2330 = vld [vmem:[%s2316 + $0x34] sm:$0xf]
        %v2331 = vld [vmem:[%s2316 + $0x38] sm:$0xf]
        %v2332 = vld [vmem:[%s2316 + $0x3c] sm:$0xf]
        %v2349 = vunpack.c.l.b16 %v2317
        %v2350 = vunpack.c.l.b16 %v2318
        %v2351 = vunpack.c.l.b16 %v2319
        %v2352 = vunpack.c.l.b16 %v2320
        %v2353 = vunpack.c.l.b16 %v2321
        %v2354 = vunpack.c.l.b16 %v2322
        %v2355 = vunpack.c.l.b16 %v2323
        %v2356 = vunpack.c.l.b16 %v2324
        %v2357 = vunpack.c.l.b16 %v2325
        %v2358 = vunpack.c.l.b16 %v2326
        %v2359 = vunpack.c.l.b16 %v2327
        %v2360 = vunpack.c.l.b16 %v2328
        %v2361 = vunpack.c.l.b16 %v2329
        %v2362 = vunpack.c.l.b16 %v2330
        %v2363 = vunpack.c.l.b16 %v2331
        %v2364 = vunpack.c.l.b16 %v2332
        %v2365 = vpack.c.b16 %v2350, %v2349
        %v2366 = vpack.c.b16 %v2352, %v2351
        %v2367 = vpack.c.b16 %v2354, %v2353
        %v2368 = vpack.c.b16 %v2356, %v2355
        %v2369 = vpack.c.b16 %v2358, %v2357
        %v2370 = vpack.c.b16 %v2360, %v2359
        %v2371 = vpack.c.b16 %v2362, %v2361
        %v2372 = vpack.c.b16 %v2364, %v2363
        %2381 = vmatprep.subr.bf16.mxu0 0
        %2382 = vmatpush1.bf16.msra.mxu0 %v2365
        %2383 = vmatprep.subr.bf16.mxu0 0
        %2384 = vmatpush1.bf16.msra.mxu0 %v2366
        %2385 = vmatprep.subr.bf16.mxu0 0
        %2386 = vmatpush1.bf16.msra.mxu0 %v2367
        %2387 = vmatprep.subr.bf16.mxu0 0
        %2388 = vmatpush1.bf16.msra.mxu0 %v2368
        %2389 = vmatprep.subr.bf16.mxu0 0
        %2390 = vmatpush1.bf16.msra.mxu0 %v2369
        %2391 = vmatprep.subr.bf16.mxu0 0
        %2392 = vmatpush1.bf16.msra.mxu0 %v2370
        %2393 = vmatprep.subr.bf16.mxu0 0
        %2394 = vmatpush1.bf16.msra.mxu0 %v2371
        %2395 = vmatprep.subr.bf16.mxu0 0
        %2396 = vmatpush1.bf16.msra.mxu0 %v2372
        %2397 = vmatprep.subr.bf16.mxu0 0
        %2398 = vmatpush1.bf16.msra.mxu0 0
        %2399 = vmatprep.subr.bf16.mxu0 0
        %2400 = vmatpush1.bf16.msra.mxu0 0
        %2401 = vmatprep.subr.bf16.mxu0 0
        %2402 = vmatpush1.bf16.msra.mxu0 0
        %2403 = vmatprep.subr.bf16.mxu0 0
        %2404 = vmatpush1.bf16.msra.mxu0 0
        %2405 = vmatprep.subr.bf16.mxu0 0
        %2406 = vmatpush1.bf16.msra.mxu0 0
        %2407 = vmatprep.subr.bf16.mxu0 0
        %2408 = vmatpush1.bf16.msra.mxu0 0
        %2409 = vmatprep.subr.bf16.mxu0 0
        %2410 = vmatpush1.bf16.msra.mxu0 0
        %2411 = vmatprep.subr.bf16.mxu0 0
        %2412 = vmatpush1.bf16.msra.mxu0 0
        %2413 = vmatprep.mubr.bf16.mxu0 0
        %2414 = vmatmul.mubr.bf16.gmra.mrb[0].mxu0 %v2300
        %v2415 = vpop.f32.mrb[0].mxu0
        %v2416 = vadd.f32 0.0, %v2415
        %v2417 = vpop.f32.mrb[0].mxu0
        %v2418 = vpop.f32.mrb[0].mxu0
        %v2419 = vadd.f32 0.0, %v2418
        %v2420 = vpop.f32.mrb[0].mxu0
        %2421 = vmatprep.mubr.bf16.mxu0 0
        %2422 = vmatmul.mubr.bf16.gmra.mrb[0].mxu0 %v2301
        %v2423 = vpop.f32.mrb[0].mxu0
        %v2424 = vadd.f32 0.0, %v2423
        %v2425 = vpop.f32.mrb[0].mxu0
        %v2426 = vpop.f32.mrb[0].mxu0
        %v2427 = vadd.f32 0.0, %v2426
        %v2428 = vpop.f32.mrb[0].mxu0
        %2429 = vmatprep.mubr.bf16.mxu0 0
        %2430 = vmatmul.mubr.bf16.gmra.mrb[0].mxu0 %v2302
        %v2431 = vpop.f32.mrb[0].mxu0
        %v2432 = vadd.f32 0.0, %v2431
        %v2433 = vpop.f32.mrb[0].mxu0
        %v2434 = vpop.f32.mrb[0].mxu0
        %v2435 = vadd.f32 0.0, %v2434
        %v2436 = vpop.f32.mrb[0].mxu0
        %2437 = vmatprep.mubr.bf16.mxu0 0
        %2438 = vmatmul.mubr.bf16.gmra.mrb[0].mxu0 %v2303
        %v2439 = vpop.f32.mrb[0].mxu0
        %v2440 = vadd.f32 0.0, %v2439
        %v2441 = vpop.f32.mrb[0].mxu0
        %v2442 = vpop.f32.mrb[0].mxu0
        %v2443 = vadd.f32 0.0, %v2442
        %v2444 = vpop.f32.mrb[0].mxu0
        %2445 = vmatprep.mubr.bf16.mxu0 0
        %2446 = vmatmul.mubr.bf16.gmra.mrb[0].mxu0 %v2304
        %v2447 = vpop.f32.mrb[0].mxu0
        %v2448 = vadd.f32 0.0, %v2447
        %v2449 = vpop.f32.mrb[0].mxu0
        %v2450 = vpop.f32.mrb[0].mxu0
        %v2451 = vadd.f32 0.0, %v2450
        %v2452 = vpop.f32.mrb[0].mxu0
        %2453 = vmatprep.mubr.bf16.mxu0 0
        %2454 = vmatmul.mubr.bf16.gmra.mrb[0].mxu0 %v2305
        %v2455 = vpop.f32.mrb[0].mxu0
        %v2456 = vadd.f32 0.0, %v2455
        %v2457 = vpop.f32.mrb[0].mxu0
        %v2458 = vpop.f32.mrb[0].mxu0
        %v2459 = vadd.f32 0.0, %v2458
        %v2460 = vpop.f32.mrb[0].mxu0
        %2461 = vmatprep.mubr.bf16.mxu0 0
        %2462 = vmatmul.mubr.bf16.gmra.mrb[0].mxu0 %v2306
        %v2463 = vpop.f32.mrb[0].mxu0
        %v2464 = vadd.f32 0.0, %v2463
        %v2465 = vpop.f32.mrb[0].mxu0
        %v2466 = vpop.f32.mrb[0].mxu0
        %v2467 = vadd.f32 0.0, %v2466
        %v2468 = vpop.f32.mrb[0].mxu0
        %2469 = vmatprep.mubr.bf16.mxu0 0
        %2470 = vmatmul.mubr.bf16.gmra.mrb[0].mxu0 %v2307
        %v2471 = vpop.f32.mrb[0].mxu0
        %v2472 = vadd.f32 0.0, %v2471
        %v2473 = vpop.f32.mrb[0].mxu0
        %v2474 = vpop.f32.mrb[0].mxu0
        %v2475 = vadd.f32 0.0, %v2474
        %v2476 = vpop.f32.mrb[0].mxu0
        %2477 = vmatprep.mubr.bf16.mxu0 0
        %2478 = vmatmul.mubr.bf16.gmra.mrb[0].mxu0 %v2308
        %v2479 = vpop.f32.mrb[0].mxu0
        %v2480 = vadd.f32 0.0, %v2479
        %v2481 = vpop.f32.mrb[0].mxu0
        %v2482 = vpop.f32.mrb[0].mxu0
        %v2483 = vadd.f32 0.0, %v2482
        %v2484 = vpop.f32.mrb[0].mxu0
        %2485 = vmatprep.mubr.bf16.mxu0 0
        %2486 = vmatmul.mubr.bf16.gmra.mrb[0].mxu0 %v2309
        %v2487 = vpop.f32.mrb[0].mxu0
        %v2488 = vadd.f32 0.0, %v2487
        %v2489 = vpop.f32.mrb[0].mxu0
        %v2490 = vpop.f32.mrb[0].mxu0
        %v2491 = vadd.f32 0.0, %v2490
        %v2492 = vpop.f32.mrb[0].mxu0
        %2493 = vmatprep.mubr.bf16.mxu0 0
        %2494 = vmatmul.mubr.bf16.gmra.mrb[0].mxu0 %v2310
        %v2495 = vpop.f32.mrb[0].mxu0
        %v2496 = vadd.f32 0.0, %v2495
        %v2497 = vpop.f32.mrb[0].mxu0
        %v2498 = vpop.f32.mrb[0].mxu0
        %v2499 = vadd.f32 0.0, %v2498
        %v2500 = vpop.f32.mrb[0].mxu0
        %2501 = vmatprep.mubr.bf16.mxu0 0
        %2502 = vmatmul.mubr.bf16.gmra.mrb[0].mxu0 %v2311
        %v2503 = vpop.f32.mrb[0].mxu0
        %v2504 = vadd.f32 0.0, %v2503
        %v2505 = vpop.f32.mrb[0].mxu0
        %v2506 = vpop.f32.mrb[0].mxu0
        %v2507 = vadd.f32 0.0, %v2506
        %v2508 = vpop.f32.mrb[0].mxu0
        %2509 = vmatprep.mubr.bf16.mxu0 0
        %2510 = vmatmul.mubr.bf16.gmra.mrb[0].mxu0 %v2312
        %v2511 = vpop.f32.mrb[0].mxu0
        %v2512 = vadd.f32 0.0, %v2511
        %v2513 = vpop.f32.mrb[0].mxu0
        %v2514 = vpop.f32.mrb[0].mxu0
        %v2515 = vadd.f32 0.0, %v2514
        %v2516 = vpop.f32.mrb[0].mxu0
        %2517 = vmatprep.mubr.bf16.mxu0 0
        %2518 = vmatmul.mubr.bf16.gmra.mrb[0].mxu0 %v2313
        %v2519 = vpop.f32.mrb[0].mxu0
        %v2520 = vadd.f32 0.0, %v2519
        %v2521 = vpop.f32.mrb[0].mxu0
        %v2522 = vpop.f32.mrb[0].mxu0
        %v2523 = vadd.f32 0.0, %v2522
        %v2524 = vpop.f32.mrb[0].mxu0
        %2525 = vmatprep.mubr.bf16.mxu0 0
        %2526 = vmatmul.mubr.bf16.gmra.mrb[0].mxu0 %v2314
        %v2527 = vpop.f32.mrb[0].mxu0
        %v2528 = vadd.f32 0.0, %v2527
        %v2529 = vpop.f32.mrb[0].mxu0
        %v2530 = vpop.f32.mrb[0].mxu0
        %v2531 = vadd.f32 0.0, %v2530
        %v2532 = vpop.f32.mrb[0].mxu0
        %2533 = vmatprep.mubr.bf16.mxu0 0
        %2534 = vmatmul.mubr.bf16.gmra.mrb[0].mxu0 %v2315
        %v2535 = vpop.f32.mrb[0].mxu0
        %v2536 = vadd.f32 0.0, %v2535
        %v2537 = vpop.f32.mrb[0].mxu0
        %v2538 = vpop.f32.mrb[0].mxu0
        %v2539 = vadd.f32 0.0, %v2538
        %v2540 = vpop.f32.mrb[0].mxu0
        %2541 = vdwg.mxu0
        %v2542 = vadd.f32 %v2236, %v2416
        %v2543 = vadd.f32 %v2237, %v2419
        %v2544 = vadd.f32 %v2238, %v2424
        %v2545 = vadd.f32 %v2239, %v2427
        %v2546 = vadd.f32 %v2240, %v2432
        %v2547 = vadd.f32 %v2241, %v2435
        %v2548 = vadd.f32 %v2242, %v2440
        %v2549 = vadd.f32 %v2243, %v2443
        %v2550 = vadd.f32 %v2244, %v2448
        %v2551 = vadd.f32 %v2245, %v2451
        %v2552 = vadd.f32 %v2246, %v2456
        %v2553 = vadd.f32 %v2247, %v2459
        %v2554 = vadd.f32 %v2248, %v2464
        %v2555 = vadd.f32 %v2249, %v2467
        %v2556 = vadd.f32 %v2250, %v2472
        %v2557 = vadd.f32 %v2251, %v2475
        %v2558 = vadd.f32 %v2252, %v2480
        %v2559 = vadd.f32 %v2253, %v2483
        %v2560 = vadd.f32 %v2254, %v2488
        %v2561 = vadd.f32 %v2255, %v2491
        %v2562 = vadd.f32 %v2256, %v2496
        %v2563 = vadd.f32 %v2257, %v2499
        %v2564 = vadd.f32 %v2258, %v2504
        %v2565 = vadd.f32 %v2259, %v2507
        %v2566 = vadd.f32 %v2260, %v2512
        %v2567 = vadd.f32 %v2261, %v2515
        %v2568 = vadd.f32 %v2262, %v2520
        %v2569 = vadd.f32 %v2263, %v2523
        %v2570 = vadd.f32 %v2264, %v2528
        %v2571 = vadd.f32 %v2265, %v2531
        %v2572 = vadd.f32 %v2266, %v2536
        %v2573 = vadd.f32 %v2267, %v2539
        %v2574 = vld [vmem:[%s1044 + $0x2] sm:$0xff]
        %v2575 = vld [vmem:[%s1044 + $0xa] sm:$0xff]
        %v2576 = vld [vmem:[%s1044 + $0x1a] sm:$0xff]
        %v2577 = vld [vmem:[%s1044 + $0x22] sm:$0xff]
        %v2578 = vld [vmem:[%s1044 + $0x32] sm:$0xff]
        %v2579 = vld [vmem:[%s1044 + $0x3a] sm:$0xff]
        %v2580 = vld [vmem:[%s1044 + $0x4a] sm:$0xff]
        %v2581 = vld [vmem:[%s1044 + $0x52] sm:$0xff]
        %v2582 = vld [vmem:[%s1044 + $0x62] sm:$0xff]
        %v2583 = vld [vmem:[%s1044 + $0x6a] sm:$0xff]
        %v2584 = vld [vmem:[%s1044 + $0x7a] sm:$0xff]
        %v2585 = vld [vmem:[%s1044 + $0x82] sm:$0xff]
        %v2586 = vld [vmem:[%s1044 + $0x92] sm:$0xff]
        %v2587 = vld [vmem:[%s1044 + $0x9a] sm:$0xff]
        %v2588 = vld [vmem:[%s1044 + $0xaa] sm:$0xff]
        %v2589 = vld [vmem:[%s1044 + $0xb2] sm:$0xff]
        %v2590 = vld [vmem:[%s1044 + $0xc2] sm:$0xff]
        %v2591 = vld [vmem:[%s1044 + $0xca] sm:$0xff]
        %v2592 = vld [vmem:[%s1044 + $0xda] sm:$0xff]
        %v2593 = vld [vmem:[%s1044 + $0xe2] sm:$0xff]
        %v2594 = vld [vmem:[%s1044 + $0xf2] sm:$0xff]
        %v2595 = vld [vmem:[%s1044 + $0xfa] sm:$0xff]
        %v2596 = vld [vmem:[%s1044 + $0x10a] sm:$0xff]
        %v2597 = vld [vmem:[%s1044 + $0x112] sm:$0xff]
        %v2598 = vld [vmem:[%s1044 + $0x122] sm:$0xff]
        %v2599 = vld [vmem:[%s1044 + $0x12a] sm:$0xff]
        %v2600 = vld [vmem:[%s1044 + $0x13a] sm:$0xff]
        %v2601 = vld [vmem:[%s1044 + $0x142] sm:$0xff]
        %v2602 = vld [vmem:[%s1044 + $0x152] sm:$0xff]
        %v2603 = vld [vmem:[%s1044 + $0x15a] sm:$0xff]
        %v2604 = vld [vmem:[%s1044 + $0x16a] sm:$0xff]
        %v2605 = vld [vmem:[%s1044 + $0x172] sm:$0xff]
        %v2606 = vpack.c.bf16 %v2575, %v2574
        %v2607 = vpack.c.bf16 %v2577, %v2576
        %v2608 = vpack.c.bf16 %v2579, %v2578
        %v2609 = vpack.c.bf16 %v2581, %v2580
        %v2610 = vpack.c.bf16 %v2583, %v2582
        %v2611 = vpack.c.bf16 %v2585, %v2584
        %v2612 = vpack.c.bf16 %v2587, %v2586
        %v2613 = vpack.c.bf16 %v2589, %v2588
        %v2614 = vpack.c.bf16 %v2591, %v2590
        %v2615 = vpack.c.bf16 %v2593, %v2592
        %v2616 = vpack.c.bf16 %v2595, %v2594
        %v2617 = vpack.c.bf16 %v2597, %v2596
        %v2618 = vpack.c.bf16 %v2599, %v2598
        %v2619 = vpack.c.bf16 %v2601, %v2600
        %v2620 = vpack.c.bf16 %v2603, %v2602
        %v2621 = vpack.c.bf16 %v2605, %v2604
        %s2622 = scalar_lea.vmem %s4, 320
        %v2623 = vld [vmem:[%s2622] sm:$0xf]
        %v2624 = vld [vmem:[%s2622 + $0x4] sm:$0xf]
        %v2625 = vld [vmem:[%s2622 + $0x8] sm:$0xf]
        %v2626 = vld [vmem:[%s2622 + $0xc] sm:$0xf]
        %v2627 = vld [vmem:[%s2622 + $0x10] sm:$0xf]
        %v2628 = vld [vmem:[%s2622 + $0x14] sm:$0xf]
        %v2629 = vld [vmem:[%s2622 + $0x18] sm:$0xf]
        %v2630 = vld [vmem:[%s2622 + $0x1c] sm:$0xf]
        %v2631 = vld [vmem:[%s2622 + $0x20] sm:$0xf]
        %v2632 = vld [vmem:[%s2622 + $0x24] sm:$0xf]
        %v2633 = vld [vmem:[%s2622 + $0x28] sm:$0xf]
        %v2634 = vld [vmem:[%s2622 + $0x2c] sm:$0xf]
        %v2635 = vld [vmem:[%s2622 + $0x30] sm:$0xf]
        %v2636 = vld [vmem:[%s2622 + $0x34] sm:$0xf]
        %v2637 = vld [vmem:[%s2622 + $0x38] sm:$0xf]
        %v2638 = vld [vmem:[%s2622 + $0x3c] sm:$0xf]
        %v2655 = vunpack.c.l.b16 %v2623
        %v2656 = vunpack.c.l.b16 %v2624
        %v2657 = vunpack.c.l.b16 %v2625
        %v2658 = vunpack.c.l.b16 %v2626
        %v2659 = vunpack.c.l.b16 %v2627
        %v2660 = vunpack.c.l.b16 %v2628
        %v2661 = vunpack.c.l.b16 %v2629
        %v2662 = vunpack.c.l.b16 %v2630
        %v2663 = vunpack.c.l.b16 %v2631
        %v2664 = vunpack.c.l.b16 %v2632
        %v2665 = vunpack.c.l.b16 %v2633
        %v2666 = vunpack.c.l.b16 %v2634
        %v2667 = vunpack.c.l.b16 %v2635
        %v2668 = vunpack.c.l.b16 %v2636
        %v2669 = vunpack.c.l.b16 %v2637
        %v2670 = vunpack.c.l.b16 %v2638
        %v2671 = vpack.c.b16 %v2656, %v2655
        %v2672 = vpack.c.b16 %v2658, %v2657
        %v2673 = vpack.c.b16 %v2660, %v2659
        %v2674 = vpack.c.b16 %v2662, %v2661
        %v2675 = vpack.c.b16 %v2664, %v2663
        %v2676 = vpack.c.b16 %v2666, %v2665
        %v2677 = vpack.c.b16 %v2668, %v2667
        %v2678 = vpack.c.b16 %v2670, %v2669
        %2687 = vmatprep.subr.bf16.mxu0 0
        %2688 = vmatpush1.bf16.msra.mxu0 %v2671
        %2689 = vmatprep.subr.bf16.mxu0 0
        %2690 = vmatpush1.bf16.msra.mxu0 %v2672
        %2691 = vmatprep.subr.bf16.mxu0 0
        %2692 = vmatpush1.bf16.msra.mxu0 %v2673
        %2693 = vmatprep.subr.bf16.mxu0 0
        %2694 = vmatpush1.bf16.msra.mxu0 %v2674
        %2695 = vmatprep.subr.bf16.mxu0 0
        %2696 = vmatpush1.bf16.msra.mxu0 %v2675
        %2697 = vmatprep.subr.bf16.mxu0 0
        %2698 = vmatpush1.bf16.msra.mxu0 %v2676
        %2699 = vmatprep.subr.bf16.mxu0 0
        %2700 = vmatpush1.bf16.msra.mxu0 %v2677
        %2701 = vmatprep.subr.bf16.mxu0 0
        %2702 = vmatpush1.bf16.msra.mxu0 %v2678
        %2703 = vmatprep.subr.bf16.mxu0 0
        %2704 = vmatpush1.bf16.msra.mxu0 0
        %2705 = vmatprep.subr.bf16.mxu0 0
        %2706 = vmatpush1.bf16.msra.mxu0 0
        %2707 = vmatprep.subr.bf16.mxu0 0
        %2708 = vmatpush1.bf16.msra.mxu0 0
        %2709 = vmatprep.subr.bf16.mxu0 0
        %2710 = vmatpush1.bf16.msra.mxu0 0
        %2711 = vmatprep.subr.bf16.mxu0 0
        %2712 = vmatpush1.bf16.msra.mxu0 0
        %2713 = vmatprep.subr.bf16.mxu0 0
        %2714 = vmatpush1.bf16.msra.mxu0 0
        %2715 = vmatprep.subr.bf16.mxu0 0
        %2716 = vmatpush1.bf16.msra.mxu0 0
        %2717 = vmatprep.subr.bf16.mxu0 0
        %2718 = vmatpush1.bf16.msra.mxu0 0
        %2719 = vmatprep.mubr.bf16.mxu0 0
        %2720 = vmatmul.mubr.bf16.gmra.mrb[0].mxu0 %v2606
        %v2721 = vpop.f32.mrb[0].mxu0
        %v2722 = vadd.f32 0.0, %v2721
        %v2723 = vpop.f32.mrb[0].mxu0
        %v2724 = vpop.f32.mrb[0].mxu0
        %v2725 = vadd.f32 0.0, %v2724
        %v2726 = vpop.f32.mrb[0].mxu0
        %2727 = vmatprep.mubr.bf16.mxu0 0
        %2728 = vmatmul.mubr.bf16.gmra.mrb[0].mxu0 %v2607
        %v2729 = vpop.f32.mrb[0].mxu0
        %v2730 = vadd.f32 0.0, %v2729
        %v2731 = vpop.f32.mrb[0].mxu0
        %v2732 = vpop.f32.mrb[0].mxu0
        %v2733 = vadd.f32 0.0, %v2732
        %v2734 = vpop.f32.mrb[0].mxu0
        %2735 = vmatprep.mubr.bf16.mxu0 0
        %2736 = vmatmul.mubr.bf16.gmra.mrb[0].mxu0 %v2608
        %v2737 = vpop.f32.mrb[0].mxu0
        %v2738 = vadd.f32 0.0, %v2737
        %v2739 = vpop.f32.mrb[0].mxu0
        %v2740 = vpop.f32.mrb[0].mxu0
        %v2741 = vadd.f32 0.0, %v2740
        %v2742 = vpop.f32.mrb[0].mxu0
        %2743 = vmatprep.mubr.bf16.mxu0 0
        %2744 = vmatmul.mubr.bf16.gmra.mrb[0].mxu0 %v2609
        %v2745 = vpop.f32.mrb[0].mxu0
        %v2746 = vadd.f32 0.0, %v2745
        %v2747 = vpop.f32.mrb[0].mxu0
        %v2748 = vpop.f32.mrb[0].mxu0
        %v2749 = vadd.f32 0.0, %v2748
        %v2750 = vpop.f32.mrb[0].mxu0
        %2751 = vmatprep.mubr.bf16.mxu0 0
        %2752 = vmatmul.mubr.bf16.gmra.mrb[0].mxu0 %v2610
        %v2753 = vpop.f32.mrb[0].mxu0
        %v2754 = vadd.f32 0.0, %v2753
        %v2755 = vpop.f32.mrb[0].mxu0
        %v2756 = vpop.f32.mrb[0].mxu0
        %v2757 = vadd.f32 0.0, %v2756
        %v2758 = vpop.f32.mrb[0].mxu0
        %2759 = vmatprep.mubr.bf16.mxu0 0
        %2760 = vmatmul.mubr.bf16.gmra.mrb[0].mxu0 %v2611
        %v2761 = vpop.f32.mrb[0].mxu0
        %v2762 = vadd.f32 0.0, %v2761
        %v2763 = vpop.f32.mrb[0].mxu0
        %v2764 = vpop.f32.mrb[0].mxu0
        %v2765 = vadd.f32 0.0, %v2764
        %v2766 = vpop.f32.mrb[0].mxu0
        %2767 = vmatprep.mubr.bf16.mxu0 0
        %2768 = vmatmul.mubr.bf16.gmra.mrb[0].mxu0 %v2612
        %v2769 = vpop.f32.mrb[0].mxu0
        %v2770 = vadd.f32 0.0, %v2769
        %v2771 = vpop.f32.mrb[0].mxu0
        %v2772 = vpop.f32.mrb[0].mxu0
        %v2773 = vadd.f32 0.0, %v2772
        %v2774 = vpop.f32.mrb[0].mxu0
        %2775 = vmatprep.mubr.bf16.mxu0 0
        %2776 = vmatmul.mubr.bf16.gmra.mrb[0].mxu0 %v2613
        %v2777 = vpop.f32.mrb[0].mxu0
        %v2778 = vadd.f32 0.0, %v2777
        %v2779 = vpop.f32.mrb[0].mxu0
        %v2780 = vpop.f32.mrb[0].mxu0
        %v2781 = vadd.f32 0.0, %v2780
        %v2782 = vpop.f32.mrb[0].mxu0
        %2783 = vmatprep.mubr.bf16.mxu0 0
        %2784 = vmatmul.mubr.bf16.gmra.mrb[0].mxu0 %v2614
        %v2785 = vpop.f32.mrb[0].mxu0
        %v2786 = vadd.f32 0.0, %v2785
        %v2787 = vpop.f32.mrb[0].mxu0
        %v2788 = vpop.f32.mrb[0].mxu0
        %v2789 = vadd.f32 0.0, %v2788
        %v2790 = vpop.f32.mrb[0].mxu0
        %2791 = vmatprep.mubr.bf16.mxu0 0
        %2792 = vmatmul.mubr.bf16.gmra.mrb[0].mxu0 %v2615
        %v2793 = vpop.f32.mrb[0].mxu0
        %v2794 = vadd.f32 0.0, %v2793
        %v2795 = vpop.f32.mrb[0].mxu0
        %v2796 = vpop.f32.mrb[0].mxu0
        %v2797 = vadd.f32 0.0, %v2796
        %v2798 = vpop.f32.mrb[0].mxu0
        %2799 = vmatprep.mubr.bf16.mxu0 0
        %2800 = vmatmul.mubr.bf16.gmra.mrb[0].mxu0 %v2616
        %v2801 = vpop.f32.mrb[0].mxu0
        %v2802 = vadd.f32 0.0, %v2801
        %v2803 = vpop.f32.mrb[0].mxu0
        %v2804 = vpop.f32.mrb[0].mxu0
        %v2805 = vadd.f32 0.0, %v2804
        %v2806 = vpop.f32.mrb[0].mxu0
        %2807 = vmatprep.mubr.bf16.mxu0 0
        %2808 = vmatmul.mubr.bf16.gmra.mrb[0].mxu0 %v2617
        %v2809 = vpop.f32.mrb[0].mxu0
        %v2810 = vadd.f32 0.0, %v2809
        %v2811 = vpop.f32.mrb[0].mxu0
        %v2812 = vpop.f32.mrb[0].mxu0
        %v2813 = vadd.f32 0.0, %v2812
        %v2814 = vpop.f32.mrb[0].mxu0
        %2815 = vmatprep.mubr.bf16.mxu0 0
        %2816 = vmatmul.mubr.bf16.gmra.mrb[0].mxu0 %v2618
        %v2817 = vpop.f32.mrb[0].mxu0
        %v2818 = vadd.f32 0.0, %v2817
        %v2819 = vpop.f32.mrb[0].mxu0
        %v2820 = vpop.f32.mrb[0].mxu0
        %v2821 = vadd.f32 0.0, %v2820
        %v2822 = vpop.f32.mrb[0].mxu0
        %2823 = vmatprep.mubr.bf16.mxu0 0
        %2824 = vmatmul.mubr.bf16.gmra.mrb[0].mxu0 %v2619
        %v2825 = vpop.f32.mrb[0].mxu0
        %v2826 = vadd.f32 0.0, %v2825
        %v2827 = vpop.f32.mrb[0].mxu0
        %v2828 = vpop.f32.mrb[0].mxu0
        %v2829 = vadd.f32 0.0, %v2828
        %v2830 = vpop.f32.mrb[0].mxu0
        %2831 = vmatprep.mubr.bf16.mxu0 0
        %2832 = vmatmul.mubr.bf16.gmra.mrb[0].mxu0 %v2620
        %v2833 = vpop.f32.mrb[0].mxu0
        %v2834 = vadd.f32 0.0, %v2833
        %v2835 = vpop.f32.mrb[0].mxu0
        %v2836 = vpop.f32.mrb[0].mxu0
        %v2837 = vadd.f32 0.0, %v2836
        %v2838 = vpop.f32.mrb[0].mxu0
        %2839 = vmatprep.mubr.bf16.mxu0 0
        %2840 = vmatmul.mubr.bf16.gmra.mrb[0].mxu0 %v2621
        %v2841 = vpop.f32.mrb[0].mxu0
        %v2842 = vadd.f32 0.0, %v2841
        %v2843 = vpop.f32.mrb[0].mxu0
        %v2844 = vpop.f32.mrb[0].mxu0
        %v2845 = vadd.f32 0.0, %v2844
        %v2846 = vpop.f32.mrb[0].mxu0
        %2847 = vdwg.mxu0
        %v2848 = vadd.f32 %v2542, %v2722
        %v2849 = vadd.f32 %v2543, %v2725
        %v2850 = vadd.f32 %v2544, %v2730
        %v2851 = vadd.f32 %v2545, %v2733
        %v2852 = vadd.f32 %v2546, %v2738
        %v2853 = vadd.f32 %v2547, %v2741
        %v2854 = vadd.f32 %v2548, %v2746
        %v2855 = vadd.f32 %v2549, %v2749
        %v2856 = vadd.f32 %v2550, %v2754
        %v2857 = vadd.f32 %v2551, %v2757
        %v2858 = vadd.f32 %v2552, %v2762
        %v2859 = vadd.f32 %v2553, %v2765
        %v2860 = vadd.f32 %v2554, %v2770
        %v2861 = vadd.f32 %v2555, %v2773
        %v2862 = vadd.f32 %v2556, %v2778
        %v2863 = vadd.f32 %v2557, %v2781
        %v2864 = vadd.f32 %v2558, %v2786
        %v2865 = vadd.f32 %v2559, %v2789
        %v2866 = vadd.f32 %v2560, %v2794
        %v2867 = vadd.f32 %v2561, %v2797
        %v2868 = vadd.f32 %v2562, %v2802
        %v2869 = vadd.f32 %v2563, %v2805
        %v2870 = vadd.f32 %v2564, %v2810
        %v2871 = vadd.f32 %v2565, %v2813
        %v2872 = vadd.f32 %v2566, %v2818
        %v2873 = vadd.f32 %v2567, %v2821
        %v2874 = vadd.f32 %v2568, %v2826
        %v2875 = vadd.f32 %v2569, %v2829
        %v2876 = vadd.f32 %v2570, %v2834
        %v2877 = vadd.f32 %v2571, %v2837
        %v2878 = vadd.f32 %v2572, %v2842
        %v2879 = vadd.f32 %v2573, %v2845
        %s2880 = scalar_lea.vmem [#allocation2], 48
        %v2881 = vld [vmem:[%s2880] sm:$0xff]
        %v2882 = vld [vmem:[%s2880 + $0x8] sm:$0xff]
        %v2883 = vld [vmem:[%s2880 + $0x18] sm:$0xff]
        %v2884 = vld [vmem:[%s2880 + $0x20] sm:$0xff]
        %v2885 = vld [vmem:[%s2880 + $0x30] sm:$0xff]
        %v2886 = vld [vmem:[%s2880 + $0x38] sm:$0xff]
        %v2887 = vld [vmem:[%s2880 + $0x48] sm:$0xff]
        %v2888 = vld [vmem:[%s2880 + $0x50] sm:$0xff]
        %v2889 = vld [vmem:[%s2880 + $0x60] sm:$0xff]
        %v2890 = vld [vmem:[%s2880 + $0x68] sm:$0xff]
        %v2891 = vld [vmem:[%s2880 + $0x78] sm:$0xff]
        %v2892 = vld [vmem:[%s2880 + $0x80] sm:$0xff]
        %v2893 = vld [vmem:[%s2880 + $0x90] sm:$0xff]
        %v2894 = vld [vmem:[%s2880 + $0x98] sm:$0xff]
        %v2895 = vld [vmem:[%s2880 + $0xa8] sm:$0xff]
        %v2896 = vld [vmem:[%s2880 + $0xb0] sm:$0xff]
        %v2897 = vld [vmem:[%s2880 + $0xc0] sm:$0xff]
        %v2898 = vld [vmem:[%s2880 + $0xc8] sm:$0xff]
        %v2899 = vld [vmem:[%s2880 + $0xd8] sm:$0xff]
        %v2900 = vld [vmem:[%s2880 + $0xe0] sm:$0xff]
        %v2901 = vld [vmem:[%s2880 + $0xf0] sm:$0xff]
        %v2902 = vld [vmem:[%s2880 + $0xf8] sm:$0xff]
        %v2903 = vld [vmem:[%s2880 + $0x108] sm:$0xff]
        %v2904 = vld [vmem:[%s2880 + $0x110] sm:$0xff]
        %v2905 = vld [vmem:[%s2880 + $0x120] sm:$0xff]
        %v2906 = vld [vmem:[%s2880 + $0x128] sm:$0xff]
        %v2907 = vld [vmem:[%s2880 + $0x138] sm:$0xff]
        %v2908 = vld [vmem:[%s2880 + $0x140] sm:$0xff]
        %v2909 = vld [vmem:[%s2880 + $0x150] sm:$0xff]
        %v2910 = vld [vmem:[%s2880 + $0x158] sm:$0xff]
        %v2911 = vld [vmem:[%s2880 + $0x168] sm:$0xff]
        %v2912 = vld [vmem:[%s2880 + $0x170] sm:$0xff]
        %v2913 = vpack.c.bf16 %v2882, %v2881
        %v2914 = vpack.c.bf16 %v2884, %v2883
        %v2915 = vpack.c.bf16 %v2886, %v2885
        %v2916 = vpack.c.bf16 %v2888, %v2887
        %v2917 = vpack.c.bf16 %v2890, %v2889
        %v2918 = vpack.c.bf16 %v2892, %v2891
        %v2919 = vpack.c.bf16 %v2894, %v2893
        %v2920 = vpack.c.bf16 %v2896, %v2895
        %v2921 = vpack.c.bf16 %v2898, %v2897
        %v2922 = vpack.c.bf16 %v2900, %v2899
        %v2923 = vpack.c.bf16 %v2902, %v2901
        %v2924 = vpack.c.bf16 %v2904, %v2903
        %v2925 = vpack.c.bf16 %v2906, %v2905
        %v2926 = vpack.c.bf16 %v2908, %v2907
        %v2927 = vpack.c.bf16 %v2910, %v2909
        %v2928 = vpack.c.bf16 %v2912, %v2911
        %s2929 = scalar_lea.vmem %s4, 384
        %v2930 = vld [vmem:[%s2929] sm:$0xf]
        %v2931 = vld [vmem:[%s2929 + $0x4] sm:$0xf]
        %v2932 = vld [vmem:[%s2929 + $0x8] sm:$0xf]
        %v2933 = vld [vmem:[%s2929 + $0xc] sm:$0xf]
        %v2934 = vld [vmem:[%s2929 + $0x10] sm:$0xf]
        %v2935 = vld [vmem:[%s2929 + $0x14] sm:$0xf]
        %v2936 = vld [vmem:[%s2929 + $0x18] sm:$0xf]
        %v2937 = vld [vmem:[%s2929 + $0x1c] sm:$0xf]
        %v2938 = vld [vmem:[%s2929 + $0x20] sm:$0xf]
        %v2939 = vld [vmem:[%s2929 + $0x24] sm:$0xf]
        %v2940 = vld [vmem:[%s2929 + $0x28] sm:$0xf]
        %v2941 = vld [vmem:[%s2929 + $0x2c] sm:$0xf]
        %v2942 = vld [vmem:[%s2929 + $0x30] sm:$0xf]
        %v2943 = vld [vmem:[%s2929 + $0x34] sm:$0xf]
        %v2944 = vld [vmem:[%s2929 + $0x38] sm:$0xf]
        %v2945 = vld [vmem:[%s2929 + $0x3c] sm:$0xf]
        %v2962 = vunpack.c.l.b16 %v2930
        %v2963 = vunpack.c.l.b16 %v2931
        %v2964 = vunpack.c.l.b16 %v2932
        %v2965 = vunpack.c.l.b16 %v2933
        %v2966 = vunpack.c.l.b16 %v2934
        %v2967 = vunpack.c.l.b16 %v2935
        %v2968 = vunpack.c.l.b16 %v2936
        %v2969 = vunpack.c.l.b16 %v2937
        %v2970 = vunpack.c.l.b16 %v2938
        %v2971 = vunpack.c.l.b16 %v2939
        %v2972 = vunpack.c.l.b16 %v2940
        %v2973 = vunpack.c.l.b16 %v2941
        %v2974 = vunpack.c.l.b16 %v2942
        %v2975 = vunpack.c.l.b16 %v2943
        %v2976 = vunpack.c.l.b16 %v2944
        %v2977 = vunpack.c.l.b16 %v2945
        %v2978 = vpack.c.b16 %v2963, %v2962
        %v2979 = vpack.c.b16 %v2965, %v2964
        %v2980 = vpack.c.b16 %v2967, %v2966
        %v2981 = vpack.c.b16 %v2969, %v2968
        %v2982 = vpack.c.b16 %v2971, %v2970
        %v2983 = vpack.c.b16 %v2973, %v2972
        %v2984 = vpack.c.b16 %v2975, %v2974
        %v2985 = vpack.c.b16 %v2977, %v2976
        %2994 = vmatprep.subr.bf16.mxu0 0
        %2995 = vmatpush1.bf16.msra.mxu0 %v2978
        %2996 = vmatprep.subr.bf16.mxu0 0
        %2997 = vmatpush1.bf16.msra.mxu0 %v2979
        %2998 = vmatprep.subr.bf16.mxu0 0
        %2999 = vmatpush1.bf16.msra.mxu0 %v2980
        %3000 = vmatprep.subr.bf16.mxu0 0
        %3001 = vmatpush1.bf16.msra.mxu0 %v2981
        %3002 = vmatprep.subr.bf16.mxu0 0
        %3003 = vmatpush1.bf16.msra.mxu0 %v2982
        %3004 = vmatprep.subr.bf16.mxu0 0
        %3005 = vmatpush1.bf16.msra.mxu0 %v2983
        %3006 = vmatprep.subr.bf16.mxu0 0
        %3007 = vmatpush1.bf16.msra.mxu0 %v2984
        %3008 = vmatprep.subr.bf16.mxu0 0
        %3009 = vmatpush1.bf16.msra.mxu0 %v2985
        %3010 = vmatprep.subr.bf16.mxu0 0
        %3011 = vmatpush1.bf16.msra.mxu0 0
        %3012 = vmatprep.subr.bf16.mxu0 0
        %3013 = vmatpush1.bf16.msra.mxu0 0
        %3014 = vmatprep.subr.bf16.mxu0 0
        %3015 = vmatpush1.bf16.msra.mxu0 0
        %3016 = vmatprep.subr.bf16.mxu0 0
        %3017 = vmatpush1.bf16.msra.mxu0 0
        %3018 = vmatprep.subr.bf16.mxu0 0
        %3019 = vmatpush1.bf16.msra.mxu0 0
        %3020 = vmatprep.subr.bf16.mxu0 0
        %3021 = vmatpush1.bf16.msra.mxu0 0
        %3022 = vmatprep.subr.bf16.mxu0 0
        %3023 = vmatpush1.bf16.msra.mxu0 0
        %3024 = vmatprep.subr.bf16.mxu0 0
        %3025 = vmatpush1.bf16.msra.mxu0 0
        %3026 = vmatprep.mubr.bf16.mxu0 0
        %3027 = vmatmul.mubr.bf16.gmra.mrb[0].mxu0 %v2913
        %v3028 = vpop.f32.mrb[0].mxu0
        %v3029 = vadd.f32 0.0, %v3028
        %v3030 = vpop.f32.mrb[0].mxu0
        %v3031 = vpop.f32.mrb[0].mxu0
        %v3032 = vadd.f32 0.0, %v3031
        %v3033 = vpop.f32.mrb[0].mxu0
        %3034 = vmatprep.mubr.bf16.mxu0 0
        %3035 = vmatmul.mubr.bf16.gmra.mrb[0].mxu0 %v2914
        %v3036 = vpop.f32.mrb[0].mxu0
        %v3037 = vadd.f32 0.0, %v3036
        %v3038 = vpop.f32.mrb[0].mxu0
        %v3039 = vpop.f32.mrb[0].mxu0
        %v3040 = vadd.f32 0.0, %v3039
        %v3041 = vpop.f32.mrb[0].mxu0
        %3042 = vmatprep.mubr.bf16.mxu0 0
        %3043 = vmatmul.mubr.bf16.gmra.mrb[0].mxu0 %v2915
        %v3044 = vpop.f32.mrb[0].mxu0
        %v3045 = vadd.f32 0.0, %v3044
        %v3046 = vpop.f32.mrb[0].mxu0
        %v3047 = vpop.f32.mrb[0].mxu0
        %v3048 = vadd.f32 0.0, %v3047
        %v3049 = vpop.f32.mrb[0].mxu0
        %3050 = vmatprep.mubr.bf16.mxu0 0
        %3051 = vmatmul.mubr.bf16.gmra.mrb[0].mxu0 %v2916
        %v3052 = vpop.f32.mrb[0].mxu0
        %v3053 = vadd.f32 0.0, %v3052
        %v3054 = vpop.f32.mrb[0].mxu0
        %v3055 = vpop.f32.mrb[0].mxu0
        %v3056 = vadd.f32 0.0, %v3055
        %v3057 = vpop.f32.mrb[0].mxu0
        %3058 = vmatprep.mubr.bf16.mxu0 0
        %3059 = vmatmul.mubr.bf16.gmra.mrb[0].mxu0 %v2917
        %v3060 = vpop.f32.mrb[0].mxu0
        %v3061 = vadd.f32 0.0, %v3060
        %v3062 = vpop.f32.mrb[0].mxu0
        %v3063 = vpop.f32.mrb[0].mxu0
        %v3064 = vadd.f32 0.0, %v3063
        %v3065 = vpop.f32.mrb[0].mxu0
        %3066 = vmatprep.mubr.bf16.mxu0 0
        %3067 = vmatmul.mubr.bf16.gmra.mrb[0].mxu0 %v2918
        %v3068 = vpop.f32.mrb[0].mxu0
        %v3069 = vadd.f32 0.0, %v3068
        %v3070 = vpop.f32.mrb[0].mxu0
        %v3071 = vpop.f32.mrb[0].mxu0
        %v3072 = vadd.f32 0.0, %v3071
        %v3073 = vpop.f32.mrb[0].mxu0
        %3074 = vmatprep.mubr.bf16.mxu0 0
        %3075 = vmatmul.mubr.bf16.gmra.mrb[0].mxu0 %v2919
        %v3076 = vpop.f32.mrb[0].mxu0
        %v3077 = vadd.f32 0.0, %v3076
        %v3078 = vpop.f32.mrb[0].mxu0
        %v3079 = vpop.f32.mrb[0].mxu0
        %v3080 = vadd.f32 0.0, %v3079
        %v3081 = vpop.f32.mrb[0].mxu0
        %3082 = vmatprep.mubr.bf16.mxu0 0
        %3083 = vmatmul.mubr.bf16.gmra.mrb[0].mxu0 %v2920
        %v3084 = vpop.f32.mrb[0].mxu0
        %v3085 = vadd.f32 0.0, %v3084
        %v3086 = vpop.f32.mrb[0].mxu0
        %v3087 = vpop.f32.mrb[0].mxu0
        %v3088 = vadd.f32 0.0, %v3087
        %v3089 = vpop.f32.mrb[0].mxu0
        %3090 = vmatprep.mubr.bf16.mxu0 0
        %3091 = vmatmul.mubr.bf16.gmra.mrb[0].mxu0 %v2921
        %v3092 = vpop.f32.mrb[0].mxu0
        %v3093 = vadd.f32 0.0, %v3092
        %v3094 = vpop.f32.mrb[0].mxu0
        %v3095 = vpop.f32.mrb[0].mxu0
        %v3096 = vadd.f32 0.0, %v3095
        %v3097 = vpop.f32.mrb[0].mxu0
        %3098 = vmatprep.mubr.bf16.mxu0 0
        %3099 = vmatmul.mubr.bf16.gmra.mrb[0].mxu0 %v2922
        %v3100 = vpop.f32.mrb[0].mxu0
        %v3101 = vadd.f32 0.0, %v3100
        %v3102 = vpop.f32.mrb[0].mxu0
        %v3103 = vpop.f32.mrb[0].mxu0
        %v3104 = vadd.f32 0.0, %v3103
        %v3105 = vpop.f32.mrb[0].mxu0
        %3106 = vmatprep.mubr.bf16.mxu0 0
        %3107 = vmatmul.mubr.bf16.gmra.mrb[0].mxu0 %v2923
        %v3108 = vpop.f32.mrb[0].mxu0
        %v3109 = vadd.f32 0.0, %v3108
        %v3110 = vpop.f32.mrb[0].mxu0
        %v3111 = vpop.f32.mrb[0].mxu0
        %v3112 = vadd.f32 0.0, %v3111
        %v3113 = vpop.f32.mrb[0].mxu0
        %3114 = vmatprep.mubr.bf16.mxu0 0
        %3115 = vmatmul.mubr.bf16.gmra.mrb[0].mxu0 %v2924
        %v3116 = vpop.f32.mrb[0].mxu0
        %v3117 = vadd.f32 0.0, %v3116
        %v3118 = vpop.f32.mrb[0].mxu0
        %v3119 = vpop.f32.mrb[0].mxu0
        %v3120 = vadd.f32 0.0, %v3119
        %v3121 = vpop.f32.mrb[0].mxu0
        %3122 = vmatprep.mubr.bf16.mxu0 0
        %3123 = vmatmul.mubr.bf16.gmra.mrb[0].mxu0 %v2925
        %v3124 = vpop.f32.mrb[0].mxu0
        %v3125 = vadd.f32 0.0, %v3124
        %v3126 = vpop.f32.mrb[0].mxu0
        %v3127 = vpop.f32.mrb[0].mxu0
        %v3128 = vadd.f32 0.0, %v3127
        %v3129 = vpop.f32.mrb[0].mxu0
        %3130 = vmatprep.mubr.bf16.mxu0 0
        %3131 = vmatmul.mubr.bf16.gmra.mrb[0].mxu0 %v2926
        %v3132 = vpop.f32.mrb[0].mxu0
        %v3133 = vadd.f32 0.0, %v3132
        %v3134 = vpop.f32.mrb[0].mxu0
        %v3135 = vpop.f32.mrb[0].mxu0
        %v3136 = vadd.f32 0.0, %v3135
        %v3137 = vpop.f32.mrb[0].mxu0
        %3138 = vmatprep.mubr.bf16.mxu0 0
        %3139 = vmatmul.mubr.bf16.gmra.mrb[0].mxu0 %v2927
        %v3140 = vpop.f32.mrb[0].mxu0
        %v3141 = vadd.f32 0.0, %v3140
        %v3142 = vpop.f32.mrb[0].mxu0
        %v3143 = vpop.f32.mrb[0].mxu0
        %v3144 = vadd.f32 0.0, %v3143
        %v3145 = vpop.f32.mrb[0].mxu0
        %3146 = vmatprep.mubr.bf16.mxu0 0
        %3147 = vmatmul.mubr.bf16.gmra.mrb[0].mxu0 %v2928
        %v3148 = vpop.f32.mrb[0].mxu0
        %v3149 = vadd.f32 0.0, %v3148
        %v3150 = vpop.f32.mrb[0].mxu0
        %v3151 = vpop.f32.mrb[0].mxu0
        %v3152 = vadd.f32 0.0, %v3151
        %v3153 = vpop.f32.mrb[0].mxu0
        %3154 = vdwg.mxu0
        %v3155 = vadd.f32 %v2848, %v3029
        %v3156 = vadd.f32 %v2849, %v3032
        %v3157 = vadd.f32 %v2850, %v3037
        %v3158 = vadd.f32 %v2851, %v3040
        %v3159 = vadd.f32 %v2852, %v3045
        %v3160 = vadd.f32 %v2853, %v3048
        %v3161 = vadd.f32 %v2854, %v3053
        %v3162 = vadd.f32 %v2855, %v3056
        %v3163 = vadd.f32 %v2856, %v3061
        %v3164 = vadd.f32 %v2857, %v3064
        %v3165 = vadd.f32 %v2858, %v3069
        %v3166 = vadd.f32 %v2859, %v3072
        %v3167 = vadd.f32 %v2860, %v3077
        %v3168 = vadd.f32 %v2861, %v3080
        %v3169 = vadd.f32 %v2862, %v3085
        %v3170 = vadd.f32 %v2863, %v3088
        %v3171 = vadd.f32 %v2864, %v3093
        %v3172 = vadd.f32 %v2865, %v3096
        %v3173 = vadd.f32 %v2866, %v3101
        %v3174 = vadd.f32 %v2867, %v3104
        %v3175 = vadd.f32 %v2868, %v3109
        %v3176 = vadd.f32 %v2869, %v3112
        %v3177 = vadd.f32 %v2870, %v3117
        %v3178 = vadd.f32 %v2871, %v3120
        %v3179 = vadd.f32 %v2872, %v3125
        %v3180 = vadd.f32 %v2873, %v3128
        %v3181 = vadd.f32 %v2874, %v3133
        %v3182 = vadd.f32 %v2875, %v3136
        %v3183 = vadd.f32 %v2876, %v3141
        %v3184 = vadd.f32 %v2877, %v3144
        %v3185 = vadd.f32 %v2878, %v3149
        %v3186 = vadd.f32 %v2879, %v3152
        %v3187 = vld [vmem:[%s2880 + $0x1] sm:$0xff]
        %v3188 = vld [vmem:[%s2880 + $0x9] sm:$0xff]
        %v3189 = vld [vmem:[%s2880 + $0x19] sm:$0xff]
        %v3190 = vld [vmem:[%s2880 + $0x21] sm:$0xff]
        %v3191 = vld [vmem:[%s2880 + $0x31] sm:$0xff]
        %v3192 = vld [vmem:[%s2880 + $0x39] sm:$0xff]
        %v3193 = vld [vmem:[%s2880 + $0x49] sm:$0xff]
        %v3194 = vld [vmem:[%s2880 + $0x51] sm:$0xff]
        %v3195 = vld [vmem:[%s2880 + $0x61] sm:$0xff]
        %v3196 = vld [vmem:[%s2880 + $0x69] sm:$0xff]
        %v3197 = vld [vmem:[%s2880 + $0x79] sm:$0xff]
        %v3198 = vld [vmem:[%s2880 + $0x81] sm:$0xff]
        %v3199 = vld [vmem:[%s2880 + $0x91] sm:$0xff]
        %v3200 = vld [vmem:[%s2880 + $0x99] sm:$0xff]
        %v3201 = vld [vmem:[%s2880 + $0xa9] sm:$0xff]
        %v3202 = vld [vmem:[%s2880 + $0xb1] sm:$0xff]
        %v3203 = vld [vmem:[%s2880 + $0xc1] sm:$0xff]
        %v3204 = vld [vmem:[%s2880 + $0xc9] sm:$0xff]
        %v3205 = vld [vmem:[%s2880 + $0xd9] sm:$0xff]
        %v3206 = vld [vmem:[%s2880 + $0xe1] sm:$0xff]
        %v3207 = vld [vmem:[%s2880 + $0xf1] sm:$0xff]
        %v3208 = vld [vmem:[%s2880 + $0xf9] sm:$0xff]
        %v3209 = vld [vmem:[%s2880 + $0x109] sm:$0xff]
        %v3210 = vld [vmem:[%s2880 + $0x111] sm:$0xff]
        %v3211 = vld [vmem:[%s2880 + $0x121] sm:$0xff]
        %v3212 = vld [vmem:[%s2880 + $0x129] sm:$0xff]
        %v3213 = vld [vmem:[%s2880 + $0x139] sm:$0xff]
        %v3214 = vld [vmem:[%s2880 + $0x141] sm:$0xff]
        %v3215 = vld [vmem:[%s2880 + $0x151] sm:$0xff]
        %v3216 = vld [vmem:[%s2880 + $0x159] sm:$0xff]
        %v3217 = vld [vmem:[%s2880 + $0x169] sm:$0xff]
        %v3218 = vld [vmem:[%s2880 + $0x171] sm:$0xff]
        %v3219 = vpack.c.bf16 %v3188, %v3187
        %v3220 = vpack.c.bf16 %v3190, %v3189
        %v3221 = vpack.c.bf16 %v3192, %v3191
        %v3222 = vpack.c.bf16 %v3194, %v3193
        %v3223 = vpack.c.bf16 %v3196, %v3195
        %v3224 = vpack.c.bf16 %v3198, %v3197
        %v3225 = vpack.c.bf16 %v3200, %v3199
        %v3226 = vpack.c.bf16 %v3202, %v3201
        %v3227 = vpack.c.bf16 %v3204, %v3203
        %v3228 = vpack.c.bf16 %v3206, %v3205
        %v3229 = vpack.c.bf16 %v3208, %v3207
        %v3230 = vpack.c.bf16 %v3210, %v3209
        %v3231 = vpack.c.bf16 %v3212, %v3211
        %v3232 = vpack.c.bf16 %v3214, %v3213
        %v3233 = vpack.c.bf16 %v3216, %v3215
        %v3234 = vpack.c.bf16 %v3218, %v3217
        %s3235 = scalar_lea.vmem %s4, 448
        %v3236 = vld [vmem:[%s3235] sm:$0xf]
        %v3237 = vld [vmem:[%s3235 + $0x4] sm:$0xf]
        %v3238 = vld [vmem:[%s3235 + $0x8] sm:$0xf]
        %v3239 = vld [vmem:[%s3235 + $0xc] sm:$0xf]
        %v3240 = vld [vmem:[%s3235 + $0x10] sm:$0xf]
        %v3241 = vld [vmem:[%s3235 + $0x14] sm:$0xf]
        %v3242 = vld [vmem:[%s3235 + $0x18] sm:$0xf]
        %v3243 = vld [vmem:[%s3235 + $0x1c] sm:$0xf]
        %v3244 = vld [vmem:[%s3235 + $0x20] sm:$0xf]
        %v3245 = vld [vmem:[%s3235 + $0x24] sm:$0xf]
        %v3246 = vld [vmem:[%s3235 + $0x28] sm:$0xf]
        %v3247 = vld [vmem:[%s3235 + $0x2c] sm:$0xf]
        %v3248 = vld [vmem:[%s3235 + $0x30] sm:$0xf]
        %v3249 = vld [vmem:[%s3235 + $0x34] sm:$0xf]
        %v3250 = vld [vmem:[%s3235 + $0x38] sm:$0xf]
        %v3251 = vld [vmem:[%s3235 + $0x3c] sm:$0xf]
        %v3268 = vunpack.c.l.b16 %v3236
        %v3269 = vunpack.c.l.b16 %v3237
        %v3270 = vunpack.c.l.b16 %v3238
        %v3271 = vunpack.c.l.b16 %v3239
        %v3272 = vunpack.c.l.b16 %v3240
        %v3273 = vunpack.c.l.b16 %v3241
        %v3274 = vunpack.c.l.b16 %v3242
        %v3275 = vunpack.c.l.b16 %v3243
        %v3276 = vunpack.c.l.b16 %v3244
        %v3277 = vunpack.c.l.b16 %v3245
        %v3278 = vunpack.c.l.b16 %v3246
        %v3279 = vunpack.c.l.b16 %v3247
        %v3280 = vunpack.c.l.b16 %v3248
        %v3281 = vunpack.c.l.b16 %v3249
        %v3282 = vunpack.c.l.b16 %v3250
        %v3283 = vunpack.c.l.b16 %v3251
        %v3284 = vpack.c.b16 %v3269, %v3268
        %v3285 = vpack.c.b16 %v3271, %v3270
        %v3286 = vpack.c.b16 %v3273, %v3272
        %v3287 = vpack.c.b16 %v3275, %v3274
        %v3288 = vpack.c.b16 %v3277, %v3276
        %v3289 = vpack.c.b16 %v3279, %v3278
        %v3290 = vpack.c.b16 %v3281, %v3280
        %v3291 = vpack.c.b16 %v3283, %v3282
        %3300 = vmatprep.subr.bf16.mxu0 0
        %3301 = vmatpush1.bf16.msra.mxu0 %v3284
        %3302 = vmatprep.subr.bf16.mxu0 0
        %3303 = vmatpush1.bf16.msra.mxu0 %v3285
        %3304 = vmatprep.subr.bf16.mxu0 0
        %3305 = vmatpush1.bf16.msra.mxu0 %v3286
        %3306 = vmatprep.subr.bf16.mxu0 0
        %3307 = vmatpush1.bf16.msra.mxu0 %v3287
        %3308 = vmatprep.subr.bf16.mxu0 0
        %3309 = vmatpush1.bf16.msra.mxu0 %v3288
        %3310 = vmatprep.subr.bf16.mxu0 0
        %3311 = vmatpush1.bf16.msra.mxu0 %v3289
        %3312 = vmatprep.subr.bf16.mxu0 0
        %3313 = vmatpush1.bf16.msra.mxu0 %v3290
        %3314 = vmatprep.subr.bf16.mxu0 0
        %3315 = vmatpush1.bf16.msra.mxu0 %v3291
        %3316 = vmatprep.subr.bf16.mxu0 0
        %3317 = vmatpush1.bf16.msra.mxu0 0
        %3318 = vmatprep.subr.bf16.mxu0 0
        %3319 = vmatpush1.bf16.msra.mxu0 0
        %3320 = vmatprep.subr.bf16.mxu0 0
        %3321 = vmatpush1.bf16.msra.mxu0 0
        %3322 = vmatprep.subr.bf16.mxu0 0
        %3323 = vmatpush1.bf16.msra.mxu0 0
        %3324 = vmatprep.subr.bf16.mxu0 0
        %3325 = vmatpush1.bf16.msra.mxu0 0
        %3326 = vmatprep.subr.bf16.mxu0 0
        %3327 = vmatpush1.bf16.msra.mxu0 0
        %3328 = vmatprep.subr.bf16.mxu0 0
        %3329 = vmatpush1.bf16.msra.mxu0 0
        %3330 = vmatprep.subr.bf16.mxu0 0
        %3331 = vmatpush1.bf16.msra.mxu0 0
        %3332 = vmatprep.mubr.bf16.mxu0 0
        %3333 = vmatmul.mubr.bf16.gmra.mrb[0].mxu0 %v3219
        %v3334 = vpop.f32.mrb[0].mxu0
        %v3335 = vadd.f32 0.0, %v3334
        %v3336 = vpop.f32.mrb[0].mxu0
        %v3337 = vpop.f32.mrb[0].mxu0
        %v3338 = vadd.f32 0.0, %v3337
        %v3339 = vpop.f32.mrb[0].mxu0
        %3340 = vmatprep.mubr.bf16.mxu0 0
        %3341 = vmatmul.mubr.bf16.gmra.mrb[0].mxu0 %v3220
        %v3342 = vpop.f32.mrb[0].mxu0
        %v3343 = vadd.f32 0.0, %v3342
        %v3344 = vpop.f32.mrb[0].mxu0
        %v3345 = vpop.f32.mrb[0].mxu0
        %v3346 = vadd.f32 0.0, %v3345
        %v3347 = vpop.f32.mrb[0].mxu0
        %3348 = vmatprep.mubr.bf16.mxu0 0
        %3349 = vmatmul.mubr.bf16.gmra.mrb[0].mxu0 %v3221
        %v3350 = vpop.f32.mrb[0].mxu0
        %v3351 = vadd.f32 0.0, %v3350
        %v3352 = vpop.f32.mrb[0].mxu0
        %v3353 = vpop.f32.mrb[0].mxu0
        %v3354 = vadd.f32 0.0, %v3353
        %v3355 = vpop.f32.mrb[0].mxu0
        %3356 = vmatprep.mubr.bf16.mxu0 0
        %3357 = vmatmul.mubr.bf16.gmra.mrb[0].mxu0 %v3222
        %v3358 = vpop.f32.mrb[0].mxu0
        %v3359 = vadd.f32 0.0, %v3358
        %v3360 = vpop.f32.mrb[0].mxu0
        %v3361 = vpop.f32.mrb[0].mxu0
        %v3362 = vadd.f32 0.0, %v3361
        %v3363 = vpop.f32.mrb[0].mxu0
        %3364 = vmatprep.mubr.bf16.mxu0 0
        %3365 = vmatmul.mubr.bf16.gmra.mrb[0].mxu0 %v3223
        %v3366 = vpop.f32.mrb[0].mxu0
        %v3367 = vadd.f32 0.0, %v3366
        %v3368 = vpop.f32.mrb[0].mxu0
        %v3369 = vpop.f32.mrb[0].mxu0
        %v3370 = vadd.f32 0.0, %v3369
        %v3371 = vpop.f32.mrb[0].mxu0
        %3372 = vmatprep.mubr.bf16.mxu0 0
        %3373 = vmatmul.mubr.bf16.gmra.mrb[0].mxu0 %v3224
        %v3374 = vpop.f32.mrb[0].mxu0
        %v3375 = vadd.f32 0.0, %v3374
        %v3376 = vpop.f32.mrb[0].mxu0
        %v3377 = vpop.f32.mrb[0].mxu0
        %v3378 = vadd.f32 0.0, %v3377
        %v3379 = vpop.f32.mrb[0].mxu0
        %3380 = vmatprep.mubr.bf16.mxu0 0
        %3381 = vmatmul.mubr.bf16.gmra.mrb[0].mxu0 %v3225
        %v3382 = vpop.f32.mrb[0].mxu0
        %v3383 = vadd.f32 0.0, %v3382
        %v3384 = vpop.f32.mrb[0].mxu0
        %v3385 = vpop.f32.mrb[0].mxu0
        %v3386 = vadd.f32 0.0, %v3385
        %v3387 = vpop.f32.mrb[0].mxu0
        %3388 = vmatprep.mubr.bf16.mxu0 0
        %3389 = vmatmul.mubr.bf16.gmra.mrb[0].mxu0 %v3226
        %v3390 = vpop.f32.mrb[0].mxu0
        %v3391 = vadd.f32 0.0, %v3390
        %v3392 = vpop.f32.mrb[0].mxu0
        %v3393 = vpop.f32.mrb[0].mxu0
        %v3394 = vadd.f32 0.0, %v3393
        %v3395 = vpop.f32.mrb[0].mxu0
        %3396 = vmatprep.mubr.bf16.mxu0 0
        %3397 = vmatmul.mubr.bf16.gmra.mrb[0].mxu0 %v3227
        %v3398 = vpop.f32.mrb[0].mxu0
        %v3399 = vadd.f32 0.0, %v3398
        %v3400 = vpop.f32.mrb[0].mxu0
        %v3401 = vpop.f32.mrb[0].mxu0
        %v3402 = vadd.f32 0.0, %v3401
        %v3403 = vpop.f32.mrb[0].mxu0
        %3404 = vmatprep.mubr.bf16.mxu0 0
        %3405 = vmatmul.mubr.bf16.gmra.mrb[0].mxu0 %v3228
        %v3406 = vpop.f32.mrb[0].mxu0
        %v3407 = vadd.f32 0.0, %v3406
        %v3408 = vpop.f32.mrb[0].mxu0
        %v3409 = vpop.f32.mrb[0].mxu0
        %v3410 = vadd.f32 0.0, %v3409
        %v3411 = vpop.f32.mrb[0].mxu0
        %3412 = vmatprep.mubr.bf16.mxu0 0
        %3413 = vmatmul.mubr.bf16.gmra.mrb[0].mxu0 %v3229
        %v3414 = vpop.f32.mrb[0].mxu0
        %v3415 = vadd.f32 0.0, %v3414
        %v3416 = vpop.f32.mrb[0].mxu0
        %v3417 = vpop.f32.mrb[0].mxu0
        %v3418 = vadd.f32 0.0, %v3417
        %v3419 = vpop.f32.mrb[0].mxu0
        %3420 = vmatprep.mubr.bf16.mxu0 0
        %3421 = vmatmul.mubr.bf16.gmra.mrb[0].mxu0 %v3230
        %v3422 = vpop.f32.mrb[0].mxu0
        %v3423 = vadd.f32 0.0, %v3422
        %v3424 = vpop.f32.mrb[0].mxu0
        %v3425 = vpop.f32.mrb[0].mxu0
        %v3426 = vadd.f32 0.0, %v3425
        %v3427 = vpop.f32.mrb[0].mxu0
        %3428 = vmatprep.mubr.bf16.mxu0 0
        %3429 = vmatmul.mubr.bf16.gmra.mrb[0].mxu0 %v3231
        %v3430 = vpop.f32.mrb[0].mxu0
        %v3431 = vadd.f32 0.0, %v3430
        %v3432 = vpop.f32.mrb[0].mxu0
        %v3433 = vpop.f32.mrb[0].mxu0
        %v3434 = vadd.f32 0.0, %v3433
        %v3435 = vpop.f32.mrb[0].mxu0
        %3436 = vmatprep.mubr.bf16.mxu0 0
        %3437 = vmatmul.mubr.bf16.gmra.mrb[0].mxu0 %v3232
        %v3438 = vpop.f32.mrb[0].mxu0
        %v3439 = vadd.f32 0.0, %v3438
        %v3440 = vpop.f32.mrb[0].mxu0
        %v3441 = vpop.f32.mrb[0].mxu0
        %v3442 = vadd.f32 0.0, %v3441
        %v3443 = vpop.f32.mrb[0].mxu0
        %3444 = vmatprep.mubr.bf16.mxu0 0
        %3445 = vmatmul.mubr.bf16.gmra.mrb[0].mxu0 %v3233
        %v3446 = vpop.f32.mrb[0].mxu0
        %v3447 = vadd.f32 0.0, %v3446
        %v3448 = vpop.f32.mrb[0].mxu0
        %v3449 = vpop.f32.mrb[0].mxu0
        %v3450 = vadd.f32 0.0, %v3449
        %v3451 = vpop.f32.mrb[0].mxu0
        %3452 = vmatprep.mubr.bf16.mxu0 0
        %3453 = vmatmul.mubr.bf16.gmra.mrb[0].mxu0 %v3234
        %v3454 = vpop.f32.mrb[0].mxu0
        %v3455 = vadd.f32 0.0, %v3454
        %v3456 = vpop.f32.mrb[0].mxu0
        %v3457 = vpop.f32.mrb[0].mxu0
        %v3458 = vadd.f32 0.0, %v3457
        %v3459 = vpop.f32.mrb[0].mxu0
        %3460 = vdwg.mxu0
        %v3461 = vadd.f32 %v3155, %v3335
        %v3462 = vadd.f32 %v3156, %v3338
        %v3463 = vadd.f32 %v3157, %v3343
        %v3464 = vadd.f32 %v3158, %v3346
        %v3465 = vadd.f32 %v3159, %v3351
        %v3466 = vadd.f32 %v3160, %v3354
        %v3467 = vadd.f32 %v3161, %v3359
        %v3468 = vadd.f32 %v3162, %v3362
        %v3469 = vadd.f32 %v3163, %v3367
        %v3470 = vadd.f32 %v3164, %v3370
        %v3471 = vadd.f32 %v3165, %v3375
        %v3472 = vadd.f32 %v3166, %v3378
        %v3473 = vadd.f32 %v3167, %v3383
        %v3474 = vadd.f32 %v3168, %v3386
        %v3475 = vadd.f32 %v3169, %v3391
        %v3476 = vadd.f32 %v3170, %v3394
        %v3477 = vadd.f32 %v3171, %v3399
        %v3478 = vadd.f32 %v3172, %v3402
        %v3479 = vadd.f32 %v3173, %v3407
        %v3480 = vadd.f32 %v3174, %v3410
        %v3481 = vadd.f32 %v3175, %v3415
        %v3482 = vadd.f32 %v3176, %v3418
        %v3483 = vadd.f32 %v3177, %v3423
        %v3484 = vadd.f32 %v3178, %v3426
        %v3485 = vadd.f32 %v3179, %v3431
        %v3486 = vadd.f32 %v3180, %v3434
        %v3487 = vadd.f32 %v3181, %v3439
        %v3488 = vadd.f32 %v3182, %v3442
        %v3489 = vadd.f32 %v3183, %v3447
        %v3490 = vadd.f32 %v3184, %v3450
        %v3491 = vadd.f32 %v3185, %v3455
        %v3492 = vadd.f32 %v3186, %v3458
        %v3493 = vld [vmem:[%s2880 + $0x2] sm:$0xff]
        %v3494 = vld [vmem:[%s2880 + $0xa] sm:$0xff]
        %v3495 = vld [vmem:[%s2880 + $0x1a] sm:$0xff]
        %v3496 = vld [vmem:[%s2880 + $0x22] sm:$0xff]
        %v3497 = vld [vmem:[%s2880 + $0x32] sm:$0xff]
        %v3498 = vld [vmem:[%s2880 + $0x3a] sm:$0xff]
        %v3499 = vld [vmem:[%s2880 + $0x4a] sm:$0xff]
        %v3500 = vld [vmem:[%s2880 + $0x52] sm:$0xff]
        %v3501 = vld [vmem:[%s2880 + $0x62] sm:$0xff]
        %v3502 = vld [vmem:[%s2880 + $0x6a] sm:$0xff]
        %v3503 = vld [vmem:[%s2880 + $0x7a] sm:$0xff]
        %v3504 = vld [vmem:[%s2880 + $0x82] sm:$0xff]
        %v3505 = vld [vmem:[%s2880 + $0x92] sm:$0xff]
        %v3506 = vld [vmem:[%s2880 + $0x9a] sm:$0xff]
        %v3507 = vld [vmem:[%s2880 + $0xaa] sm:$0xff]
        %v3508 = vld [vmem:[%s2880 + $0xb2] sm:$0xff]
        %v3509 = vld [vmem:[%s2880 + $0xc2] sm:$0xff]
        %v3510 = vld [vmem:[%s2880 + $0xca] sm:$0xff]
        %v3511 = vld [vmem:[%s2880 + $0xda] sm:$0xff]
        %v3512 = vld [vmem:[%s2880 + $0xe2] sm:$0xff]
        %v3513 = vld [vmem:[%s2880 + $0xf2] sm:$0xff]
        %v3514 = vld [vmem:[%s2880 + $0xfa] sm:$0xff]
        %v3515 = vld [vmem:[%s2880 + $0x10a] sm:$0xff]
        %v3516 = vld [vmem:[%s2880 + $0x112] sm:$0xff]
        %v3517 = vld [vmem:[%s2880 + $0x122] sm:$0xff]
        %v3518 = vld [vmem:[%s2880 + $0x12a] sm:$0xff]
        %v3519 = vld [vmem:[%s2880 + $0x13a] sm:$0xff]
        %v3520 = vld [vmem:[%s2880 + $0x142] sm:$0xff]
        %v3521 = vld [vmem:[%s2880 + $0x152] sm:$0xff]
        %v3522 = vld [vmem:[%s2880 + $0x15a] sm:$0xff]
        %v3523 = vld [vmem:[%s2880 + $0x16a] sm:$0xff]
        %v3524 = vld [vmem:[%s2880 + $0x172] sm:$0xff]
        %v3525 = vpack.c.bf16 %v3494, %v3493
        %v3526 = vpack.c.bf16 %v3496, %v3495
        %v3527 = vpack.c.bf16 %v3498, %v3497
        %v3528 = vpack.c.bf16 %v3500, %v3499
        %v3529 = vpack.c.bf16 %v3502, %v3501
        %v3530 = vpack.c.bf16 %v3504, %v3503
        %v3531 = vpack.c.bf16 %v3506, %v3505
        %v3532 = vpack.c.bf16 %v3508, %v3507
        %v3533 = vpack.c.bf16 %v3510, %v3509
        %v3534 = vpack.c.bf16 %v3512, %v3511
        %v3535 = vpack.c.bf16 %v3514, %v3513
        %v3536 = vpack.c.bf16 %v3516, %v3515
        %v3537 = vpack.c.bf16 %v3518, %v3517
        %v3538 = vpack.c.bf16 %v3520, %v3519
        %v3539 = vpack.c.bf16 %v3522, %v3521
        %v3540 = vpack.c.bf16 %v3524, %v3523
        %s3541 = scalar_lea.vmem %s4, 512
        %v3542 = vld [vmem:[%s3541] sm:$0xf]
        %v3543 = vld [vmem:[%s3541 + $0x4] sm:$0xf]
        %v3544 = vld [vmem:[%s3541 + $0x8] sm:$0xf]
        %v3545 = vld [vmem:[%s3541 + $0xc] sm:$0xf]
        %v3546 = vld [vmem:[%s3541 + $0x10] sm:$0xf]
        %v3547 = vld [vmem:[%s3541 + $0x14] sm:$0xf]
        %v3548 = vld [vmem:[%s3541 + $0x18] sm:$0xf]
        %v3549 = vld [vmem:[%s3541 + $0x1c] sm:$0xf]
        %v3550 = vld [vmem:[%s3541 + $0x20] sm:$0xf]
        %v3551 = vld [vmem:[%s3541 + $0x24] sm:$0xf]
        %v3552 = vld [vmem:[%s3541 + $0x28] sm:$0xf]
        %v3553 = vld [vmem:[%s3541 + $0x2c] sm:$0xf]
        %v3554 = vld [vmem:[%s3541 + $0x30] sm:$0xf]
        %v3555 = vld [vmem:[%s3541 + $0x34] sm:$0xf]
        %v3556 = vld [vmem:[%s3541 + $0x38] sm:$0xf]
        %v3557 = vld [vmem:[%s3541 + $0x3c] sm:$0xf]
        %v3574 = vunpack.c.l.b16 %v3542
        %v3575 = vunpack.c.l.b16 %v3543
        %v3576 = vunpack.c.l.b16 %v3544
        %v3577 = vunpack.c.l.b16 %v3545
        %v3578 = vunpack.c.l.b16 %v3546
        %v3579 = vunpack.c.l.b16 %v3547
        %v3580 = vunpack.c.l.b16 %v3548
        %v3581 = vunpack.c.l.b16 %v3549
        %v3582 = vunpack.c.l.b16 %v3550
        %v3583 = vunpack.c.l.b16 %v3551
        %v3584 = vunpack.c.l.b16 %v3552
        %v3585 = vunpack.c.l.b16 %v3553
        %v3586 = vunpack.c.l.b16 %v3554
        %v3587 = vunpack.c.l.b16 %v3555
        %v3588 = vunpack.c.l.b16 %v3556
        %v3589 = vunpack.c.l.b16 %v3557
        %v3590 = vpack.c.b16 %v3575, %v3574
        %v3591 = vpack.c.b16 %v3577, %v3576
        %v3592 = vpack.c.b16 %v3579, %v3578
        %v3593 = vpack.c.b16 %v3581, %v3580
        %v3594 = vpack.c.b16 %v3583, %v3582
        %v3595 = vpack.c.b16 %v3585, %v3584
        %v3596 = vpack.c.b16 %v3587, %v3586
        %v3597 = vpack.c.b16 %v3589, %v3588
        %3606 = vmatprep.subr.bf16.mxu0 0
        %3607 = vmatpush1.bf16.msra.mxu0 %v3590
        %3608 = vmatprep.subr.bf16.mxu0 0
        %3609 = vmatpush1.bf16.msra.mxu0 %v3591
        %3610 = vmatprep.subr.bf16.mxu0 0
        %3611 = vmatpush1.bf16.msra.mxu0 %v3592
        %3612 = vmatprep.subr.bf16.mxu0 0
        %3613 = vmatpush1.bf16.msra.mxu0 %v3593
        %3614 = vmatprep.subr.bf16.mxu0 0
        %3615 = vmatpush1.bf16.msra.mxu0 %v3594
        %3616 = vmatprep.subr.bf16.mxu0 0
        %3617 = vmatpush1.bf16.msra.mxu0 %v3595
        %3618 = vmatprep.subr.bf16.mxu0 0
        %3619 = vmatpush1.bf16.msra.mxu0 %v3596
        %3620 = vmatprep.subr.bf16.mxu0 0
        %3621 = vmatpush1.bf16.msra.mxu0 %v3597
        %3622 = vmatprep.subr.bf16.mxu0 0
        %3623 = vmatpush1.bf16.msra.mxu0 0
        %3624 = vmatprep.subr.bf16.mxu0 0
        %3625 = vmatpush1.bf16.msra.mxu0 0
        %3626 = vmatprep.subr.bf16.mxu0 0
        %3627 = vmatpush1.bf16.msra.mxu0 0
        %3628 = vmatprep.subr.bf16.mxu0 0
        %3629 = vmatpush1.bf16.msra.mxu0 0
        %3630 = vmatprep.subr.bf16.mxu0 0
        %3631 = vmatpush1.bf16.msra.mxu0 0
        %3632 = vmatprep.subr.bf16.mxu0 0
        %3633 = vmatpush1.bf16.msra.mxu0 0
        %3634 = vmatprep.subr.bf16.mxu0 0
        %3635 = vmatpush1.bf16.msra.mxu0 0
        %3636 = vmatprep.subr.bf16.mxu0 0
        %3637 = vmatpush1.bf16.msra.mxu0 0
        %3638 = vmatprep.mubr.bf16.mxu0 0
        %3639 = vmatmul.mubr.bf16.gmra.mrb[0].mxu0 %v3525
        %v3640 = vpop.f32.mrb[0].mxu0
        %v3641 = vadd.f32 0.0, %v3640
        %v3642 = vpop.f32.mrb[0].mxu0
        %v3643 = vpop.f32.mrb[0].mxu0
        %v3644 = vadd.f32 0.0, %v3643
        %v3645 = vpop.f32.mrb[0].mxu0
        %3646 = vmatprep.mubr.bf16.mxu0 0
        %3647 = vmatmul.mubr.bf16.gmra.mrb[0].mxu0 %v3526
        %v3648 = vpop.f32.mrb[0].mxu0
        %v3649 = vadd.f32 0.0, %v3648
        %v3650 = vpop.f32.mrb[0].mxu0
        %v3651 = vpop.f32.mrb[0].mxu0
        %v3652 = vadd.f32 0.0, %v3651
        %v3653 = vpop.f32.mrb[0].mxu0
        %3654 = vmatprep.mubr.bf16.mxu0 0
        %3655 = vmatmul.mubr.bf16.gmra.mrb[0].mxu0 %v3527
        %v3656 = vpop.f32.mrb[0].mxu0
        %v3657 = vadd.f32 0.0, %v3656
        %v3658 = vpop.f32.mrb[0].mxu0
        %v3659 = vpop.f32.mrb[0].mxu0
        %v3660 = vadd.f32 0.0, %v3659
        %v3661 = vpop.f32.mrb[0].mxu0
        %3662 = vmatprep.mubr.bf16.mxu0 0
        %3663 = vmatmul.mubr.bf16.gmra.mrb[0].mxu0 %v3528
        %v3664 = vpop.f32.mrb[0].mxu0
        %v3665 = vadd.f32 0.0, %v3664
        %v3666 = vpop.f32.mrb[0].mxu0
        %v3667 = vpop.f32.mrb[0].mxu0
        %v3668 = vadd.f32 0.0, %v3667
        %v3669 = vpop.f32.mrb[0].mxu0
        %3670 = vmatprep.mubr.bf16.mxu0 0
        %3671 = vmatmul.mubr.bf16.gmra.mrb[0].mxu0 %v3529
        %v3672 = vpop.f32.mrb[0].mxu0
        %v3673 = vadd.f32 0.0, %v3672
        %v3674 = vpop.f32.mrb[0].mxu0
        %v3675 = vpop.f32.mrb[0].mxu0
        %v3676 = vadd.f32 0.0, %v3675
        %v3677 = vpop.f32.mrb[0].mxu0
        %3678 = vmatprep.mubr.bf16.mxu0 0
        %3679 = vmatmul.mubr.bf16.gmra.mrb[0].mxu0 %v3530
        %v3680 = vpop.f32.mrb[0].mxu0
        %v3681 = vadd.f32 0.0, %v3680
        %v3682 = vpop.f32.mrb[0].mxu0
        %v3683 = vpop.f32.mrb[0].mxu0
        %v3684 = vadd.f32 0.0, %v3683
        %v3685 = vpop.f32.mrb[0].mxu0
        %3686 = vmatprep.mubr.bf16.mxu0 0
        %3687 = vmatmul.mubr.bf16.gmra.mrb[0].mxu0 %v3531
        %v3688 = vpop.f32.mrb[0].mxu0
        %v3689 = vadd.f32 0.0, %v3688
        %v3690 = vpop.f32.mrb[0].mxu0
        %v3691 = vpop.f32.mrb[0].mxu0
        %v3692 = vadd.f32 0.0, %v3691
        %v3693 = vpop.f32.mrb[0].mxu0
        %3694 = vmatprep.mubr.bf16.mxu0 0
        %3695 = vmatmul.mubr.bf16.gmra.mrb[0].mxu0 %v3532
        %v3696 = vpop.f32.mrb[0].mxu0
        %v3697 = vadd.f32 0.0, %v3696
        %v3698 = vpop.f32.mrb[0].mxu0
        %v3699 = vpop.f32.mrb[0].mxu0
        %v3700 = vadd.f32 0.0, %v3699
        %v3701 = vpop.f32.mrb[0].mxu0
        %3702 = vmatprep.mubr.bf16.mxu0 0
        %3703 = vmatmul.mubr.bf16.gmra.mrb[0].mxu0 %v3533
        %v3704 = vpop.f32.mrb[0].mxu0
        %v3705 = vadd.f32 0.0, %v3704
        %v3706 = vpop.f32.mrb[0].mxu0
        %v3707 = vpop.f32.mrb[0].mxu0
        %v3708 = vadd.f32 0.0, %v3707
        %v3709 = vpop.f32.mrb[0].mxu0
        %3710 = vmatprep.mubr.bf16.mxu0 0
        %3711 = vmatmul.mubr.bf16.gmra.mrb[0].mxu0 %v3534
        %v3712 = vpop.f32.mrb[0].mxu0
        %v3713 = vadd.f32 0.0, %v3712
        %v3714 = vpop.f32.mrb[0].mxu0
        %v3715 = vpop.f32.mrb[0].mxu0
        %v3716 = vadd.f32 0.0, %v3715
        %v3717 = vpop.f32.mrb[0].mxu0
        %3718 = vmatprep.mubr.bf16.mxu0 0
        %3719 = vmatmul.mubr.bf16.gmra.mrb[0].mxu0 %v3535
        %v3720 = vpop.f32.mrb[0].mxu0
        %v3721 = vadd.f32 0.0, %v3720
        %v3722 = vpop.f32.mrb[0].mxu0
        %v3723 = vpop.f32.mrb[0].mxu0
        %v3724 = vadd.f32 0.0, %v3723
        %v3725 = vpop.f32.mrb[0].mxu0
        %3726 = vmatprep.mubr.bf16.mxu0 0
        %3727 = vmatmul.mubr.bf16.gmra.mrb[0].mxu0 %v3536
        %v3728 = vpop.f32.mrb[0].mxu0
        %v3729 = vadd.f32 0.0, %v3728
        %v3730 = vpop.f32.mrb[0].mxu0
        %v3731 = vpop.f32.mrb[0].mxu0
        %v3732 = vadd.f32 0.0, %v3731
        %v3733 = vpop.f32.mrb[0].mxu0
        %3734 = vmatprep.mubr.bf16.mxu0 0
        %3735 = vmatmul.mubr.bf16.gmra.mrb[0].mxu0 %v3537
        %v3736 = vpop.f32.mrb[0].mxu0
        %v3737 = vadd.f32 0.0, %v3736
        %v3738 = vpop.f32.mrb[0].mxu0
        %v3739 = vpop.f32.mrb[0].mxu0
        %v3740 = vadd.f32 0.0, %v3739
        %v3741 = vpop.f32.mrb[0].mxu0
        %3742 = vmatprep.mubr.bf16.mxu0 0
        %3743 = vmatmul.mubr.bf16.gmra.mrb[0].mxu0 %v3538
        %v3744 = vpop.f32.mrb[0].mxu0
        %v3745 = vadd.f32 0.0, %v3744
        %v3746 = vpop.f32.mrb[0].mxu0
        %v3747 = vpop.f32.mrb[0].mxu0
        %v3748 = vadd.f32 0.0, %v3747
        %v3749 = vpop.f32.mrb[0].mxu0
        %3750 = vmatprep.mubr.bf16.mxu0 0
        %3751 = vmatmul.mubr.bf16.gmra.mrb[0].mxu0 %v3539
        %v3752 = vpop.f32.mrb[0].mxu0
        %v3753 = vadd.f32 0.0, %v3752
        %v3754 = vpop.f32.mrb[0].mxu0
        %v3755 = vpop.f32.mrb[0].mxu0
        %v3756 = vadd.f32 0.0, %v3755
        %v3757 = vpop.f32.mrb[0].mxu0
        %3758 = vmatprep.mubr.bf16.mxu0 0
        %3759 = vmatmul.mubr.bf16.gmra.mrb[0].mxu0 %v3540
        %v3760 = vpop.f32.mrb[0].mxu0
        %v3761 = vadd.f32 0.0, %v3760
        %v3762 = vpop.f32.mrb[0].mxu0
        %v3763 = vpop.f32.mrb[0].mxu0
        %v3764 = vadd.f32 0.0, %v3763
        %v3765 = vpop.f32.mrb[0].mxu0
        %3766 = vdwg.mxu0
        %v3767 = vadd.f32 %v3461, %v3641
        %v3768 = vadd.f32 %v3462, %v3644
        %v3769 = vadd.f32 %v3463, %v3649
        %v3770 = vadd.f32 %v3464, %v3652
        %v3771 = vadd.f32 %v3465, %v3657
        %v3772 = vadd.f32 %v3466, %v3660
        %v3773 = vadd.f32 %v3467, %v3665
        %v3774 = vadd.f32 %v3468, %v3668
        %v3775 = vadd.f32 %v3469, %v3673
        %v3776 = vadd.f32 %v3470, %v3676
        %v3777 = vadd.f32 %v3471, %v3681
        %v3778 = vadd.f32 %v3472, %v3684
        %v3779 = vadd.f32 %v3473, %v3689
        %v3780 = vadd.f32 %v3474, %v3692
        %v3781 = vadd.f32 %v3475, %v3697
        %v3782 = vadd.f32 %v3476, %v3700
        %v3783 = vadd.f32 %v3477, %v3705
        %v3784 = vadd.f32 %v3478, %v3708
        %v3785 = vadd.f32 %v3479, %v3713
        %v3786 = vadd.f32 %v3480, %v3716
        %v3787 = vadd.f32 %v3481, %v3721
        %v3788 = vadd.f32 %v3482, %v3724
        %v3789 = vadd.f32 %v3483, %v3729
        %v3790 = vadd.f32 %v3484, %v3732
        %v3791 = vadd.f32 %v3485, %v3737
        %v3792 = vadd.f32 %v3486, %v3740
        %v3793 = vadd.f32 %v3487, %v3745
        %v3794 = vadd.f32 %v3488, %v3748
        %v3795 = vadd.f32 %v3489, %v3753
        %v3796 = vadd.f32 %v3490, %v3756
        %v3797 = vadd.f32 %v3491, %v3761
        %v3798 = vadd.f32 %v3492, %v3764
        %v3799 = vld [vmem:[%s5] sm:$0x1]
        %v3801 = vlaneseq
        %v3802 = vshrl.u32 %v3801, 7
        %v3803 = vsub.s32 0, %v3802
        %v3804 = vrot.slane %v3799, %v3803
        %v3806 = vmul.f32 %v3767, %v3804
        %v3807 = vmul.f32 %v3768, %v3804
        %v3808 = vmul.f32 %v3769, %v3804
        %v3809 = vmul.f32 %v3770, %v3804
        %v3810 = vmul.f32 %v3771, %v3804
        %v3811 = vmul.f32 %v3772, %v3804
        %v3812 = vmul.f32 %v3773, %v3804
        %v3813 = vmul.f32 %v3774, %v3804
        %v3814 = vmul.f32 %v3775, %v3804
        %v3815 = vmul.f32 %v3776, %v3804
        %v3816 = vmul.f32 %v3777, %v3804
        %v3817 = vmul.f32 %v3778, %v3804
        %v3818 = vmul.f32 %v3779, %v3804
        %v3819 = vmul.f32 %v3780, %v3804
        %v3820 = vmul.f32 %v3781, %v3804
        %v3821 = vmul.f32 %v3782, %v3804
        %v3822 = vmul.f32 %v3783, %v3804
        %v3823 = vmul.f32 %v3784, %v3804
        %v3824 = vmul.f32 %v3785, %v3804
        %v3825 = vmul.f32 %v3786, %v3804
        %v3826 = vmul.f32 %v3787, %v3804
        %v3827 = vmul.f32 %v3788, %v3804
        %v3828 = vmul.f32 %v3789, %v3804
        %v3829 = vmul.f32 %v3790, %v3804
        %v3830 = vmul.f32 %v3791, %v3804
        %v3831 = vmul.f32 %v3792, %v3804
        %v3832 = vmul.f32 %v3793, %v3804
        %v3833 = vmul.f32 %v3794, %v3804
        %v3834 = vmul.f32 %v3795, %v3804
        %v3835 = vmul.f32 %v3796, %v3804
        %v3836 = vmul.f32 %v3797, %v3804
        %v3837 = vmul.f32 %v3798, %v3804
        %v3838 = vld [vmem:[%s6] sm:$0x1]
        %v3840 = vlaneseq
        %v3841 = vshrl.u32 %v3840, 7
        %v3842 = vsub.s32 0, %v3841
        %v3843 = vrot.slane %v3838, %v3842
        %v3845 = vadd.f32 %v3806, %v3843
        %v3846 = vadd.f32 %v3807, %v3843
        %v3847 = vadd.f32 %v3808, %v3843
        %v3848 = vadd.f32 %v3809, %v3843
        %v3849 = vadd.f32 %v3810, %v3843
        %v3850 = vadd.f32 %v3811, %v3843
        %v3851 = vadd.f32 %v3812, %v3843
        %v3852 = vadd.f32 %v3813, %v3843
        %v3853 = vadd.f32 %v3814, %v3843
        %v3854 = vadd.f32 %v3815, %v3843
        %v3855 = vadd.f32 %v3816, %v3843
        %v3856 = vadd.f32 %v3817, %v3843
        %v3857 = vadd.f32 %v3818, %v3843
        %v3858 = vadd.f32 %v3819, %v3843
        %v3859 = vadd.f32 %v3820, %v3843
        %v3860 = vadd.f32 %v3821, %v3843
        %v3861 = vadd.f32 %v3822, %v3843
        %v3862 = vadd.f32 %v3823, %v3843
        %v3863 = vadd.f32 %v3824, %v3843
        %v3864 = vadd.f32 %v3825, %v3843
        %v3865 = vadd.f32 %v3826, %v3843
        %v3866 = vadd.f32 %v3827, %v3843
        %v3867 = vadd.f32 %v3828, %v3843
        %v3868 = vadd.f32 %v3829, %v3843
        %v3869 = vadd.f32 %v3830, %v3843
        %v3870 = vadd.f32 %v3831, %v3843
        %v3871 = vadd.f32 %v3832, %v3843
        %v3872 = vadd.f32 %v3833, %v3843
        %v3873 = vadd.f32 %v3834, %v3843
        %v3874 = vadd.f32 %v3835, %v3843
        %v3875 = vadd.f32 %v3836, %v3843
        %v3876 = vadd.f32 %v3837, %v3843
        %v3877 = vadd.f32 %v3845, 3.0
        %v3878 = vadd.f32 %v3846, 3.0
        %v3879 = vadd.f32 %v3847, 3.0
        %v3880 = vadd.f32 %v3848, 3.0
        %v3881 = vadd.f32 %v3849, 3.0
        %v3882 = vadd.f32 %v3850, 3.0
        %v3883 = vadd.f32 %v3851, 3.0
        %v3884 = vadd.f32 %v3852, 3.0
        %v3885 = vadd.f32 %v3853, 3.0
        %v3886 = vadd.f32 %v3854, 3.0
        %v3887 = vadd.f32 %v3855, 3.0
        %v3888 = vadd.f32 %v3856, 3.0
        %v3889 = vadd.f32 %v3857, 3.0
        %v3890 = vadd.f32 %v3858, 3.0
        %v3891 = vadd.f32 %v3859, 3.0
        %v3892 = vadd.f32 %v3860, 3.0
        %v3893 = vadd.f32 %v3861, 3.0
        %v3894 = vadd.f32 %v3862, 3.0
        %v3895 = vadd.f32 %v3863, 3.0
        %v3896 = vadd.f32 %v3864, 3.0
        %v3897 = vadd.f32 %v3865, 3.0
        %v3898 = vadd.f32 %v3866, 3.0
        %v3899 = vadd.f32 %v3867, 3.0
        %v3900 = vadd.f32 %v3868, 3.0
        %v3901 = vadd.f32 %v3869, 3.0
        %v3902 = vadd.f32 %v3870, 3.0
        %v3903 = vadd.f32 %v3871, 3.0
        %v3904 = vadd.f32 %v3872, 3.0
        %v3905 = vadd.f32 %v3873, 3.0
        %v3906 = vadd.f32 %v3874, 3.0
        %v3907 = vadd.f32 %v3875, 3.0
        %v3908 = vadd.f32 %v3876, 3.0
        %v3909 = vmax.f32 %v3877, 0.0
        %v3910 = vmax.f32 %v3878, 0.0
        %v3911 = vmax.f32 %v3879, 0.0
        %v3912 = vmax.f32 %v3880, 0.0
        %v3913 = vmax.f32 %v3881, 0.0
        %v3914 = vmax.f32 %v3882, 0.0
        %v3915 = vmax.f32 %v3883, 0.0
        %v3916 = vmax.f32 %v3884, 0.0
        %v3917 = vmax.f32 %v3885, 0.0
        %v3918 = vmax.f32 %v3886, 0.0
        %v3919 = vmax.f32 %v3887, 0.0
        %v3920 = vmax.f32 %v3888, 0.0
        %v3921 = vmax.f32 %v3889, 0.0
        %v3922 = vmax.f32 %v3890, 0.0
        %v3923 = vmax.f32 %v3891, 0.0
        %v3924 = vmax.f32 %v3892, 0.0
        %v3925 = vmax.f32 %v3893, 0.0
        %v3926 = vmax.f32 %v3894, 0.0
        %v3927 = vmax.f32 %v3895, 0.0
        %v3928 = vmax.f32 %v3896, 0.0
        %v3929 = vmax.f32 %v3897, 0.0
        %v3930 = vmax.f32 %v3898, 0.0
        %v3931 = vmax.f32 %v3899, 0.0
        %v3932 = vmax.f32 %v3900, 0.0
        %v3933 = vmax.f32 %v3901, 0.0
        %v3934 = vmax.f32 %v3902, 0.0
        %v3935 = vmax.f32 %v3903, 0.0
        %v3936 = vmax.f32 %v3904, 0.0
        %v3937 = vmax.f32 %v3905, 0.0
        %v3938 = vmax.f32 %v3906, 0.0
        %v3939 = vmax.f32 %v3907, 0.0
        %v3940 = vmax.f32 %v3908, 0.0
        %v3941 = vmin.f32 %v3909, 6.0
        %v3942 = vmin.f32 %v3910, 6.0
        %v3943 = vmin.f32 %v3911, 6.0
        %v3944 = vmin.f32 %v3912, 6.0
        %v3945 = vmin.f32 %v3913, 6.0
        %v3946 = vmin.f32 %v3914, 6.0
        %v3947 = vmin.f32 %v3915, 6.0
        %v3948 = vmin.f32 %v3916, 6.0
        %v3949 = vmin.f32 %v3917, 6.0
        %v3950 = vmin.f32 %v3918, 6.0
        %v3951 = vmin.f32 %v3919, 6.0
        %v3952 = vmin.f32 %v3920, 6.0
        %v3953 = vmin.f32 %v3921, 6.0
        %v3954 = vmin.f32 %v3922, 6.0
        %v3955 = vmin.f32 %v3923, 6.0
        %v3956 = vmin.f32 %v3924, 6.0
        %v3957 = vmin.f32 %v3925, 6.0
        %v3958 = vmin.f32 %v3926, 6.0
        %v3959 = vmin.f32 %v3927, 6.0
        %v3960 = vmin.f32 %v3928, 6.0
        %v3961 = vmin.f32 %v3929, 6.0
        %v3962 = vmin.f32 %v3930, 6.0
        %v3963 = vmin.f32 %v3931, 6.0
        %v3964 = vmin.f32 %v3932, 6.0
        %v3965 = vmin.f32 %v3933, 6.0
        %v3966 = vmin.f32 %v3934, 6.0
        %v3967 = vmin.f32 %v3935, 6.0
        %v3968 = vmin.f32 %v3936, 6.0
        %v3969 = vmin.f32 %v3937, 6.0
        %v3970 = vmin.f32 %v3938, 6.0
        %v3971 = vmin.f32 %v3939, 6.0
        %v3972 = vmin.f32 %v3940, 6.0
        %v3973 = vmul.f32 %v3845, %v3941
        %v3974 = vmul.f32 %v3846, %v3942
        %v3975 = vmul.f32 %v3847, %v3943
        %v3976 = vmul.f32 %v3848, %v3944
        %v3977 = vmul.f32 %v3849, %v3945
        %v3978 = vmul.f32 %v3850, %v3946
        %v3979 = vmul.f32 %v3851, %v3947
        %v3980 = vmul.f32 %v3852, %v3948
        %v3981 = vmul.f32 %v3853, %v3949
        %v3982 = vmul.f32 %v3854, %v3950
        %v3983 = vmul.f32 %v3855, %v3951
        %v3984 = vmul.f32 %v3856, %v3952
        %v3985 = vmul.f32 %v3857, %v3953
        %v3986 = vmul.f32 %v3858, %v3954
        %v3987 = vmul.f32 %v3859, %v3955
        %v3988 = vmul.f32 %v3860, %v3956
        %v3989 = vmul.f32 %v3861, %v3957
        %v3990 = vmul.f32 %v3862, %v3958
        %v3991 = vmul.f32 %v3863, %v3959
        %v3992 = vmul.f32 %v3864, %v3960
        %v3993 = vmul.f32 %v3865, %v3961
        %v3994 = vmul.f32 %v3866, %v3962
        %v3995 = vmul.f32 %v3867, %v3963
        %v3996 = vmul.f32 %v3868, %v3964
        %v3997 = vmul.f32 %v3869, %v3965
        %v3998 = vmul.f32 %v3870, %v3966
        %v3999 = vmul.f32 %v3871, %v3967
        %v4000 = vmul.f32 %v3872, %v3968
        %v4001 = vmul.f32 %v3873, %v3969
        %v4002 = vmul.f32 %v3874, %v3970
        %v4003 = vmul.f32 %v3875, %v3971
        %v4004 = vmul.f32 %v3876, %v3972
        %v4005 = vmul.f32 %v3973, 0.16666667
        %v4006 = vmul.f32 %v3974, 0.16666667
        %v4007 = vmul.f32 %v3975, 0.16666667
        %v4008 = vmul.f32 %v3976, 0.16666667
        %v4009 = vmul.f32 %v3977, 0.16666667
        %v4010 = vmul.f32 %v3978, 0.16666667
        %v4011 = vmul.f32 %v3979, 0.16666667
        %v4012 = vmul.f32 %v3980, 0.16666667
        %v4013 = vmul.f32 %v3981, 0.16666667
        %v4014 = vmul.f32 %v3982, 0.16666667
        %v4015 = vmul.f32 %v3983, 0.16666667
        %v4016 = vmul.f32 %v3984, 0.16666667
        %v4017 = vmul.f32 %v3985, 0.16666667
        %v4018 = vmul.f32 %v3986, 0.16666667
        %v4019 = vmul.f32 %v3987, 0.16666667
        %v4020 = vmul.f32 %v3988, 0.16666667
        %v4021 = vmul.f32 %v3989, 0.16666667
        %v4022 = vmul.f32 %v3990, 0.16666667
        %v4023 = vmul.f32 %v3991, 0.16666667
        %v4024 = vmul.f32 %v3992, 0.16666667
        %v4025 = vmul.f32 %v3993, 0.16666667
        %v4026 = vmul.f32 %v3994, 0.16666667
        %v4027 = vmul.f32 %v3995, 0.16666667
        %v4028 = vmul.f32 %v3996, 0.16666667
        %v4029 = vmul.f32 %v3997, 0.16666667
        %v4030 = vmul.f32 %v3998, 0.16666667
        %v4031 = vmul.f32 %v3999, 0.16666667
        %v4032 = vmul.f32 %v4000, 0.16666667
        %v4033 = vmul.f32 %v4001, 0.16666667
        %v4034 = vmul.f32 %v4002, 0.16666667
        %v4035 = vmul.f32 %v4003, 0.16666667
        %v4036 = vmul.f32 %v4004, 0.16666667
        %4037 = vst [vmem:[#allocation3] sm:$0xff] 0.0
        %4038 = vst [vmem:[#allocation3 + $0x8] sm:$0xff] 0.0
        %4039 = vst [vmem:[#allocation3 + $0x10] sm:$0x3] 0.0
        %s4040 = scalar_lea.vmem [#allocation3], 408
        %4041 = vst [vmem:[%s4040] sm:$0xff] 0.0
        %4042 = vst [vmem:[%s4040 + $0x8] sm:$0xff] 0.0
        %4043 = vst [vmem:[%s4040 + $0x10] sm:$0x3] 0.0
        %s4044 = scalar_lea.vmem [#allocation3], 24
        %4045 = vst [vmem:[%s4044] sm:$0x1] 0.0
        %4046 = vst [vmem:[%s4044 + $0x18] sm:$0x1] 0.0
        %4047 = vst [vmem:[%s4044 + $0x30] sm:$0x1] 0.0
        %4048 = vst [vmem:[%s4044 + $0x48] sm:$0x1] 0.0
        %4049 = vst [vmem:[%s4044 + $0x60] sm:$0x1] 0.0
        %4050 = vst [vmem:[%s4044 + $0x78] sm:$0x1] 0.0
        %4051 = vst [vmem:[%s4044 + $0x90] sm:$0x1] 0.0
        %4052 = vst [vmem:[%s4044 + $0xa8] sm:$0x1] 0.0
        %4053 = vst [vmem:[%s4044 + $0xc0] sm:$0x1] 0.0
        %4054 = vst [vmem:[%s4044 + $0xd8] sm:$0x1] 0.0
        %4055 = vst [vmem:[%s4044 + $0xf0] sm:$0x1] 0.0
        %4056 = vst [vmem:[%s4044 + $0x108] sm:$0x1] 0.0
        %4057 = vst [vmem:[%s4044 + $0x120] sm:$0x1] 0.0
        %4058 = vst [vmem:[%s4044 + $0x138] sm:$0x1] 0.0
        %4059 = vst [vmem:[%s4044 + $0x150] sm:$0x1] 0.0
        %4060 = vst [vmem:[%s4044 + $0x168] sm:$0x1] 0.0
        %4061 = vst [vmem:[%s4044 + $0x11] sm:$0x1] 0.0
        %4062 = vst [vmem:[%s4044 + $0x29] sm:$0x1] 0.0
        %4063 = vst [vmem:[%s4044 + $0x41] sm:$0x1] 0.0
        %4064 = vst [vmem:[%s4044 + $0x59] sm:$0x1] 0.0
        %4065 = vst [vmem:[%s4044 + $0x71] sm:$0x1] 0.0
        %4066 = vst [vmem:[%s4044 + $0x89] sm:$0x1] 0.0
        %4067 = vst [vmem:[%s4044 + $0xa1] sm:$0x1] 0.0
        %4068 = vst [vmem:[%s4044 + $0xb9] sm:$0x1] 0.0
        %4069 = vst [vmem:[%s4044 + $0xd1] sm:$0x1] 0.0
        %4070 = vst [vmem:[%s4044 + $0xe9] sm:$0x1] 0.0
        %4071 = vst [vmem:[%s4044 + $0x101] sm:$0x1] 0.0
        %4072 = vst [vmem:[%s4044 + $0x119] sm:$0x1] 0.0
        %4073 = vst [vmem:[%s4044 + $0x131] sm:$0x1] 0.0
        %4074 = vst [vmem:[%s4044 + $0x149] sm:$0x1] 0.0
        %4075 = vst [vmem:[%s4044 + $0x161] sm:$0x1] 0.0
        %4076 = vst [vmem:[%s4044 + $0x179] sm:$0x1] 0.0
        %4077 = vst [vmem:[%s4044 + $0x1] sm:$0xff] %v4005
        %4078 = vst [vmem:[%s4044 + $0x9] sm:$0xff] %v4006
        %4079 = vst [vmem:[%s4044 + $0x19] sm:$0xff] %v4007
        %4080 = vst [vmem:[%s4044 + $0x21] sm:$0xff] %v4008
        %4081 = vst [vmem:[%s4044 + $0x31] sm:$0xff] %v4009
        %4082 = vst [vmem:[%s4044 + $0x39] sm:$0xff] %v4010
        %4083 = vst [vmem:[%s4044 + $0x49] sm:$0xff] %v4011
        %4084 = vst [vmem:[%s4044 + $0x51] sm:$0xff] %v4012
        %4085 = vst [vmem:[%s4044 + $0x61] sm:$0xff] %v4013
        %4086 = vst [vmem:[%s4044 + $0x69] sm:$0xff] %v4014
        %4087 = vst [vmem:[%s4044 + $0x79] sm:$0xff] %v4015
        %4088 = vst [vmem:[%s4044 + $0x81] sm:$0xff] %v4016
        %4089 = vst [vmem:[%s4044 + $0x91] sm:$0xff] %v4017
        %4090 = vst [vmem:[%s4044 + $0x99] sm:$0xff] %v4018
        %4091 = vst [vmem:[%s4044 + $0xa9] sm:$0xff] %v4019
        %4092 = vst [vmem:[%s4044 + $0xb1] sm:$0xff] %v4020
        %4093 = vst [vmem:[%s4044 + $0xc1] sm:$0xff] %v4021
        %4094 = vst [vmem:[%s4044 + $0xc9] sm:$0xff] %v4022
        %4095 = vst [vmem:[%s4044 + $0xd9] sm:$0xff] %v4023
        %4096 = vst [vmem:[%s4044 + $0xe1] sm:$0xff] %v4024
        %4097 = vst [vmem:[%s4044 + $0xf1] sm:$0xff] %v4025
        %4098 = vst [vmem:[%s4044 + $0xf9] sm:$0xff] %v4026
        %4099 = vst [vmem:[%s4044 + $0x109] sm:$0xff] %v4027
        %4100 = vst [vmem:[%s4044 + $0x111] sm:$0xff] %v4028
        %4101 = vst [vmem:[%s4044 + $0x121] sm:$0xff] %v4029
        %4102 = vst [vmem:[%s4044 + $0x129] sm:$0xff] %v4030
        %4103 = vst [vmem:[%s4044 + $0x139] sm:$0xff] %v4031
        %4104 = vst [vmem:[%s4044 + $0x141] sm:$0xff] %v4032
        %4105 = vst [vmem:[%s4044 + $0x151] sm:$0xff] %v4033
        %4106 = vst [vmem:[%s4044 + $0x159] sm:$0xff] %v4034
        %4107 = vst [vmem:[%s4044 + $0x169] sm:$0xff] %v4035
        %4108 = vst [vmem:[%s4044 + $0x171] sm:$0xff] %v4036
        %v4109 = vld [vmem:[#allocation3] sm:$0xff]
        %v4110 = vld [vmem:[#allocation3 + $0x8] sm:$0xff]
        %v4111 = vld [vmem:[#allocation3 + $0x18] sm:$0xff]
        %v4112 = vld [vmem:[#allocation3 + $0x20] sm:$0xff]
        %v4113 = vld [vmem:[#allocation3 + $0x30] sm:$0xff]
        %v4114 = vld [vmem:[#allocation3 + $0x38] sm:$0xff]
        %v4115 = vld [vmem:[#allocation3 + $0x48] sm:$0xff]
        %v4116 = vld [vmem:[#allocation3 + $0x50] sm:$0xff]
        %v4117 = vld [vmem:[#allocation3 + $0x60] sm:$0xff]
        %v4118 = vld [vmem:[#allocation3 + $0x68] sm:$0xff]
        %v4119 = vld [vmem:[#allocation3 + $0x78] sm:$0xff]
        %v4120 = vld [vmem:[#allocation3 + $0x80] sm:$0xff]
        %v4121 = vld [vmem:[#allocation3 + $0x90] sm:$0xff]
        %v4122 = vld [vmem:[#allocation3 + $0x98] sm:$0xff]
        %v4123 = vld [vmem:[#allocation3 + $0xa8] sm:$0xff]
        %v4124 = vld [vmem:[#allocation3 + $0xb0] sm:$0xff]
        %v4125 = vld [vmem:[#allocation3 + $0xc0] sm:$0xff]
        %v4126 = vld [vmem:[#allocation3 + $0xc8] sm:$0xff]
        %v4127 = vld [vmem:[#allocation3 + $0xd8] sm:$0xff]
        %v4128 = vld [vmem:[#allocation3 + $0xe0] sm:$0xff]
        %v4129 = vld [vmem:[#allocation3 + $0xf0] sm:$0xff]
        %v4130 = vld [vmem:[#allocation3 + $0xf8] sm:$0xff]
        %v4131 = vld [vmem:[#allocation3 + $0x108] sm:$0xff]
        %v4132 = vld [vmem:[#allocation3 + $0x110] sm:$0xff]
        %v4133 = vld [vmem:[#allocation3 + $0x120] sm:$0xff]
        %v4134 = vld [vmem:[#allocation3 + $0x128] sm:$0xff]
        %v4135 = vld [vmem:[#allocation3 + $0x138] sm:$0xff]
        %v4136 = vld [vmem:[#allocation3 + $0x140] sm:$0xff]
        %v4137 = vld [vmem:[#allocation3 + $0x150] sm:$0xff]
        %v4138 = vld [vmem:[#allocation3 + $0x158] sm:$0xff]
        %v4139 = vld [vmem:[#allocation3 + $0x168] sm:$0xff]
        %v4140 = vld [vmem:[#allocation3 + $0x170] sm:$0xff]
        %v4141 = vpack.c.bf16 %v4110, %v4109
        %v4142 = vpack.c.bf16 %v4112, %v4111
        %v4143 = vpack.c.bf16 %v4114, %v4113
        %v4144 = vpack.c.bf16 %v4116, %v4115
        %v4145 = vpack.c.bf16 %v4118, %v4117
        %v4146 = vpack.c.bf16 %v4120, %v4119
        %v4147 = vpack.c.bf16 %v4122, %v4121
        %v4148 = vpack.c.bf16 %v4124, %v4123
        %v4149 = vpack.c.bf16 %v4126, %v4125
        %v4150 = vpack.c.bf16 %v4128, %v4127
        %v4151 = vpack.c.bf16 %v4130, %v4129
        %v4152 = vpack.c.bf16 %v4132, %v4131
        %v4153 = vpack.c.bf16 %v4134, %v4133
        %v4154 = vpack.c.bf16 %v4136, %v4135
        %v4155 = vpack.c.bf16 %v4138, %v4137
        %v4156 = vpack.c.bf16 %v4140, %v4139
        %v4157 = vld [vmem:[#allocation4] sm:$0xf]
        %v4158 = vld [vmem:[#allocation4 + $0x4] sm:$0xf]
        %v4159 = vld [vmem:[#allocation4 + $0x8] sm:$0xf]
        %v4160 = vld [vmem:[#allocation4 + $0xc] sm:$0xf]
        %v4161 = vld [vmem:[#allocation4 + $0x10] sm:$0xf]
        %v4162 = vld [vmem:[#allocation4 + $0x14] sm:$0xf]
        %v4163 = vld [vmem:[#allocation4 + $0x18] sm:$0xf]
        %v4164 = vld [vmem:[#allocation4 + $0x1c] sm:$0xf]
        %v4165 = vld [vmem:[#allocation4 + $0x20] sm:$0xf]
        %v4166 = vld [vmem:[#allocation4 + $0x24] sm:$0xf]
        %v4167 = vld [vmem:[#allocation4 + $0x28] sm:$0xf]
        %v4168 = vld [vmem:[#allocation4 + $0x2c] sm:$0xf]
        %v4169 = vld [vmem:[#allocation4 + $0x30] sm:$0xf]
        %v4170 = vld [vmem:[#allocation4 + $0x34] sm:$0xf]
        %v4171 = vld [vmem:[#allocation4 + $0x38] sm:$0xf]
        %v4172 = vld [vmem:[#allocation4 + $0x3c] sm:$0xf]
        %v4173 = vld [vmem:[#allocation3 + $0x1] sm:$0xff]
        %v4174 = vld [vmem:[#allocation3 + $0x9] sm:$0xff]
        %v4175 = vld [vmem:[#allocation3 + $0x19] sm:$0xff]
        %v4176 = vld [vmem:[#allocation3 + $0x21] sm:$0xff]
        %v4177 = vld [vmem:[#allocation3 + $0x31] sm:$0xff]
        %v4178 = vld [vmem:[#allocation3 + $0x39] sm:$0xff]
        %v4179 = vld [vmem:[#allocation3 + $0x49] sm:$0xff]
        %v4180 = vld [vmem:[#allocation3 + $0x51] sm:$0xff]
        %v4181 = vld [vmem:[#allocation3 + $0x61] sm:$0xff]
        %v4182 = vld [vmem:[#allocation3 + $0x69] sm:$0xff]
        %v4183 = vld [vmem:[#allocation3 + $0x79] sm:$0xff]
        %v4184 = vld [vmem:[#allocation3 + $0x81] sm:$0xff]
        %v4185 = vld [vmem:[#allocation3 + $0x91] sm:$0xff]
        %v4186 = vld [vmem:[#allocation3 + $0x99] sm:$0xff]
        %v4187 = vld [vmem:[#allocation3 + $0xa9] sm:$0xff]
        %v4188 = vld [vmem:[#allocation3 + $0xb1] sm:$0xff]
        %v4189 = vld [vmem:[#allocation3 + $0xc1] sm:$0xff]
        %v4190 = vld [vmem:[#allocation3 + $0xc9] sm:$0xff]
        %v4191 = vld [vmem:[#allocation3 + $0xd9] sm:$0xff]
        %v4192 = vld [vmem:[#allocation3 + $0xe1] sm:$0xff]
        %v4193 = vld [vmem:[#allocation3 + $0xf1] sm:$0xff]
        %v4194 = vld [vmem:[#allocation3 + $0xf9] sm:$0xff]
        %v4195 = vld [vmem:[#allocation3 + $0x109] sm:$0xff]
        %v4196 = vld [vmem:[#allocation3 + $0x111] sm:$0xff]
        %v4197 = vld [vmem:[#allocation3 + $0x121] sm:$0xff]
        %v4198 = vld [vmem:[#allocation3 + $0x129] sm:$0xff]
        %v4199 = vld [vmem:[#allocation3 + $0x139] sm:$0xff]
        %v4200 = vld [vmem:[#allocation3 + $0x141] sm:$0xff]
        %v4201 = vld [vmem:[#allocation3 + $0x151] sm:$0xff]
        %v4202 = vld [vmem:[#allocation3 + $0x159] sm:$0xff]
        %v4203 = vld [vmem:[#allocation3 + $0x169] sm:$0xff]
        %v4204 = vld [vmem:[#allocation3 + $0x171] sm:$0xff]
        %v4205 = vpack.c.bf16 %v4174, %v4173
        %v4206 = vpack.c.bf16 %v4176, %v4175
        %v4207 = vpack.c.bf16 %v4178, %v4177
        %v4208 = vpack.c.bf16 %v4180, %v4179
        %v4209 = vpack.c.bf16 %v4182, %v4181
        %v4210 = vpack.c.bf16 %v4184, %v4183
        %v4211 = vpack.c.bf16 %v4186, %v4185
        %v4212 = vpack.c.bf16 %v4188, %v4187
        %v4213 = vpack.c.bf16 %v4190, %v4189
        %v4214 = vpack.c.bf16 %v4192, %v4191
        %v4215 = vpack.c.bf16 %v4194, %v4193
        %v4216 = vpack.c.bf16 %v4196, %v4195
        %v4217 = vpack.c.bf16 %v4198, %v4197
        %v4218 = vpack.c.bf16 %v4200, %v4199
        %v4219 = vpack.c.bf16 %v4202, %v4201
        %v4220 = vpack.c.bf16 %v4204, %v4203
        %s4221 = scalar_lea.vmem [#allocation4], 64
        %v4222 = vld [vmem:[%s4221] sm:$0xf]
        %v4223 = vld [vmem:[%s4221 + $0x4] sm:$0xf]
        %v4224 = vld [vmem:[%s4221 + $0x8] sm:$0xf]
        %v4225 = vld [vmem:[%s4221 + $0xc] sm:$0xf]
        %v4226 = vld [vmem:[%s4221 + $0x10] sm:$0xf]
        %v4227 = vld [vmem:[%s4221 + $0x14] sm:$0xf]
        %v4228 = vld [vmem:[%s4221 + $0x18] sm:$0xf]
        %v4229 = vld [vmem:[%s4221 + $0x1c] sm:$0xf]
        %v4230 = vld [vmem:[%s4221 + $0x20] sm:$0xf]
        %v4231 = vld [vmem:[%s4221 + $0x24] sm:$0xf]
        %v4232 = vld [vmem:[%s4221 + $0x28] sm:$0xf]
        %v4233 = vld [vmem:[%s4221 + $0x2c] sm:$0xf]
        %v4234 = vld [vmem:[%s4221 + $0x30] sm:$0xf]
        %v4235 = vld [vmem:[%s4221 + $0x34] sm:$0xf]
        %v4236 = vld [vmem:[%s4221 + $0x38] sm:$0xf]
        %v4237 = vld [vmem:[%s4221 + $0x3c] sm:$0xf]
        %v4254 = vunpack.c.l.b16 %v4222
        %v4255 = vunpack.c.l.b16 %v4223
        %v4256 = vunpack.c.l.b16 %v4224
        %v4257 = vunpack.c.l.b16 %v4225
        %v4258 = vunpack.c.l.b16 %v4226
        %v4259 = vunpack.c.l.b16 %v4227
        %v4260 = vunpack.c.l.b16 %v4228
        %v4261 = vunpack.c.l.b16 %v4229
        %v4262 = vunpack.c.l.b16 %v4230
        %v4263 = vunpack.c.l.b16 %v4231
        %v4264 = vunpack.c.l.b16 %v4232
        %v4265 = vunpack.c.l.b16 %v4233
        %v4266 = vunpack.c.l.b16 %v4234
        %v4267 = vunpack.c.l.b16 %v4235
        %v4268 = vunpack.c.l.b16 %v4236
        %v4269 = vunpack.c.l.b16 %v4237
        %v4270 = vpack.c.b16 %v4255, %v4254
        %v4271 = vpack.c.b16 %v4257, %v4256
        %v4272 = vpack.c.b16 %v4259, %v4258
        %v4273 = vpack.c.b16 %v4261, %v4260
        %v4274 = vpack.c.b16 %v4263, %v4262
        %v4275 = vpack.c.b16 %v4265, %v4264
        %v4276 = vpack.c.b16 %v4267, %v4266
        %v4277 = vpack.c.b16 %v4269, %v4268
        %4286 = vmatprep.subr.bf16.mxu0 0
        %4287 = vmatpush1.bf16.msra.mxu0 %v4270
        %4288 = vmatprep.subr.bf16.mxu0 0
        %4289 = vmatpush1.bf16.msra.mxu0 %v4271
        %4290 = vmatprep.subr.bf16.mxu0 0
        %4291 = vmatpush1.bf16.msra.mxu0 %v4272
        %4292 = vmatprep.subr.bf16.mxu0 0
        %4293 = vmatpush1.bf16.msra.mxu0 %v4273
        %4294 = vmatprep.subr.bf16.mxu0 0
        %4295 = vmatpush1.bf16.msra.mxu0 %v4274
        %4296 = vmatprep.subr.bf16.mxu0 0
        %4297 = vmatpush1.bf16.msra.mxu0 %v4275
        %4298 = vmatprep.subr.bf16.mxu0 0
        %4299 = vmatpush1.bf16.msra.mxu0 %v4276
        %4300 = vmatprep.subr.bf16.mxu0 0
        %4301 = vmatpush1.bf16.msra.mxu0 %v4277
        %4302 = vmatprep.subr.bf16.mxu0 0
        %4303 = vmatpush1.bf16.msra.mxu0 0
        %4304 = vmatprep.subr.bf16.mxu0 0
        %4305 = vmatpush1.bf16.msra.mxu0 0
        %4306 = vmatprep.subr.bf16.mxu0 0
        %4307 = vmatpush1.bf16.msra.mxu0 0
        %4308 = vmatprep.subr.bf16.mxu0 0
        %4309 = vmatpush1.bf16.msra.mxu0 0
        %4310 = vmatprep.subr.bf16.mxu0 0
        %4311 = vmatpush1.bf16.msra.mxu0 0
        %4312 = vmatprep.subr.bf16.mxu0 0
        %4313 = vmatpush1.bf16.msra.mxu0 0
        %4314 = vmatprep.subr.bf16.mxu0 0
        %4315 = vmatpush1.bf16.msra.mxu0 0
        %4316 = vmatprep.subr.bf16.mxu0 0
        %4317 = vmatpush1.bf16.msra.mxu0 0
        %4318 = vmatprep.mubr.bf16.mxu0 0
        %4319 = vmatmul.mubr.bf16.gmra.mrb[0].mxu0 %v4205
        %v4320 = vpop.f32.mrb[0].mxu0
        %v4321 = vadd.f32 0.0, %v4320
        %v4322 = vpop.f32.mrb[0].mxu0
        %v4323 = vpop.f32.mrb[0].mxu0
        %v4324 = vadd.f32 0.0, %v4323
        %v4325 = vpop.f32.mrb[0].mxu0
        %4326 = vmatprep.mubr.bf16.mxu0 0
        %4327 = vmatmul.mubr.bf16.gmra.mrb[0].mxu0 %v4206
        %v4328 = vpop.f32.mrb[0].mxu0
        %v4329 = vadd.f32 0.0, %v4328
        %v4330 = vpop.f32.mrb[0].mxu0
        %v4331 = vpop.f32.mrb[0].mxu0
        %v4332 = vadd.f32 0.0, %v4331
        %v4333 = vpop.f32.mrb[0].mxu0
        %4334 = vmatprep.mubr.bf16.mxu0 0
        %4335 = vmatmul.mubr.bf16.gmra.mrb[0].mxu0 %v4207
        %v4336 = vpop.f32.mrb[0].mxu0
        %v4337 = vadd.f32 0.0, %v4336
        %v4338 = vpop.f32.mrb[0].mxu0
        %v4339 = vpop.f32.mrb[0].mxu0
        %v4340 = vadd.f32 0.0, %v4339
        %v4341 = vpop.f32.mrb[0].mxu0
        %4342 = vmatprep.mubr.bf16.mxu0 0
        %4343 = vmatmul.mubr.bf16.gmra.mrb[0].mxu0 %v4208
        %v4344 = vpop.f32.mrb[0].mxu0
        %v4345 = vadd.f32 0.0, %v4344
        %v4346 = vpop.f32.mrb[0].mxu0
        %v4347 = vpop.f32.mrb[0].mxu0
        %v4348 = vadd.f32 0.0, %v4347
        %v4349 = vpop.f32.mrb[0].mxu0
        %4350 = vmatprep.mubr.bf16.mxu0 0
        %4351 = vmatmul.mubr.bf16.gmra.mrb[0].mxu0 %v4209
        %v4352 = vpop.f32.mrb[0].mxu0
        %v4353 = vadd.f32 0.0, %v4352
        %v4354 = vpop.f32.mrb[0].mxu0
        %v4355 = vpop.f32.mrb[0].mxu0
        %v4356 = vadd.f32 0.0, %v4355
        %v4357 = vpop.f32.mrb[0].mxu0
        %4358 = vmatprep.mubr.bf16.mxu0 0
        %4359 = vmatmul.mubr.bf16.gmra.mrb[0].mxu0 %v4210
        %v4360 = vpop.f32.mrb[0].mxu0
        %v4361 = vadd.f32 0.0, %v4360
        %v4362 = vpop.f32.mrb[0].mxu0
        %v4363 = vpop.f32.mrb[0].mxu0
        %v4364 = vadd.f32 0.0, %v4363
        %v4365 = vpop.f32.mrb[0].mxu0
        %4366 = vmatprep.mubr.bf16.mxu0 0
        %4367 = vmatmul.mubr.bf16.gmra.mrb[0].mxu0 %v4211
        %v4368 = vpop.f32.mrb[0].mxu0
        %v4369 = vadd.f32 0.0, %v4368
        %v4370 = vpop.f32.mrb[0].mxu0
        %v4371 = vpop.f32.mrb[0].mxu0
        %v4372 = vadd.f32 0.0, %v4371
        %v4373 = vpop.f32.mrb[0].mxu0
        %4374 = vmatprep.mubr.bf16.mxu0 0
        %4375 = vmatmul.mubr.bf16.gmra.mrb[0].mxu0 %v4212
        %v4376 = vpop.f32.mrb[0].mxu0
        %v4377 = vadd.f32 0.0, %v4376
        %v4378 = vpop.f32.mrb[0].mxu0
        %v4379 = vpop.f32.mrb[0].mxu0
        %v4380 = vadd.f32 0.0, %v4379
        %v4381 = vpop.f32.mrb[0].mxu0
        %4382 = vmatprep.mubr.bf16.mxu0 0
        %4383 = vmatmul.mubr.bf16.gmra.mrb[0].mxu0 %v4213
        %v4384 = vpop.f32.mrb[0].mxu0
        %v4385 = vadd.f32 0.0, %v4384
        %v4386 = vpop.f32.mrb[0].mxu0
        %v4387 = vpop.f32.mrb[0].mxu0
        %v4388 = vadd.f32 0.0, %v4387
        %v4389 = vpop.f32.mrb[0].mxu0
        %4390 = vmatprep.mubr.bf16.mxu0 0
        %4391 = vmatmul.mubr.bf16.gmra.mrb[0].mxu0 %v4214
        %v4392 = vpop.f32.mrb[0].mxu0
        %v4393 = vadd.f32 0.0, %v4392
        %v4394 = vpop.f32.mrb[0].mxu0
        %v4395 = vpop.f32.mrb[0].mxu0
        %v4396 = vadd.f32 0.0, %v4395
        %v4397 = vpop.f32.mrb[0].mxu0
        %4398 = vmatprep.mubr.bf16.mxu0 0
        %4399 = vmatmul.mubr.bf16.gmra.mrb[0].mxu0 %v4215
        %v4400 = vpop.f32.mrb[0].mxu0
        %v4401 = vadd.f32 0.0, %v4400
        %v4402 = vpop.f32.mrb[0].mxu0
        %v4403 = vpop.f32.mrb[0].mxu0
        %v4404 = vadd.f32 0.0, %v4403
        %v4405 = vpop.f32.mrb[0].mxu0
        %4406 = vmatprep.mubr.bf16.mxu0 0
        %4407 = vmatmul.mubr.bf16.gmra.mrb[0].mxu0 %v4216
        %v4408 = vpop.f32.mrb[0].mxu0
        %v4409 = vadd.f32 0.0, %v4408
        %v4410 = vpop.f32.mrb[0].mxu0
        %v4411 = vpop.f32.mrb[0].mxu0
        %v4412 = vadd.f32 0.0, %v4411
        %v4413 = vpop.f32.mrb[0].mxu0
        %4414 = vmatprep.mubr.bf16.mxu0 0
        %4415 = vmatmul.mubr.bf16.gmra.mrb[0].mxu0 %v4217
        %v4416 = vpop.f32.mrb[0].mxu0
        %v4417 = vadd.f32 0.0, %v4416
        %v4418 = vpop.f32.mrb[0].mxu0
        %v4419 = vpop.f32.mrb[0].mxu0
        %v4420 = vadd.f32 0.0, %v4419
        %v4421 = vpop.f32.mrb[0].mxu0
        %4422 = vmatprep.mubr.bf16.mxu0 0
        %4423 = vmatmul.mubr.bf16.gmra.mrb[0].mxu0 %v4218
        %v4424 = vpop.f32.mrb[0].mxu0
        %v4425 = vadd.f32 0.0, %v4424
        %v4426 = vpop.f32.mrb[0].mxu0
        %v4427 = vpop.f32.mrb[0].mxu0
        %v4428 = vadd.f32 0.0, %v4427
        %v4429 = vpop.f32.mrb[0].mxu0
        %4430 = vmatprep.mubr.bf16.mxu0 0
        %4431 = vmatmul.mubr.bf16.gmra.mrb[0].mxu0 %v4219
        %v4432 = vpop.f32.mrb[0].mxu0
        %v4433 = vadd.f32 0.0, %v4432
        %v4434 = vpop.f32.mrb[0].mxu0
        %v4435 = vpop.f32.mrb[0].mxu0
        %v4436 = vadd.f32 0.0, %v4435
        %v4437 = vpop.f32.mrb[0].mxu0
        %4438 = vmatprep.mubr.bf16.mxu0 0
        %4439 = vmatmul.mubr.bf16.gmra.mrb[0].mxu0 %v4220
        %v4440 = vpop.f32.mrb[0].mxu0
        %v4441 = vadd.f32 0.0, %v4440
        %v4442 = vpop.f32.mrb[0].mxu0
        %v4443 = vpop.f32.mrb[0].mxu0
        %v4444 = vadd.f32 0.0, %v4443
        %v4445 = vpop.f32.mrb[0].mxu0
        %4446 = vdwg.mxu0
        %v4463 = vunpack.c.l.b16 %v4157
        %v4464 = vunpack.c.l.b16 %v4158
        %v4465 = vunpack.c.l.b16 %v4159
        %v4466 = vunpack.c.l.b16 %v4160
        %v4467 = vunpack.c.l.b16 %v4161
        %v4468 = vunpack.c.l.b16 %v4162
        %v4469 = vunpack.c.l.b16 %v4163
        %v4470 = vunpack.c.l.b16 %v4164
        %v4471 = vunpack.c.l.b16 %v4165
        %v4472 = vunpack.c.l.b16 %v4166
        %v4473 = vunpack.c.l.b16 %v4167
        %v4474 = vunpack.c.l.b16 %v4168
        %v4475 = vunpack.c.l.b16 %v4169
        %v4476 = vunpack.c.l.b16 %v4170
        %v4477 = vunpack.c.l.b16 %v4171
        %v4478 = vunpack.c.l.b16 %v4172
        %v4479 = vpack.c.b16 %v4464, %v4463
        %v4480 = vpack.c.b16 %v4466, %v4465
        %v4481 = vpack.c.b16 %v4468, %v4467
        %v4482 = vpack.c.b16 %v4470, %v4469
        %v4483 = vpack.c.b16 %v4472, %v4471
        %v4484 = vpack.c.b16 %v4474, %v4473
        %v4485 = vpack.c.b16 %v4476, %v4475
        %v4486 = vpack.c.b16 %v4478, %v4477
        %4495 = vmatprep.subr.bf16.mxu0 0
        %4496 = vmatpush1.bf16.msra.mxu0 %v4479
        %4497 = vmatprep.subr.bf16.mxu0 0
        %4498 = vmatpush1.bf16.msra.mxu0 %v4480
        %4499 = vmatprep.subr.bf16.mxu0 0
        %4500 = vmatpush1.bf16.msra.mxu0 %v4481
        %4501 = vmatprep.subr.bf16.mxu0 0
        %4502 = vmatpush1.bf16.msra.mxu0 %v4482
        %4503 = vmatprep.subr.bf16.mxu0 0
        %4504 = vmatpush1.bf16.msra.mxu0 %v4483
        %4505 = vmatprep.subr.bf16.mxu0 0
        %4506 = vmatpush1.bf16.msra.mxu0 %v4484
        %4507 = vmatprep.subr.bf16.mxu0 0
        %4508 = vmatpush1.bf16.msra.mxu0 %v4485
        %4509 = vmatprep.subr.bf16.mxu0 0
        %4510 = vmatpush1.bf16.msra.mxu0 %v4486
        %4511 = vmatprep.subr.bf16.mxu0 0
        %4512 = vmatpush1.bf16.msra.mxu0 0
        %4513 = vmatprep.subr.bf16.mxu0 0
        %4514 = vmatpush1.bf16.msra.mxu0 0
        %4515 = vmatprep.subr.bf16.mxu0 0
        %4516 = vmatpush1.bf16.msra.mxu0 0
        %4517 = vmatprep.subr.bf16.mxu0 0
        %4518 = vmatpush1.bf16.msra.mxu0 0
        %4519 = vmatprep.subr.bf16.mxu0 0
        %4520 = vmatpush1.bf16.msra.mxu0 0
        %4521 = vmatprep.subr.bf16.mxu0 0
        %4522 = vmatpush1.bf16.msra.mxu0 0
        %4523 = vmatprep.subr.bf16.mxu0 0
        %4524 = vmatpush1.bf16.msra.mxu0 0
        %4525 = vmatprep.subr.bf16.mxu0 0
        %4526 = vmatpush1.bf16.msra.mxu0 0
        %4527 = vmatprep.mubr.bf16.mxu0 0
        %4528 = vmatmul.mubr.bf16.gmra.mrb[0].mxu0 %v4141
        %v4529 = vpop.f32.mrb[0].mxu0
        %v4530 = vadd.f32 %v4321, %v4529
        %v4531 = vpop.f32.mrb[0].mxu0
        %v4532 = vpop.f32.mrb[0].mxu0
        %v4533 = vadd.f32 %v4324, %v4532
        %v4534 = vpop.f32.mrb[0].mxu0
        %4535 = vmatprep.mubr.bf16.mxu0 0
        %4536 = vmatmul.mubr.bf16.gmra.mrb[0].mxu0 %v4142
        %v4537 = vpop.f32.mrb[0].mxu0
        %v4538 = vadd.f32 %v4329, %v4537
        %v4539 = vpop.f32.mrb[0].mxu0
        %v4540 = vpop.f32.mrb[0].mxu0
        %v4541 = vadd.f32 %v4332, %v4540
        %v4542 = vpop.f32.mrb[0].mxu0
        %4543 = vmatprep.mubr.bf16.mxu0 0
        %4544 = vmatmul.mubr.bf16.gmra.mrb[0].mxu0 %v4143
        %v4545 = vpop.f32.mrb[0].mxu0
        %v4546 = vadd.f32 %v4337, %v4545
        %v4547 = vpop.f32.mrb[0].mxu0
        %v4548 = vpop.f32.mrb[0].mxu0
        %v4549 = vadd.f32 %v4340, %v4548
        %v4550 = vpop.f32.mrb[0].mxu0
        %4551 = vmatprep.mubr.bf16.mxu0 0
        %4552 = vmatmul.mubr.bf16.gmra.mrb[0].mxu0 %v4144
        %v4553 = vpop.f32.mrb[0].mxu0
        %v4554 = vadd.f32 %v4345, %v4553
        %v4555 = vpop.f32.mrb[0].mxu0
        %v4556 = vpop.f32.mrb[0].mxu0
        %v4557 = vadd.f32 %v4348, %v4556
        %v4558 = vpop.f32.mrb[0].mxu0
        %4559 = vmatprep.mubr.bf16.mxu0 0
        %4560 = vmatmul.mubr.bf16.gmra.mrb[0].mxu0 %v4145
        %v4561 = vpop.f32.mrb[0].mxu0
        %v4562 = vadd.f32 %v4353, %v4561
        %v4563 = vpop.f32.mrb[0].mxu0
        %v4564 = vpop.f32.mrb[0].mxu0
        %v4565 = vadd.f32 %v4356, %v4564
        %v4566 = vpop.f32.mrb[0].mxu0
        %4567 = vmatprep.mubr.bf16.mxu0 0
        %4568 = vmatmul.mubr.bf16.gmra.mrb[0].mxu0 %v4146
        %v4569 = vpop.f32.mrb[0].mxu0
        %v4570 = vadd.f32 %v4361, %v4569
        %v4571 = vpop.f32.mrb[0].mxu0
        %v4572 = vpop.f32.mrb[0].mxu0
        %v4573 = vadd.f32 %v4364, %v4572
        %v4574 = vpop.f32.mrb[0].mxu0
        %4575 = vmatprep.mubr.bf16.mxu0 0
        %4576 = vmatmul.mubr.bf16.gmra.mrb[0].mxu0 %v4147
        %v4577 = vpop.f32.mrb[0].mxu0
        %v4578 = vadd.f32 %v4369, %v4577
        %v4579 = vpop.f32.mrb[0].mxu0
        %v4580 = vpop.f32.mrb[0].mxu0
        %v4581 = vadd.f32 %v4372, %v4580
        %v4582 = vpop.f32.mrb[0].mxu0
        %4583 = vmatprep.mubr.bf16.mxu0 0
        %4584 = vmatmul.mubr.bf16.gmra.mrb[0].mxu0 %v4148
        %v4585 = vpop.f32.mrb[0].mxu0
        %v4586 = vadd.f32 %v4377, %v4585
        %v4587 = vpop.f32.mrb[0].mxu0
        %v4588 = vpop.f32.mrb[0].mxu0
        %v4589 = vadd.f32 %v4380, %v4588
        %v4590 = vpop.f32.mrb[0].mxu0
        %4591 = vmatprep.mubr.bf16.mxu0 0
        %4592 = vmatmul.mubr.bf16.gmra.mrb[0].mxu0 %v4149
        %v4593 = vpop.f32.mrb[0].mxu0
        %v4594 = vadd.f32 %v4385, %v4593
        %v4595 = vpop.f32.mrb[0].mxu0
        %v4596 = vpop.f32.mrb[0].mxu0
        %v4597 = vadd.f32 %v4388, %v4596
        %v4598 = vpop.f32.mrb[0].mxu0
        %4599 = vmatprep.mubr.bf16.mxu0 0
        %4600 = vmatmul.mubr.bf16.gmra.mrb[0].mxu0 %v4150
        %v4601 = vpop.f32.mrb[0].mxu0
        %v4602 = vadd.f32 %v4393, %v4601
        %v4603 = vpop.f32.mrb[0].mxu0
        %v4604 = vpop.f32.mrb[0].mxu0
        %v4605 = vadd.f32 %v4396, %v4604
        %v4606 = vpop.f32.mrb[0].mxu0
        %4607 = vmatprep.mubr.bf16.mxu0 0
        %4608 = vmatmul.mubr.bf16.gmra.mrb[0].mxu0 %v4151
        %v4609 = vpop.f32.mrb[0].mxu0
        %v4610 = vadd.f32 %v4401, %v4609
        %v4611 = vpop.f32.mrb[0].mxu0
        %v4612 = vpop.f32.mrb[0].mxu0
        %v4613 = vadd.f32 %v4404, %v4612
        %v4614 = vpop.f32.mrb[0].mxu0
        %4615 = vmatprep.mubr.bf16.mxu0 0
        %4616 = vmatmul.mubr.bf16.gmra.mrb[0].mxu0 %v4152
        %v4617 = vpop.f32.mrb[0].mxu0
        %v4618 = vadd.f32 %v4409, %v4617
        %v4619 = vpop.f32.mrb[0].mxu0
        %v4620 = vpop.f32.mrb[0].mxu0
        %v4621 = vadd.f32 %v4412, %v4620
        %v4622 = vpop.f32.mrb[0].mxu0
        %4623 = vmatprep.mubr.bf16.mxu0 0
        %4624 = vmatmul.mubr.bf16.gmra.mrb[0].mxu0 %v4153
        %v4625 = vpop.f32.mrb[0].mxu0
        %v4626 = vadd.f32 %v4417, %v4625
        %v4627 = vpop.f32.mrb[0].mxu0
        %v4628 = vpop.f32.mrb[0].mxu0
        %v4629 = vadd.f32 %v4420, %v4628
        %v4630 = vpop.f32.mrb[0].mxu0
        %4631 = vmatprep.mubr.bf16.mxu0 0
        %4632 = vmatmul.mubr.bf16.gmra.mrb[0].mxu0 %v4154
        %v4633 = vpop.f32.mrb[0].mxu0
        %v4634 = vadd.f32 %v4425, %v4633
        %v4635 = vpop.f32.mrb[0].mxu0
        %v4636 = vpop.f32.mrb[0].mxu0
        %v4637 = vadd.f32 %v4428, %v4636
        %v4638 = vpop.f32.mrb[0].mxu0
        %4639 = vmatprep.mubr.bf16.mxu0 0
        %4640 = vmatmul.mubr.bf16.gmra.mrb[0].mxu0 %v4155
        %v4641 = vpop.f32.mrb[0].mxu0
        %v4642 = vadd.f32 %v4433, %v4641
        %v4643 = vpop.f32.mrb[0].mxu0
        %v4644 = vpop.f32.mrb[0].mxu0
        %v4645 = vadd.f32 %v4436, %v4644
        %v4646 = vpop.f32.mrb[0].mxu0
        %4647 = vmatprep.mubr.bf16.mxu0 0
        %4648 = vmatmul.mubr.bf16.gmra.mrb[0].mxu0 %v4156
        %v4649 = vpop.f32.mrb[0].mxu0
        %v4650 = vadd.f32 %v4441, %v4649
        %v4651 = vpop.f32.mrb[0].mxu0
        %v4652 = vpop.f32.mrb[0].mxu0
        %v4653 = vadd.f32 %v4444, %v4652
        %v4654 = vpop.f32.mrb[0].mxu0
        %4655 = vdwg.mxu0
        %v4656 = vld [vmem:[#allocation3 + $0x2] sm:$0xff]
        %v4657 = vld [vmem:[#allocation3 + $0xa] sm:$0xff]
        %v4658 = vld [vmem:[#allocation3 + $0x1a] sm:$0xff]
        %v4659 = vld [vmem:[#allocation3 + $0x22] sm:$0xff]
        %v4660 = vld [vmem:[#allocation3 + $0x32] sm:$0xff]
        %v4661 = vld [vmem:[#allocation3 + $0x3a] sm:$0xff]
        %v4662 = vld [vmem:[#allocation3 + $0x4a] sm:$0xff]
        %v4663 = vld [vmem:[#allocation3 + $0x52] sm:$0xff]
        %v4664 = vld [vmem:[#allocation3 + $0x62] sm:$0xff]
        %v4665 = vld [vmem:[#allocation3 + $0x6a] sm:$0xff]
        %v4666 = vld [vmem:[#allocation3 + $0x7a] sm:$0xff]
        %v4667 = vld [vmem:[#allocation3 + $0x82] sm:$0xff]
        %v4668 = vld [vmem:[#allocation3 + $0x92] sm:$0xff]
        %v4669 = vld [vmem:[#allocation3 + $0x9a] sm:$0xff]
        %v4670 = vld [vmem:[#allocation3 + $0xaa] sm:$0xff]
        %v4671 = vld [vmem:[#allocation3 + $0xb2] sm:$0xff]
        %v4672 = vld [vmem:[#allocation3 + $0xc2] sm:$0xff]
        %v4673 = vld [vmem:[#allocation3 + $0xca] sm:$0xff]
        %v4674 = vld [vmem:[#allocation3 + $0xda] sm:$0xff]
        %v4675 = vld [vmem:[#allocation3 + $0xe2] sm:$0xff]
        %v4676 = vld [vmem:[#allocation3 + $0xf2] sm:$0xff]
        %v4677 = vld [vmem:[#allocation3 + $0xfa] sm:$0xff]
        %v4678 = vld [vmem:[#allocation3 + $0x10a] sm:$0xff]
        %v4679 = vld [vmem:[#allocation3 + $0x112] sm:$0xff]
        %v4680 = vld [vmem:[#allocation3 + $0x122] sm:$0xff]
        %v4681 = vld [vmem:[#allocation3 + $0x12a] sm:$0xff]
        %v4682 = vld [vmem:[#allocation3 + $0x13a] sm:$0xff]
        %v4683 = vld [vmem:[#allocation3 + $0x142] sm:$0xff]
        %v4684 = vld [vmem:[#allocation3 + $0x152] sm:$0xff]
        %v4685 = vld [vmem:[#allocation3 + $0x15a] sm:$0xff]
        %v4686 = vld [vmem:[#allocation3 + $0x16a] sm:$0xff]
        %v4687 = vld [vmem:[#allocation3 + $0x172] sm:$0xff]
        %v4688 = vpack.c.bf16 %v4657, %v4656
        %v4689 = vpack.c.bf16 %v4659, %v4658
        %v4690 = vpack.c.bf16 %v4661, %v4660
        %v4691 = vpack.c.bf16 %v4663, %v4662
        %v4692 = vpack.c.bf16 %v4665, %v4664
        %v4693 = vpack.c.bf16 %v4667, %v4666
        %v4694 = vpack.c.bf16 %v4669, %v4668
        %v4695 = vpack.c.bf16 %v4671, %v4670
        %v4696 = vpack.c.bf16 %v4673, %v4672
        %v4697 = vpack.c.bf16 %v4675, %v4674
        %v4698 = vpack.c.bf16 %v4677, %v4676
        %v4699 = vpack.c.bf16 %v4679, %v4678
        %v4700 = vpack.c.bf16 %v4681, %v4680
        %v4701 = vpack.c.bf16 %v4683, %v4682
        %v4702 = vpack.c.bf16 %v4685, %v4684
        %v4703 = vpack.c.bf16 %v4687, %v4686
        %s4704 = scalar_lea.vmem [#allocation4], 128
        %v4705 = vld [vmem:[%s4704] sm:$0xf]
        %v4706 = vld [vmem:[%s4704 + $0x4] sm:$0xf]
        %v4707 = vld [vmem:[%s4704 + $0x8] sm:$0xf]
        %v4708 = vld [vmem:[%s4704 + $0xc] sm:$0xf]
        %v4709 = vld [vmem:[%s4704 + $0x10] sm:$0xf]
        %v4710 = vld [vmem:[%s4704 + $0x14] sm:$0xf]
        %v4711 = vld [vmem:[%s4704 + $0x18] sm:$0xf]
        %v4712 = vld [vmem:[%s4704 + $0x1c] sm:$0xf]
        %v4713 = vld [vmem:[%s4704 + $0x20] sm:$0xf]
        %v4714 = vld [vmem:[%s4704 + $0x24] sm:$0xf]
        %v4715 = vld [vmem:[%s4704 + $0x28] sm:$0xf]
        %v4716 = vld [vmem:[%s4704 + $0x2c] sm:$0xf]
        %v4717 = vld [vmem:[%s4704 + $0x30] sm:$0xf]
        %v4718 = vld [vmem:[%s4704 + $0x34] sm:$0xf]
        %v4719 = vld [vmem:[%s4704 + $0x38] sm:$0xf]
        %v4720 = vld [vmem:[%s4704 + $0x3c] sm:$0xf]
        %v4737 = vunpack.c.l.b16 %v4705
        %v4738 = vunpack.c.l.b16 %v4706
        %v4739 = vunpack.c.l.b16 %v4707
        %v4740 = vunpack.c.l.b16 %v4708
        %v4741 = vunpack.c.l.b16 %v4709
        %v4742 = vunpack.c.l.b16 %v4710
        %v4743 = vunpack.c.l.b16 %v4711
        %v4744 = vunpack.c.l.b16 %v4712
        %v4745 = vunpack.c.l.b16 %v4713
        %v4746 = vunpack.c.l.b16 %v4714
        %v4747 = vunpack.c.l.b16 %v4715
        %v4748 = vunpack.c.l.b16 %v4716
        %v4749 = vunpack.c.l.b16 %v4717
        %v4750 = vunpack.c.l.b16 %v4718
        %v4751 = vunpack.c.l.b16 %v4719
        %v4752 = vunpack.c.l.b16 %v4720
        %v4753 = vpack.c.b16 %v4738, %v4737
        %v4754 = vpack.c.b16 %v4740, %v4739
        %v4755 = vpack.c.b16 %v4742, %v4741
        %v4756 = vpack.c.b16 %v4744, %v4743
        %v4757 = vpack.c.b16 %v4746, %v4745
        %v4758 = vpack.c.b16 %v4748, %v4747
        %v4759 = vpack.c.b16 %v4750, %v4749
        %v4760 = vpack.c.b16 %v4752, %v4751
        %4769 = vmatprep.subr.bf16.mxu0 0
        %4770 = vmatpush1.bf16.msra.mxu0 %v4753
        %4771 = vmatprep.subr.bf16.mxu0 0
        %4772 = vmatpush1.bf16.msra.mxu0 %v4754
        %4773 = vmatprep.subr.bf16.mxu0 0
        %4774 = vmatpush1.bf16.msra.mxu0 %v4755
        %4775 = vmatprep.subr.bf16.mxu0 0
        %4776 = vmatpush1.bf16.msra.mxu0 %v4756
        %4777 = vmatprep.subr.bf16.mxu0 0
        %4778 = vmatpush1.bf16.msra.mxu0 %v4757
        %4779 = vmatprep.subr.bf16.mxu0 0
        %4780 = vmatpush1.bf16.msra.mxu0 %v4758
        %4781 = vmatprep.subr.bf16.mxu0 0
        %4782 = vmatpush1.bf16.msra.mxu0 %v4759
        %4783 = vmatprep.subr.bf16.mxu0 0
        %4784 = vmatpush1.bf16.msra.mxu0 %v4760
        %4785 = vmatprep.subr.bf16.mxu0 0
        %4786 = vmatpush1.bf16.msra.mxu0 0
        %4787 = vmatprep.subr.bf16.mxu0 0
        %4788 = vmatpush1.bf16.msra.mxu0 0
        %4789 = vmatprep.subr.bf16.mxu0 0
        %4790 = vmatpush1.bf16.msra.mxu0 0
        %4791 = vmatprep.subr.bf16.mxu0 0
        %4792 = vmatpush1.bf16.msra.mxu0 0
        %4793 = vmatprep.subr.bf16.mxu0 0
        %4794 = vmatpush1.bf16.msra.mxu0 0
        %4795 = vmatprep.subr.bf16.mxu0 0
        %4796 = vmatpush1.bf16.msra.mxu0 0
        %4797 = vmatprep.subr.bf16.mxu0 0
        %4798 = vmatpush1.bf16.msra.mxu0 0
        %4799 = vmatprep.subr.bf16.mxu0 0
        %4800 = vmatpush1.bf16.msra.mxu0 0
        %4801 = vmatprep.mubr.bf16.mxu0 0
        %4802 = vmatmul.mubr.bf16.gmra.mrb[0].mxu0 %v4688
        %v4803 = vpop.f32.mrb[0].mxu0
        %v4804 = vadd.f32 0.0, %v4803
        %v4805 = vpop.f32.mrb[0].mxu0
        %v4806 = vpop.f32.mrb[0].mxu0
        %v4807 = vadd.f32 0.0, %v4806
        %v4808 = vpop.f32.mrb[0].mxu0
        %4809 = vmatprep.mubr.bf16.mxu0 0
        %4810 = vmatmul.mubr.bf16.gmra.mrb[0].mxu0 %v4689
        %v4811 = vpop.f32.mrb[0].mxu0
        %v4812 = vadd.f32 0.0, %v4811
        %v4813 = vpop.f32.mrb[0].mxu0
        %v4814 = vpop.f32.mrb[0].mxu0
        %v4815 = vadd.f32 0.0, %v4814
        %v4816 = vpop.f32.mrb[0].mxu0
        %4817 = vmatprep.mubr.bf16.mxu0 0
        %4818 = vmatmul.mubr.bf16.gmra.mrb[0].mxu0 %v4690
        %v4819 = vpop.f32.mrb[0].mxu0
        %v4820 = vadd.f32 0.0, %v4819
        %v4821 = vpop.f32.mrb[0].mxu0
        %v4822 = vpop.f32.mrb[0].mxu0
        %v4823 = vadd.f32 0.0, %v4822
        %v4824 = vpop.f32.mrb[0].mxu0
        %4825 = vmatprep.mubr.bf16.mxu0 0
        %4826 = vmatmul.mubr.bf16.gmra.mrb[0].mxu0 %v4691
        %v4827 = vpop.f32.mrb[0].mxu0
        %v4828 = vadd.f32 0.0, %v4827
        %v4829 = vpop.f32.mrb[0].mxu0
        %v4830 = vpop.f32.mrb[0].mxu0
        %v4831 = vadd.f32 0.0, %v4830
        %v4832 = vpop.f32.mrb[0].mxu0
        %4833 = vmatprep.mubr.bf16.mxu0 0
        %4834 = vmatmul.mubr.bf16.gmra.mrb[0].mxu0 %v4692
        %v4835 = vpop.f32.mrb[0].mxu0
        %v4836 = vadd.f32 0.0, %v4835
        %v4837 = vpop.f32.mrb[0].mxu0
        %v4838 = vpop.f32.mrb[0].mxu0
        %v4839 = vadd.f32 0.0, %v4838
        %v4840 = vpop.f32.mrb[0].mxu0
        %4841 = vmatprep.mubr.bf16.mxu0 0
        %4842 = vmatmul.mubr.bf16.gmra.mrb[0].mxu0 %v4693
        %v4843 = vpop.f32.mrb[0].mxu0
        %v4844 = vadd.f32 0.0, %v4843
        %v4845 = vpop.f32.mrb[0].mxu0
        %v4846 = vpop.f32.mrb[0].mxu0
        %v4847 = vadd.f32 0.0, %v4846
        %v4848 = vpop.f32.mrb[0].mxu0
        %4849 = vmatprep.mubr.bf16.mxu0 0
        %4850 = vmatmul.mubr.bf16.gmra.mrb[0].mxu0 %v4694
        %v4851 = vpop.f32.mrb[0].mxu0
        %v4852 = vadd.f32 0.0, %v4851
        %v4853 = vpop.f32.mrb[0].mxu0
        %v4854 = vpop.f32.mrb[0].mxu0
        %v4855 = vadd.f32 0.0, %v4854
        %v4856 = vpop.f32.mrb[0].mxu0
        %4857 = vmatprep.mubr.bf16.mxu0 0
        %4858 = vmatmul.mubr.bf16.gmra.mrb[0].mxu0 %v4695
        %v4859 = vpop.f32.mrb[0].mxu0
        %v4860 = vadd.f32 0.0, %v4859
        %v4861 = vpop.f32.mrb[0].mxu0
        %v4862 = vpop.f32.mrb[0].mxu0
        %v4863 = vadd.f32 0.0, %v4862
        %v4864 = vpop.f32.mrb[0].mxu0
        %4865 = vmatprep.mubr.bf16.mxu0 0
        %4866 = vmatmul.mubr.bf16.gmra.mrb[0].mxu0 %v4696
        %v4867 = vpop.f32.mrb[0].mxu0
        %v4868 = vadd.f32 0.0, %v4867
        %v4869 = vpop.f32.mrb[0].mxu0
        %v4870 = vpop.f32.mrb[0].mxu0
        %v4871 = vadd.f32 0.0, %v4870
        %v4872 = vpop.f32.mrb[0].mxu0
        %4873 = vmatprep.mubr.bf16.mxu0 0
        %4874 = vmatmul.mubr.bf16.gmra.mrb[0].mxu0 %v4697
        %v4875 = vpop.f32.mrb[0].mxu0
        %v4876 = vadd.f32 0.0, %v4875
        %v4877 = vpop.f32.mrb[0].mxu0
        %v4878 = vpop.f32.mrb[0].mxu0
        %v4879 = vadd.f32 0.0, %v4878
        %v4880 = vpop.f32.mrb[0].mxu0
        %4881 = vmatprep.mubr.bf16.mxu0 0
        %4882 = vmatmul.mubr.bf16.gmra.mrb[0].mxu0 %v4698
        %v4883 = vpop.f32.mrb[0].mxu0
        %v4884 = vadd.f32 0.0, %v4883
        %v4885 = vpop.f32.mrb[0].mxu0
        %v4886 = vpop.f32.mrb[0].mxu0
        %v4887 = vadd.f32 0.0, %v4886
        %v4888 = vpop.f32.mrb[0].mxu0
        %4889 = vmatprep.mubr.bf16.mxu0 0
        %4890 = vmatmul.mubr.bf16.gmra.mrb[0].mxu0 %v4699
        %v4891 = vpop.f32.mrb[0].mxu0
        %v4892 = vadd.f32 0.0, %v4891
        %v4893 = vpop.f32.mrb[0].mxu0
        %v4894 = vpop.f32.mrb[0].mxu0
        %v4895 = vadd.f32 0.0, %v4894
        %v4896 = vpop.f32.mrb[0].mxu0
        %4897 = vmatprep.mubr.bf16.mxu0 0
        %4898 = vmatmul.mubr.bf16.gmra.mrb[0].mxu0 %v4700
        %v4899 = vpop.f32.mrb[0].mxu0
        %v4900 = vadd.f32 0.0, %v4899
        %v4901 = vpop.f32.mrb[0].mxu0
        %v4902 = vpop.f32.mrb[0].mxu0
        %v4903 = vadd.f32 0.0, %v4902
        %v4904 = vpop.f32.mrb[0].mxu0
        %4905 = vmatprep.mubr.bf16.mxu0 0
        %4906 = vmatmul.mubr.bf16.gmra.mrb[0].mxu0 %v4701
        %v4907 = vpop.f32.mrb[0].mxu0
        %v4908 = vadd.f32 0.0, %v4907
        %v4909 = vpop.f32.mrb[0].mxu0
        %v4910 = vpop.f32.mrb[0].mxu0
        %v4911 = vadd.f32 0.0, %v4910
        %v4912 = vpop.f32.mrb[0].mxu0
        %4913 = vmatprep.mubr.bf16.mxu0 0
        %4914 = vmatmul.mubr.bf16.gmra.mrb[0].mxu0 %v4702
        %v4915 = vpop.f32.mrb[0].mxu0
        %v4916 = vadd.f32 0.0, %v4915
        %v4917 = vpop.f32.mrb[0].mxu0
        %v4918 = vpop.f32.mrb[0].mxu0
        %v4919 = vadd.f32 0.0, %v4918
        %v4920 = vpop.f32.mrb[0].mxu0
        %4921 = vmatprep.mubr.bf16.mxu0 0
        %4922 = vmatmul.mubr.bf16.gmra.mrb[0].mxu0 %v4703
        %v4923 = vpop.f32.mrb[0].mxu0
        %v4924 = vadd.f32 0.0, %v4923
        %v4925 = vpop.f32.mrb[0].mxu0
        %v4926 = vpop.f32.mrb[0].mxu0
        %v4927 = vadd.f32 0.0, %v4926
        %v4928 = vpop.f32.mrb[0].mxu0
        %4929 = vdwg.mxu0
        %v4930 = vadd.f32 %v4530, %v4804
        %v4931 = vadd.f32 %v4533, %v4807
        %v4932 = vadd.f32 %v4538, %v4812
        %v4933 = vadd.f32 %v4541, %v4815
        %v4934 = vadd.f32 %v4546, %v4820
        %v4935 = vadd.f32 %v4549, %v4823
        %v4936 = vadd.f32 %v4554, %v4828
        %v4937 = vadd.f32 %v4557, %v4831
        %v4938 = vadd.f32 %v4562, %v4836
        %v4939 = vadd.f32 %v4565, %v4839
        %v4940 = vadd.f32 %v4570, %v4844
        %v4941 = vadd.f32 %v4573, %v4847
        %v4942 = vadd.f32 %v4578, %v4852
        %v4943 = vadd.f32 %v4581, %v4855
        %v4944 = vadd.f32 %v4586, %v4860
        %v4945 = vadd.f32 %v4589, %v4863
        %v4946 = vadd.f32 %v4594, %v4868
        %v4947 = vadd.f32 %v4597, %v4871
        %v4948 = vadd.f32 %v4602, %v4876
        %v4949 = vadd.f32 %v4605, %v4879
        %v4950 = vadd.f32 %v4610, %v4884
        %v4951 = vadd.f32 %v4613, %v4887
        %v4952 = vadd.f32 %v4618, %v4892
        %v4953 = vadd.f32 %v4621, %v4895
        %v4954 = vadd.f32 %v4626, %v4900
        %v4955 = vadd.f32 %v4629, %v4903
        %v4956 = vadd.f32 %v4634, %v4908
        %v4957 = vadd.f32 %v4637, %v4911
        %v4958 = vadd.f32 %v4642, %v4916
        %v4959 = vadd.f32 %v4645, %v4919
        %v4960 = vadd.f32 %v4650, %v4924
        %v4961 = vadd.f32 %v4653, %v4927
        %v4962 = vld [vmem:[%s4044] sm:$0xff]
        %v4963 = vld [vmem:[%s4044 + $0x8] sm:$0xff]
        %v4964 = vld [vmem:[%s4044 + $0x18] sm:$0xff]
        %v4965 = vld [vmem:[%s4044 + $0x20] sm:$0xff]
        %v4966 = vld [vmem:[%s4044 + $0x30] sm:$0xff]
        %v4967 = vld [vmem:[%s4044 + $0x38] sm:$0xff]
        %v4968 = vld [vmem:[%s4044 + $0x48] sm:$0xff]
        %v4969 = vld [vmem:[%s4044 + $0x50] sm:$0xff]
        %v4970 = vld [vmem:[%s4044 + $0x60] sm:$0xff]
        %v4971 = vld [vmem:[%s4044 + $0x68] sm:$0xff]
        %v4972 = vld [vmem:[%s4044 + $0x78] sm:$0xff]
        %v4973 = vld [vmem:[%s4044 + $0x80] sm:$0xff]
        %v4974 = vld [vmem:[%s4044 + $0x90] sm:$0xff]
        %v4975 = vld [vmem:[%s4044 + $0x98] sm:$0xff]
        %v4976 = vld [vmem:[%s4044 + $0xa8] sm:$0xff]
        %v4977 = vld [vmem:[%s4044 + $0xb0] sm:$0xff]
        %v4978 = vld [vmem:[%s4044 + $0xc0] sm:$0xff]
        %v4979 = vld [vmem:[%s4044 + $0xc8] sm:$0xff]
        %v4980 = vld [vmem:[%s4044 + $0xd8] sm:$0xff]
        %v4981 = vld [vmem:[%s4044 + $0xe0] sm:$0xff]
        %v4982 = vld [vmem:[%s4044 + $0xf0] sm:$0xff]
        %v4983 = vld [vmem:[%s4044 + $0xf8] sm:$0xff]
        %v4984 = vld [vmem:[%s4044 + $0x108] sm:$0xff]
        %v4985 = vld [vmem:[%s4044 + $0x110] sm:$0xff]
        %v4986 = vld [vmem:[%s4044 + $0x120] sm:$0xff]
        %v4987 = vld [vmem:[%s4044 + $0x128] sm:$0xff]
        %v4988 = vld [vmem:[%s4044 + $0x138] sm:$0xff]
        %v4989 = vld [vmem:[%s4044 + $0x140] sm:$0xff]
        %v4990 = vld [vmem:[%s4044 + $0x150] sm:$0xff]
        %v4991 = vld [vmem:[%s4044 + $0x158] sm:$0xff]
        %v4992 = vld [vmem:[%s4044 + $0x168] sm:$0xff]
        %v4993 = vld [vmem:[%s4044 + $0x170] sm:$0xff]
        %v4994 = vpack.c.bf16 %v4963, %v4962
        %v4995 = vpack.c.bf16 %v4965, %v4964
        %v4996 = vpack.c.bf16 %v4967, %v4966
        %v4997 = vpack.c.bf16 %v4969, %v4968
        %v4998 = vpack.c.bf16 %v4971, %v4970
        %v4999 = vpack.c.bf16 %v4973, %v4972
        %v5000 = vpack.c.bf16 %v4975, %v4974
        %v5001 = vpack.c.bf16 %v4977, %v4976
        %v5002 = vpack.c.bf16 %v4979, %v4978
        %v5003 = vpack.c.bf16 %v4981, %v4980
        %v5004 = vpack.c.bf16 %v4983, %v4982
        %v5005 = vpack.c.bf16 %v4985, %v4984
        %v5006 = vpack.c.bf16 %v4987, %v4986
        %v5007 = vpack.c.bf16 %v4989, %v4988
        %v5008 = vpack.c.bf16 %v4991, %v4990
        %v5009 = vpack.c.bf16 %v4993, %v4992
        %s5010 = scalar_lea.vmem [#allocation4], 192
        %v5011 = vld [vmem:[%s5010] sm:$0xf]
        %v5012 = vld [vmem:[%s5010 + $0x4] sm:$0xf]
        %v5013 = vld [vmem:[%s5010 + $0x8] sm:$0xf]
        %v5014 = vld [vmem:[%s5010 + $0xc] sm:$0xf]
        %v5015 = vld [vmem:[%s5010 + $0x10] sm:$0xf]
        %v5016 = vld [vmem:[%s5010 + $0x14] sm:$0xf]
        %v5017 = vld [vmem:[%s5010 + $0x18] sm:$0xf]
        %v5018 = vld [vmem:[%s5010 + $0x1c] sm:$0xf]
        %v5019 = vld [vmem:[%s5010 + $0x20] sm:$0xf]
        %v5020 = vld [vmem:[%s5010 + $0x24] sm:$0xf]
        %v5021 = vld [vmem:[%s5010 + $0x28] sm:$0xf]
        %v5022 = vld [vmem:[%s5010 + $0x2c] sm:$0xf]
        %v5023 = vld [vmem:[%s5010 + $0x30] sm:$0xf]
        %v5024 = vld [vmem:[%s5010 + $0x34] sm:$0xf]
        %v5025 = vld [vmem:[%s5010 + $0x38] sm:$0xf]
        %v5026 = vld [vmem:[%s5010 + $0x3c] sm:$0xf]
        %v5043 = vunpack.c.l.b16 %v5011
        %v5044 = vunpack.c.l.b16 %v5012
        %v5045 = vunpack.c.l.b16 %v5013
        %v5046 = vunpack.c.l.b16 %v5014
        %v5047 = vunpack.c.l.b16 %v5015
        %v5048 = vunpack.c.l.b16 %v5016
        %v5049 = vunpack.c.l.b16 %v5017
        %v5050 = vunpack.c.l.b16 %v5018
        %v5051 = vunpack.c.l.b16 %v5019
        %v5052 = vunpack.c.l.b16 %v5020
        %v5053 = vunpack.c.l.b16 %v5021
        %v5054 = vunpack.c.l.b16 %v5022
        %v5055 = vunpack.c.l.b16 %v5023
        %v5056 = vunpack.c.l.b16 %v5024
        %v5057 = vunpack.c.l.b16 %v5025
        %v5058 = vunpack.c.l.b16 %v5026
        %v5059 = vpack.c.b16 %v5044, %v5043
        %v5060 = vpack.c.b16 %v5046, %v5045
        %v5061 = vpack.c.b16 %v5048, %v5047
        %v5062 = vpack.c.b16 %v5050, %v5049
        %v5063 = vpack.c.b16 %v5052, %v5051
        %v5064 = vpack.c.b16 %v5054, %v5053
        %v5065 = vpack.c.b16 %v5056, %v5055
        %v5066 = vpack.c.b16 %v5058, %v5057
        %5075 = vmatprep.subr.bf16.mxu0 0
        %5076 = vmatpush1.bf16.msra.mxu0 %v5059
        %5077 = vmatprep.subr.bf16.mxu0 0
        %5078 = vmatpush1.bf16.msra.mxu0 %v5060
        %5079 = vmatprep.subr.bf16.mxu0 0
        %5080 = vmatpush1.bf16.msra.mxu0 %v5061
        %5081 = vmatprep.subr.bf16.mxu0 0
        %5082 = vmatpush1.bf16.msra.mxu0 %v5062
        %5083 = vmatprep.subr.bf16.mxu0 0
        %5084 = vmatpush1.bf16.msra.mxu0 %v5063
        %5085 = vmatprep.subr.bf16.mxu0 0
        %5086 = vmatpush1.bf16.msra.mxu0 %v5064
        %5087 = vmatprep.subr.bf16.mxu0 0
        %5088 = vmatpush1.bf16.msra.mxu0 %v5065
        %5089 = vmatprep.subr.bf16.mxu0 0
        %5090 = vmatpush1.bf16.msra.mxu0 %v5066
        %5091 = vmatprep.subr.bf16.mxu0 0
        %5092 = vmatpush1.bf16.msra.mxu0 0
        %5093 = vmatprep.subr.bf16.mxu0 0
        %5094 = vmatpush1.bf16.msra.mxu0 0
        %5095 = vmatprep.subr.bf16.mxu0 0
        %5096 = vmatpush1.bf16.msra.mxu0 0
        %5097 = vmatprep.subr.bf16.mxu0 0
        %5098 = vmatpush1.bf16.msra.mxu0 0
        %5099 = vmatprep.subr.bf16.mxu0 0
        %5100 = vmatpush1.bf16.msra.mxu0 0
        %5101 = vmatprep.subr.bf16.mxu0 0
        %5102 = vmatpush1.bf16.msra.mxu0 0
        %5103 = vmatprep.subr.bf16.mxu0 0
        %5104 = vmatpush1.bf16.msra.mxu0 0
        %5105 = vmatprep.subr.bf16.mxu0 0
        %5106 = vmatpush1.bf16.msra.mxu0 0
        %5107 = vmatprep.mubr.bf16.mxu0 0
        %5108 = vmatmul.mubr.bf16.gmra.mrb[0].mxu0 %v4994
        %v5109 = vpop.f32.mrb[0].mxu0
        %v5110 = vadd.f32 0.0, %v5109
        %v5111 = vpop.f32.mrb[0].mxu0
        %v5112 = vpop.f32.mrb[0].mxu0
        %v5113 = vadd.f32 0.0, %v5112
        %v5114 = vpop.f32.mrb[0].mxu0
        %5115 = vmatprep.mubr.bf16.mxu0 0
        %5116 = vmatmul.mubr.bf16.gmra.mrb[0].mxu0 %v4995
        %v5117 = vpop.f32.mrb[0].mxu0
        %v5118 = vadd.f32 0.0, %v5117
        %v5119 = vpop.f32.mrb[0].mxu0
        %v5120 = vpop.f32.mrb[0].mxu0
        %v5121 = vadd.f32 0.0, %v5120
        %v5122 = vpop.f32.mrb[0].mxu0
        %5123 = vmatprep.mubr.bf16.mxu0 0
        %5124 = vmatmul.mubr.bf16.gmra.mrb[0].mxu0 %v4996
        %v5125 = vpop.f32.mrb[0].mxu0
        %v5126 = vadd.f32 0.0, %v5125
        %v5127 = vpop.f32.mrb[0].mxu0
        %v5128 = vpop.f32.mrb[0].mxu0
        %v5129 = vadd.f32 0.0, %v5128
        %v5130 = vpop.f32.mrb[0].mxu0
        %5131 = vmatprep.mubr.bf16.mxu0 0
        %5132 = vmatmul.mubr.bf16.gmra.mrb[0].mxu0 %v4997
        %v5133 = vpop.f32.mrb[0].mxu0
        %v5134 = vadd.f32 0.0, %v5133
        %v5135 = vpop.f32.mrb[0].mxu0
        %v5136 = vpop.f32.mrb[0].mxu0
        %v5137 = vadd.f32 0.0, %v5136
        %v5138 = vpop.f32.mrb[0].mxu0
        %5139 = vmatprep.mubr.bf16.mxu0 0
        %5140 = vmatmul.mubr.bf16.gmra.mrb[0].mxu0 %v4998
        %v5141 = vpop.f32.mrb[0].mxu0
        %v5142 = vadd.f32 0.0, %v5141
        %v5143 = vpop.f32.mrb[0].mxu0
        %v5144 = vpop.f32.mrb[0].mxu0
        %v5145 = vadd.f32 0.0, %v5144
        %v5146 = vpop.f32.mrb[0].mxu0
        %5147 = vmatprep.mubr.bf16.mxu0 0
        %5148 = vmatmul.mubr.bf16.gmra.mrb[0].mxu0 %v4999
        %v5149 = vpop.f32.mrb[0].mxu0
        %v5150 = vadd.f32 0.0, %v5149
        %v5151 = vpop.f32.mrb[0].mxu0
        %v5152 = vpop.f32.mrb[0].mxu0
        %v5153 = vadd.f32 0.0, %v5152
        %v5154 = vpop.f32.mrb[0].mxu0
        %5155 = vmatprep.mubr.bf16.mxu0 0
        %5156 = vmatmul.mubr.bf16.gmra.mrb[0].mxu0 %v5000
        %v5157 = vpop.f32.mrb[0].mxu0
        %v5158 = vadd.f32 0.0, %v5157
        %v5159 = vpop.f32.mrb[0].mxu0
        %v5160 = vpop.f32.mrb[0].mxu0
        %v5161 = vadd.f32 0.0, %v5160
        %v5162 = vpop.f32.mrb[0].mxu0
        %5163 = vmatprep.mubr.bf16.mxu0 0
        %5164 = vmatmul.mubr.bf16.gmra.mrb[0].mxu0 %v5001
        %v5165 = vpop.f32.mrb[0].mxu0
        %v5166 = vadd.f32 0.0, %v5165
        %v5167 = vpop.f32.mrb[0].mxu0
        %v5168 = vpop.f32.mrb[0].mxu0
        %v5169 = vadd.f32 0.0, %v5168
        %v5170 = vpop.f32.mrb[0].mxu0
        %5171 = vmatprep.mubr.bf16.mxu0 0
        %5172 = vmatmul.mubr.bf16.gmra.mrb[0].mxu0 %v5002
        %v5173 = vpop.f32.mrb[0].mxu0
        %v5174 = vadd.f32 0.0, %v5173
        %v5175 = vpop.f32.mrb[0].mxu0
        %v5176 = vpop.f32.mrb[0].mxu0
        %v5177 = vadd.f32 0.0, %v5176
        %v5178 = vpop.f32.mrb[0].mxu0
        %5179 = vmatprep.mubr.bf16.mxu0 0
        %5180 = vmatmul.mubr.bf16.gmra.mrb[0].mxu0 %v5003
        %v5181 = vpop.f32.mrb[0].mxu0
        %v5182 = vadd.f32 0.0, %v5181
        %v5183 = vpop.f32.mrb[0].mxu0
        %v5184 = vpop.f32.mrb[0].mxu0
        %v5185 = vadd.f32 0.0, %v5184
        %v5186 = vpop.f32.mrb[0].mxu0
        %5187 = vmatprep.mubr.bf16.mxu0 0
        %5188 = vmatmul.mubr.bf16.gmra.mrb[0].mxu0 %v5004
        %v5189 = vpop.f32.mrb[0].mxu0
        %v5190 = vadd.f32 0.0, %v5189
        %v5191 = vpop.f32.mrb[0].mxu0
        %v5192 = vpop.f32.mrb[0].mxu0
        %v5193 = vadd.f32 0.0, %v5192
        %v5194 = vpop.f32.mrb[0].mxu0
        %5195 = vmatprep.mubr.bf16.mxu0 0
        %5196 = vmatmul.mubr.bf16.gmra.mrb[0].mxu0 %v5005
        %v5197 = vpop.f32.mrb[0].mxu0
        %v5198 = vadd.f32 0.0, %v5197
        %v5199 = vpop.f32.mrb[0].mxu0
        %v5200 = vpop.f32.mrb[0].mxu0
        %v5201 = vadd.f32 0.0, %v5200
        %v5202 = vpop.f32.mrb[0].mxu0
        %5203 = vmatprep.mubr.bf16.mxu0 0
        %5204 = vmatmul.mubr.bf16.gmra.mrb[0].mxu0 %v5006
        %v5205 = vpop.f32.mrb[0].mxu0
        %v5206 = vadd.f32 0.0, %v5205
        %v5207 = vpop.f32.mrb[0].mxu0
        %v5208 = vpop.f32.mrb[0].mxu0
        %v5209 = vadd.f32 0.0, %v5208
        %v5210 = vpop.f32.mrb[0].mxu0
        %5211 = vmatprep.mubr.bf16.mxu0 0
        %5212 = vmatmul.mubr.bf16.gmra.mrb[0].mxu0 %v5007
        %v5213 = vpop.f32.mrb[0].mxu0
        %v5214 = vadd.f32 0.0, %v5213
        %v5215 = vpop.f32.mrb[0].mxu0
        %v5216 = vpop.f32.mrb[0].mxu0
        %v5217 = vadd.f32 0.0, %v5216
        %v5218 = vpop.f32.mrb[0].mxu0
        %5219 = vmatprep.mubr.bf16.mxu0 0
        %5220 = vmatmul.mubr.bf16.gmra.mrb[0].mxu0 %v5008
        %v5221 = vpop.f32.mrb[0].mxu0
        %v5222 = vadd.f32 0.0, %v5221
        %v5223 = vpop.f32.mrb[0].mxu0
        %v5224 = vpop.f32.mrb[0].mxu0
        %v5225 = vadd.f32 0.0, %v5224
        %v5226 = vpop.f32.mrb[0].mxu0
        %5227 = vmatprep.mubr.bf16.mxu0 0
        %5228 = vmatmul.mubr.bf16.gmra.mrb[0].mxu0 %v5009
        %v5229 = vpop.f32.mrb[0].mxu0
        %v5230 = vadd.f32 0.0, %v5229
        %v5231 = vpop.f32.mrb[0].mxu0
        %v5232 = vpop.f32.mrb[0].mxu0
        %v5233 = vadd.f32 0.0, %v5232
        %v5234 = vpop.f32.mrb[0].mxu0
        %5235 = vdwg.mxu0
        %v5236 = vadd.f32 %v4930, %v5110
        %v5237 = vadd.f32 %v4931, %v5113
        %v5238 = vadd.f32 %v4932, %v5118
        %v5239 = vadd.f32 %v4933, %v5121
        %v5240 = vadd.f32 %v4934, %v5126
        %v5241 = vadd.f32 %v4935, %v5129
        %v5242 = vadd.f32 %v4936, %v5134
        %v5243 = vadd.f32 %v4937, %v5137
        %v5244 = vadd.f32 %v4938, %v5142
        %v5245 = vadd.f32 %v4939, %v5145
        %v5246 = vadd.f32 %v4940, %v5150
        %v5247 = vadd.f32 %v4941, %v5153
        %v5248 = vadd.f32 %v4942, %v5158
        %v5249 = vadd.f32 %v4943, %v5161
        %v5250 = vadd.f32 %v4944, %v5166
        %v5251 = vadd.f32 %v4945, %v5169
        %v5252 = vadd.f32 %v4946, %v5174
        %v5253 = vadd.f32 %v4947, %v5177
        %v5254 = vadd.f32 %v4948, %v5182
        %v5255 = vadd.f32 %v4949, %v5185
        %v5256 = vadd.f32 %v4950, %v5190
        %v5257 = vadd.f32 %v4951, %v5193
        %v5258 = vadd.f32 %v4952, %v5198
        %v5259 = vadd.f32 %v4953, %v5201
        %v5260 = vadd.f32 %v4954, %v5206
        %v5261 = vadd.f32 %v4955, %v5209
        %v5262 = vadd.f32 %v4956, %v5214
        %v5263 = vadd.f32 %v4957, %v5217
        %v5264 = vadd.f32 %v4958, %v5222
        %v5265 = vadd.f32 %v4959, %v5225
        %v5266 = vadd.f32 %v4960, %v5230
        %v5267 = vadd.f32 %v4961, %v5233
        %v5268 = vld [vmem:[%s4044 + $0x1] sm:$0xff]
        %v5269 = vld [vmem:[%s4044 + $0x9] sm:$0xff]
        %v5270 = vld [vmem:[%s4044 + $0x19] sm:$0xff]
        %v5271 = vld [vmem:[%s4044 + $0x21] sm:$0xff]
        %v5272 = vld [vmem:[%s4044 + $0x31] sm:$0xff]
        %v5273 = vld [vmem:[%s4044 + $0x39] sm:$0xff]
        %v5274 = vld [vmem:[%s4044 + $0x49] sm:$0xff]
        %v5275 = vld [vmem:[%s4044 + $0x51] sm:$0xff]
        %v5276 = vld [vmem:[%s4044 + $0x61] sm:$0xff]
        %v5277 = vld [vmem:[%s4044 + $0x69] sm:$0xff]
        %v5278 = vld [vmem:[%s4044 + $0x79] sm:$0xff]
        %v5279 = vld [vmem:[%s4044 + $0x81] sm:$0xff]
        %v5280 = vld [vmem:[%s4044 + $0x91] sm:$0xff]
        %v5281 = vld [vmem:[%s4044 + $0x99] sm:$0xff]
        %v5282 = vld [vmem:[%s4044 + $0xa9] sm:$0xff]
        %v5283 = vld [vmem:[%s4044 + $0xb1] sm:$0xff]
        %v5284 = vld [vmem:[%s4044 + $0xc1] sm:$0xff]
        %v5285 = vld [vmem:[%s4044 + $0xc9] sm:$0xff]
        %v5286 = vld [vmem:[%s4044 + $0xd9] sm:$0xff]
        %v5287 = vld [vmem:[%s4044 + $0xe1] sm:$0xff]
        %v5288 = vld [vmem:[%s4044 + $0xf1] sm:$0xff]
        %v5289 = vld [vmem:[%s4044 + $0xf9] sm:$0xff]
        %v5290 = vld [vmem:[%s4044 + $0x109] sm:$0xff]
        %v5291 = vld [vmem:[%s4044 + $0x111] sm:$0xff]
        %v5292 = vld [vmem:[%s4044 + $0x121] sm:$0xff]
        %v5293 = vld [vmem:[%s4044 + $0x129] sm:$0xff]
        %v5294 = vld [vmem:[%s4044 + $0x139] sm:$0xff]
        %v5295 = vld [vmem:[%s4044 + $0x141] sm:$0xff]
        %v5296 = vld [vmem:[%s4044 + $0x151] sm:$0xff]
        %v5297 = vld [vmem:[%s4044 + $0x159] sm:$0xff]
        %v5298 = vld [vmem:[%s4044 + $0x169] sm:$0xff]
        %v5299 = vld [vmem:[%s4044 + $0x171] sm:$0xff]
        %v5300 = vpack.c.bf16 %v5269, %v5268
        %v5301 = vpack.c.bf16 %v5271, %v5270
        %v5302 = vpack.c.bf16 %v5273, %v5272
        %v5303 = vpack.c.bf16 %v5275, %v5274
        %v5304 = vpack.c.bf16 %v5277, %v5276
        %v5305 = vpack.c.bf16 %v5279, %v5278
        %v5306 = vpack.c.bf16 %v5281, %v5280
        %v5307 = vpack.c.bf16 %v5283, %v5282
        %v5308 = vpack.c.bf16 %v5285, %v5284
        %v5309 = vpack.c.bf16 %v5287, %v5286
        %v5310 = vpack.c.bf16 %v5289, %v5288
        %v5311 = vpack.c.bf16 %v5291, %v5290
        %v5312 = vpack.c.bf16 %v5293, %v5292
        %v5313 = vpack.c.bf16 %v5295, %v5294
        %v5314 = vpack.c.bf16 %v5297, %v5296
        %v5315 = vpack.c.bf16 %v5299, %v5298
        %s5316 = scalar_lea.vmem [#allocation4], 256
        %v5317 = vld [vmem:[%s5316] sm:$0xf]
        %v5318 = vld [vmem:[%s5316 + $0x4] sm:$0xf]
        %v5319 = vld [vmem:[%s5316 + $0x8] sm:$0xf]
        %v5320 = vld [vmem:[%s5316 + $0xc] sm:$0xf]
        %v5321 = vld [vmem:[%s5316 + $0x10] sm:$0xf]
        %v5322 = vld [vmem:[%s5316 + $0x14] sm:$0xf]
        %v5323 = vld [vmem:[%s5316 + $0x18] sm:$0xf]
        %v5324 = vld [vmem:[%s5316 + $0x1c] sm:$0xf]
        %v5325 = vld [vmem:[%s5316 + $0x20] sm:$0xf]
        %v5326 = vld [vmem:[%s5316 + $0x24] sm:$0xf]
        %v5327 = vld [vmem:[%s5316 + $0x28] sm:$0xf]
        %v5328 = vld [vmem:[%s5316 + $0x2c] sm:$0xf]
        %v5329 = vld [vmem:[%s5316 + $0x30] sm:$0xf]
        %v5330 = vld [vmem:[%s5316 + $0x34] sm:$0xf]
        %v5331 = vld [vmem:[%s5316 + $0x38] sm:$0xf]
        %v5332 = vld [vmem:[%s5316 + $0x3c] sm:$0xf]
        %v5349 = vunpack.c.l.b16 %v5317
        %v5350 = vunpack.c.l.b16 %v5318
        %v5351 = vunpack.c.l.b16 %v5319
        %v5352 = vunpack.c.l.b16 %v5320
        %v5353 = vunpack.c.l.b16 %v5321
        %v5354 = vunpack.c.l.b16 %v5322
        %v5355 = vunpack.c.l.b16 %v5323
        %v5356 = vunpack.c.l.b16 %v5324
        %v5357 = vunpack.c.l.b16 %v5325
        %v5358 = vunpack.c.l.b16 %v5326
        %v5359 = vunpack.c.l.b16 %v5327
        %v5360 = vunpack.c.l.b16 %v5328
        %v5361 = vunpack.c.l.b16 %v5329
        %v5362 = vunpack.c.l.b16 %v5330
        %v5363 = vunpack.c.l.b16 %v5331
        %v5364 = vunpack.c.l.b16 %v5332
        %v5365 = vpack.c.b16 %v5350, %v5349
        %v5366 = vpack.c.b16 %v5352, %v5351
        %v5367 = vpack.c.b16 %v5354, %v5353
        %v5368 = vpack.c.b16 %v5356, %v5355
        %v5369 = vpack.c.b16 %v5358, %v5357
        %v5370 = vpack.c.b16 %v5360, %v5359
        %v5371 = vpack.c.b16 %v5362, %v5361
        %v5372 = vpack.c.b16 %v5364, %v5363
        %5381 = vmatprep.subr.bf16.mxu0 0
        %5382 = vmatpush1.bf16.msra.mxu0 %v5365
        %5383 = vmatprep.subr.bf16.mxu0 0
        %5384 = vmatpush1.bf16.msra.mxu0 %v5366
        %5385 = vmatprep.subr.bf16.mxu0 0
        %5386 = vmatpush1.bf16.msra.mxu0 %v5367
        %5387 = vmatprep.subr.bf16.mxu0 0
        %5388 = vmatpush1.bf16.msra.mxu0 %v5368
        %5389 = vmatprep.subr.bf16.mxu0 0
        %5390 = vmatpush1.bf16.msra.mxu0 %v5369
        %5391 = vmatprep.subr.bf16.mxu0 0
        %5392 = vmatpush1.bf16.msra.mxu0 %v5370
        %5393 = vmatprep.subr.bf16.mxu0 0
        %5394 = vmatpush1.bf16.msra.mxu0 %v5371
        %5395 = vmatprep.subr.bf16.mxu0 0
        %5396 = vmatpush1.bf16.msra.mxu0 %v5372
        %5397 = vmatprep.subr.bf16.mxu0 0
        %5398 = vmatpush1.bf16.msra.mxu0 0
        %5399 = vmatprep.subr.bf16.mxu0 0
        %5400 = vmatpush1.bf16.msra.mxu0 0
        %5401 = vmatprep.subr.bf16.mxu0 0
        %5402 = vmatpush1.bf16.msra.mxu0 0
        %5403 = vmatprep.subr.bf16.mxu0 0
        %5404 = vmatpush1.bf16.msra.mxu0 0
        %5405 = vmatprep.subr.bf16.mxu0 0
        %5406 = vmatpush1.bf16.msra.mxu0 0
        %5407 = vmatprep.subr.bf16.mxu0 0
        %5408 = vmatpush1.bf16.msra.mxu0 0
        %5409 = vmatprep.subr.bf16.mxu0 0
        %5410 = vmatpush1.bf16.msra.mxu0 0
        %5411 = vmatprep.subr.bf16.mxu0 0
        %5412 = vmatpush1.bf16.msra.mxu0 0
        %5413 = vmatprep.mubr.bf16.mxu0 0
        %5414 = vmatmul.mubr.bf16.gmra.mrb[0].mxu0 %v5300
        %v5415 = vpop.f32.mrb[0].mxu0
        %v5416 = vadd.f32 0.0, %v5415
        %v5417 = vpop.f32.mrb[0].mxu0
        %v5418 = vpop.f32.mrb[0].mxu0
        %v5419 = vadd.f32 0.0, %v5418
        %v5420 = vpop.f32.mrb[0].mxu0
        %5421 = vmatprep.mubr.bf16.mxu0 0
        %5422 = vmatmul.mubr.bf16.gmra.mrb[0].mxu0 %v5301
        %v5423 = vpop.f32.mrb[0].mxu0
        %v5424 = vadd.f32 0.0, %v5423
        %v5425 = vpop.f32.mrb[0].mxu0
        %v5426 = vpop.f32.mrb[0].mxu0
        %v5427 = vadd.f32 0.0, %v5426
        %v5428 = vpop.f32.mrb[0].mxu0
        %5429 = vmatprep.mubr.bf16.mxu0 0
        %5430 = vmatmul.mubr.bf16.gmra.mrb[0].mxu0 %v5302
        %v5431 = vpop.f32.mrb[0].mxu0
        %v5432 = vadd.f32 0.0, %v5431
        %v5433 = vpop.f32.mrb[0].mxu0
        %v5434 = vpop.f32.mrb[0].mxu0
        %v5435 = vadd.f32 0.0, %v5434
        %v5436 = vpop.f32.mrb[0].mxu0
        %5437 = vmatprep.mubr.bf16.mxu0 0
        %5438 = vmatmul.mubr.bf16.gmra.mrb[0].mxu0 %v5303
        %v5439 = vpop.f32.mrb[0].mxu0
        %v5440 = vadd.f32 0.0, %v5439
        %v5441 = vpop.f32.mrb[0].mxu0
        %v5442 = vpop.f32.mrb[0].mxu0
        %v5443 = vadd.f32 0.0, %v5442
        %v5444 = vpop.f32.mrb[0].mxu0
        %5445 = vmatprep.mubr.bf16.mxu0 0
        %5446 = vmatmul.mubr.bf16.gmra.mrb[0].mxu0 %v5304
        %v5447 = vpop.f32.mrb[0].mxu0
        %v5448 = vadd.f32 0.0, %v5447
        %v5449 = vpop.f32.mrb[0].mxu0
        %v5450 = vpop.f32.mrb[0].mxu0
        %v5451 = vadd.f32 0.0, %v5450
        %v5452 = vpop.f32.mrb[0].mxu0
        %5453 = vmatprep.mubr.bf16.mxu0 0
        %5454 = vmatmul.mubr.bf16.gmra.mrb[0].mxu0 %v5305
        %v5455 = vpop.f32.mrb[0].mxu0
        %v5456 = vadd.f32 0.0, %v5455
        %v5457 = vpop.f32.mrb[0].mxu0
        %v5458 = vpop.f32.mrb[0].mxu0
        %v5459 = vadd.f32 0.0, %v5458
        %v5460 = vpop.f32.mrb[0].mxu0
        %5461 = vmatprep.mubr.bf16.mxu0 0
        %5462 = vmatmul.mubr.bf16.gmra.mrb[0].mxu0 %v5306
        %v5463 = vpop.f32.mrb[0].mxu0
        %v5464 = vadd.f32 0.0, %v5463
        %v5465 = vpop.f32.mrb[0].mxu0
        %v5466 = vpop.f32.mrb[0].mxu0
        %v5467 = vadd.f32 0.0, %v5466
        %v5468 = vpop.f32.mrb[0].mxu0
        %5469 = vmatprep.mubr.bf16.mxu0 0
        %5470 = vmatmul.mubr.bf16.gmra.mrb[0].mxu0 %v5307
        %v5471 = vpop.f32.mrb[0].mxu0
        %v5472 = vadd.f32 0.0, %v5471
        %v5473 = vpop.f32.mrb[0].mxu0
        %v5474 = vpop.f32.mrb[0].mxu0
        %v5475 = vadd.f32 0.0, %v5474
        %v5476 = vpop.f32.mrb[0].mxu0
        %5477 = vmatprep.mubr.bf16.mxu0 0
        %5478 = vmatmul.mubr.bf16.gmra.mrb[0].mxu0 %v5308
        %v5479 = vpop.f32.mrb[0].mxu0
        %v5480 = vadd.f32 0.0, %v5479
        %v5481 = vpop.f32.mrb[0].mxu0
        %v5482 = vpop.f32.mrb[0].mxu0
        %v5483 = vadd.f32 0.0, %v5482
        %v5484 = vpop.f32.mrb[0].mxu0
        %5485 = vmatprep.mubr.bf16.mxu0 0
        %5486 = vmatmul.mubr.bf16.gmra.mrb[0].mxu0 %v5309
        %v5487 = vpop.f32.mrb[0].mxu0
        %v5488 = vadd.f32 0.0, %v5487
        %v5489 = vpop.f32.mrb[0].mxu0
        %v5490 = vpop.f32.mrb[0].mxu0
        %v5491 = vadd.f32 0.0, %v5490
        %v5492 = vpop.f32.mrb[0].mxu0
        %5493 = vmatprep.mubr.bf16.mxu0 0
        %5494 = vmatmul.mubr.bf16.gmra.mrb[0].mxu0 %v5310
        %v5495 = vpop.f32.mrb[0].mxu0
        %v5496 = vadd.f32 0.0, %v5495
        %v5497 = vpop.f32.mrb[0].mxu0
        %v5498 = vpop.f32.mrb[0].mxu0
        %v5499 = vadd.f32 0.0, %v5498
        %v5500 = vpop.f32.mrb[0].mxu0
        %5501 = vmatprep.mubr.bf16.mxu0 0
        %5502 = vmatmul.mubr.bf16.gmra.mrb[0].mxu0 %v5311
        %v5503 = vpop.f32.mrb[0].mxu0
        %v5504 = vadd.f32 0.0, %v5503
        %v5505 = vpop.f32.mrb[0].mxu0
        %v5506 = vpop.f32.mrb[0].mxu0
        %v5507 = vadd.f32 0.0, %v5506
        %v5508 = vpop.f32.mrb[0].mxu0
        %5509 = vmatprep.mubr.bf16.mxu0 0
        %5510 = vmatmul.mubr.bf16.gmra.mrb[0].mxu0 %v5312
        %v5511 = vpop.f32.mrb[0].mxu0
        %v5512 = vadd.f32 0.0, %v5511
        %v5513 = vpop.f32.mrb[0].mxu0
        %v5514 = vpop.f32.mrb[0].mxu0
        %v5515 = vadd.f32 0.0, %v5514
        %v5516 = vpop.f32.mrb[0].mxu0
        %5517 = vmatprep.mubr.bf16.mxu0 0
        %5518 = vmatmul.mubr.bf16.gmra.mrb[0].mxu0 %v5313
        %v5519 = vpop.f32.mrb[0].mxu0
        %v5520 = vadd.f32 0.0, %v5519
        %v5521 = vpop.f32.mrb[0].mxu0
        %v5522 = vpop.f32.mrb[0].mxu0
        %v5523 = vadd.f32 0.0, %v5522
        %v5524 = vpop.f32.mrb[0].mxu0
        %5525 = vmatprep.mubr.bf16.mxu0 0
        %5526 = vmatmul.mubr.bf16.gmra.mrb[0].mxu0 %v5314
        %v5527 = vpop.f32.mrb[0].mxu0
        %v5528 = vadd.f32 0.0, %v5527
        %v5529 = vpop.f32.mrb[0].mxu0
        %v5530 = vpop.f32.mrb[0].mxu0
        %v5531 = vadd.f32 0.0, %v5530
        %v5532 = vpop.f32.mrb[0].mxu0
        %5533 = vmatprep.mubr.bf16.mxu0 0
        %5534 = vmatmul.mubr.bf16.gmra.mrb[0].mxu0 %v5315
        %v5535 = vpop.f32.mrb[0].mxu0
        %v5536 = vadd.f32 0.0, %v5535
        %v5537 = vpop.f32.mrb[0].mxu0
        %v5538 = vpop.f32.mrb[0].mxu0
        %v5539 = vadd.f32 0.0, %v5538
        %v5540 = vpop.f32.mrb[0].mxu0
        %5541 = vdwg.mxu0
        %v5542 = vadd.f32 %v5236, %v5416
        %v5543 = vadd.f32 %v5237, %v5419
        %v5544 = vadd.f32 %v5238, %v5424
        %v5545 = vadd.f32 %v5239, %v5427
        %v5546 = vadd.f32 %v5240, %v5432
        %v5547 = vadd.f32 %v5241, %v5435
        %v5548 = vadd.f32 %v5242, %v5440
        %v5549 = vadd.f32 %v5243, %v5443
        %v5550 = vadd.f32 %v5244, %v5448
        %v5551 = vadd.f32 %v5245, %v5451
        %v5552 = vadd.f32 %v5246, %v5456
        %v5553 = vadd.f32 %v5247, %v5459
        %v5554 = vadd.f32 %v5248, %v5464
        %v5555 = vadd.f32 %v5249, %v5467
        %v5556 = vadd.f32 %v5250, %v5472
        %v5557 = vadd.f32 %v5251, %v5475
        %v5558 = vadd.f32 %v5252, %v5480
        %v5559 = vadd.f32 %v5253, %v5483
        %v5560 = vadd.f32 %v5254, %v5488
        %v5561 = vadd.f32 %v5255, %v5491
        %v5562 = vadd.f32 %v5256, %v5496
        %v5563 = vadd.f32 %v5257, %v5499
        %v5564 = vadd.f32 %v5258, %v5504
        %v5565 = vadd.f32 %v5259, %v5507
        %v5566 = vadd.f32 %v5260, %v5512
        %v5567 = vadd.f32 %v5261, %v5515
        %v5568 = vadd.f32 %v5262, %v5520
        %v5569 = vadd.f32 %v5263, %v5523
        %v5570 = vadd.f32 %v5264, %v5528
        %v5571 = vadd.f32 %v5265, %v5531
        %v5572 = vadd.f32 %v5266, %v5536
        %v5573 = vadd.f32 %v5267, %v5539
        %v5574 = vld [vmem:[%s4044 + $0x2] sm:$0xff]
        %v5575 = vld [vmem:[%s4044 + $0xa] sm:$0xff]
        %v5576 = vld [vmem:[%s4044 + $0x1a] sm:$0xff]
        %v5577 = vld [vmem:[%s4044 + $0x22] sm:$0xff]
        %v5578 = vld [vmem:[%s4044 + $0x32] sm:$0xff]
        %v5579 = vld [vmem:[%s4044 + $0x3a] sm:$0xff]
        %v5580 = vld [vmem:[%s4044 + $0x4a] sm:$0xff]
        %v5581 = vld [vmem:[%s4044 + $0x52] sm:$0xff]
        %v5582 = vld [vmem:[%s4044 + $0x62] sm:$0xff]
        %v5583 = vld [vmem:[%s4044 + $0x6a] sm:$0xff]
        %v5584 = vld [vmem:[%s4044 + $0x7a] sm:$0xff]
        %v5585 = vld [vmem:[%s4044 + $0x82] sm:$0xff]
        %v5586 = vld [vmem:[%s4044 + $0x92] sm:$0xff]
        %v5587 = vld [vmem:[%s4044 + $0x9a] sm:$0xff]
        %v5588 = vld [vmem:[%s4044 + $0xaa] sm:$0xff]
        %v5589 = vld [vmem:[%s4044 + $0xb2] sm:$0xff]
        %v5590 = vld [vmem:[%s4044 + $0xc2] sm:$0xff]
        %v5591 = vld [vmem:[%s4044 + $0xca] sm:$0xff]
        %v5592 = vld [vmem:[%s4044 + $0xda] sm:$0xff]
        %v5593 = vld [vmem:[%s4044 + $0xe2] sm:$0xff]
        %v5594 = vld [vmem:[%s4044 + $0xf2] sm:$0xff]
        %v5595 = vld [vmem:[%s4044 + $0xfa] sm:$0xff]
        %v5596 = vld [vmem:[%s4044 + $0x10a] sm:$0xff]
        %v5597 = vld [vmem:[%s4044 + $0x112] sm:$0xff]
        %v5598 = vld [vmem:[%s4044 + $0x122] sm:$0xff]
        %v5599 = vld [vmem:[%s4044 + $0x12a] sm:$0xff]
        %v5600 = vld [vmem:[%s4044 + $0x13a] sm:$0xff]
        %v5601 = vld [vmem:[%s4044 + $0x142] sm:$0xff]
        %v5602 = vld [vmem:[%s4044 + $0x152] sm:$0xff]
        %v5603 = vld [vmem:[%s4044 + $0x15a] sm:$0xff]
        %v5604 = vld [vmem:[%s4044 + $0x16a] sm:$0xff]
        %v5605 = vld [vmem:[%s4044 + $0x172] sm:$0xff]
        %v5606 = vpack.c.bf16 %v5575, %v5574
        %v5607 = vpack.c.bf16 %v5577, %v5576
        %v5608 = vpack.c.bf16 %v5579, %v5578
        %v5609 = vpack.c.bf16 %v5581, %v5580
        %v5610 = vpack.c.bf16 %v5583, %v5582
        %v5611 = vpack.c.bf16 %v5585, %v5584
        %v5612 = vpack.c.bf16 %v5587, %v5586
        %v5613 = vpack.c.bf16 %v5589, %v5588
        %v5614 = vpack.c.bf16 %v5591, %v5590
        %v5615 = vpack.c.bf16 %v5593, %v5592
        %v5616 = vpack.c.bf16 %v5595, %v5594
        %v5617 = vpack.c.bf16 %v5597, %v5596
        %v5618 = vpack.c.bf16 %v5599, %v5598
        %v5619 = vpack.c.bf16 %v5601, %v5600
        %v5620 = vpack.c.bf16 %v5603, %v5602
        %v5621 = vpack.c.bf16 %v5605, %v5604
        %s5622 = scalar_lea.vmem [#allocation4], 320
        %v5623 = vld [vmem:[%s5622] sm:$0xf]
        %v5624 = vld [vmem:[%s5622 + $0x4] sm:$0xf]
        %v5625 = vld [vmem:[%s5622 + $0x8] sm:$0xf]
        %v5626 = vld [vmem:[%s5622 + $0xc] sm:$0xf]
        %v5627 = vld [vmem:[%s5622 + $0x10] sm:$0xf]
        %v5628 = vld [vmem:[%s5622 + $0x14] sm:$0xf]
        %v5629 = vld [vmem:[%s5622 + $0x18] sm:$0xf]
        %v5630 = vld [vmem:[%s5622 + $0x1c] sm:$0xf]
        %v5631 = vld [vmem:[%s5622 + $0x20] sm:$0xf]
        %v5632 = vld [vmem:[%s5622 + $0x24] sm:$0xf]
        %v5633 = vld [vmem:[%s5622 + $0x28] sm:$0xf]
        %v5634 = vld [vmem:[%s5622 + $0x2c] sm:$0xf]
        %v5635 = vld [vmem:[%s5622 + $0x30] sm:$0xf]
        %v5636 = vld [vmem:[%s5622 + $0x34] sm:$0xf]
        %v5637 = vld [vmem:[%s5622 + $0x38] sm:$0xf]
        %v5638 = vld [vmem:[%s5622 + $0x3c] sm:$0xf]
        %v5655 = vunpack.c.l.b16 %v5623
        %v5656 = vunpack.c.l.b16 %v5624
        %v5657 = vunpack.c.l.b16 %v5625
        %v5658 = vunpack.c.l.b16 %v5626
        %v5659 = vunpack.c.l.b16 %v5627
        %v5660 = vunpack.c.l.b16 %v5628
        %v5661 = vunpack.c.l.b16 %v5629
        %v5662 = vunpack.c.l.b16 %v5630
        %v5663 = vunpack.c.l.b16 %v5631
        %v5664 = vunpack.c.l.b16 %v5632
        %v5665 = vunpack.c.l.b16 %v5633
        %v5666 = vunpack.c.l.b16 %v5634
        %v5667 = vunpack.c.l.b16 %v5635
        %v5668 = vunpack.c.l.b16 %v5636
        %v5669 = vunpack.c.l.b16 %v5637
        %v5670 = vunpack.c.l.b16 %v5638
        %v5671 = vpack.c.b16 %v5656, %v5655
        %v5672 = vpack.c.b16 %v5658, %v5657
        %v5673 = vpack.c.b16 %v5660, %v5659
        %v5674 = vpack.c.b16 %v5662, %v5661
        %v5675 = vpack.c.b16 %v5664, %v5663
        %v5676 = vpack.c.b16 %v5666, %v5665
        %v5677 = vpack.c.b16 %v5668, %v5667
        %v5678 = vpack.c.b16 %v5670, %v5669
        %5687 = vmatprep.subr.bf16.mxu0 0
        %5688 = vmatpush1.bf16.msra.mxu0 %v5671
        %5689 = vmatprep.subr.bf16.mxu0 0
        %5690 = vmatpush1.bf16.msra.mxu0 %v5672
        %5691 = vmatprep.subr.bf16.mxu0 0
        %5692 = vmatpush1.bf16.msra.mxu0 %v5673
        %5693 = vmatprep.subr.bf16.mxu0 0
        %5694 = vmatpush1.bf16.msra.mxu0 %v5674
        %5695 = vmatprep.subr.bf16.mxu0 0
        %5696 = vmatpush1.bf16.msra.mxu0 %v5675
        %5697 = vmatprep.subr.bf16.mxu0 0
        %5698 = vmatpush1.bf16.msra.mxu0 %v5676
        %5699 = vmatprep.subr.bf16.mxu0 0
        %5700 = vmatpush1.bf16.msra.mxu0 %v5677
        %5701 = vmatprep.subr.bf16.mxu0 0
        %5702 = vmatpush1.bf16.msra.mxu0 %v5678
        %5703 = vmatprep.subr.bf16.mxu0 0
        %5704 = vmatpush1.bf16.msra.mxu0 0
        %5705 = vmatprep.subr.bf16.mxu0 0
        %5706 = vmatpush1.bf16.msra.mxu0 0
        %5707 = vmatprep.subr.bf16.mxu0 0
        %5708 = vmatpush1.bf16.msra.mxu0 0
        %5709 = vmatprep.subr.bf16.mxu0 0
        %5710 = vmatpush1.bf16.msra.mxu0 0
        %5711 = vmatprep.subr.bf16.mxu0 0
        %5712 = vmatpush1.bf16.msra.mxu0 0
        %5713 = vmatprep.subr.bf16.mxu0 0
        %5714 = vmatpush1.bf16.msra.mxu0 0
        %5715 = vmatprep.subr.bf16.mxu0 0
        %5716 = vmatpush1.bf16.msra.mxu0 0
        %5717 = vmatprep.subr.bf16.mxu0 0
        %5718 = vmatpush1.bf16.msra.mxu0 0
        %5719 = vmatprep.mubr.bf16.mxu0 0
        %5720 = vmatmul.mubr.bf16.gmra.mrb[0].mxu0 %v5606
        %v5721 = vpop.f32.mrb[0].mxu0
        %v5722 = vadd.f32 0.0, %v5721
        %v5723 = vpop.f32.mrb[0].mxu0
        %v5724 = vpop.f32.mrb[0].mxu0
        %v5725 = vadd.f32 0.0, %v5724
        %v5726 = vpop.f32.mrb[0].mxu0
        %5727 = vmatprep.mubr.bf16.mxu0 0
        %5728 = vmatmul.mubr.bf16.gmra.mrb[0].mxu0 %v5607
        %v5729 = vpop.f32.mrb[0].mxu0
        %v5730 = vadd.f32 0.0, %v5729
        %v5731 = vpop.f32.mrb[0].mxu0
        %v5732 = vpop.f32.mrb[0].mxu0
        %v5733 = vadd.f32 0.0, %v5732
        %v5734 = vpop.f32.mrb[0].mxu0
        %5735 = vmatprep.mubr.bf16.mxu0 0
        %5736 = vmatmul.mubr.bf16.gmra.mrb[0].mxu0 %v5608
        %v5737 = vpop.f32.mrb[0].mxu0
        %v5738 = vadd.f32 0.0, %v5737
        %v5739 = vpop.f32.mrb[0].mxu0
        %v5740 = vpop.f32.mrb[0].mxu0
        %v5741 = vadd.f32 0.0, %v5740
        %v5742 = vpop.f32.mrb[0].mxu0
        %5743 = vmatprep.mubr.bf16.mxu0 0
        %5744 = vmatmul.mubr.bf16.gmra.mrb[0].mxu0 %v5609
        %v5745 = vpop.f32.mrb[0].mxu0
        %v5746 = vadd.f32 0.0, %v5745
        %v5747 = vpop.f32.mrb[0].mxu0
        %v5748 = vpop.f32.mrb[0].mxu0
        %v5749 = vadd.f32 0.0, %v5748
        %v5750 = vpop.f32.mrb[0].mxu0
        %5751 = vmatprep.mubr.bf16.mxu0 0
        %5752 = vmatmul.mubr.bf16.gmra.mrb[0].mxu0 %v5610
        %v5753 = vpop.f32.mrb[0].mxu0
        %v5754 = vadd.f32 0.0, %v5753
        %v5755 = vpop.f32.mrb[0].mxu0
        %v5756 = vpop.f32.mrb[0].mxu0
        %v5757 = vadd.f32 0.0, %v5756
        %v5758 = vpop.f32.mrb[0].mxu0
        %5759 = vmatprep.mubr.bf16.mxu0 0
        %5760 = vmatmul.mubr.bf16.gmra.mrb[0].mxu0 %v5611
        %v5761 = vpop.f32.mrb[0].mxu0
        %v5762 = vadd.f32 0.0, %v5761
        %v5763 = vpop.f32.mrb[0].mxu0
        %v5764 = vpop.f32.mrb[0].mxu0
        %v5765 = vadd.f32 0.0, %v5764
        %v5766 = vpop.f32.mrb[0].mxu0
        %5767 = vmatprep.mubr.bf16.mxu0 0
        %5768 = vmatmul.mubr.bf16.gmra.mrb[0].mxu0 %v5612
        %v5769 = vpop.f32.mrb[0].mxu0
        %v5770 = vadd.f32 0.0, %v5769
        %v5771 = vpop.f32.mrb[0].mxu0
        %v5772 = vpop.f32.mrb[0].mxu0
        %v5773 = vadd.f32 0.0, %v5772
        %v5774 = vpop.f32.mrb[0].mxu0
        %5775 = vmatprep.mubr.bf16.mxu0 0
        %5776 = vmatmul.mubr.bf16.gmra.mrb[0].mxu0 %v5613
        %v5777 = vpop.f32.mrb[0].mxu0
        %v5778 = vadd.f32 0.0, %v5777
        %v5779 = vpop.f32.mrb[0].mxu0
        %v5780 = vpop.f32.mrb[0].mxu0
        %v5781 = vadd.f32 0.0, %v5780
        %v5782 = vpop.f32.mrb[0].mxu0
        %5783 = vmatprep.mubr.bf16.mxu0 0
        %5784 = vmatmul.mubr.bf16.gmra.mrb[0].mxu0 %v5614
        %v5785 = vpop.f32.mrb[0].mxu0
        %v5786 = vadd.f32 0.0, %v5785
        %v5787 = vpop.f32.mrb[0].mxu0
        %v5788 = vpop.f32.mrb[0].mxu0
        %v5789 = vadd.f32 0.0, %v5788
        %v5790 = vpop.f32.mrb[0].mxu0
        %5791 = vmatprep.mubr.bf16.mxu0 0
        %5792 = vmatmul.mubr.bf16.gmra.mrb[0].mxu0 %v5615
        %v5793 = vpop.f32.mrb[0].mxu0
        %v5794 = vadd.f32 0.0, %v5793
        %v5795 = vpop.f32.mrb[0].mxu0
        %v5796 = vpop.f32.mrb[0].mxu0
        %v5797 = vadd.f32 0.0, %v5796
        %v5798 = vpop.f32.mrb[0].mxu0
        %5799 = vmatprep.mubr.bf16.mxu0 0
        %5800 = vmatmul.mubr.bf16.gmra.mrb[0].mxu0 %v5616
        %v5801 = vpop.f32.mrb[0].mxu0
        %v5802 = vadd.f32 0.0, %v5801
        %v5803 = vpop.f32.mrb[0].mxu0
        %v5804 = vpop.f32.mrb[0].mxu0
        %v5805 = vadd.f32 0.0, %v5804
        %v5806 = vpop.f32.mrb[0].mxu0
        %5807 = vmatprep.mubr.bf16.mxu0 0
        %5808 = vmatmul.mubr.bf16.gmra.mrb[0].mxu0 %v5617
        %v5809 = vpop.f32.mrb[0].mxu0
        %v5810 = vadd.f32 0.0, %v5809
        %v5811 = vpop.f32.mrb[0].mxu0
        %v5812 = vpop.f32.mrb[0].mxu0
        %v5813 = vadd.f32 0.0, %v5812
        %v5814 = vpop.f32.mrb[0].mxu0
        %5815 = vmatprep.mubr.bf16.mxu0 0
        %5816 = vmatmul.mubr.bf16.gmra.mrb[0].mxu0 %v5618
        %v5817 = vpop.f32.mrb[0].mxu0
        %v5818 = vadd.f32 0.0, %v5817
        %v5819 = vpop.f32.mrb[0].mxu0
        %v5820 = vpop.f32.mrb[0].mxu0
        %v5821 = vadd.f32 0.0, %v5820
        %v5822 = vpop.f32.mrb[0].mxu0
        %5823 = vmatprep.mubr.bf16.mxu0 0
        %5824 = vmatmul.mubr.bf16.gmra.mrb[0].mxu0 %v5619
        %v5825 = vpop.f32.mrb[0].mxu0
        %v5826 = vadd.f32 0.0, %v5825
        %v5827 = vpop.f32.mrb[0].mxu0
        %v5828 = vpop.f32.mrb[0].mxu0
        %v5829 = vadd.f32 0.0, %v5828
        %v5830 = vpop.f32.mrb[0].mxu0
        %5831 = vmatprep.mubr.bf16.mxu0 0
        %5832 = vmatmul.mubr.bf16.gmra.mrb[0].mxu0 %v5620
        %v5833 = vpop.f32.mrb[0].mxu0
        %v5834 = vadd.f32 0.0, %v5833
        %v5835 = vpop.f32.mrb[0].mxu0
        %v5836 = vpop.f32.mrb[0].mxu0
        %v5837 = vadd.f32 0.0, %v5836
        %v5838 = vpop.f32.mrb[0].mxu0
        %5839 = vmatprep.mubr.bf16.mxu0 0
        %5840 = vmatmul.mubr.bf16.gmra.mrb[0].mxu0 %v5621
        %v5841 = vpop.f32.mrb[0].mxu0
        %v5842 = vadd.f32 0.0, %v5841
        %v5843 = vpop.f32.mrb[0].mxu0
        %v5844 = vpop.f32.mrb[0].mxu0
        %v5845 = vadd.f32 0.0, %v5844
        %v5846 = vpop.f32.mrb[0].mxu0
        %5847 = vdwg.mxu0
        %v5848 = vadd.f32 %v5542, %v5722
        %v5849 = vadd.f32 %v5543, %v5725
        %v5850 = vadd.f32 %v5544, %v5730
        %v5851 = vadd.f32 %v5545, %v5733
        %v5852 = vadd.f32 %v5546, %v5738
        %v5853 = vadd.f32 %v5547, %v5741
        %v5854 = vadd.f32 %v5548, %v5746
        %v5855 = vadd.f32 %v5549, %v5749
        %v5856 = vadd.f32 %v5550, %v5754
        %v5857 = vadd.f32 %v5551, %v5757
        %v5858 = vadd.f32 %v5552, %v5762
        %v5859 = vadd.f32 %v5553, %v5765
        %v5860 = vadd.f32 %v5554, %v5770
        %v5861 = vadd.f32 %v5555, %v5773
        %v5862 = vadd.f32 %v5556, %v5778
        %v5863 = vadd.f32 %v5557, %v5781
        %v5864 = vadd.f32 %v5558, %v5786
        %v5865 = vadd.f32 %v5559, %v5789
        %v5866 = vadd.f32 %v5560, %v5794
        %v5867 = vadd.f32 %v5561, %v5797
        %v5868 = vadd.f32 %v5562, %v5802
        %v5869 = vadd.f32 %v5563, %v5805
        %v5870 = vadd.f32 %v5564, %v5810
        %v5871 = vadd.f32 %v5565, %v5813
        %v5872 = vadd.f32 %v5566, %v5818
        %v5873 = vadd.f32 %v5567, %v5821
        %v5874 = vadd.f32 %v5568, %v5826
        %v5875 = vadd.f32 %v5569, %v5829
        %v5876 = vadd.f32 %v5570, %v5834
        %v5877 = vadd.f32 %v5571, %v5837
        %v5878 = vadd.f32 %v5572, %v5842
        %v5879 = vadd.f32 %v5573, %v5845
        %s5880 = scalar_lea.vmem [#allocation3], 48
        %v5881 = vld [vmem:[%s5880] sm:$0xff]
        %v5882 = vld [vmem:[%s5880 + $0x8] sm:$0xff]
        %v5883 = vld [vmem:[%s5880 + $0x18] sm:$0xff]
        %v5884 = vld [vmem:[%s5880 + $0x20] sm:$0xff]
        %v5885 = vld [vmem:[%s5880 + $0x30] sm:$0xff]
        %v5886 = vld [vmem:[%s5880 + $0x38] sm:$0xff]
        %v5887 = vld [vmem:[%s5880 + $0x48] sm:$0xff]
        %v5888 = vld [vmem:[%s5880 + $0x50] sm:$0xff]
        %v5889 = vld [vmem:[%s5880 + $0x60] sm:$0xff]
        %v5890 = vld [vmem:[%s5880 + $0x68] sm:$0xff]
        %v5891 = vld [vmem:[%s5880 + $0x78] sm:$0xff]
        %v5892 = vld [vmem:[%s5880 + $0x80] sm:$0xff]
        %v5893 = vld [vmem:[%s5880 + $0x90] sm:$0xff]
        %v5894 = vld [vmem:[%s5880 + $0x98] sm:$0xff]
        %v5895 = vld [vmem:[%s5880 + $0xa8] sm:$0xff]
        %v5896 = vld [vmem:[%s5880 + $0xb0] sm:$0xff]
        %v5897 = vld [vmem:[%s5880 + $0xc0] sm:$0xff]
        %v5898 = vld [vmem:[%s5880 + $0xc8] sm:$0xff]
        %v5899 = vld [vmem:[%s5880 + $0xd8] sm:$0xff]
        %v5900 = vld [vmem:[%s5880 + $0xe0] sm:$0xff]
        %v5901 = vld [vmem:[%s5880 + $0xf0] sm:$0xff]
        %v5902 = vld [vmem:[%s5880 + $0xf8] sm:$0xff]
        %v5903 = vld [vmem:[%s5880 + $0x108] sm:$0xff]
        %v5904 = vld [vmem:[%s5880 + $0x110] sm:$0xff]
        %v5905 = vld [vmem:[%s5880 + $0x120] sm:$0xff]
        %v5906 = vld [vmem:[%s5880 + $0x128] sm:$0xff]
        %v5907 = vld [vmem:[%s5880 + $0x138] sm:$0xff]
        %v5908 = vld [vmem:[%s5880 + $0x140] sm:$0xff]
        %v5909 = vld [vmem:[%s5880 + $0x150] sm:$0xff]
        %v5910 = vld [vmem:[%s5880 + $0x158] sm:$0xff]
        %v5911 = vld [vmem:[%s5880 + $0x168] sm:$0xff]
        %v5912 = vld [vmem:[%s5880 + $0x170] sm:$0xff]
        %v5913 = vpack.c.bf16 %v5882, %v5881
        %v5914 = vpack.c.bf16 %v5884, %v5883
        %v5915 = vpack.c.bf16 %v5886, %v5885
        %v5916 = vpack.c.bf16 %v5888, %v5887
        %v5917 = vpack.c.bf16 %v5890, %v5889
        %v5918 = vpack.c.bf16 %v5892, %v5891
        %v5919 = vpack.c.bf16 %v5894, %v5893
        %v5920 = vpack.c.bf16 %v5896, %v5895
        %v5921 = vpack.c.bf16 %v5898, %v5897
        %v5922 = vpack.c.bf16 %v5900, %v5899
        %v5923 = vpack.c.bf16 %v5902, %v5901
        %v5924 = vpack.c.bf16 %v5904, %v5903
        %v5925 = vpack.c.bf16 %v5906, %v5905
        %v5926 = vpack.c.bf16 %v5908, %v5907
        %v5927 = vpack.c.bf16 %v5910, %v5909
        %v5928 = vpack.c.bf16 %v5912, %v5911
        %s5929 = scalar_lea.vmem [#allocation4], 384
        %v5930 = vld [vmem:[%s5929] sm:$0xf]
        %v5931 = vld [vmem:[%s5929 + $0x4] sm:$0xf]
        %v5932 = vld [vmem:[%s5929 + $0x8] sm:$0xf]
        %v5933 = vld [vmem:[%s5929 + $0xc] sm:$0xf]
        %v5934 = vld [vmem:[%s5929 + $0x10] sm:$0xf]
        %v5935 = vld [vmem:[%s5929 + $0x14] sm:$0xf]
        %v5936 = vld [vmem:[%s5929 + $0x18] sm:$0xf]
        %v5937 = vld [vmem:[%s5929 + $0x1c] sm:$0xf]
        %v5938 = vld [vmem:[%s5929 + $0x20] sm:$0xf]
        %v5939 = vld [vmem:[%s5929 + $0x24] sm:$0xf]
        %v5940 = vld [vmem:[%s5929 + $0x28] sm:$0xf]
        %v5941 = vld [vmem:[%s5929 + $0x2c] sm:$0xf]
        %v5942 = vld [vmem:[%s5929 + $0x30] sm:$0xf]
        %v5943 = vld [vmem:[%s5929 + $0x34] sm:$0xf]
        %v5944 = vld [vmem:[%s5929 + $0x38] sm:$0xf]
        %v5945 = vld [vmem:[%s5929 + $0x3c] sm:$0xf]
        %v5962 = vunpack.c.l.b16 %v5930
        %v5963 = vunpack.c.l.b16 %v5931
        %v5964 = vunpack.c.l.b16 %v5932
        %v5965 = vunpack.c.l.b16 %v5933
        %v5966 = vunpack.c.l.b16 %v5934
        %v5967 = vunpack.c.l.b16 %v5935
        %v5968 = vunpack.c.l.b16 %v5936
        %v5969 = vunpack.c.l.b16 %v5937
        %v5970 = vunpack.c.l.b16 %v5938
        %v5971 = vunpack.c.l.b16 %v5939
        %v5972 = vunpack.c.l.b16 %v5940
        %v5973 = vunpack.c.l.b16 %v5941
        %v5974 = vunpack.c.l.b16 %v5942
        %v5975 = vunpack.c.l.b16 %v5943
        %v5976 = vunpack.c.l.b16 %v5944
        %v5977 = vunpack.c.l.b16 %v5945
        %v5978 = vpack.c.b16 %v5963, %v5962
        %v5979 = vpack.c.b16 %v5965, %v5964
        %v5980 = vpack.c.b16 %v5967, %v5966
        %v5981 = vpack.c.b16 %v5969, %v5968
        %v5982 = vpack.c.b16 %v5971, %v5970
        %v5983 = vpack.c.b16 %v5973, %v5972
        %v5984 = vpack.c.b16 %v5975, %v5974
        %v5985 = vpack.c.b16 %v5977, %v5976
        %5994 = vmatprep.subr.bf16.mxu0 0
        %5995 = vmatpush1.bf16.msra.mxu0 %v5978
        %5996 = vmatprep.subr.bf16.mxu0 0
        %5997 = vmatpush1.bf16.msra.mxu0 %v5979
        %5998 = vmatprep.subr.bf16.mxu0 0
        %5999 = vmatpush1.bf16.msra.mxu0 %v5980
        %6000 = vmatprep.subr.bf16.mxu0 0
        %6001 = vmatpush1.bf16.msra.mxu0 %v5981
        %6002 = vmatprep.subr.bf16.mxu0 0
        %6003 = vmatpush1.bf16.msra.mxu0 %v5982
        %6004 = vmatprep.subr.bf16.mxu0 0
        %6005 = vmatpush1.bf16.msra.mxu0 %v5983
        %6006 = vmatprep.subr.bf16.mxu0 0
        %6007 = vmatpush1.bf16.msra.mxu0 %v5984
        %6008 = vmatprep.subr.bf16.mxu0 0
        %6009 = vmatpush1.bf16.msra.mxu0 %v5985
        %6010 = vmatprep.subr.bf16.mxu0 0
        %6011 = vmatpush1.bf16.msra.mxu0 0
        %6012 = vmatprep.subr.bf16.mxu0 0
        %6013 = vmatpush1.bf16.msra.mxu0 0
        %6014 = vmatprep.subr.bf16.mxu0 0
        %6015 = vmatpush1.bf16.msra.mxu0 0
        %6016 = vmatprep.subr.bf16.mxu0 0
        %6017 = vmatpush1.bf16.msra.mxu0 0
        %6018 = vmatprep.subr.bf16.mxu0 0
        %6019 = vmatpush1.bf16.msra.mxu0 0
        %6020 = vmatprep.subr.bf16.mxu0 0
        %6021 = vmatpush1.bf16.msra.mxu0 0
        %6022 = vmatprep.subr.bf16.mxu0 0
        %6023 = vmatpush1.bf16.msra.mxu0 0
        %6024 = vmatprep.subr.bf16.mxu0 0
        %6025 = vmatpush1.bf16.msra.mxu0 0
        %6026 = vmatprep.mubr.bf16.mxu0 0
        %6027 = vmatmul.mubr.bf16.gmra.mrb[0].mxu0 %v5913
        %v6028 = vpop.f32.mrb[0].mxu0
        %v6029 = vadd.f32 0.0, %v6028
        %v6030 = vpop.f32.mrb[0].mxu0
        %v6031 = vpop.f32.mrb[0].mxu0
        %v6032 = vadd.f32 0.0, %v6031
        %v6033 = vpop.f32.mrb[0].mxu0
        %6034 = vmatprep.mubr.bf16.mxu0 0
        %6035 = vmatmul.mubr.bf16.gmra.mrb[0].mxu0 %v5914
        %v6036 = vpop.f32.mrb[0].mxu0
        %v6037 = vadd.f32 0.0, %v6036
        %v6038 = vpop.f32.mrb[0].mxu0
        %v6039 = vpop.f32.mrb[0].mxu0
        %v6040 = vadd.f32 0.0, %v6039
        %v6041 = vpop.f32.mrb[0].mxu0
        %6042 = vmatprep.mubr.bf16.mxu0 0
        %6043 = vmatmul.mubr.bf16.gmra.mrb[0].mxu0 %v5915
        %v6044 = vpop.f32.mrb[0].mxu0
        %v6045 = vadd.f32 0.0, %v6044
        %v6046 = vpop.f32.mrb[0].mxu0
        %v6047 = vpop.f32.mrb[0].mxu0
        %v6048 = vadd.f32 0.0, %v6047
        %v6049 = vpop.f32.mrb[0].mxu0
        %6050 = vmatprep.mubr.bf16.mxu0 0
        %6051 = vmatmul.mubr.bf16.gmra.mrb[0].mxu0 %v5916
        %v6052 = vpop.f32.mrb[0].mxu0
        %v6053 = vadd.f32 0.0, %v6052
        %v6054 = vpop.f32.mrb[0].mxu0
        %v6055 = vpop.f32.mrb[0].mxu0
        %v6056 = vadd.f32 0.0, %v6055
        %v6057 = vpop.f32.mrb[0].mxu0
        %6058 = vmatprep.mubr.bf16.mxu0 0
        %6059 = vmatmul.mubr.bf16.gmra.mrb[0].mxu0 %v5917
        %v6060 = vpop.f32.mrb[0].mxu0
        %v6061 = vadd.f32 0.0, %v6060
        %v6062 = vpop.f32.mrb[0].mxu0
        %v6063 = vpop.f32.mrb[0].mxu0
        %v6064 = vadd.f32 0.0, %v6063
        %v6065 = vpop.f32.mrb[0].mxu0
        %6066 = vmatprep.mubr.bf16.mxu0 0
        %6067 = vmatmul.mubr.bf16.gmra.mrb[0].mxu0 %v5918
        %v6068 = vpop.f32.mrb[0].mxu0
        %v6069 = vadd.f32 0.0, %v6068
        %v6070 = vpop.f32.mrb[0].mxu0
        %v6071 = vpop.f32.mrb[0].mxu0
        %v6072 = vadd.f32 0.0, %v6071
        %v6073 = vpop.f32.mrb[0].mxu0
        %6074 = vmatprep.mubr.bf16.mxu0 0
        %6075 = vmatmul.mubr.bf16.gmra.mrb[0].mxu0 %v5919
        %v6076 = vpop.f32.mrb[0].mxu0
        %v6077 = vadd.f32 0.0, %v6076
        %v6078 = vpop.f32.mrb[0].mxu0
        %v6079 = vpop.f32.mrb[0].mxu0
        %v6080 = vadd.f32 0.0, %v6079
        %v6081 = vpop.f32.mrb[0].mxu0
        %6082 = vmatprep.mubr.bf16.mxu0 0
        %6083 = vmatmul.mubr.bf16.gmra.mrb[0].mxu0 %v5920
        %v6084 = vpop.f32.mrb[0].mxu0
        %v6085 = vadd.f32 0.0, %v6084
        %v6086 = vpop.f32.mrb[0].mxu0
        %v6087 = vpop.f32.mrb[0].mxu0
        %v6088 = vadd.f32 0.0, %v6087
        %v6089 = vpop.f32.mrb[0].mxu0
        %6090 = vmatprep.mubr.bf16.mxu0 0
        %6091 = vmatmul.mubr.bf16.gmra.mrb[0].mxu0 %v5921
        %v6092 = vpop.f32.mrb[0].mxu0
        %v6093 = vadd.f32 0.0, %v6092
        %v6094 = vpop.f32.mrb[0].mxu0
        %v6095 = vpop.f32.mrb[0].mxu0
        %v6096 = vadd.f32 0.0, %v6095
        %v6097 = vpop.f32.mrb[0].mxu0
        %6098 = vmatprep.mubr.bf16.mxu0 0
        %6099 = vmatmul.mubr.bf16.gmra.mrb[0].mxu0 %v5922
        %v6100 = vpop.f32.mrb[0].mxu0
        %v6101 = vadd.f32 0.0, %v6100
        %v6102 = vpop.f32.mrb[0].mxu0
        %v6103 = vpop.f32.mrb[0].mxu0
        %v6104 = vadd.f32 0.0, %v6103
        %v6105 = vpop.f32.mrb[0].mxu0
        %6106 = vmatprep.mubr.bf16.mxu0 0
        %6107 = vmatmul.mubr.bf16.gmra.mrb[0].mxu0 %v5923
        %v6108 = vpop.f32.mrb[0].mxu0
        %v6109 = vadd.f32 0.0, %v6108
        %v6110 = vpop.f32.mrb[0].mxu0
        %v6111 = vpop.f32.mrb[0].mxu0
        %v6112 = vadd.f32 0.0, %v6111
        %v6113 = vpop.f32.mrb[0].mxu0
        %6114 = vmatprep.mubr.bf16.mxu0 0
        %6115 = vmatmul.mubr.bf16.gmra.mrb[0].mxu0 %v5924
        %v6116 = vpop.f32.mrb[0].mxu0
        %v6117 = vadd.f32 0.0, %v6116
        %v6118 = vpop.f32.mrb[0].mxu0
        %v6119 = vpop.f32.mrb[0].mxu0
        %v6120 = vadd.f32 0.0, %v6119
        %v6121 = vpop.f32.mrb[0].mxu0
        %6122 = vmatprep.mubr.bf16.mxu0 0
        %6123 = vmatmul.mubr.bf16.gmra.mrb[0].mxu0 %v5925
        %v6124 = vpop.f32.mrb[0].mxu0
        %v6125 = vadd.f32 0.0, %v6124
        %v6126 = vpop.f32.mrb[0].mxu0
        %v6127 = vpop.f32.mrb[0].mxu0
        %v6128 = vadd.f32 0.0, %v6127
        %v6129 = vpop.f32.mrb[0].mxu0
        %6130 = vmatprep.mubr.bf16.mxu0 0
        %6131 = vmatmul.mubr.bf16.gmra.mrb[0].mxu0 %v5926
        %v6132 = vpop.f32.mrb[0].mxu0
        %v6133 = vadd.f32 0.0, %v6132
        %v6134 = vpop.f32.mrb[0].mxu0
        %v6135 = vpop.f32.mrb[0].mxu0
        %v6136 = vadd.f32 0.0, %v6135
        %v6137 = vpop.f32.mrb[0].mxu0
        %6138 = vmatprep.mubr.bf16.mxu0 0
        %6139 = vmatmul.mubr.bf16.gmra.mrb[0].mxu0 %v5927
        %v6140 = vpop.f32.mrb[0].mxu0
        %v6141 = vadd.f32 0.0, %v6140
        %v6142 = vpop.f32.mrb[0].mxu0
        %v6143 = vpop.f32.mrb[0].mxu0
        %v6144 = vadd.f32 0.0, %v6143
        %v6145 = vpop.f32.mrb[0].mxu0
        %6146 = vmatprep.mubr.bf16.mxu0 0
        %6147 = vmatmul.mubr.bf16.gmra.mrb[0].mxu0 %v5928
        %v6148 = vpop.f32.mrb[0].mxu0
        %v6149 = vadd.f32 0.0, %v6148
        %v6150 = vpop.f32.mrb[0].mxu0
        %v6151 = vpop.f32.mrb[0].mxu0
        %v6152 = vadd.f32 0.0, %v6151
        %v6153 = vpop.f32.mrb[0].mxu0
        %6154 = vdwg.mxu0
        %v6155 = vadd.f32 %v5848, %v6029
        %v6156 = vadd.f32 %v5849, %v6032
        %v6157 = vadd.f32 %v5850, %v6037
        %v6158 = vadd.f32 %v5851, %v6040
        %v6159 = vadd.f32 %v5852, %v6045
        %v6160 = vadd.f32 %v5853, %v6048
        %v6161 = vadd.f32 %v5854, %v6053
        %v6162 = vadd.f32 %v5855, %v6056
        %v6163 = vadd.f32 %v5856, %v6061
        %v6164 = vadd.f32 %v5857, %v6064
        %v6165 = vadd.f32 %v5858, %v6069
        %v6166 = vadd.f32 %v5859, %v6072
        %v6167 = vadd.f32 %v5860, %v6077
        %v6168 = vadd.f32 %v5861, %v6080
        %v6169 = vadd.f32 %v5862, %v6085
        %v6170 = vadd.f32 %v5863, %v6088
        %v6171 = vadd.f32 %v5864, %v6093
        %v6172 = vadd.f32 %v5865, %v6096
        %v6173 = vadd.f32 %v5866, %v6101
        %v6174 = vadd.f32 %v5867, %v6104
        %v6175 = vadd.f32 %v5868, %v6109
        %v6176 = vadd.f32 %v5869, %v6112
        %v6177 = vadd.f32 %v5870, %v6117
        %v6178 = vadd.f32 %v5871, %v6120
        %v6179 = vadd.f32 %v5872, %v6125
        %v6180 = vadd.f32 %v5873, %v6128
        %v6181 = vadd.f32 %v5874, %v6133
        %v6182 = vadd.f32 %v5875, %v6136
        %v6183 = vadd.f32 %v5876, %v6141
        %v6184 = vadd.f32 %v5877, %v6144
        %v6185 = vadd.f32 %v5878, %v6149
        %v6186 = vadd.f32 %v5879, %v6152
        %v6187 = vld [vmem:[%s5880 + $0x1] sm:$0xff]
        %v6188 = vld [vmem:[%s5880 + $0x9] sm:$0xff]
        %v6189 = vld [vmem:[%s5880 + $0x19] sm:$0xff]
        %v6190 = vld [vmem:[%s5880 + $0x21] sm:$0xff]
        %v6191 = vld [vmem:[%s5880 + $0x31] sm:$0xff]
        %v6192 = vld [vmem:[%s5880 + $0x39] sm:$0xff]
        %v6193 = vld [vmem:[%s5880 + $0x49] sm:$0xff]
        %v6194 = vld [vmem:[%s5880 + $0x51] sm:$0xff]
        %v6195 = vld [vmem:[%s5880 + $0x61] sm:$0xff]
        %v6196 = vld [vmem:[%s5880 + $0x69] sm:$0xff]
        %v6197 = vld [vmem:[%s5880 + $0x79] sm:$0xff]
        %v6198 = vld [vmem:[%s5880 + $0x81] sm:$0xff]
        %v6199 = vld [vmem:[%s5880 + $0x91] sm:$0xff]
        %v6200 = vld [vmem:[%s5880 + $0x99] sm:$0xff]
        %v6201 = vld [vmem:[%s5880 + $0xa9] sm:$0xff]
        %v6202 = vld [vmem:[%s5880 + $0xb1] sm:$0xff]
        %v6203 = vld [vmem:[%s5880 + $0xc1] sm:$0xff]
        %v6204 = vld [vmem:[%s5880 + $0xc9] sm:$0xff]
        %v6205 = vld [vmem:[%s5880 + $0xd9] sm:$0xff]
        %v6206 = vld [vmem:[%s5880 + $0xe1] sm:$0xff]
        %v6207 = vld [vmem:[%s5880 + $0xf1] sm:$0xff]
        %v6208 = vld [vmem:[%s5880 + $0xf9] sm:$0xff]
        %v6209 = vld [vmem:[%s5880 + $0x109] sm:$0xff]
        %v6210 = vld [vmem:[%s5880 + $0x111] sm:$0xff]
        %v6211 = vld [vmem:[%s5880 + $0x121] sm:$0xff]
        %v6212 = vld [vmem:[%s5880 + $0x129] sm:$0xff]
        %v6213 = vld [vmem:[%s5880 + $0x139] sm:$0xff]
        %v6214 = vld [vmem:[%s5880 + $0x141] sm:$0xff]
        %v6215 = vld [vmem:[%s5880 + $0x151] sm:$0xff]
        %v6216 = vld [vmem:[%s5880 + $0x159] sm:$0xff]
        %v6217 = vld [vmem:[%s5880 + $0x169] sm:$0xff]
        %v6218 = vld [vmem:[%s5880 + $0x171] sm:$0xff]
        %v6219 = vpack.c.bf16 %v6188, %v6187
        %v6220 = vpack.c.bf16 %v6190, %v6189
        %v6221 = vpack.c.bf16 %v6192, %v6191
        %v6222 = vpack.c.bf16 %v6194, %v6193
        %v6223 = vpack.c.bf16 %v6196, %v6195
        %v6224 = vpack.c.bf16 %v6198, %v6197
        %v6225 = vpack.c.bf16 %v6200, %v6199
        %v6226 = vpack.c.bf16 %v6202, %v6201
        %v6227 = vpack.c.bf16 %v6204, %v6203
        %v6228 = vpack.c.bf16 %v6206, %v6205
        %v6229 = vpack.c.bf16 %v6208, %v6207
        %v6230 = vpack.c.bf16 %v6210, %v6209
        %v6231 = vpack.c.bf16 %v6212, %v6211
        %v6232 = vpack.c.bf16 %v6214, %v6213
        %v6233 = vpack.c.bf16 %v6216, %v6215
        %v6234 = vpack.c.bf16 %v6218, %v6217
        %s6235 = scalar_lea.vmem [#allocation4], 448
        %v6236 = vld [vmem:[%s6235] sm:$0xf]
        %v6237 = vld [vmem:[%s6235 + $0x4] sm:$0xf]
        %v6238 = vld [vmem:[%s6235 + $0x8] sm:$0xf]
        %v6239 = vld [vmem:[%s6235 + $0xc] sm:$0xf]
        %v6240 = vld [vmem:[%s6235 + $0x10] sm:$0xf]
        %v6241 = vld [vmem:[%s6235 + $0x14] sm:$0xf]
        %v6242 = vld [vmem:[%s6235 + $0x18] sm:$0xf]
        %v6243 = vld [vmem:[%s6235 + $0x1c] sm:$0xf]
        %v6244 = vld [vmem:[%s6235 + $0x20] sm:$0xf]
        %v6245 = vld [vmem:[%s6235 + $0x24] sm:$0xf]
        %v6246 = vld [vmem:[%s6235 + $0x28] sm:$0xf]
        %v6247 = vld [vmem:[%s6235 + $0x2c] sm:$0xf]
        %v6248 = vld [vmem:[%s6235 + $0x30] sm:$0xf]
        %v6249 = vld [vmem:[%s6235 + $0x34] sm:$0xf]
        %v6250 = vld [vmem:[%s6235 + $0x38] sm:$0xf]
        %v6251 = vld [vmem:[%s6235 + $0x3c] sm:$0xf]
        %v6268 = vunpack.c.l.b16 %v6236
        %v6269 = vunpack.c.l.b16 %v6237
        %v6270 = vunpack.c.l.b16 %v6238
        %v6271 = vunpack.c.l.b16 %v6239
        %v6272 = vunpack.c.l.b16 %v6240
        %v6273 = vunpack.c.l.b16 %v6241
        %v6274 = vunpack.c.l.b16 %v6242
        %v6275 = vunpack.c.l.b16 %v6243
        %v6276 = vunpack.c.l.b16 %v6244
        %v6277 = vunpack.c.l.b16 %v6245
        %v6278 = vunpack.c.l.b16 %v6246
        %v6279 = vunpack.c.l.b16 %v6247
        %v6280 = vunpack.c.l.b16 %v6248
        %v6281 = vunpack.c.l.b16 %v6249
        %v6282 = vunpack.c.l.b16 %v6250
        %v6283 = vunpack.c.l.b16 %v6251
        %v6284 = vpack.c.b16 %v6269, %v6268
        %v6285 = vpack.c.b16 %v6271, %v6270
        %v6286 = vpack.c.b16 %v6273, %v6272
        %v6287 = vpack.c.b16 %v6275, %v6274
        %v6288 = vpack.c.b16 %v6277, %v6276
        %v6289 = vpack.c.b16 %v6279, %v6278
        %v6290 = vpack.c.b16 %v6281, %v6280
        %v6291 = vpack.c.b16 %v6283, %v6282
        %6300 = vmatprep.subr.bf16.mxu0 0
        %6301 = vmatpush1.bf16.msra.mxu0 %v6284
        %6302 = vmatprep.subr.bf16.mxu0 0
        %6303 = vmatpush1.bf16.msra.mxu0 %v6285
        %6304 = vmatprep.subr.bf16.mxu0 0
        %6305 = vmatpush1.bf16.msra.mxu0 %v6286
        %6306 = vmatprep.subr.bf16.mxu0 0
        %6307 = vmatpush1.bf16.msra.mxu0 %v6287
        %6308 = vmatprep.subr.bf16.mxu0 0
        %6309 = vmatpush1.bf16.msra.mxu0 %v6288
        %6310 = vmatprep.subr.bf16.mxu0 0
        %6311 = vmatpush1.bf16.msra.mxu0 %v6289
        %6312 = vmatprep.subr.bf16.mxu0 0
        %6313 = vmatpush1.bf16.msra.mxu0 %v6290
        %6314 = vmatprep.subr.bf16.mxu0 0
        %6315 = vmatpush1.bf16.msra.mxu0 %v6291
        %6316 = vmatprep.subr.bf16.mxu0 0
        %6317 = vmatpush1.bf16.msra.mxu0 0
        %6318 = vmatprep.subr.bf16.mxu0 0
        %6319 = vmatpush1.bf16.msra.mxu0 0
        %6320 = vmatprep.subr.bf16.mxu0 0
        %6321 = vmatpush1.bf16.msra.mxu0 0
        %6322 = vmatprep.subr.bf16.mxu0 0
        %6323 = vmatpush1.bf16.msra.mxu0 0
        %6324 = vmatprep.subr.bf16.mxu0 0
        %6325 = vmatpush1.bf16.msra.mxu0 0
        %6326 = vmatprep.subr.bf16.mxu0 0
        %6327 = vmatpush1.bf16.msra.mxu0 0
        %6328 = vmatprep.subr.bf16.mxu0 0
        %6329 = vmatpush1.bf16.msra.mxu0 0
        %6330 = vmatprep.subr.bf16.mxu0 0
        %6331 = vmatpush1.bf16.msra.mxu0 0
        %6332 = vmatprep.mubr.bf16.mxu0 0
        %6333 = vmatmul.mubr.bf16.gmra.mrb[0].mxu0 %v6219
        %v6334 = vpop.f32.mrb[0].mxu0
        %v6335 = vadd.f32 0.0, %v6334
        %v6336 = vpop.f32.mrb[0].mxu0
        %v6337 = vpop.f32.mrb[0].mxu0
        %v6338 = vadd.f32 0.0, %v6337
        %v6339 = vpop.f32.mrb[0].mxu0
        %6340 = vmatprep.mubr.bf16.mxu0 0
        %6341 = vmatmul.mubr.bf16.gmra.mrb[0].mxu0 %v6220
        %v6342 = vpop.f32.mrb[0].mxu0
        %v6343 = vadd.f32 0.0, %v6342
        %v6344 = vpop.f32.mrb[0].mxu0
        %v6345 = vpop.f32.mrb[0].mxu0
        %v6346 = vadd.f32 0.0, %v6345
        %v6347 = vpop.f32.mrb[0].mxu0
        %6348 = vmatprep.mubr.bf16.mxu0 0
        %6349 = vmatmul.mubr.bf16.gmra.mrb[0].mxu0 %v6221
        %v6350 = vpop.f32.mrb[0].mxu0
        %v6351 = vadd.f32 0.0, %v6350
        %v6352 = vpop.f32.mrb[0].mxu0
        %v6353 = vpop.f32.mrb[0].mxu0
        %v6354 = vadd.f32 0.0, %v6353
        %v6355 = vpop.f32.mrb[0].mxu0
        %6356 = vmatprep.mubr.bf16.mxu0 0
        %6357 = vmatmul.mubr.bf16.gmra.mrb[0].mxu0 %v6222
        %v6358 = vpop.f32.mrb[0].mxu0
        %v6359 = vadd.f32 0.0, %v6358
        %v6360 = vpop.f32.mrb[0].mxu0
        %v6361 = vpop.f32.mrb[0].mxu0
        %v6362 = vadd.f32 0.0, %v6361
        %v6363 = vpop.f32.mrb[0].mxu0
        %6364 = vmatprep.mubr.bf16.mxu0 0
        %6365 = vmatmul.mubr.bf16.gmra.mrb[0].mxu0 %v6223
        %v6366 = vpop.f32.mrb[0].mxu0
        %v6367 = vadd.f32 0.0, %v6366
        %v6368 = vpop.f32.mrb[0].mxu0
        %v6369 = vpop.f32.mrb[0].mxu0
        %v6370 = vadd.f32 0.0, %v6369
        %v6371 = vpop.f32.mrb[0].mxu0
        %6372 = vmatprep.mubr.bf16.mxu0 0
        %6373 = vmatmul.mubr.bf16.gmra.mrb[0].mxu0 %v6224
        %v6374 = vpop.f32.mrb[0].mxu0
        %v6375 = vadd.f32 0.0, %v6374
        %v6376 = vpop.f32.mrb[0].mxu0
        %v6377 = vpop.f32.mrb[0].mxu0
        %v6378 = vadd.f32 0.0, %v6377
        %v6379 = vpop.f32.mrb[0].mxu0
        %6380 = vmatprep.mubr.bf16.mxu0 0
        %6381 = vmatmul.mubr.bf16.gmra.mrb[0].mxu0 %v6225
        %v6382 = vpop.f32.mrb[0].mxu0
        %v6383 = vadd.f32 0.0, %v6382
        %v6384 = vpop.f32.mrb[0].mxu0
        %v6385 = vpop.f32.mrb[0].mxu0
        %v6386 = vadd.f32 0.0, %v6385
        %v6387 = vpop.f32.mrb[0].mxu0
        %6388 = vmatprep.mubr.bf16.mxu0 0
        %6389 = vmatmul.mubr.bf16.gmra.mrb[0].mxu0 %v6226
        %v6390 = vpop.f32.mrb[0].mxu0
        %v6391 = vadd.f32 0.0, %v6390
        %v6392 = vpop.f32.mrb[0].mxu0
        %v6393 = vpop.f32.mrb[0].mxu0
        %v6394 = vadd.f32 0.0, %v6393
        %v6395 = vpop.f32.mrb[0].mxu0
        %6396 = vmatprep.mubr.bf16.mxu0 0
        %6397 = vmatmul.mubr.bf16.gmra.mrb[0].mxu0 %v6227
        %v6398 = vpop.f32.mrb[0].mxu0
        %v6399 = vadd.f32 0.0, %v6398
        %v6400 = vpop.f32.mrb[0].mxu0
        %v6401 = vpop.f32.mrb[0].mxu0
        %v6402 = vadd.f32 0.0, %v6401
        %v6403 = vpop.f32.mrb[0].mxu0
        %6404 = vmatprep.mubr.bf16.mxu0 0
        %6405 = vmatmul.mubr.bf16.gmra.mrb[0].mxu0 %v6228
        %v6406 = vpop.f32.mrb[0].mxu0
        %v6407 = vadd.f32 0.0, %v6406
        %v6408 = vpop.f32.mrb[0].mxu0
        %v6409 = vpop.f32.mrb[0].mxu0
        %v6410 = vadd.f32 0.0, %v6409
        %v6411 = vpop.f32.mrb[0].mxu0
        %6412 = vmatprep.mubr.bf16.mxu0 0
        %6413 = vmatmul.mubr.bf16.gmra.mrb[0].mxu0 %v6229
        %v6414 = vpop.f32.mrb[0].mxu0
        %v6415 = vadd.f32 0.0, %v6414
        %v6416 = vpop.f32.mrb[0].mxu0
        %v6417 = vpop.f32.mrb[0].mxu0
        %v6418 = vadd.f32 0.0, %v6417
        %v6419 = vpop.f32.mrb[0].mxu0
        %6420 = vmatprep.mubr.bf16.mxu0 0
        %6421 = vmatmul.mubr.bf16.gmra.mrb[0].mxu0 %v6230
        %v6422 = vpop.f32.mrb[0].mxu0
        %v6423 = vadd.f32 0.0, %v6422
        %v6424 = vpop.f32.mrb[0].mxu0
        %v6425 = vpop.f32.mrb[0].mxu0
        %v6426 = vadd.f32 0.0, %v6425
        %v6427 = vpop.f32.mrb[0].mxu0
        %6428 = vmatprep.mubr.bf16.mxu0 0
        %6429 = vmatmul.mubr.bf16.gmra.mrb[0].mxu0 %v6231
        %v6430 = vpop.f32.mrb[0].mxu0
        %v6431 = vadd.f32 0.0, %v6430
        %v6432 = vpop.f32.mrb[0].mxu0
        %v6433 = vpop.f32.mrb[0].mxu0
        %v6434 = vadd.f32 0.0, %v6433
        %v6435 = vpop.f32.mrb[0].mxu0
        %6436 = vmatprep.mubr.bf16.mxu0 0
        %6437 = vmatmul.mubr.bf16.gmra.mrb[0].mxu0 %v6232
        %v6438 = vpop.f32.mrb[0].mxu0
        %v6439 = vadd.f32 0.0, %v6438
        %v6440 = vpop.f32.mrb[0].mxu0
        %v6441 = vpop.f32.mrb[0].mxu0
        %v6442 = vadd.f32 0.0, %v6441
        %v6443 = vpop.f32.mrb[0].mxu0
        %6444 = vmatprep.mubr.bf16.mxu0 0
        %6445 = vmatmul.mubr.bf16.gmra.mrb[0].mxu0 %v6233
        %v6446 = vpop.f32.mrb[0].mxu0
        %v6447 = vadd.f32 0.0, %v6446
        %v6448 = vpop.f32.mrb[0].mxu0
        %v6449 = vpop.f32.mrb[0].mxu0
        %v6450 = vadd.f32 0.0, %v6449
        %v6451 = vpop.f32.mrb[0].mxu0
        %6452 = vmatprep.mubr.bf16.mxu0 0
        %6453 = vmatmul.mubr.bf16.gmra.mrb[0].mxu0 %v6234
        %v6454 = vpop.f32.mrb[0].mxu0
        %v6455 = vadd.f32 0.0, %v6454
        %v6456 = vpop.f32.mrb[0].mxu0
        %v6457 = vpop.f32.mrb[0].mxu0
        %v6458 = vadd.f32 0.0, %v6457
        %v6459 = vpop.f32.mrb[0].mxu0
        %6460 = vdwg.mxu0
        %v6461 = vadd.f32 %v6155, %v6335
        %v6462 = vadd.f32 %v6156, %v6338
        %v6463 = vadd.f32 %v6157, %v6343
        %v6464 = vadd.f32 %v6158, %v6346
        %v6465 = vadd.f32 %v6159, %v6351
        %v6466 = vadd.f32 %v6160, %v6354
        %v6467 = vadd.f32 %v6161, %v6359
        %v6468 = vadd.f32 %v6162, %v6362
        %v6469 = vadd.f32 %v6163, %v6367
        %v6470 = vadd.f32 %v6164, %v6370
        %v6471 = vadd.f32 %v6165, %v6375
        %v6472 = vadd.f32 %v6166, %v6378
        %v6473 = vadd.f32 %v6167, %v6383
        %v6474 = vadd.f32 %v6168, %v6386
        %v6475 = vadd.f32 %v6169, %v6391
        %v6476 = vadd.f32 %v6170, %v6394
        %v6477 = vadd.f32 %v6171, %v6399
        %v6478 = vadd.f32 %v6172, %v6402
        %v6479 = vadd.f32 %v6173, %v6407
        %v6480 = vadd.f32 %v6174, %v6410
        %v6481 = vadd.f32 %v6175, %v6415
        %v6482 = vadd.f32 %v6176, %v6418
        %v6483 = vadd.f32 %v6177, %v6423
        %v6484 = vadd.f32 %v6178, %v6426
        %v6485 = vadd.f32 %v6179, %v6431
        %v6486 = vadd.f32 %v6180, %v6434
        %v6487 = vadd.f32 %v6181, %v6439
        %v6488 = vadd.f32 %v6182, %v6442
        %v6489 = vadd.f32 %v6183, %v6447
        %v6490 = vadd.f32 %v6184, %v6450
        %v6491 = vadd.f32 %v6185, %v6455
        %v6492 = vadd.f32 %v6186, %v6458
        %v6493 = vld [vmem:[%s5880 + $0x2] sm:$0xff]
        %v6494 = vld [vmem:[%s5880 + $0xa] sm:$0xff]
        %v6495 = vld [vmem:[%s5880 + $0x1a] sm:$0xff]
        %v6496 = vld [vmem:[%s5880 + $0x22] sm:$0xff]
        %v6497 = vld [vmem:[%s5880 + $0x32] sm:$0xff]
        %v6498 = vld [vmem:[%s5880 + $0x3a] sm:$0xff]
        %v6499 = vld [vmem:[%s5880 + $0x4a] sm:$0xff]
        %v6500 = vld [vmem:[%s5880 + $0x52] sm:$0xff]
        %v6501 = vld [vmem:[%s5880 + $0x62] sm:$0xff]
        %v6502 = vld [vmem:[%s5880 + $0x6a] sm:$0xff]
        %v6503 = vld [vmem:[%s5880 + $0x7a] sm:$0xff]
        %v6504 = vld [vmem:[%s5880 + $0x82] sm:$0xff]
        %v6505 = vld [vmem:[%s5880 + $0x92] sm:$0xff]
        %v6506 = vld [vmem:[%s5880 + $0x9a] sm:$0xff]
        %v6507 = vld [vmem:[%s5880 + $0xaa] sm:$0xff]
        %v6508 = vld [vmem:[%s5880 + $0xb2] sm:$0xff]
        %v6509 = vld [vmem:[%s5880 + $0xc2] sm:$0xff]
        %v6510 = vld [vmem:[%s5880 + $0xca] sm:$0xff]
        %v6511 = vld [vmem:[%s5880 + $0xda] sm:$0xff]
        %v6512 = vld [vmem:[%s5880 + $0xe2] sm:$0xff]
        %v6513 = vld [vmem:[%s5880 + $0xf2] sm:$0xff]
        %v6514 = vld [vmem:[%s5880 + $0xfa] sm:$0xff]
        %v6515 = vld [vmem:[%s5880 + $0x10a] sm:$0xff]
        %v6516 = vld [vmem:[%s5880 + $0x112] sm:$0xff]
        %v6517 = vld [vmem:[%s5880 + $0x122] sm:$0xff]
        %v6518 = vld [vmem:[%s5880 + $0x12a] sm:$0xff]
        %v6519 = vld [vmem:[%s5880 + $0x13a] sm:$0xff]
        %v6520 = vld [vmem:[%s5880 + $0x142] sm:$0xff]
        %v6521 = vld [vmem:[%s5880 + $0x152] sm:$0xff]
        %v6522 = vld [vmem:[%s5880 + $0x15a] sm:$0xff]
        %v6523 = vld [vmem:[%s5880 + $0x16a] sm:$0xff]
        %v6524 = vld [vmem:[%s5880 + $0x172] sm:$0xff]
        %v6525 = vpack.c.bf16 %v6494, %v6493
        %v6526 = vpack.c.bf16 %v6496, %v6495
        %v6527 = vpack.c.bf16 %v6498, %v6497
        %v6528 = vpack.c.bf16 %v6500, %v6499
        %v6529 = vpack.c.bf16 %v6502, %v6501
        %v6530 = vpack.c.bf16 %v6504, %v6503
        %v6531 = vpack.c.bf16 %v6506, %v6505
        %v6532 = vpack.c.bf16 %v6508, %v6507
        %v6533 = vpack.c.bf16 %v6510, %v6509
        %v6534 = vpack.c.bf16 %v6512, %v6511
        %v6535 = vpack.c.bf16 %v6514, %v6513
        %v6536 = vpack.c.bf16 %v6516, %v6515
        %v6537 = vpack.c.bf16 %v6518, %v6517
        %v6538 = vpack.c.bf16 %v6520, %v6519
        %v6539 = vpack.c.bf16 %v6522, %v6521
        %v6540 = vpack.c.bf16 %v6524, %v6523
        %s6541 = scalar_lea.vmem [#allocation4], 512
        %v6542 = vld [vmem:[%s6541] sm:$0xf]
        %v6543 = vld [vmem:[%s6541 + $0x4] sm:$0xf]
        %v6544 = vld [vmem:[%s6541 + $0x8] sm:$0xf]
        %v6545 = vld [vmem:[%s6541 + $0xc] sm:$0xf]
        %v6546 = vld [vmem:[%s6541 + $0x10] sm:$0xf]
        %v6547 = vld [vmem:[%s6541 + $0x14] sm:$0xf]
        %v6548 = vld [vmem:[%s6541 + $0x18] sm:$0xf]
        %v6549 = vld [vmem:[%s6541 + $0x1c] sm:$0xf]
        %v6550 = vld [vmem:[%s6541 + $0x20] sm:$0xf]
        %v6551 = vld [vmem:[%s6541 + $0x24] sm:$0xf]
        %v6552 = vld [vmem:[%s6541 + $0x28] sm:$0xf]
        %v6553 = vld [vmem:[%s6541 + $0x2c] sm:$0xf]
        %v6554 = vld [vmem:[%s6541 + $0x30] sm:$0xf]
        %v6555 = vld [vmem:[%s6541 + $0x34] sm:$0xf]
        %v6556 = vld [vmem:[%s6541 + $0x38] sm:$0xf]
        %v6557 = vld [vmem:[%s6541 + $0x3c] sm:$0xf]
        %v6574 = vunpack.c.l.b16 %v6542
        %v6575 = vunpack.c.l.b16 %v6543
        %v6576 = vunpack.c.l.b16 %v6544
        %v6577 = vunpack.c.l.b16 %v6545
        %v6578 = vunpack.c.l.b16 %v6546
        %v6579 = vunpack.c.l.b16 %v6547
        %v6580 = vunpack.c.l.b16 %v6548
        %v6581 = vunpack.c.l.b16 %v6549
        %v6582 = vunpack.c.l.b16 %v6550
        %v6583 = vunpack.c.l.b16 %v6551
        %v6584 = vunpack.c.l.b16 %v6552
        %v6585 = vunpack.c.l.b16 %v6553
        %v6586 = vunpack.c.l.b16 %v6554
        %v6587 = vunpack.c.l.b16 %v6555
        %v6588 = vunpack.c.l.b16 %v6556
        %v6589 = vunpack.c.l.b16 %v6557
        %v6590 = vpack.c.b16 %v6575, %v6574
        %v6591 = vpack.c.b16 %v6577, %v6576
        %v6592 = vpack.c.b16 %v6579, %v6578
        %v6593 = vpack.c.b16 %v6581, %v6580
        %v6594 = vpack.c.b16 %v6583, %v6582
        %v6595 = vpack.c.b16 %v6585, %v6584
        %v6596 = vpack.c.b16 %v6587, %v6586
        %v6597 = vpack.c.b16 %v6589, %v6588
        %6606 = vmatprep.subr.bf16.mxu0 0
        %6607 = vmatpush1.bf16.msra.mxu0 %v6590
        %6608 = vmatprep.subr.bf16.mxu0 0
        %6609 = vmatpush1.bf16.msra.mxu0 %v6591
        %6610 = vmatprep.subr.bf16.mxu0 0
        %6611 = vmatpush1.bf16.msra.mxu0 %v6592
        %6612 = vmatprep.subr.bf16.mxu0 0
        %6613 = vmatpush1.bf16.msra.mxu0 %v6593
        %6614 = vmatprep.subr.bf16.mxu0 0
        %6615 = vmatpush1.bf16.msra.mxu0 %v6594
        %6616 = vmatprep.subr.bf16.mxu0 0
        %6617 = vmatpush1.bf16.msra.mxu0 %v6595
        %6618 = vmatprep.subr.bf16.mxu0 0
        %6619 = vmatpush1.bf16.msra.mxu0 %v6596
        %6620 = vmatprep.subr.bf16.mxu0 0
        %6621 = vmatpush1.bf16.msra.mxu0 %v6597
        %6622 = vmatprep.subr.bf16.mxu0 0
        %6623 = vmatpush1.bf16.msra.mxu0 0
        %6624 = vmatprep.subr.bf16.mxu0 0
        %6625 = vmatpush1.bf16.msra.mxu0 0
        %6626 = vmatprep.subr.bf16.mxu0 0
        %6627 = vmatpush1.bf16.msra.mxu0 0
        %6628 = vmatprep.subr.bf16.mxu0 0
        %6629 = vmatpush1.bf16.msra.mxu0 0
        %6630 = vmatprep.subr.bf16.mxu0 0
        %6631 = vmatpush1.bf16.msra.mxu0 0
        %6632 = vmatprep.subr.bf16.mxu0 0
        %6633 = vmatpush1.bf16.msra.mxu0 0
        %6634 = vmatprep.subr.bf16.mxu0 0
        %6635 = vmatpush1.bf16.msra.mxu0 0
        %6636 = vmatprep.subr.bf16.mxu0 0
        %6637 = vmatpush1.bf16.msra.mxu0 0
        %6638 = vmatprep.mubr.bf16.mxu0 0
        %6639 = vmatmul.mubr.bf16.gmra.mrb[0].mxu0 %v6525
        %v6640 = vpop.f32.mrb[0].mxu0
        %v6641 = vadd.f32 0.0, %v6640
        %v6642 = vpop.f32.mrb[0].mxu0
        %v6643 = vpop.f32.mrb[0].mxu0
        %v6644 = vadd.f32 0.0, %v6643
        %v6645 = vpop.f32.mrb[0].mxu0
        %6646 = vmatprep.mubr.bf16.mxu0 0
        %6647 = vmatmul.mubr.bf16.gmra.mrb[0].mxu0 %v6526
        %v6648 = vpop.f32.mrb[0].mxu0
        %v6649 = vadd.f32 0.0, %v6648
        %v6650 = vpop.f32.mrb[0].mxu0
        %v6651 = vpop.f32.mrb[0].mxu0
        %v6652 = vadd.f32 0.0, %v6651
        %v6653 = vpop.f32.mrb[0].mxu0
        %6654 = vmatprep.mubr.bf16.mxu0 0
        %6655 = vmatmul.mubr.bf16.gmra.mrb[0].mxu0 %v6527
        %v6656 = vpop.f32.mrb[0].mxu0
        %v6657 = vadd.f32 0.0, %v6656
        %v6658 = vpop.f32.mrb[0].mxu0
        %v6659 = vpop.f32.mrb[0].mxu0
        %v6660 = vadd.f32 0.0, %v6659
        %v6661 = vpop.f32.mrb[0].mxu0
        %6662 = vmatprep.mubr.bf16.mxu0 0
        %6663 = vmatmul.mubr.bf16.gmra.mrb[0].mxu0 %v6528
        %v6664 = vpop.f32.mrb[0].mxu0
        %v6665 = vadd.f32 0.0, %v6664
        %v6666 = vpop.f32.mrb[0].mxu0
        %v6667 = vpop.f32.mrb[0].mxu0
        %v6668 = vadd.f32 0.0, %v6667
        %v6669 = vpop.f32.mrb[0].mxu0
        %6670 = vmatprep.mubr.bf16.mxu0 0
        %6671 = vmatmul.mubr.bf16.gmra.mrb[0].mxu0 %v6529
        %v6672 = vpop.f32.mrb[0].mxu0
        %v6673 = vadd.f32 0.0, %v6672
        %v6674 = vpop.f32.mrb[0].mxu0
        %v6675 = vpop.f32.mrb[0].mxu0
        %v6676 = vadd.f32 0.0, %v6675
        %v6677 = vpop.f32.mrb[0].mxu0
        %6678 = vmatprep.mubr.bf16.mxu0 0
        %6679 = vmatmul.mubr.bf16.gmra.mrb[0].mxu0 %v6530
        %v6680 = vpop.f32.mrb[0].mxu0
        %v6681 = vadd.f32 0.0, %v6680
        %v6682 = vpop.f32.mrb[0].mxu0
        %v6683 = vpop.f32.mrb[0].mxu0
        %v6684 = vadd.f32 0.0, %v6683
        %v6685 = vpop.f32.mrb[0].mxu0
        %6686 = vmatprep.mubr.bf16.mxu0 0
        %6687 = vmatmul.mubr.bf16.gmra.mrb[0].mxu0 %v6531
        %v6688 = vpop.f32.mrb[0].mxu0
        %v6689 = vadd.f32 0.0, %v6688
        %v6690 = vpop.f32.mrb[0].mxu0
        %v6691 = vpop.f32.mrb[0].mxu0
        %v6692 = vadd.f32 0.0, %v6691
        %v6693 = vpop.f32.mrb[0].mxu0
        %6694 = vmatprep.mubr.bf16.mxu0 0
        %6695 = vmatmul.mubr.bf16.gmra.mrb[0].mxu0 %v6532
        %v6696 = vpop.f32.mrb[0].mxu0
        %v6697 = vadd.f32 0.0, %v6696
        %v6698 = vpop.f32.mrb[0].mxu0
        %v6699 = vpop.f32.mrb[0].mxu0
        %v6700 = vadd.f32 0.0, %v6699
        %v6701 = vpop.f32.mrb[0].mxu0
        %6702 = vmatprep.mubr.bf16.mxu0 0
        %6703 = vmatmul.mubr.bf16.gmra.mrb[0].mxu0 %v6533
        %v6704 = vpop.f32.mrb[0].mxu0
        %v6705 = vadd.f32 0.0, %v6704
        %v6706 = vpop.f32.mrb[0].mxu0
        %v6707 = vpop.f32.mrb[0].mxu0
        %v6708 = vadd.f32 0.0, %v6707
        %v6709 = vpop.f32.mrb[0].mxu0
        %6710 = vmatprep.mubr.bf16.mxu0 0
        %6711 = vmatmul.mubr.bf16.gmra.mrb[0].mxu0 %v6534
        %v6712 = vpop.f32.mrb[0].mxu0
        %v6713 = vadd.f32 0.0, %v6712
        %v6714 = vpop.f32.mrb[0].mxu0
        %v6715 = vpop.f32.mrb[0].mxu0
        %v6716 = vadd.f32 0.0, %v6715
        %v6717 = vpop.f32.mrb[0].mxu0
        %6718 = vmatprep.mubr.bf16.mxu0 0
        %6719 = vmatmul.mubr.bf16.gmra.mrb[0].mxu0 %v6535
        %v6720 = vpop.f32.mrb[0].mxu0
        %v6721 = vadd.f32 0.0, %v6720
        %v6722 = vpop.f32.mrb[0].mxu0
        %v6723 = vpop.f32.mrb[0].mxu0
        %v6724 = vadd.f32 0.0, %v6723
        %v6725 = vpop.f32.mrb[0].mxu0
        %6726 = vmatprep.mubr.bf16.mxu0 0
        %6727 = vmatmul.mubr.bf16.gmra.mrb[0].mxu0 %v6536
        %v6728 = vpop.f32.mrb[0].mxu0
        %v6729 = vadd.f32 0.0, %v6728
        %v6730 = vpop.f32.mrb[0].mxu0
        %v6731 = vpop.f32.mrb[0].mxu0
        %v6732 = vadd.f32 0.0, %v6731
        %v6733 = vpop.f32.mrb[0].mxu0
        %6734 = vmatprep.mubr.bf16.mxu0 0
        %6735 = vmatmul.mubr.bf16.gmra.mrb[0].mxu0 %v6537
        %v6736 = vpop.f32.mrb[0].mxu0
        %v6737 = vadd.f32 0.0, %v6736
        %v6738 = vpop.f32.mrb[0].mxu0
        %v6739 = vpop.f32.mrb[0].mxu0
        %v6740 = vadd.f32 0.0, %v6739
        %v6741 = vpop.f32.mrb[0].mxu0
        %6742 = vmatprep.mubr.bf16.mxu0 0
        %6743 = vmatmul.mubr.bf16.gmra.mrb[0].mxu0 %v6538
        %v6744 = vpop.f32.mrb[0].mxu0
        %v6745 = vadd.f32 0.0, %v6744
        %v6746 = vpop.f32.mrb[0].mxu0
        %v6747 = vpop.f32.mrb[0].mxu0
        %v6748 = vadd.f32 0.0, %v6747
        %v6749 = vpop.f32.mrb[0].mxu0
        %6750 = vmatprep.mubr.bf16.mxu0 0
        %6751 = vmatmul.mubr.bf16.gmra.mrb[0].mxu0 %v6539
        %v6752 = vpop.f32.mrb[0].mxu0
        %v6753 = vadd.f32 0.0, %v6752
        %v6754 = vpop.f32.mrb[0].mxu0
        %v6755 = vpop.f32.mrb[0].mxu0
        %v6756 = vadd.f32 0.0, %v6755
        %v6757 = vpop.f32.mrb[0].mxu0
        %6758 = vmatprep.mubr.bf16.mxu0 0
        %6759 = vmatmul.mubr.bf16.gmra.mrb[0].mxu0 %v6540
        %v6760 = vpop.f32.mrb[0].mxu0
        %v6761 = vadd.f32 0.0, %v6760
        %v6762 = vpop.f32.mrb[0].mxu0
        %v6763 = vpop.f32.mrb[0].mxu0
        %v6764 = vadd.f32 0.0, %v6763
        %v6765 = vpop.f32.mrb[0].mxu0
        %6766 = vdwg.mxu0
        %v6767 = vadd.f32 %v6461, %v6641
        %v6768 = vadd.f32 %v6462, %v6644
        %v6769 = vadd.f32 %v6463, %v6649
        %v6770 = vadd.f32 %v6464, %v6652
        %v6771 = vadd.f32 %v6465, %v6657
        %v6772 = vadd.f32 %v6466, %v6660
        %v6773 = vadd.f32 %v6467, %v6665
        %v6774 = vadd.f32 %v6468, %v6668
        %v6775 = vadd.f32 %v6469, %v6673
        %v6776 = vadd.f32 %v6470, %v6676
        %v6777 = vadd.f32 %v6471, %v6681
        %v6778 = vadd.f32 %v6472, %v6684
        %v6779 = vadd.f32 %v6473, %v6689
        %v6780 = vadd.f32 %v6474, %v6692
        %v6781 = vadd.f32 %v6475, %v6697
        %v6782 = vadd.f32 %v6476, %v6700
        %v6783 = vadd.f32 %v6477, %v6705
        %v6784 = vadd.f32 %v6478, %v6708
        %v6785 = vadd.f32 %v6479, %v6713
        %v6786 = vadd.f32 %v6480, %v6716
        %v6787 = vadd.f32 %v6481, %v6721
        %v6788 = vadd.f32 %v6482, %v6724
        %v6789 = vadd.f32 %v6483, %v6729
        %v6790 = vadd.f32 %v6484, %v6732
        %v6791 = vadd.f32 %v6485, %v6737
        %v6792 = vadd.f32 %v6486, %v6740
        %v6793 = vadd.f32 %v6487, %v6745
        %v6794 = vadd.f32 %v6488, %v6748
        %v6795 = vadd.f32 %v6489, %v6753
        %v6796 = vadd.f32 %v6490, %v6756
        %v6797 = vadd.f32 %v6491, %v6761
        %v6798 = vadd.f32 %v6492, %v6764
        %v6799 = vld [vmem:[%s8] sm:$0x1]
        %v6801 = vlaneseq
        %v6802 = vshrl.u32 %v6801, 7
        %v6803 = vsub.s32 0, %v6802
        %v6804 = vrot.slane %v6799, %v6803
        %v6806 = vmul.f32 %v6767, %v6804
        %v6807 = vmul.f32 %v6768, %v6804
        %v6808 = vmul.f32 %v6769, %v6804
        %v6809 = vmul.f32 %v6770, %v6804
        %v6810 = vmul.f32 %v6771, %v6804
        %v6811 = vmul.f32 %v6772, %v6804
        %v6812 = vmul.f32 %v6773, %v6804
        %v6813 = vmul.f32 %v6774, %v6804
        %v6814 = vmul.f32 %v6775, %v6804
        %v6815 = vmul.f32 %v6776, %v6804
        %v6816 = vmul.f32 %v6777, %v6804
        %v6817 = vmul.f32 %v6778, %v6804
        %v6818 = vmul.f32 %v6779, %v6804
        %v6819 = vmul.f32 %v6780, %v6804
        %v6820 = vmul.f32 %v6781, %v6804
        %v6821 = vmul.f32 %v6782, %v6804
        %v6822 = vmul.f32 %v6783, %v6804
        %v6823 = vmul.f32 %v6784, %v6804
        %v6824 = vmul.f32 %v6785, %v6804
        %v6825 = vmul.f32 %v6786, %v6804
        %v6826 = vmul.f32 %v6787, %v6804
        %v6827 = vmul.f32 %v6788, %v6804
        %v6828 = vmul.f32 %v6789, %v6804
        %v6829 = vmul.f32 %v6790, %v6804
        %v6830 = vmul.f32 %v6791, %v6804
        %v6831 = vmul.f32 %v6792, %v6804
        %v6832 = vmul.f32 %v6793, %v6804
        %v6833 = vmul.f32 %v6794, %v6804
        %v6834 = vmul.f32 %v6795, %v6804
        %v6835 = vmul.f32 %v6796, %v6804
        %v6836 = vmul.f32 %v6797, %v6804
        %v6837 = vmul.f32 %v6798, %v6804
        %v6838 = vld [vmem:[%s9] sm:$0x1]
        %v6840 = vlaneseq
        %v6841 = vshrl.u32 %v6840, 7
        %v6842 = vsub.s32 0, %v6841
        %v6843 = vrot.slane %v6838, %v6842
        %v6845 = vadd.f32 %v6806, %v6843
        %v6846 = vadd.f32 %v6807, %v6843
        %v6847 = vadd.f32 %v6808, %v6843
        %v6848 = vadd.f32 %v6809, %v6843
        %v6849 = vadd.f32 %v6810, %v6843
        %v6850 = vadd.f32 %v6811, %v6843
        %v6851 = vadd.f32 %v6812, %v6843
        %v6852 = vadd.f32 %v6813, %v6843
        %v6853 = vadd.f32 %v6814, %v6843
        %v6854 = vadd.f32 %v6815, %v6843
        %v6855 = vadd.f32 %v6816, %v6843
        %v6856 = vadd.f32 %v6817, %v6843
        %v6857 = vadd.f32 %v6818, %v6843
        %v6858 = vadd.f32 %v6819, %v6843
        %v6859 = vadd.f32 %v6820, %v6843
        %v6860 = vadd.f32 %v6821, %v6843
        %v6861 = vadd.f32 %v6822, %v6843
        %v6862 = vadd.f32 %v6823, %v6843
        %v6863 = vadd.f32 %v6824, %v6843
        %v6864 = vadd.f32 %v6825, %v6843
        %v6865 = vadd.f32 %v6826, %v6843
        %v6866 = vadd.f32 %v6827, %v6843
        %v6867 = vadd.f32 %v6828, %v6843
        %v6868 = vadd.f32 %v6829, %v6843
        %v6869 = vadd.f32 %v6830, %v6843
        %v6870 = vadd.f32 %v6831, %v6843
        %v6871 = vadd.f32 %v6832, %v6843
        %v6872 = vadd.f32 %v6833, %v6843
        %v6873 = vadd.f32 %v6834, %v6843
        %v6874 = vadd.f32 %v6835, %v6843
        %v6875 = vadd.f32 %v6836, %v6843
        %v6876 = vadd.f32 %v6837, %v6843
        %v6877 = vadd.f32 %v6845, 3.0
        %v6878 = vadd.f32 %v6846, 3.0
        %v6879 = vadd.f32 %v6847, 3.0
        %v6880 = vadd.f32 %v6848, 3.0
        %v6881 = vadd.f32 %v6849, 3.0
        %v6882 = vadd.f32 %v6850, 3.0
        %v6883 = vadd.f32 %v6851, 3.0
        %v6884 = vadd.f32 %v6852, 3.0
        %v6885 = vadd.f32 %v6853, 3.0
        %v6886 = vadd.f32 %v6854, 3.0
        %v6887 = vadd.f32 %v6855, 3.0
        %v6888 = vadd.f32 %v6856, 3.0
        %v6889 = vadd.f32 %v6857, 3.0
        %v6890 = vadd.f32 %v6858, 3.0
        %v6891 = vadd.f32 %v6859, 3.0
        %v6892 = vadd.f32 %v6860, 3.0
        %v6893 = vadd.f32 %v6861, 3.0
        %v6894 = vadd.f32 %v6862, 3.0
        %v6895 = vadd.f32 %v6863, 3.0
        %v6896 = vadd.f32 %v6864, 3.0
        %v6897 = vadd.f32 %v6865, 3.0
        %v6898 = vadd.f32 %v6866, 3.0
        %v6899 = vadd.f32 %v6867, 3.0
        %v6900 = vadd.f32 %v6868, 3.0
        %v6901 = vadd.f32 %v6869, 3.0
        %v6902 = vadd.f32 %v6870, 3.0
        %v6903 = vadd.f32 %v6871, 3.0
        %v6904 = vadd.f32 %v6872, 3.0
        %v6905 = vadd.f32 %v6873, 3.0
        %v6906 = vadd.f32 %v6874, 3.0
        %v6907 = vadd.f32 %v6875, 3.0
        %v6908 = vadd.f32 %v6876, 3.0
        %v6909 = vmax.f32 %v6877, 0.0
        %v6910 = vmax.f32 %v6878, 0.0
        %v6911 = vmax.f32 %v6879, 0.0
        %v6912 = vmax.f32 %v6880, 0.0
        %v6913 = vmax.f32 %v6881, 0.0
        %v6914 = vmax.f32 %v6882, 0.0
        %v6915 = vmax.f32 %v6883, 0.0
        %v6916 = vmax.f32 %v6884, 0.0
        %v6917 = vmax.f32 %v6885, 0.0
        %v6918 = vmax.f32 %v6886, 0.0
        %v6919 = vmax.f32 %v6887, 0.0
        %v6920 = vmax.f32 %v6888, 0.0
        %v6921 = vmax.f32 %v6889, 0.0
        %v6922 = vmax.f32 %v6890, 0.0
        %v6923 = vmax.f32 %v6891, 0.0
        %v6924 = vmax.f32 %v6892, 0.0
        %v6925 = vmax.f32 %v6893, 0.0
        %v6926 = vmax.f32 %v6894, 0.0
        %v6927 = vmax.f32 %v6895, 0.0
        %v6928 = vmax.f32 %v6896, 0.0
        %v6929 = vmax.f32 %v6897, 0.0
        %v6930 = vmax.f32 %v6898, 0.0
        %v6931 = vmax.f32 %v6899, 0.0
        %v6932 = vmax.f32 %v6900, 0.0
        %v6933 = vmax.f32 %v6901, 0.0
        %v6934 = vmax.f32 %v6902, 0.0
        %v6935 = vmax.f32 %v6903, 0.0
        %v6936 = vmax.f32 %v6904, 0.0
        %v6937 = vmax.f32 %v6905, 0.0
        %v6938 = vmax.f32 %v6906, 0.0
        %v6939 = vmax.f32 %v6907, 0.0
        %v6940 = vmax.f32 %v6908, 0.0
        %v6941 = vmin.f32 %v6909, 6.0
        %v6942 = vmin.f32 %v6910, 6.0
        %v6943 = vmin.f32 %v6911, 6.0
        %v6944 = vmin.f32 %v6912, 6.0
        %v6945 = vmin.f32 %v6913, 6.0
        %v6946 = vmin.f32 %v6914, 6.0
        %v6947 = vmin.f32 %v6915, 6.0
        %v6948 = vmin.f32 %v6916, 6.0
        %v6949 = vmin.f32 %v6917, 6.0
        %v6950 = vmin.f32 %v6918, 6.0
        %v6951 = vmin.f32 %v6919, 6.0
        %v6952 = vmin.f32 %v6920, 6.0
        %v6953 = vmin.f32 %v6921, 6.0
        %v6954 = vmin.f32 %v6922, 6.0
        %v6955 = vmin.f32 %v6923, 6.0
        %v6956 = vmin.f32 %v6924, 6.0
        %v6957 = vmin.f32 %v6925, 6.0
        %v6958 = vmin.f32 %v6926, 6.0
        %v6959 = vmin.f32 %v6927, 6.0
        %v6960 = vmin.f32 %v6928, 6.0
        %v6961 = vmin.f32 %v6929, 6.0
        %v6962 = vmin.f32 %v6930, 6.0
        %v6963 = vmin.f32 %v6931, 6.0
        %v6964 = vmin.f32 %v6932, 6.0
        %v6965 = vmin.f32 %v6933, 6.0
        %v6966 = vmin.f32 %v6934, 6.0
        %v6967 = vmin.f32 %v6935, 6.0
        %v6968 = vmin.f32 %v6936, 6.0
        %v6969 = vmin.f32 %v6937, 6.0
        %v6970 = vmin.f32 %v6938, 6.0
        %v6971 = vmin.f32 %v6939, 6.0
        %v6972 = vmin.f32 %v6940, 6.0
        %v6973 = vmul.f32 %v6845, %v6941
        %v6974 = vmul.f32 %v6846, %v6942
        %v6975 = vmul.f32 %v6847, %v6943
        %v6976 = vmul.f32 %v6848, %v6944
        %v6977 = vmul.f32 %v6849, %v6945
        %v6978 = vmul.f32 %v6850, %v6946
        %v6979 = vmul.f32 %v6851, %v6947
        %v6980 = vmul.f32 %v6852, %v6948
        %v6981 = vmul.f32 %v6853, %v6949
        %v6982 = vmul.f32 %v6854, %v6950
        %v6983 = vmul.f32 %v6855, %v6951
        %v6984 = vmul.f32 %v6856, %v6952
        %v6985 = vmul.f32 %v6857, %v6953
        %v6986 = vmul.f32 %v6858, %v6954
        %v6987 = vmul.f32 %v6859, %v6955
        %v6988 = vmul.f32 %v6860, %v6956
        %v6989 = vmul.f32 %v6861, %v6957
        %v6990 = vmul.f32 %v6862, %v6958
        %v6991 = vmul.f32 %v6863, %v6959
        %v6992 = vmul.f32 %v6864, %v6960
        %v6993 = vmul.f32 %v6865, %v6961
        %v6994 = vmul.f32 %v6866, %v6962
        %v6995 = vmul.f32 %v6867, %v6963
        %v6996 = vmul.f32 %v6868, %v6964
        %v6997 = vmul.f32 %v6869, %v6965
        %v6998 = vmul.f32 %v6870, %v6966
        %v6999 = vmul.f32 %v6871, %v6967
        %v7000 = vmul.f32 %v6872, %v6968
        %v7001 = vmul.f32 %v6873, %v6969
        %v7002 = vmul.f32 %v6874, %v6970
        %v7003 = vmul.f32 %v6875, %v6971
        %v7004 = vmul.f32 %v6876, %v6972
        %v7005 = vmul.f32 %v6973, 0.16666667
        %v7006 = vmul.f32 %v6974, 0.16666667
        %v7007 = vmul.f32 %v6975, 0.16666667
        %v7008 = vmul.f32 %v6976, 0.16666667
        %v7009 = vmul.f32 %v6977, 0.16666667
        %v7010 = vmul.f32 %v6978, 0.16666667
        %v7011 = vmul.f32 %v6979, 0.16666667
        %v7012 = vmul.f32 %v6980, 0.16666667
        %v7013 = vmul.f32 %v6981, 0.16666667
        %v7014 = vmul.f32 %v6982, 0.16666667
        %v7015 = vmul.f32 %v6983, 0.16666667
        %v7016 = vmul.f32 %v6984, 0.16666667
        %v7017 = vmul.f32 %v6985, 0.16666667
        %v7018 = vmul.f32 %v6986, 0.16666667
        %v7019 = vmul.f32 %v6987, 0.16666667
        %v7020 = vmul.f32 %v6988, 0.16666667
        %v7021 = vmul.f32 %v6989, 0.16666667
        %v7022 = vmul.f32 %v6990, 0.16666667
        %v7023 = vmul.f32 %v6991, 0.16666667
        %v7024 = vmul.f32 %v6992, 0.16666667
        %v7025 = vmul.f32 %v6993, 0.16666667
        %v7026 = vmul.f32 %v6994, 0.16666667
        %v7027 = vmul.f32 %v6995, 0.16666667
        %v7028 = vmul.f32 %v6996, 0.16666667
        %v7029 = vmul.f32 %v6997, 0.16666667
        %v7030 = vmul.f32 %v6998, 0.16666667
        %v7031 = vmul.f32 %v6999, 0.16666667
        %v7032 = vmul.f32 %v7000, 0.16666667
        %v7033 = vmul.f32 %v7001, 0.16666667
        %v7034 = vmul.f32 %v7002, 0.16666667
        %v7035 = vmul.f32 %v7003, 0.16666667
        %v7036 = vmul.f32 %v7004, 0.16666667
        %v7037 = vadd.f32 %v7005, %v7006
        %v7038 = vadd.f32 %v7037, %v7007
        %v7039 = vadd.f32 %v7038, %v7008
        %v7040 = vadd.f32 %v7039, %v7009
        %v7041 = vadd.f32 %v7040, %v7010
        %v7042 = vadd.f32 %v7041, %v7011
        %v7043 = vadd.f32 %v7042, %v7012
        %v7044 = vadd.f32 %v7043, %v7013
        %v7045 = vadd.f32 %v7044, %v7014
        %v7046 = vadd.f32 %v7045, %v7015
        %v7047 = vadd.f32 %v7046, %v7016
        %v7048 = vadd.f32 %v7047, %v7017
        %v7049 = vadd.f32 %v7048, %v7018
        %v7050 = vadd.f32 %v7049, %v7019
        %v7051 = vadd.f32 %v7050, %v7020
        %v7052 = vadd.f32 %v7051, %v7021
        %v7053 = vadd.f32 %v7052, %v7022
        %v7054 = vadd.f32 %v7053, %v7023
        %v7055 = vadd.f32 %v7054, %v7024
        %v7056 = vadd.f32 %v7055, %v7025
        %v7057 = vadd.f32 %v7056, %v7026
        %v7058 = vadd.f32 %v7057, %v7027
        %v7059 = vadd.f32 %v7058, %v7028
        %v7060 = vadd.f32 %v7059, %v7029
        %v7061 = vadd.f32 %v7060, %v7030
        %v7062 = vadd.f32 %v7061, %v7031
        %v7063 = vadd.f32 %v7062, %v7032
        %v7064 = vadd.f32 %v7063, %v7033
        %v7065 = vadd.f32 %v7064, %v7034
        %v7066 = vadd.f32 %v7065, %v7035
        %v7067 = vadd.f32 %v7066, %v7036
        %v7068 = vrot.slane %v7067, 4
        %v7069 = vadd.f32 %v7067, %v7068
        %v7070 = vrot.slane %v7069, 2
        %v7071 = vadd.f32 %v7069, %v7070
        %v7072 = vrot.slane %v7071, 1
        %v7073 = vadd.f32 %v7071, %v7072
        %v7074 = vrcp.pop 256.0
        %v7075 = vmul.f32 %v7073, %v7074
        %v7076 = vld [vmem:[%s10] sm:$0xff]
        %v7077 = vld [vmem:[%s10 + $0x8] sm:$0xff]
        %v7078 = vld [vmem:[%s10 + $0x10] sm:$0xff]
        %v7079 = vld [vmem:[%s10 + $0x18] sm:$0xff]
        %v7080 = vld [vmem:[%s10 + $0x20] sm:$0xff]
        %v7081 = vld [vmem:[%s10 + $0x28] sm:$0xff]
        %v7082 = vld [vmem:[%s10 + $0x30] sm:$0xff]
        %v7083 = vld [vmem:[%s10 + $0x38] sm:$0xff]
        %v7084 = vld [vmem:[%s10 + $0x40] sm:$0xff]
        %v7085 = vld [vmem:[%s10 + $0x48] sm:$0xff]
        %v7086 = vld [vmem:[%s10 + $0x50] sm:$0xff]
        %v7087 = vld [vmem:[%s10 + $0x58] sm:$0xff]
        %v7088 = vld [vmem:[%s10 + $0x60] sm:$0xff]
        %v7089 = vld [vmem:[%s10 + $0x68] sm:$0xff]
        %v7090 = vld [vmem:[%s10 + $0x70] sm:$0xff]
        %v7091 = vld [vmem:[%s10 + $0x78] sm:$0xff]
        %7092 = vmatprep.subr.mxu0 0.0
        %7093 = vmatpush1.msra.mxu0 %v7076
        %7094 = vmatprep.subr.mxu0 0.0
        %7095 = vmatpush1.msra.mxu0 %v7077
        %7096 = vmatprep.subr.mxu0 0.0
        %7097 = vmatpush1.msra.mxu0 %v7078
        %7098 = vmatprep.subr.mxu0 0.0
        %7099 = vmatpush1.msra.mxu0 %v7079
        %7100 = vmatprep.subr.mxu0 0.0
        %7101 = vmatpush1.msra.mxu0 %v7080
        %7102 = vmatprep.subr.mxu0 0.0
        %7103 = vmatpush1.msra.mxu0 %v7081
        %7104 = vmatprep.subr.mxu0 0.0
        %7105 = vmatpush1.msra.mxu0 %v7082
        %7106 = vmatprep.subr.mxu0 0.0
        %7107 = vmatpush1.msra.mxu0 %v7083
        %7108 = vmatprep.subr.mxu0 0.0
        %7109 = vmatpush1.msra.mxu0 %v7084
        %7110 = vmatprep.subr.mxu0 0.0
        %7111 = vmatpush1.msra.mxu0 %v7085
        %7112 = vmatprep.subr.mxu0 0.0
        %7113 = vmatpush1.msra.mxu0 %v7086
        %7114 = vmatprep.subr.mxu0 0.0
        %7115 = vmatpush1.msra.mxu0 %v7087
        %7116 = vmatprep.subr.mxu0 0.0
        %7117 = vmatpush1.msra.mxu0 %v7088
        %7118 = vmatprep.subr.mxu0 0.0
        %7119 = vmatpush1.msra.mxu0 %v7089
        %7120 = vmatprep.subr.mxu0 0.0
        %7121 = vmatpush1.msra.mxu0 %v7090
        %7122 = vmatprep.subr.mxu0 0.0
        %7123 = vmatpush1.msra.mxu0 %v7091
        %7124 = vmatprep.subr.mxu0 0.0
        %7125 = vmatpush1.msra.mxu0 0.0
        %7126 = vmatprep.subr.mxu0 0.0
        %7127 = vmatpush1.msra.mxu0 0.0
        %7128 = vmatprep.subr.mxu0 0.0
        %7129 = vmatpush1.msra.mxu0 0.0
        %7130 = vmatprep.subr.mxu0 0.0
        %7131 = vmatpush1.msra.mxu0 0.0
        %7132 = vmatprep.subr.mxu0 0.0
        %7133 = vmatpush1.msra.mxu0 0.0
        %7134 = vmatprep.subr.mxu0 0.0
        %7135 = vmatpush1.msra.mxu0 0.0
        %7136 = vmatprep.subr.mxu0 0.0
        %7137 = vmatpush1.msra.mxu0 0.0
        %7138 = vmatprep.subr.mxu0 0.0
        %7139 = vmatpush1.msra.mxu0 0.0
        %7140 = vmatprep.subr.mxu0 0.0
        %7141 = vmatpush1.msra.mxu0 0.0
        %7142 = vmatprep.subr.mxu0 0.0
        %7143 = vmatpush1.msra.mxu0 0.0
        %7144 = vmatprep.subr.mxu0 0.0
        %7145 = vmatpush1.msra.mxu0 0.0
        %7146 = vmatprep.subr.mxu0 0.0
        %7147 = vmatpush1.msra.mxu0 0.0
        %7148 = vmatprep.subr.mxu0 0.0
        %7149 = vmatpush1.msra.mxu0 0.0
        %7150 = vmatprep.subr.mxu0 0.0
        %7151 = vmatpush1.msra.mxu0 0.0
        %7152 = vmatprep.subr.mxu0 0.0
        %7153 = vmatpush1.msra.mxu0 0.0
        %7154 = vmatprep.subr.mxu0 0.0
        %7155 = vmatpush1.msra.mxu0 0.0
        %7156 = vmatprep.mubr.f32.mxu0 0.0
        %7157 = vmatmul.mubr.f32.gmra.mrb[0].mxu0 %v7075
        %v7158 = vpop.f32.mrb[0].mxu0
        %v7159 = vadd.f32 0.0, %v7158
        %v7160 = vpop.f32.mrb[0].mxu0
        %7161 = vdwg.mxu0
        %v7162 = vmax.f32 %v7159, 0.0
        %v7163 = vld [vmem:[%s11] sm:$0xf]
        %v7165 = vsel %vm585, %v7162, 0
        %vm7167 = vcmask 1043456
        %v7169 = vsel %vm7167, %v7163, 0
        %7171 = vmatprep.subr.mxu0 0.0
        %7172 = vmatpush1.msra.mxu0 %v7169
        %7173 = vmatprep.subr.mxu0 0.0
        %7174 = vmatpush1.msra.mxu0 0.0
        %7175 = vmatprep.subr.mxu0 0.0
        %7176 = vmatpush1.msra.mxu0 0.0
        %7177 = vmatprep.subr.mxu0 0.0
        %7178 = vmatpush1.msra.mxu0 0.0
        %7179 = vmatprep.subr.mxu0 0.0
        %7180 = vmatpush1.msra.mxu0 0.0
        %7181 = vmatprep.subr.mxu0 0.0
        %7182 = vmatpush1.msra.mxu0 0.0
        %7183 = vmatprep.subr.mxu0 0.0
        %7184 = vmatpush1.msra.mxu0 0.0
        %7185 = vmatprep.subr.mxu0 0.0
        %7186 = vmatpush1.msra.mxu0 0.0
        %7187 = vmatprep.subr.mxu0 0.0
        %7188 = vmatpush1.msra.mxu0 0.0
        %7189 = vmatprep.subr.mxu0 0.0
        %7190 = vmatpush1.msra.mxu0 0.0
        %7191 = vmatprep.subr.mxu0 0.0
        %7192 = vmatpush1.msra.mxu0 0.0
        %7193 = vmatprep.subr.mxu0 0.0
        %7194 = vmatpush1.msra.mxu0 0.0
        %7195 = vmatprep.subr.mxu0 0.0
        %7196 = vmatpush1.msra.mxu0 0.0
        %7197 = vmatprep.subr.mxu0 0.0
        %7198 = vmatpush1.msra.mxu0 0.0
        %7199 = vmatprep.subr.mxu0 0.0
        %7200 = vmatpush1.msra.mxu0 0.0
        %7201 = vmatprep.subr.mxu0 0.0
        %7202 = vmatpush1.msra.mxu0 0.0
        %7203 = vmatprep.subr.mxu0 0.0
        %7204 = vmatpush1.msra.mxu0 0.0
        %7205 = vmatprep.subr.mxu0 0.0
        %7206 = vmatpush1.msra.mxu0 0.0
        %7207 = vmatprep.subr.mxu0 0.0
        %7208 = vmatpush1.msra.mxu0 0.0
        %7209 = vmatprep.subr.mxu0 0.0
        %7210 = vmatpush1.msra.mxu0 0.0
        %7211 = vmatprep.subr.mxu0 0.0
        %7212 = vmatpush1.msra.mxu0 0.0
        %7213 = vmatprep.subr.mxu0 0.0
        %7214 = vmatpush1.msra.mxu0 0.0
        %7215 = vmatprep.subr.mxu0 0.0
        %7216 = vmatpush1.msra.mxu0 0.0
        %7217 = vmatprep.subr.mxu0 0.0
        %7218 = vmatpush1.msra.mxu0 0.0
        %7219 = vmatprep.subr.mxu0 0.0
        %7220 = vmatpush1.msra.mxu0 0.0
        %7221 = vmatprep.subr.mxu0 0.0
        %7222 = vmatpush1.msra.mxu0 0.0
        %7223 = vmatprep.subr.mxu0 0.0
        %7224 = vmatpush1.msra.mxu0 0.0
        %7225 = vmatprep.subr.mxu0 0.0
        %7226 = vmatpush1.msra.mxu0 0.0
        %7227 = vmatprep.subr.mxu0 0.0
        %7228 = vmatpush1.msra.mxu0 0.0
        %7229 = vmatprep.subr.mxu0 0.0
        %7230 = vmatpush1.msra.mxu0 0.0
        %7231 = vmatprep.subr.mxu0 0.0
        %7232 = vmatpush1.msra.mxu0 0.0
        %7233 = vmatprep.subr.mxu0 0.0
        %7234 = vmatpush1.msra.mxu0 0.0
        %7235 = vmatprep.mubr.f32.mxu0 0.0
        %7236 = vmatmul.mubr.f32.gmra.mrb[0].mxu0 %v7165
        %v7237 = vpop.f32.mrb[0].mxu0
        %v7238 = vadd.f32 0.0, %v7237
        %v7239 = vpop.f32.mrb[0].mxu0
        %7240 = vdwg.mxu0
        %v7241 = vsub.f32 0.0, %v7238
        %v7242 = vmul.f32 %v7241, 1.442695
        %v7243 = vpow.pop %v7242
        %v7244 = vadd.f32 %v7243, 1.0
        %v7245 = vrcp.pop %v7244
        %v7246 = vmul.f32 1.0, %v7245
        %v7247 = vlaneseq
        %v7248 = vshrl.u32 %v7247, 7
        %v7249 = vsub.s32 0, %v7248
        %v7250 = vrot.slane %v7246, %v7249
        %v7251 = vmul.f32 %v7005, %v7250
        %v7252 = vmul.f32 %v7006, %v7250
        %v7253 = vmul.f32 %v7007, %v7250
        %v7254 = vmul.f32 %v7008, %v7250
        %v7255 = vmul.f32 %v7009, %v7250
        %v7256 = vmul.f32 %v7010, %v7250
        %v7257 = vmul.f32 %v7011, %v7250
        %v7258 = vmul.f32 %v7012, %v7250
        %v7259 = vmul.f32 %v7013, %v7250
        %v7260 = vmul.f32 %v7014, %v7250
        %v7261 = vmul.f32 %v7015, %v7250
        %v7262 = vmul.f32 %v7016, %v7250
        %v7263 = vmul.f32 %v7017, %v7250
        %v7264 = vmul.f32 %v7018, %v7250
        %v7265 = vmul.f32 %v7019, %v7250
        %v7266 = vmul.f32 %v7020, %v7250
        %v7267 = vmul.f32 %v7021, %v7250
        %v7268 = vmul.f32 %v7022, %v7250
        %v7269 = vmul.f32 %v7023, %v7250
        %v7270 = vmul.f32 %v7024, %v7250
        %v7271 = vmul.f32 %v7025, %v7250
        %v7272 = vmul.f32 %v7026, %v7250
        %v7273 = vmul.f32 %v7027, %v7250
        %v7274 = vmul.f32 %v7028, %v7250
        %v7275 = vmul.f32 %v7029, %v7250
        %v7276 = vmul.f32 %v7030, %v7250
        %v7277 = vmul.f32 %v7031, %v7250
        %v7278 = vmul.f32 %v7032, %v7250
        %v7279 = vmul.f32 %v7033, %v7250
        %v7280 = vmul.f32 %v7034, %v7250
        %v7281 = vmul.f32 %v7035, %v7250
        %v7282 = vmul.f32 %v7036, %v7250
        %v7283 = vpack.c.bf16 %v7252, %v7251
        %v7284 = vpack.c.bf16 %v7254, %v7253
        %v7285 = vpack.c.bf16 %v7256, %v7255
        %v7286 = vpack.c.bf16 %v7258, %v7257
        %v7287 = vpack.c.bf16 %v7260, %v7259
        %v7288 = vpack.c.bf16 %v7262, %v7261
        %v7289 = vpack.c.bf16 %v7264, %v7263
        %v7290 = vpack.c.bf16 %v7266, %v7265
        %v7291 = vpack.c.bf16 %v7268, %v7267
        %v7292 = vpack.c.bf16 %v7270, %v7269
        %v7293 = vpack.c.bf16 %v7272, %v7271
        %v7294 = vpack.c.bf16 %v7274, %v7273
        %v7295 = vpack.c.bf16 %v7276, %v7275
        %v7296 = vpack.c.bf16 %v7278, %v7277
        %v7297 = vpack.c.bf16 %v7280, %v7279
        %v7298 = vpack.c.bf16 %v7282, %v7281
        %v7299 = vld [vmem:[%s12] sm:$0xf]
        %v7300 = vld [vmem:[%s12 + $0x4] sm:$0xf]
        %v7301 = vld [vmem:[%s12 + $0x8] sm:$0xf]
        %v7302 = vld [vmem:[%s12 + $0xc] sm:$0xf]
        %v7303 = vld [vmem:[%s12 + $0x10] sm:$0xf]
        %v7304 = vld [vmem:[%s12 + $0x14] sm:$0xf]
        %v7305 = vld [vmem:[%s12 + $0x18] sm:$0xf]
        %v7306 = vld [vmem:[%s12 + $0x1c] sm:$0xf]
        %v7307 = vld [vmem:[%s12 + $0x20] sm:$0xf]
        %v7308 = vld [vmem:[%s12 + $0x24] sm:$0xf]
        %v7309 = vld [vmem:[%s12 + $0x28] sm:$0xf]
        %v7310 = vld [vmem:[%s12 + $0x2c] sm:$0xf]
        %v7311 = vld [vmem:[%s12 + $0x30] sm:$0xf]
        %v7312 = vld [vmem:[%s12 + $0x34] sm:$0xf]
        %v7313 = vld [vmem:[%s12 + $0x38] sm:$0xf]
        %v7314 = vld [vmem:[%s12 + $0x3c] sm:$0xf]
        %v7331 = vunpack.c.l.b16 %v7299
        %v7332 = vunpack.c.l.b16 %v7300
        %v7333 = vunpack.c.l.b16 %v7301
        %v7334 = vunpack.c.l.b16 %v7302
        %v7335 = vunpack.c.l.b16 %v7303
        %v7336 = vunpack.c.l.b16 %v7304
        %v7337 = vunpack.c.l.b16 %v7305
        %v7338 = vunpack.c.l.b16 %v7306
        %v7339 = vunpack.c.l.b16 %v7307
        %v7340 = vunpack.c.l.b16 %v7308
        %v7341 = vunpack.c.l.b16 %v7309
        %v7342 = vunpack.c.l.b16 %v7310
        %v7343 = vunpack.c.l.b16 %v7311
        %v7344 = vunpack.c.l.b16 %v7312
        %v7345 = vunpack.c.l.b16 %v7313
        %v7346 = vunpack.c.l.b16 %v7314
        %v7347 = vpack.c.b16 %v7332, %v7331
        %v7348 = vpack.c.b16 %v7334, %v7333
        %v7349 = vpack.c.b16 %v7336, %v7335
        %v7350 = vpack.c.b16 %v7338, %v7337
        %v7351 = vpack.c.b16 %v7340, %v7339
        %v7352 = vpack.c.b16 %v7342, %v7341
        %v7353 = vpack.c.b16 %v7344, %v7343
        %v7354 = vpack.c.b16 %v7346, %v7345
        %7363 = vmatprep.subr.bf16.mxu0 0
        %7364 = vmatpush1.bf16.msra.mxu0 %v7347
        %7365 = vmatprep.subr.bf16.mxu0 0
        %7366 = vmatpush1.bf16.msra.mxu0 %v7348
        %7367 = vmatprep.subr.bf16.mxu0 0
        %7368 = vmatpush1.bf16.msra.mxu0 %v7349
        %7369 = vmatprep.subr.bf16.mxu0 0
        %7370 = vmatpush1.bf16.msra.mxu0 %v7350
        %7371 = vmatprep.subr.bf16.mxu0 0
        %7372 = vmatpush1.bf16.msra.mxu0 %v7351
        %7373 = vmatprep.subr.bf16.mxu0 0
        %7374 = vmatpush1.bf16.msra.mxu0 %v7352
        %7375 = vmatprep.subr.bf16.mxu0 0
        %7376 = vmatpush1.bf16.msra.mxu0 %v7353
        %7377 = vmatprep.subr.bf16.mxu0 0
        %7378 = vmatpush1.bf16.msra.mxu0 %v7354
        %7379 = vmatprep.subr.bf16.mxu0 0
        %7380 = vmatpush1.bf16.msra.mxu0 0
        %7381 = vmatprep.subr.bf16.mxu0 0
        %7382 = vmatpush1.bf16.msra.mxu0 0
        %7383 = vmatprep.subr.bf16.mxu0 0
        %7384 = vmatpush1.bf16.msra.mxu0 0
        %7385 = vmatprep.subr.bf16.mxu0 0
        %7386 = vmatpush1.bf16.msra.mxu0 0
        %7387 = vmatprep.subr.bf16.mxu0 0
        %7388 = vmatpush1.bf16.msra.mxu0 0
        %7389 = vmatprep.subr.bf16.mxu0 0
        %7390 = vmatpush1.bf16.msra.mxu0 0
        %7391 = vmatprep.subr.bf16.mxu0 0
        %7392 = vmatpush1.bf16.msra.mxu0 0
        %7393 = vmatprep.subr.bf16.mxu0 0
        %7394 = vmatpush1.bf16.msra.mxu0 0
        %7395 = vmatprep.mubr.bf16.mxu0 0
        %7396 = vmatmul.mubr.bf16.gmra.mrb[0].mxu0 %v7283
        %v7397 = vpop.f32.mrb[0].mxu0
        %v7398 = vadd.f32 0.0, %v7397
        %v7399 = vpop.f32.mrb[0].mxu0
        %v7400 = vpop.f32.mrb[0].mxu0
        %v7401 = vadd.f32 0.0, %v7400
        %v7402 = vpop.f32.mrb[0].mxu0
        %7403 = vmatprep.mubr.bf16.mxu0 0
        %7404 = vmatmul.mubr.bf16.gmra.mrb[0].mxu0 %v7284
        %v7405 = vpop.f32.mrb[0].mxu0
        %v7406 = vadd.f32 0.0, %v7405
        %v7407 = vpop.f32.mrb[0].mxu0
        %v7408 = vpop.f32.mrb[0].mxu0
        %v7409 = vadd.f32 0.0, %v7408
        %v7410 = vpop.f32.mrb[0].mxu0
        %7411 = vmatprep.mubr.bf16.mxu0 0
        %7412 = vmatmul.mubr.bf16.gmra.mrb[0].mxu0 %v7285
        %v7413 = vpop.f32.mrb[0].mxu0
        %v7414 = vadd.f32 0.0, %v7413
        %v7415 = vpop.f32.mrb[0].mxu0
        %v7416 = vpop.f32.mrb[0].mxu0
        %v7417 = vadd.f32 0.0, %v7416
        %v7418 = vpop.f32.mrb[0].mxu0
        %7419 = vmatprep.mubr.bf16.mxu0 0
        %7420 = vmatmul.mubr.bf16.gmra.mrb[0].mxu0 %v7286
        %v7421 = vpop.f32.mrb[0].mxu0
        %v7422 = vadd.f32 0.0, %v7421
        %v7423 = vpop.f32.mrb[0].mxu0
        %v7424 = vpop.f32.mrb[0].mxu0
        %v7425 = vadd.f32 0.0, %v7424
        %v7426 = vpop.f32.mrb[0].mxu0
        %7427 = vmatprep.mubr.bf16.mxu0 0
        %7428 = vmatmul.mubr.bf16.gmra.mrb[0].mxu0 %v7287
        %v7429 = vpop.f32.mrb[0].mxu0
        %v7430 = vadd.f32 0.0, %v7429
        %v7431 = vpop.f32.mrb[0].mxu0
        %v7432 = vpop.f32.mrb[0].mxu0
        %v7433 = vadd.f32 0.0, %v7432
        %v7434 = vpop.f32.mrb[0].mxu0
        %7435 = vmatprep.mubr.bf16.mxu0 0
        %7436 = vmatmul.mubr.bf16.gmra.mrb[0].mxu0 %v7288
        %v7437 = vpop.f32.mrb[0].mxu0
        %v7438 = vadd.f32 0.0, %v7437
        %v7439 = vpop.f32.mrb[0].mxu0
        %v7440 = vpop.f32.mrb[0].mxu0
        %v7441 = vadd.f32 0.0, %v7440
        %v7442 = vpop.f32.mrb[0].mxu0
        %7443 = vmatprep.mubr.bf16.mxu0 0
        %7444 = vmatmul.mubr.bf16.gmra.mrb[0].mxu0 %v7289
        %v7445 = vpop.f32.mrb[0].mxu0
        %v7446 = vadd.f32 0.0, %v7445
        %v7447 = vpop.f32.mrb[0].mxu0
        %v7448 = vpop.f32.mrb[0].mxu0
        %v7449 = vadd.f32 0.0, %v7448
        %v7450 = vpop.f32.mrb[0].mxu0
        %7451 = vmatprep.mubr.bf16.mxu0 0
        %7452 = vmatmul.mubr.bf16.gmra.mrb[0].mxu0 %v7290
        %v7453 = vpop.f32.mrb[0].mxu0
        %v7454 = vadd.f32 0.0, %v7453
        %v7455 = vpop.f32.mrb[0].mxu0
        %v7456 = vpop.f32.mrb[0].mxu0
        %v7457 = vadd.f32 0.0, %v7456
        %v7458 = vpop.f32.mrb[0].mxu0
        %7459 = vmatprep.mubr.bf16.mxu0 0
        %7460 = vmatmul.mubr.bf16.gmra.mrb[0].mxu0 %v7291
        %v7461 = vpop.f32.mrb[0].mxu0
        %v7462 = vadd.f32 0.0, %v7461
        %v7463 = vpop.f32.mrb[0].mxu0
        %v7464 = vpop.f32.mrb[0].mxu0
        %v7465 = vadd.f32 0.0, %v7464
        %v7466 = vpop.f32.mrb[0].mxu0
        %7467 = vmatprep.mubr.bf16.mxu0 0
        %7468 = vmatmul.mubr.bf16.gmra.mrb[0].mxu0 %v7292
        %v7469 = vpop.f32.mrb[0].mxu0
        %v7470 = vadd.f32 0.0, %v7469
        %v7471 = vpop.f32.mrb[0].mxu0
        %v7472 = vpop.f32.mrb[0].mxu0
        %v7473 = vadd.f32 0.0, %v7472
        %v7474 = vpop.f32.mrb[0].mxu0
        %7475 = vmatprep.mubr.bf16.mxu0 0
        %7476 = vmatmul.mubr.bf16.gmra.mrb[0].mxu0 %v7293
        %v7477 = vpop.f32.mrb[0].mxu0
        %v7478 = vadd.f32 0.0, %v7477
        %v7479 = vpop.f32.mrb[0].mxu0
        %v7480 = vpop.f32.mrb[0].mxu0
        %v7481 = vadd.f32 0.0, %v7480
        %v7482 = vpop.f32.mrb[0].mxu0
        %7483 = vmatprep.mubr.bf16.mxu0 0
        %7484 = vmatmul.mubr.bf16.gmra.mrb[0].mxu0 %v7294
        %v7485 = vpop.f32.mrb[0].mxu0
        %v7486 = vadd.f32 0.0, %v7485
        %v7487 = vpop.f32.mrb[0].mxu0
        %v7488 = vpop.f32.mrb[0].mxu0
        %v7489 = vadd.f32 0.0, %v7488
        %v7490 = vpop.f32.mrb[0].mxu0
        %7491 = vmatprep.mubr.bf16.mxu0 0
        %7492 = vmatmul.mubr.bf16.gmra.mrb[0].mxu0 %v7295
        %v7493 = vpop.f32.mrb[0].mxu0
        %v7494 = vadd.f32 0.0, %v7493
        %v7495 = vpop.f32.mrb[0].mxu0
        %v7496 = vpop.f32.mrb[0].mxu0
        %v7497 = vadd.f32 0.0, %v7496
        %v7498 = vpop.f32.mrb[0].mxu0
        %7499 = vmatprep.mubr.bf16.mxu0 0
        %7500 = vmatmul.mubr.bf16.gmra.mrb[0].mxu0 %v7296
        %v7501 = vpop.f32.mrb[0].mxu0
        %v7502 = vadd.f32 0.0, %v7501
        %v7503 = vpop.f32.mrb[0].mxu0
        %v7504 = vpop.f32.mrb[0].mxu0
        %v7505 = vadd.f32 0.0, %v7504
        %v7506 = vpop.f32.mrb[0].mxu0
        %7507 = vmatprep.mubr.bf16.mxu0 0
        %7508 = vmatmul.mubr.bf16.gmra.mrb[0].mxu0 %v7297
        %v7509 = vpop.f32.mrb[0].mxu0
        %v7510 = vadd.f32 0.0, %v7509
        %v7511 = vpop.f32.mrb[0].mxu0
        %v7512 = vpop.f32.mrb[0].mxu0
        %v7513 = vadd.f32 0.0, %v7512
        %v7514 = vpop.f32.mrb[0].mxu0
        %7515 = vmatprep.mubr.bf16.mxu0 0
        %7516 = vmatmul.mubr.bf16.gmra.mrb[0].mxu0 %v7298
        %v7517 = vpop.f32.mrb[0].mxu0
        %v7518 = vadd.f32 0.0, %v7517
        %v7519 = vpop.f32.mrb[0].mxu0
        %v7520 = vpop.f32.mrb[0].mxu0
        %v7521 = vadd.f32 0.0, %v7520
        %v7522 = vpop.f32.mrb[0].mxu0
        %7523 = vdwg.mxu0
        %v7524 = vld [vmem:[%s13] sm:$0x1]
        %v7526 = vlaneseq
        %v7527 = vshrl.u32 %v7526, 7
        %v7528 = vsub.s32 0, %v7527
        %v7529 = vrot.slane %v7524, %v7528
        %v7531 = vmul.f32 %v7398, %v7529
        %v7532 = vmul.f32 %v7401, %v7529
        %v7533 = vmul.f32 %v7406, %v7529
        %v7534 = vmul.f32 %v7409, %v7529
        %v7535 = vmul.f32 %v7414, %v7529
        %v7536 = vmul.f32 %v7417, %v7529
        %v7537 = vmul.f32 %v7422, %v7529
        %v7538 = vmul.f32 %v7425, %v7529
        %v7539 = vmul.f32 %v7430, %v7529
        %v7540 = vmul.f32 %v7433, %v7529
        %v7541 = vmul.f32 %v7438, %v7529
        %v7542 = vmul.f32 %v7441, %v7529
        %v7543 = vmul.f32 %v7446, %v7529
        %v7544 = vmul.f32 %v7449, %v7529
        %v7545 = vmul.f32 %v7454, %v7529
        %v7546 = vmul.f32 %v7457, %v7529
        %v7547 = vmul.f32 %v7462, %v7529
        %v7548 = vmul.f32 %v7465, %v7529
        %v7549 = vmul.f32 %v7470, %v7529
        %v7550 = vmul.f32 %v7473, %v7529
        %v7551 = vmul.f32 %v7478, %v7529
        %v7552 = vmul.f32 %v7481, %v7529
        %v7553 = vmul.f32 %v7486, %v7529
        %v7554 = vmul.f32 %v7489, %v7529
        %v7555 = vmul.f32 %v7494, %v7529
        %v7556 = vmul.f32 %v7497, %v7529
        %v7557 = vmul.f32 %v7502, %v7529
        %v7558 = vmul.f32 %v7505, %v7529
        %v7559 = vmul.f32 %v7510, %v7529
        %v7560 = vmul.f32 %v7513, %v7529
        %v7561 = vmul.f32 %v7518, %v7529
        %v7562 = vmul.f32 %v7521, %v7529
        %v7563 = vld [vmem:[%s14] sm:$0x1]
        %v7565 = vlaneseq
        %v7566 = vshrl.u32 %v7565, 7
        %v7567 = vsub.s32 0, %v7566
        %v7568 = vrot.slane %v7563, %v7567
        %v7570 = vadd.f32 %v7531, %v7568
        %v7571 = vadd.f32 %v7532, %v7568
        %v7572 = vadd.f32 %v7533, %v7568
        %v7573 = vadd.f32 %v7534, %v7568
        %v7574 = vadd.f32 %v7535, %v7568
        %v7575 = vadd.f32 %v7536, %v7568
        %v7576 = vadd.f32 %v7537, %v7568
        %v7577 = vadd.f32 %v7538, %v7568
        %v7578 = vadd.f32 %v7539, %v7568
        %v7579 = vadd.f32 %v7540, %v7568
        %v7580 = vadd.f32 %v7541, %v7568
        %v7581 = vadd.f32 %v7542, %v7568
        %v7582 = vadd.f32 %v7543, %v7568
        %v7583 = vadd.f32 %v7544, %v7568
        %v7584 = vadd.f32 %v7545, %v7568
        %v7585 = vadd.f32 %v7546, %v7568
        %v7586 = vadd.f32 %v7547, %v7568
        %v7587 = vadd.f32 %v7548, %v7568
        %v7588 = vadd.f32 %v7549, %v7568
        %v7589 = vadd.f32 %v7550, %v7568
        %v7590 = vadd.f32 %v7551, %v7568
        %v7591 = vadd.f32 %v7552, %v7568
        %v7592 = vadd.f32 %v7553, %v7568
        %v7593 = vadd.f32 %v7554, %v7568
        %v7594 = vadd.f32 %v7555, %v7568
        %v7595 = vadd.f32 %v7556, %v7568
        %v7596 = vadd.f32 %v7557, %v7568
        %v7597 = vadd.f32 %v7558, %v7568
        %v7598 = vadd.f32 %v7559, %v7568
        %v7599 = vadd.f32 %v7560, %v7568
        %v7600 = vadd.f32 %v7561, %v7568
        %v7601 = vadd.f32 %v7562, %v7568
        %v7602 = vsel %vm585, %v536, 0.0
        %v7603 = vsel %vm585, %v537, 0.0
        %v7604 = vsel %vm585, %v538, 0.0
        %v7605 = vsel %vm585, %v539, 0.0
        %v7606 = vsel %vm585, %v540, 0.0
        %v7607 = vsel %vm585, %v541, 0.0
        %v7608 = vsel %vm585, %v542, 0.0
        %v7609 = vsel %vm585, %v543, 0.0
        %v7610 = vsel %vm585, %v544, 0.0
        %v7611 = vsel %vm585, %v545, 0.0
        %v7612 = vsel %vm585, %v546, 0.0
        %v7613 = vsel %vm585, %v547, 0.0
        %v7614 = vsel %vm585, %v548, 0.0
        %v7615 = vsel %vm585, %v549, 0.0
        %v7616 = vsel %vm585, %v550, 0.0
        %v7617 = vsel %vm585, %v551, 0.0
        %v7618 = vsel %vm585, %v552, 0.0
        %v7619 = vsel %vm585, %v553, 0.0
        %v7620 = vsel %vm585, %v554, 0.0
        %v7621 = vsel %vm585, %v555, 0.0
        %v7622 = vsel %vm585, %v556, 0.0
        %v7623 = vsel %vm585, %v557, 0.0
        %v7624 = vsel %vm585, %v558, 0.0
        %v7625 = vsel %vm585, %v559, 0.0
        %v7626 = vsel %vm585, %v560, 0.0
        %v7627 = vsel %vm585, %v561, 0.0
        %v7628 = vsel %vm585, %v562, 0.0
        %v7629 = vsel %vm585, %v563, 0.0
        %v7630 = vsel %vm585, %v564, 0.0
        %v7631 = vsel %vm585, %v565, 0.0
        %v7632 = vsel %vm585, %v566, 0.0
        %v7633 = vsel %vm585, %v567, 0.0
        %v7634 = vadd.f32 %v7570, %v7602
        %v7635 = vadd.f32 %v7571, %v7603
        %v7636 = vadd.f32 %v7572, %v7604
        %v7637 = vadd.f32 %v7573, %v7605
        %v7638 = vadd.f32 %v7574, %v7606
        %v7639 = vadd.f32 %v7575, %v7607
        %v7640 = vadd.f32 %v7576, %v7608
        %v7641 = vadd.f32 %v7577, %v7609
        %v7642 = vadd.f32 %v7578, %v7610
        %v7643 = vadd.f32 %v7579, %v7611
        %v7644 = vadd.f32 %v7580, %v7612
        %v7645 = vadd.f32 %v7581, %v7613
        %v7646 = vadd.f32 %v7582, %v7614
        %v7647 = vadd.f32 %v7583, %v7615
        %v7648 = vadd.f32 %v7584, %v7616
        %v7649 = vadd.f32 %v7585, %v7617
        %v7650 = vadd.f32 %v7586, %v7618
        %v7651 = vadd.f32 %v7587, %v7619
        %v7652 = vadd.f32 %v7588, %v7620
        %v7653 = vadd.f32 %v7589, %v7621
        %v7654 = vadd.f32 %v7590, %v7622
        %v7655 = vadd.f32 %v7591, %v7623
        %v7656 = vadd.f32 %v7592, %v7624
        %v7657 = vadd.f32 %v7593, %v7625
        %v7658 = vadd.f32 %v7594, %v7626
        %v7659 = vadd.f32 %v7595, %v7627
        %v7660 = vadd.f32 %v7596, %v7628
        %v7661 = vadd.f32 %v7597, %v7629
        %v7662 = vadd.f32 %v7598, %v7630
        %v7663 = vadd.f32 %v7599, %v7631
        %v7664 = vadd.f32 %v7600, %v7632
        %v7665 = vadd.f32 %v7601, %v7633
        %v7666 = vld [vmem:[%s15] sm:$0x1]
        %v7668 = vlaneseq
        %v7669 = vshrl.u32 %v7668, 7
        %v7670 = vsub.s32 0, %v7669
        %v7671 = vrot.slane %v7666, %v7670
        %v7673 = vmul.f32 %v7634, %v7671
        %v7674 = vmul.f32 %v7635, %v7671
        %v7675 = vmul.f32 %v7636, %v7671
        %v7676 = vmul.f32 %v7637, %v7671
        %v7677 = vmul.f32 %v7638, %v7671
        %v7678 = vmul.f32 %v7639, %v7671
        %v7679 = vmul.f32 %v7640, %v7671
        %v7680 = vmul.f32 %v7641, %v7671
        %v7681 = vmul.f32 %v7642, %v7671
        %v7682 = vmul.f32 %v7643, %v7671
        %v7683 = vmul.f32 %v7644, %v7671
        %v7684 = vmul.f32 %v7645, %v7671
        %v7685 = vmul.f32 %v7646, %v7671
        %v7686 = vmul.f32 %v7647, %v7671
        %v7687 = vmul.f32 %v7648, %v7671
        %v7688 = vmul.f32 %v7649, %v7671
        %v7689 = vmul.f32 %v7650, %v7671
        %v7690 = vmul.f32 %v7651, %v7671
        %v7691 = vmul.f32 %v7652, %v7671
        %v7692 = vmul.f32 %v7653, %v7671
        %v7693 = vmul.f32 %v7654, %v7671
        %v7694 = vmul.f32 %v7655, %v7671
        %v7695 = vmul.f32 %v7656, %v7671
        %v7696 = vmul.f32 %v7657, %v7671
        %v7697 = vmul.f32 %v7658, %v7671
        %v7698 = vmul.f32 %v7659, %v7671
        %v7699 = vmul.f32 %v7660, %v7671
        %v7700 = vmul.f32 %v7661, %v7671
        %v7701 = vmul.f32 %v7662, %v7671
        %v7702 = vmul.f32 %v7663, %v7671
        %v7703 = vmul.f32 %v7664, %v7671
        %v7704 = vmul.f32 %v7665, %v7671
        %7705 = vst [vmem:[%s529] sm:$0xff] %v7673
        %7706 = vst [vmem:[%s529 + $0x8] sm:$0xff] %v7674
        %7707 = vst [vmem:[%s529 + $0x10] sm:$0xff] %v7675
        %7708 = vst [vmem:[%s529 + $0x18] sm:$0xff] %v7676
        %7709 = vst [vmem:[%s529 + $0x20] sm:$0xff] %v7677
        %7710 = vst [vmem:[%s529 + $0x28] sm:$0xff] %v7678
        %7711 = vst [vmem:[%s529 + $0x30] sm:$0xff] %v7679
        %7712 = vst [vmem:[%s529 + $0x38] sm:$0xff] %v7680
        %7713 = vst [vmem:[%s529 + $0x40] sm:$0xff] %v7681
        %7714 = vst [vmem:[%s529 + $0x48] sm:$0xff] %v7682
        %7715 = vst [vmem:[%s529 + $0x50] sm:$0xff] %v7683
        %7716 = vst [vmem:[%s529 + $0x58] sm:$0xff] %v7684
        %7717 = vst [vmem:[%s529 + $0x60] sm:$0xff] %v7685
        %7718 = vst [vmem:[%s529 + $0x68] sm:$0xff] %v7686
        %7719 = vst [vmem:[%s529 + $0x70] sm:$0xff] %v7687
        %7720 = vst [vmem:[%s529 + $0x78] sm:$0xff] %v7688
        %7721 = vst [vmem:[%s529 + $0x80] sm:$0xff] %v7689
        %7722 = vst [vmem:[%s529 + $0x88] sm:$0xff] %v7690
        %7723 = vst [vmem:[%s529 + $0x90] sm:$0xff] %v7691
        %7724 = vst [vmem:[%s529 + $0x98] sm:$0xff] %v7692
        %7725 = vst [vmem:[%s529 + $0xa0] sm:$0xff] %v7693
        %7726 = vst [vmem:[%s529 + $0xa8] sm:$0xff] %v7694
        %7727 = vst [vmem:[%s529 + $0xb0] sm:$0xff] %v7695
        %7728 = vst [vmem:[%s529 + $0xb8] sm:$0xff] %v7696
        %7729 = vst [vmem:[%s529 + $0xc0] sm:$0xff] %v7697
        %7730 = vst [vmem:[%s529 + $0xc8] sm:$0xff] %v7698
        %7731 = vst [vmem:[%s529 + $0xd0] sm:$0xff] %v7699
        %7732 = vst [vmem:[%s529 + $0xd8] sm:$0xff] %v7700
        %7733 = vst [vmem:[%s529 + $0xe0] sm:$0xff] %v7701
        %7734 = vst [vmem:[%s529 + $0xe8] sm:$0xff] %v7702
        %7735 = vst [vmem:[%s529 + $0xf0] sm:$0xff] %v7703
        %7736 = vst [vmem:[%s529 + $0xf8] sm:$0xff] %v7704
        %s7737 = sand.u32 %s380, 1
        %s7738 = scalar_lea.sflag [#allocation6], %s7737
        %s7739 = sand.u32 %s380, 1
        %s7740 = smul.addr %s7739, 256
        %s7741 = scalar_lea.vmem [#allocation7], %s7740
        // Predicated region
        $region89: #{tpu_custom_call.1} parent=83 // pred_check
          %p7742 = pneg %p390
        $region90: #{tpu_custom_call.1} parent=83 // pred_check_branch
          %7744 = sbr.rel (%p7742) target = $region92
        $region91: #{tpu_custom_call.1} parent=83 // pred_region
          %s7746 = ssub.s32 4096, 4096
          %7747 = vsyncadd %s7738, %s7746
          %s7748 = smul.addr %s31, 32
          %s7749 = smul.addr %s7748, 128
          %s7750 = scalar_lea.hbm %s16, %s7749
          %s7751 = sshll.u32 %s7741, 4
          %s7752 = int_to_ptr.vmem [resolvable:$true] %s7751
          %7757 = dma.vmem_to_hbm [thread:$0]  %s7752, 4096, %s7750, %s7738, 128, 128, 8
        $region92: #{tpu_custom_call.1} parent=83 // pred_fallthru
          _
      $region84: #{tpu_custom_call.1} parent=5 // pred_fallthru
        _
      %p7758 = scmp.le.s32.totalorder 2, %s26
      // Predicated region
      $region93: #{tpu_custom_call.1} parent=5 // pred_check
        %p7759 = pneg %p7758
      $region94: #{tpu_custom_call.1} parent=5 // pred_check_branch
        %7761 = sbr.rel (%p7759) target = $region96
      $region95: #{tpu_custom_call.1} parent=5 // pred_region
        %s7762 = ssub.s32 %s26, 2
        // Predicated region
        $region97: #{tpu_custom_call.1} parent=95 // pred_check
          %p7763 = pneg %p396
        $region98: #{tpu_custom_call.1} parent=95 // pred_check_branch
          %7765 = sbr.rel (%p7763) target = $region100
        $region99: #{tpu_custom_call.1} parent=95 // pred_region
          %s7766 = sand.u32 %s381, 1
          %s7767 = scalar_lea.sflag [#allocation6], %s7766
          %s7768 = sand.u32 %s381, 1
          %s7769 = smul.addr %s7768, 256
          %s7770 = scalar_lea.vmem [#allocation7], %s7769
          %7771 = dma.done %s7767, 4096
        $region100: #{tpu_custom_call.1} parent=95 // pred_fallthru
          _
      $region96: #{tpu_custom_call.1} parent=5 // pred_fallthru
        _
    $region6: #{tpu_custom_call.1} parent=1 // loop_footer
      %s30 = sadd.s32 1, %s26
    $region7: #{tpu_custom_call.1} parent=1 // loop_footer_branch
      %25 = sbr.rel target = $region3
    $region8: #{tpu_custom_call.1} parent=1 // loop_exit
      _
    %7772 = vsyncpa [#allocation5], 1
    %s7773 = scalar_lea.sflag [#allocation5], 1
    %7774 = vsyncpa %s7773, 1
    %7775 = vsyncpa [#allocation6], 1
    %s7776 = scalar_lea.sflag [#allocation6], 1
    %7777 = vsyncpa %s7776, 1

</llo_original>
